<compile_context>
chip_gen: v7x
topology: tpu7x:2x2x1
jax: 0.10.0
libtpu: 0.0.40
codegen_flags: <defaults>
</compile_context>

<pallas_src>
from functools import partial

import jax
import jax.numpy as jnp
from jax import lax
from jax.experimental import pallas as pl
from jax.experimental.pallas import tpu as pltpu


# ---------------------------------------------------------------------------
# Pallas kernels
# ---------------------------------------------------------------------------
def _conv_pool_kernel(p0_ref, p1_ref, p2_ref, p3_ref, w_ref, b_ref, o_ref):
    """Fused 3x3-conv GEMM (4 pool quadrants) + bias + ReLU + 2x2 max-pool.

    p*_ref: [M, 9*Cin] bf16 im2col patches, one per pool quadrant.
    w_ref : [9*Cin, Cout] bf16.   b_ref: [1, Cout] f32.   o_ref: [M, Cout] bf16.
    """
    w = w_ref[...]
    a0 = jnp.dot(p0_ref[...], w, preferred_element_type=jnp.float32)
    a1 = jnp.dot(p1_ref[...], w, preferred_element_type=jnp.float32)
    a2 = jnp.dot(p2_ref[...], w, preferred_element_type=jnp.float32)
    a3 = jnp.dot(p3_ref[...], w, preferred_element_type=jnp.float32)
    y = jnp.maximum(jnp.maximum(a0, a1), jnp.maximum(a2, a3))   # pool (f32)
    y = jnp.maximum(y + b_ref[...], 0.0)                        # bias + ReLU (f32)
    o_ref[...] = y.astype(o_ref.dtype)


def _fc_head_kernel(x_ref, w1_ref, b1_ref, w2_ref, b2_ref, w3_ref, b3_ref, o_ref):
    """fc1+ReLU -> fc2+ReLU -> fc3, all weights resident in VMEM."""
    h = jnp.dot(x_ref[...], w1_ref[...], preferred_element_type=jnp.float32)
    h = jnp.maximum(h + b1_ref[...], 0.0).astype(jnp.bfloat16)
    h = jnp.dot(h, w2_ref[...], preferred_element_type=jnp.float32)
    h = jnp.maximum(h + b2_ref[...], 0.0).astype(jnp.bfloat16)
    h = jnp.dot(h, w3_ref[...], preferred_element_type=jnp.float32)
    o_ref[...] = h + b3_ref[...]


# ---------------------------------------------------------------------------
# Wrappers
# ---------------------------------------------------------------------------
_VMEM_SPEC = pl.BlockSpec(memory_space=pltpu.MemorySpace.VMEM)


def _quadrant_patches(x_nhwc, Po, Qo):
    """Four [B*Po*Qo, 9*Cin] patch matrices, one per 2x2-pool quadrant.

    Tap order is (dy, dx)-major, channel-minor, matching the prepared weights.
    """
    B, H, W, C = x_nhwc.shape
    quads = []
    for u in range(2):
        for v in range(2):
            taps = []
            for dy in range(3):
                for dx in range(3):
                    r0, c0 = u + dy, v + dx
                    taps.append(lax.slice(
                        x_nhwc,
                        (0, r0, c0, 0),
                        (B, r0 + 2 * (Po - 1) + 1, c0 + 2 * (Qo - 1) + 1, C),
                        (1, 2, 2, 1)))                       # [B, Po, Qo, C]
            quads.append(jnp.concatenate(taps, axis=-1).reshape(B * Po * Qo, 9 * C))
    return quads


def conv3x3_relu_pool(x_nhwc, w2d, b):
    """Valid 3x3 conv + bias + ReLU + 2x2 max-pool (floor), fused in one call."""
    B, H, W, C = x_nhwc.shape
    Po, Qo = (H - 2) // 2, (W - 2) // 2
    Cout = w2d.shape[1]
    quads = _quadrant_patches(x_nhwc, Po, Qo)
    M = B * Po * Qo
    out = pl.pallas_call(
        _conv_pool_kernel,
        out_shape=jax.ShapeDtypeStruct((M, Cout), jnp.bfloat16),
        in_specs=[_VMEM_SPEC] * 6,
        out_specs=_VMEM_SPEC,
    )(*quads, w2d, b)
    return out.reshape(B, Po, Qo, Cout)


def fc_head(x, kp):
    B = x.shape[0]
    N_out = kp['fc3_w'].shape[1]
    return pl.pallas_call(
        _fc_head_kernel,
        out_shape=jax.ShapeDtypeStruct((B, N_out), jnp.float32),
        in_specs=[_VMEM_SPEC] * 7,
        out_specs=_VMEM_SPEC,
    )(x, kp['fc1_w'], kp['fc1_b'], kp['fc2_w'], kp['fc2_b'],
      kp['fc3_w'], kp['fc3_b'])


# ---------------------------------------------------------------------------
# Parameters
# ---------------------------------------------------------------------------
def init_params(key):
    """PyTorch-layout params, uniform(-1/sqrt(fan_in), 1/sqrt(fan_in)) init."""
    def u(k, shape, fan_in):
        bound = 1.0 / jnp.sqrt(jnp.float32(fan_in))
        return jax.random.uniform(k, shape, jnp.float32, -bound, bound)

    ks = jax.random.split(key, 12)
    return {
        'conv1_w': u(ks[0], (64, 3, 3, 3), 3 * 9),
        'conv1_b': u(ks[1], (64,), 3 * 9),
        'conv2_w': u(ks[2], (128, 64, 3, 3), 64 * 9),
        'conv2_b': u(ks[3], (128,), 64 * 9),
        'conv3_w': u(ks[4], (256, 128, 3, 3), 128 * 9),
        'conv3_b': u(ks[5], (256,), 128 * 9),
        'fc1_w': u(ks[6], (1024, 256 * 2 * 2), 256 * 2 * 2),
        'fc1_b': u(ks[7], (1024,), 256 * 2 * 2),
        'fc2_w': u(ks[8], (512, 1024), 1024),
        'fc2_b': u(ks[9], (512,), 1024),
        'fc3_w': u(ks[10], (10, 512), 512),
        'fc3_b': u(ks[11], (10,), 512),
    }


def prepare_params(p):
    """One-time weight layout conversion (hoisted out of the forward path)."""
    def conv_w(w_oihw):  # OIHW -> [kh*kw*Cin, Cout], bf16, (dy,dx)-major / chan-minor
        O = w_oihw.shape[0]
        return jnp.transpose(w_oihw, (2, 3, 1, 0)).reshape(-1, O).astype(jnp.bfloat16)

    def bias(b):
        return b.reshape(1, -1).astype(jnp.float32)

    kp = {
        'c1_w': conv_w(p['conv1_w']), 'c1_b': bias(p['conv1_b']),
        'c2_w': conv_w(p['conv2_w']), 'c2_b': bias(p['conv2_b']),
        'c3_w': conv_w(p['conv3_w']), 'c3_b': bias(p['conv3_b']),
        'fc2_w': p['fc2_w'].T.astype(jnp.bfloat16), 'fc2_b': bias(p['fc2_b']),
        'fc3_w': p['fc3_w'].T.astype(jnp.bfloat16), 'fc3_b': bias(p['fc3_b']),
        'fc1_b': bias(p['fc1_b']),
    }
    # fc1 expects torch.flatten(x,1) i.e. (C,H,W)-ordered inputs; our conv path
    # is NHWC, so permute fc1's input dim once to accept (H,W,C) order instead.
    fc1 = p['fc1_w'].reshape(1024, 256, 2, 2)              # [out, c, h, w]
    fc1 = jnp.transpose(fc1, (2, 3, 1, 0)).reshape(256 * 2 * 2, 1024)  # [(h,w,c), out]
    kp['fc1_w'] = fc1.astype(jnp.bfloat16)
    return kp


# ---------------------------------------------------------------------------
# Forward
# ---------------------------------------------------------------------------
def model_forward(x_nchw, kp):
    x = jnp.transpose(x_nchw, (0, 2, 3, 1)).astype(jnp.bfloat16)   # NCHW -> NHWC
    x = conv3x3_relu_pool(x, kp['c1_w'], kp['c1_b'])   # [B,15,15, 64]
    x = conv3x3_relu_pool(x, kp['c2_w'], kp['c2_b'])   # [B, 6, 6,128]
    x = conv3x3_relu_pool(x, kp['c3_w'], kp['c3_b'])   # [B, 2, 2,256]
    B = x.shape[0]
    x = x.reshape(B, 2 * 2 * 256)        # HWC flatten; fc1_w pre-permuted to match
    return fc_head(x, kp)                # [B, 10] f32


if __name__ == "__main__":
    key = jax.random.PRNGKey(0)
    k_param, k_x = jax.random.split(key)
    params = init_params(k_param)
    kp = prepare_params(params)
    # Spatial size 32 is implied by fc1 = Linear(256*2*2, ...): 32->30->15->13->6->4->2
    x = jax.random.normal(k_x, (2, 3, 32, 32), dtype=jnp.float32)
    out = jax.jit(model_forward)(x, kp)
    out = jax.block_until_ready(out)
    assert out.shape == (2, 10), out.shape
    print("KERNEL_OK")
</pallas_src>

<mosaic_0001>
module attributes {stable_mosaic.version = 11 : i64} {
  func.func @_conv_pool_kernel(%arg0: memref<450x27xbf16, #tpu.memory_space<vmem>>, %arg1: memref<450x27xbf16, #tpu.memory_space<vmem>>, %arg2: memref<450x27xbf16, #tpu.memory_space<vmem>>, %arg3: memref<450x27xbf16, #tpu.memory_space<vmem>>, %arg4: memref<27x64xbf16, #tpu.memory_space<vmem>>, %arg5: memref<1x64xf32, #tpu.memory_space<vmem>>, %arg6: memref<450x64xbf16, #tpu.memory_space<vmem>>) attributes {dimension_semantics = [], scalar_prefetch = 0 : i64, scratch_operands = 0 : i64, tpu.core_type = #tpu.core_type<tc>} {
    %c0 = arith.constant 0 : index
    %c0_0 = arith.constant 0 : index
    %0 = vector.load %arg4[%c0, %c0_0] : memref<27x64xbf16, #tpu.memory_space<vmem>>, vector<27x64xbf16>
    %c0_1 = arith.constant 0 : index
    %c0_2 = arith.constant 0 : index
    %1 = vector.load %arg0[%c0_1, %c0_2] : memref<450x27xbf16, #tpu.memory_space<vmem>>, vector<450x27xbf16>
    %cst = arith.constant dense<0.000000e+00> : vector<450x64xf32>
    %2 = tpu.matmul %1, %0, %cst {dimension_numbers = #tpu.dot_dimension_numbers<[1], [0], [0], [1], [0, 0, 1, 1], [], []>} : vector<450x27xbf16>, vector<27x64xbf16>, vector<450x64xf32> -> vector<450x64xf32>
    %c0_3 = arith.constant 0 : index
    %c0_4 = arith.constant 0 : index
    %3 = vector.load %arg1[%c0_3, %c0_4] : memref<450x27xbf16, #tpu.memory_space<vmem>>, vector<450x27xbf16>
    %cst_5 = arith.constant dense<0.000000e+00> : vector<450x64xf32>
    %4 = tpu.matmul %3, %0, %cst_5 {dimension_numbers = #tpu.dot_dimension_numbers<[1], [0], [0], [1], [0, 0, 1, 1], [], []>} : vector<450x27xbf16>, vector<27x64xbf16>, vector<450x64xf32> -> vector<450x64xf32>
    %c0_6 = arith.constant 0 : index
    %c0_7 = arith.constant 0 : index
    %5 = vector.load %arg2[%c0_6, %c0_7] : memref<450x27xbf16, #tpu.memory_space<vmem>>, vector<450x27xbf16>
    %cst_8 = arith.constant dense<0.000000e+00> : vector<450x64xf32>
    %6 = tpu.matmul %5, %0, %cst_8 {dimension_numbers = #tpu.dot_dimension_numbers<[1], [0], [0], [1], [0, 0, 1, 1], [], []>} : vector<450x27xbf16>, vector<27x64xbf16>, vector<450x64xf32> -> vector<450x64xf32>
    %c0_9 = arith.constant 0 : index
    %c0_10 = arith.constant 0 : index
    %7 = vector.load %arg3[%c0_9, %c0_10] : memref<450x27xbf16, #tpu.memory_space<vmem>>, vector<450x27xbf16>
    %cst_11 = arith.constant dense<0.000000e+00> : vector<450x64xf32>
    %8 = tpu.matmul %7, %0, %cst_11 {dimension_numbers = #tpu.dot_dimension_numbers<[1], [0], [0], [1], [0, 0, 1, 1], [], []>} : vector<450x27xbf16>, vector<27x64xbf16>, vector<450x64xf32> -> vector<450x64xf32>
    %9 = arith.maximumf %2, %4 : vector<450x64xf32>
    %10 = arith.maximumf %6, %8 : vector<450x64xf32>
    %11 = arith.maximumf %9, %10 : vector<450x64xf32>
    %c0_12 = arith.constant 0 : index
    %c0_13 = arith.constant 0 : index
    %12 = vector.load %arg5[%c0_12, %c0_13] : memref<1x64xf32, #tpu.memory_space<vmem>>, vector<1x64xf32>
    %13 = vector.broadcast %12 : vector<1x64xf32> to vector<450x64xf32>
    %14 = arith.addf %11, %13 : vector<450x64xf32>
    %cst_14 = arith.constant 0.000000e+00 : f32
    %15 = vector.broadcast %cst_14 : f32 to vector<450x64xf32>
    %16 = arith.maximumf %14, %15 : vector<450x64xf32>
    %17 = arith.truncf %16 : vector<450x64xf32> to vector<450x64xbf16>
    %c0_15 = arith.constant 0 : index
    %c0_16 = arith.constant 0 : index
    %18 = vector.load %arg6[%c0_15, %c0_16] : memref<450x64xbf16, #tpu.memory_space<vmem>>, vector<450x64xbf16>
    tpu.vector_store %arg6[%c0_15, %c0_16], %17 {strides = array<i32>} : memref<450x64xbf16, #tpu.memory_space<vmem>>, vector<450x64xbf16>,
    return
  }
}

module attributes {stable_mosaic.version = 11 : i64} {
  func.func @_conv_pool_kernel(%arg0: memref<72x576xbf16, #tpu.memory_space<vmem>>, %arg1: memref<72x576xbf16, #tpu.memory_space<vmem>>, %arg2: memref<72x576xbf16, #tpu.memory_space<vmem>>, %arg3: memref<72x576xbf16, #tpu.memory_space<vmem>>, %arg4: memref<576x128xbf16, #tpu.memory_space<vmem>>, %arg5: memref<1x128xf32, #tpu.memory_space<vmem>>, %arg6: memref<72x128xbf16, #tpu.memory_space<vmem>>) attributes {dimension_semantics = [], scalar_prefetch = 0 : i64, scratch_operands = 0 : i64, tpu.core_type = #tpu.core_type<tc>} {
    %c0 = arith.constant 0 : index
    %c0_0 = arith.constant 0 : index
    %0 = vector.load %arg4[%c0, %c0_0] : memref<576x128xbf16, #tpu.memory_space<vmem>>, vector<576x128xbf16>
    %c0_1 = arith.constant 0 : index
    %c0_2 = arith.constant 0 : index
    %1 = vector.load %arg0[%c0_1, %c0_2] : memref<72x576xbf16, #tpu.memory_space<vmem>>, vector<72x576xbf16>
    %cst = arith.constant dense<0.000000e+00> : vector<72x128xf32>
    %2 = tpu.matmul %1, %0, %cst {dimension_numbers = #tpu.dot_dimension_numbers<[1], [0], [0], [1], [0, 0, 1, 1], [], []>} : vector<72x576xbf16>, vector<576x128xbf16>, vector<72x128xf32> -> vector<72x128xf32>
    %c0_3 = arith.constant 0 : index
    %c0_4 = arith.constant 0 : index
    %3 = vector.load %arg1[%c0_3, %c0_4] : memref<72x576xbf16, #tpu.memory_space<vmem>>, vector<72x576xbf16>
    %cst_5 = arith.constant dense<0.000000e+00> : vector<72x128xf32>
    %4 = tpu.matmul %3, %0, %cst_5 {dimension_numbers = #tpu.dot_dimension_numbers<[1], [0], [0], [1], [0, 0, 1, 1], [], []>} : vector<72x576xbf16>, vector<576x128xbf16>, vector<72x128xf32> -> vector<72x128xf32>
    %c0_6 = arith.constant 0 : index
    %c0_7 = arith.constant 0 : index
    %5 = vector.load %arg2[%c0_6, %c0_7] : memref<72x576xbf16, #tpu.memory_space<vmem>>, vector<72x576xbf16>
    %cst_8 = arith.constant dense<0.000000e+00> : vector<72x128xf32>
    %6 = tpu.matmul %5, %0, %cst_8 {dimension_numbers = #tpu.dot_dimension_numbers<[1], [0], [0], [1], [0, 0, 1, 1], [], []>} : vector<72x576xbf16>, vector<576x128xbf16>, vector<72x128xf32> -> vector<72x128xf32>
    %c0_9 = arith.constant 0 : index
    %c0_10 = arith.constant 0 : index
    %7 = vector.load %arg3[%c0_9, %c0_10] : memref<72x576xbf16, #tpu.memory_space<vmem>>, vector<72x576xbf16>
    %cst_11 = arith.constant dense<0.000000e+00> : vector<72x128xf32>
    %8 = tpu.matmul %7, %0, %cst_11 {dimension_numbers = #tpu.dot_dimension_numbers<[1], [0], [0], [1], [0, 0, 1, 1], [], []>} : vector<72x576xbf16>, vector<576x128xbf16>, vector<72x128xf32> -> vector<72x128xf32>
    %9 = arith.maximumf %2, %4 : vector<72x128xf32>
    %10 = arith.maximumf %6, %8 : vector<72x128xf32>
    %11 = arith.maximumf %9, %10 : vector<72x128xf32>
    %c0_12 = arith.constant 0 : index
    %c0_13 = arith.constant 0 : index
    %12 = vector.load %arg5[%c0_12, %c0_13] : memref<1x128xf32, #tpu.memory_space<vmem>>, vector<1x128xf32>
    %13 = vector.broadcast %12 : vector<1x128xf32> to vector<72x128xf32>
    %14 = arith.addf %11, %13 : vector<72x128xf32>
    %cst_14 = arith.constant 0.000000e+00 : f32
    %15 = vector.broadcast %cst_14 : f32 to vector<72x128xf32>
    %16 = arith.maximumf %14, %15 : vector<72x128xf32>
    %17 = arith.truncf %16 : vector<72x128xf32> to vector<72x128xbf16>
    %c0_15 = arith.constant 0 : index
    %c0_16 = arith.constant 0 : index
    %18 = vector.load %arg6[%c0_15, %c0_16] : memref<72x128xbf16, #tpu.memory_space<vmem>>, vector<72x128xbf16>
    tpu.vector_store %arg6[%c0_15, %c0_16], %17 {strides = array<i32>} : memref<72x128xbf16, #tpu.memory_space<vmem>>, vector<72x128xbf16>,
    return
  }
}

module attributes {stable_mosaic.version = 11 : i64} {
  func.func @_conv_pool_kernel(%arg0: memref<8x1152xbf16, #tpu.memory_space<vmem>>, %arg1: memref<8x1152xbf16, #tpu.memory_space<vmem>>, %arg2: memref<8x1152xbf16, #tpu.memory_space<vmem>>, %arg3: memref<8x1152xbf16, #tpu.memory_space<vmem>>, %arg4: memref<1152x256xbf16, #tpu.memory_space<vmem>>, %arg5: memref<1x256xf32, #tpu.memory_space<vmem>>, %arg6: memref<8x256xbf16, #tpu.memory_space<vmem>>) attributes {dimension_semantics = [], scalar_prefetch = 0 : i64, scratch_operands = 0 : i64, tpu.core_type = #tpu.core_type<tc>} {
    %c0 = arith.constant 0 : index
    %c0_0 = arith.constant 0 : index
    %0 = vector.load %arg4[%c0, %c0_0] : memref<1152x256xbf16, #tpu.memory_space<vmem>>, vector<1152x256xbf16>
    %c0_1 = arith.constant 0 : index
    %c0_2 = arith.constant 0 : index
    %1 = vector.load %arg0[%c0_1, %c0_2] : memref<8x1152xbf16, #tpu.memory_space<vmem>>, vector<8x1152xbf16>
    %cst = arith.constant dense<0.000000e+00> : vector<8x256xf32>
    %2 = tpu.matmul %1, %0, %cst {dimension_numbers = #tpu.dot_dimension_numbers<[1], [0], [0], [1], [0, 0, 1, 1], [], []>} : vector<8x1152xbf16>, vector<1152x256xbf16>, vector<8x256xf32> -> vector<8x256xf32>
    %c0_3 = arith.constant 0 : index
    %c0_4 = arith.constant 0 : index
    %3 = vector.load %arg1[%c0_3, %c0_4] : memref<8x1152xbf16, #tpu.memory_space<vmem>>, vector<8x1152xbf16>
    %cst_5 = arith.constant dense<0.000000e+00> : vector<8x256xf32>
    %4 = tpu.matmul %3, %0, %cst_5 {dimension_numbers = #tpu.dot_dimension_numbers<[1], [0], [0], [1], [0, 0, 1, 1], [], []>} : vector<8x1152xbf16>, vector<1152x256xbf16>, vector<8x256xf32> -> vector<8x256xf32>
    %c0_6 = arith.constant 0 : index
    %c0_7 = arith.constant 0 : index
    %5 = vector.load %arg2[%c0_6, %c0_7] : memref<8x1152xbf16, #tpu.memory_space<vmem>>, vector<8x1152xbf16>
    %cst_8 = arith.constant dense<0.000000e+00> : vector<8x256xf32>
    %6 = tpu.matmul %5, %0, %cst_8 {dimension_numbers = #tpu.dot_dimension_numbers<[1], [0], [0], [1], [0, 0, 1, 1], [], []>} : vector<8x1152xbf16>, vector<1152x256xbf16>, vector<8x256xf32> -> vector<8x256xf32>
    %c0_9 = arith.constant 0 : index
    %c0_10 = arith.constant 0 : index
    %7 = vector.load %arg3[%c0_9, %c0_10] : memref<8x1152xbf16, #tpu.memory_space<vmem>>, vector<8x1152xbf16>
    %cst_11 = arith.constant dense<0.000000e+00> : vector<8x256xf32>
    %8 = tpu.matmul %7, %0, %cst_11 {dimension_numbers = #tpu.dot_dimension_numbers<[1], [0], [0], [1], [0, 0, 1, 1], [], []>} : vector<8x1152xbf16>, vector<1152x256xbf16>, vector<8x256xf32> -> vector<8x256xf32>
    %9 = arith.maximumf %2, %4 : vector<8x256xf32>
    %10 = arith.maximumf %6, %8 : vector<8x256xf32>
    %11 = arith.maximumf %9, %10 : vector<8x256xf32>
    %c0_12 = arith.constant 0 : index
    %c0_13 = arith.constant 0 : index
    %12 = vector.load %arg5[%c0_12, %c0_13] : memref<1x256xf32, #tpu.memory_space<vmem>>, vector<1x256xf32>
    %13 = vector.broadcast %12 : vector<1x256xf32> to vector<8x256xf32>
    %14 = arith.addf %11, %13 : vector<8x256xf32>
    %cst_14 = arith.constant 0.000000e+00 : f32
    %15 = vector.broadcast %cst_14 : f32 to vector<8x256xf32>
    %16 = arith.maximumf %14, %15 : vector<8x256xf32>
    %17 = arith.truncf %16 : vector<8x256xf32> to vector<8x256xbf16>
    %c0_15 = arith.constant 0 : index
    %c0_16 = arith.constant 0 : index
    %18 = vector.load %arg6[%c0_15, %c0_16] : memref<8x256xbf16, #tpu.memory_space<vmem>>, vector<8x256xbf16>
    tpu.vector_store %arg6[%c0_15, %c0_16], %17 {strides = array<i32>} : memref<8x256xbf16, #tpu.memory_space<vmem>>, vector<8x256xbf16>,
    return
  }
}

module attributes {stable_mosaic.version = 11 : i64} {
  func.func @_fc_head_kernel(%arg0: memref<2x1024xbf16, #tpu.memory_space<vmem>>, %arg1: memref<1024x1024xbf16, #tpu.memory_space<vmem>>, %arg2: memref<1x1024xf32, #tpu.memory_space<vmem>>, %arg3: memref<1024x512xbf16, #tpu.memory_space<vmem>>, %arg4: memref<1x512xf32, #tpu.memory_space<vmem>>, %arg5: memref<512x10xbf16, #tpu.memory_space<vmem>>, %arg6: memref<1x10xf32, #tpu.memory_space<vmem>>, %arg7: memref<2x10xf32, #tpu.memory_space<vmem>>) attributes {dimension_semantics = [], scalar_prefetch = 0 : i64, scratch_operands = 0 : i64, tpu.core_type = #tpu.core_type<tc>} {
    %c0 = arith.constant 0 : index
    %c0_0 = arith.constant 0 : index
    %0 = vector.load %arg0[%c0, %c0_0] : memref<2x1024xbf16, #tpu.memory_space<vmem>>, vector<2x1024xbf16>
    %c0_1 = arith.constant 0 : index
    %c0_2 = arith.constant 0 : index
    %1 = vector.load %arg1[%c0_1, %c0_2] : memref<1024x1024xbf16, #tpu.memory_space<vmem>>, vector<1024x1024xbf16>
    %cst = arith.constant dense<0.000000e+00> : vector<2x1024xf32>
    %2 = tpu.matmul %0, %1, %cst {dimension_numbers = #tpu.dot_dimension_numbers<[1], [0], [0], [1], [0, 0, 1, 1], [], []>} : vector<2x1024xbf16>, vector<1024x1024xbf16>, vector<2x1024xf32> -> vector<2x1024xf32>
    %c0_3 = arith.constant 0 : index
    %c0_4 = arith.constant 0 : index
    %3 = vector.load %arg2[%c0_3, %c0_4] : memref<1x1024xf32, #tpu.memory_space<vmem>>, vector<1x1024xf32>
    %4 = vector.broadcast %3 : vector<1x1024xf32> to vector<2x1024xf32>
    %5 = arith.addf %2, %4 : vector<2x1024xf32>
    %cst_5 = arith.constant 0.000000e+00 : f32
    %6 = vector.broadcast %cst_5 : f32 to vector<2x1024xf32>
    %7 = arith.maximumf %5, %6 : vector<2x1024xf32>
    %8 = arith.truncf %7 : vector<2x1024xf32> to vector<2x1024xbf16>
    %c0_6 = arith.constant 0 : index
    %c0_7 = arith.constant 0 : index
    %9 = vector.load %arg3[%c0_6, %c0_7] : memref<1024x512xbf16, #tpu.memory_space<vmem>>, vector<1024x512xbf16>
    %cst_8 = arith.constant dense<0.000000e+00> : vector<2x512xf32>
    %10 = tpu.matmul %8, %9, %cst_8 {dimension_numbers = #tpu.dot_dimension_numbers<[1], [0], [0], [1], [0, 0, 1, 1], [], []>} : vector<2x1024xbf16>, vector<1024x512xbf16>, vector<2x512xf32> -> vector<2x512xf32>
    %c0_9 = arith.constant 0 : index
    %c0_10 = arith.constant 0 : index
    %11 = vector.load %arg4[%c0_9, %c0_10] : memref<1x512xf32, #tpu.memory_space<vmem>>, vector<1x512xf32>
    %12 = vector.broadcast %11 : vector<1x512xf32> to vector<2x512xf32>
    %13 = arith.addf %10, %12 : vector<2x512xf32>
    %cst_11 = arith.constant 0.000000e+00 : f32
    %14 = vector.broadcast %cst_11 : f32 to vector<2x512xf32>
    %15 = arith.maximumf %13, %14 : vector<2x512xf32>
    %16 = arith.truncf %15 : vector<2x512xf32> to vector<2x512xbf16>
    %c0_12 = arith.constant 0 : index
    %c0_13 = arith.constant 0 : index
    %17 = vector.load %arg5[%c0_12, %c0_13] : memref<512x10xbf16, #tpu.memory_space<vmem>>, vector<512x10xbf16>
    %cst_14 = arith.constant dense<0.000000e+00> : vector<2x10xf32>
    %18 = tpu.matmul %16, %17, %cst_14 {dimension_numbers = #tpu.dot_dimension_numbers<[1], [0], [0], [1], [0, 0, 1, 1], [], []>} : vector<2x512xbf16>, vector<512x10xbf16>, vector<2x10xf32> -> vector<2x10xf32>
    %c0_15 = arith.constant 0 : index
    %c0_16 = arith.constant 0 : index
    %19 = vector.load %arg6[%c0_15, %c0_16] : memref<1x10xf32, #tpu.memory_space<vmem>>, vector<1x10xf32>
    %20 = vector.broadcast %19 : vector<1x10xf32> to vector<2x10xf32>
    %21 = arith.addf %18, %20 : vector<2x10xf32>
    %c0_17 = arith.constant 0 : index
    %c0_18 = arith.constant 0 : index
    %22 = vector.load %arg7[%c0_17, %c0_18] : memref<2x10xf32, #tpu.memory_space<vmem>>, vector<2x10xf32>
    tpu.vector_store %arg7[%c0_17, %c0_18], %21 {strides = array<i32>} : memref<2x10xf32, #tpu.memory_space<vmem>>, vector<2x10xf32>,
    return
  }
}

</mosaic_0001>

<llo_original>
// kernel: model_forward.4
$region0: #{model_forward.4}
  #allocation0 [shape = 'u32[]', space=smem, size = 0x4, offset = 0x4, fixed_abs, tag = 'smem constant byte address 0x4 - core index']
  #allocation1 [shape = 'u32[144,128]{1,0:T(1,128)}', space=vmem, size = 0x12000, scoped, tag = 'internal scratch']
  %s0 = inlined_call_operand.vmem [shape: bf16[450,27], index: 0, kind: input, shape index: {}]
  %s1 = inlined_call_operand.vmem [shape: bf16[450,27], index: 1, kind: input, shape index: {}]
  %s2 = inlined_call_operand.vmem [shape: bf16[450,27], index: 2, kind: input, shape index: {}]
  %s3 = inlined_call_operand.vmem [shape: bf16[450,27], index: 3, kind: input, shape index: {}]
  %s4 = inlined_call_operand.vmem [shape: bf16[27,64], index: 4, kind: input, shape index: {}]
  %s5 = inlined_call_operand.vmem [shape: f32[1,64], index: 5, kind: input, shape index: {}]
  %s6 = inlined_call_operand.vmem [shape: bf16[450,64], index: 6, kind: output, shape index: {}]
  %s7 = sld [smem:[#allocation0]]
  $region34: #{model_forward.4} parent=0
    _
  %s9 = ssub.s32 1, %s7
  %s10 = scalar_select 0, %s9, %s7
  // Predicated region
  $region2: #{model_forward.4} parent=0 // pred_check
    _
  $region3: #{model_forward.4} parent=0 // pred_check_branch
    %12 = sbr.rel (0) target = $region5
  $region4: #{model_forward.4} parent=0 // pred_region
    _
  $region5: #{model_forward.4} parent=0 // pred_fallthru
    _
  // Predicated region
  $region6: #{model_forward.4} parent=0 // pred_check
    _
  $region7: #{model_forward.4} parent=0 // pred_check_branch
    %14 = sbr.rel (0) target = $region9
  $region8: #{model_forward.4} parent=0 // pred_region
    _
  $region9: #{model_forward.4} parent=0 // pred_fallthru
    _
  // Predicated region
  $region10: #{model_forward.4} parent=0 // pred_check
    _
  $region11: #{model_forward.4} parent=0 // pred_check_branch
    %16 = sbr.rel (0) target = $region13
  $region12: #{model_forward.4} parent=0 // pred_region
    _
  $region13: #{model_forward.4} parent=0 // pred_fallthru
    _
  // Predicated region
  $region14: #{model_forward.4} parent=0 // pred_check
    _
  $region15: #{model_forward.4} parent=0 // pred_check_branch
    %18 = sbr.rel (0) target = $region17
  $region16: #{model_forward.4} parent=0 // pred_region
    _
  $region17: #{model_forward.4} parent=0 // pred_fallthru
    _
  // Predicated region
  $region18: #{model_forward.4} parent=0 // pred_check
    _
  $region19: #{model_forward.4} parent=0 // pred_check_branch
    %20 = sbr.rel (0) target = $region21
  $region20: #{model_forward.4} parent=0 // pred_region
    _
  $region21: #{model_forward.4} parent=0 // pred_fallthru
    _
  // Predicated region
  $region22: #{model_forward.4} parent=0 // pred_check
    _
  $region23: #{model_forward.4} parent=0 // pred_check_branch
    %22 = sbr.rel (0) target = $region25
  $region24: #{model_forward.4} parent=0 // pred_region
    _
  $region25: #{model_forward.4} parent=0 // pred_fallthru
    _
  %v24 = vld [vmem:[%s4] sm:$0xf]
  %v25 = vld [vmem:[%s4 + $0x4] sm:$0xf]
  %v26 = vld [vmem:[%s4 + $0x8] sm:$0xf]
  %v27 = vld [vmem:[%s4 + $0xc] sm:$0x3]
  %v28 = vld [vmem:[%s0] sm:$0xf]
  %v29 = vld [vmem:[%s0 + $0x4] sm:$0xf]
  %v30 = vld [vmem:[%s0 + $0x8] sm:$0xf]
  %v31 = vld [vmem:[%s0 + $0xc] sm:$0xf]
  %v32 = vld [vmem:[%s0 + $0x10] sm:$0xf]
  %v33 = vld [vmem:[%s0 + $0x14] sm:$0xf]
  %v34 = vld [vmem:[%s0 + $0x18] sm:$0xf]
  %v35 = vld [vmem:[%s0 + $0x1c] sm:$0xf]
  %v36 = vld [vmem:[%s0 + $0x20] sm:$0xf]
  %v37 = vld [vmem:[%s0 + $0x24] sm:$0xf]
  %v38 = vld [vmem:[%s0 + $0x28] sm:$0xf]
  %v39 = vld [vmem:[%s0 + $0x2c] sm:$0xf]
  %v40 = vld [vmem:[%s0 + $0x30] sm:$0xf]
  %v41 = vld [vmem:[%s0 + $0x34] sm:$0xf]
  %v42 = vld [vmem:[%s0 + $0x38] sm:$0xf]
  %v43 = vld [vmem:[%s0 + $0x3c] sm:$0xf]
  %v44 = vld [vmem:[%s0 + $0x40] sm:$0xf]
  %v45 = vld [vmem:[%s0 + $0x44] sm:$0xf]
  %v46 = vld [vmem:[%s0 + $0x48] sm:$0xf]
  %v47 = vld [vmem:[%s0 + $0x4c] sm:$0xf]
  %v48 = vld [vmem:[%s0 + $0x50] sm:$0xf]
  %v49 = vld [vmem:[%s0 + $0x54] sm:$0xf]
  %v50 = vld [vmem:[%s0 + $0x58] sm:$0xf]
  %v51 = vld [vmem:[%s0 + $0x5c] sm:$0xf]
  %v52 = vld [vmem:[%s0 + $0x60] sm:$0xf]
  %v53 = vld [vmem:[%s0 + $0x64] sm:$0xf]
  %v54 = vld [vmem:[%s0 + $0x68] sm:$0xf]
  %v55 = vld [vmem:[%s0 + $0x6c] sm:$0xf]
  %v56 = vld [vmem:[%s0 + $0x70] sm:$0xf]
  %v57 = vld [vmem:[%s0 + $0x74] sm:$0xf]
  %v58 = vld [vmem:[%s0 + $0x78] sm:$0xf]
  %v59 = vld [vmem:[%s0 + $0x7c] sm:$0xf]
  %v60 = vld [vmem:[%s0 + $0x80] sm:$0xf]
  %v61 = vld [vmem:[%s0 + $0x84] sm:$0xf]
  %v62 = vld [vmem:[%s0 + $0x88] sm:$0xf]
  %v63 = vld [vmem:[%s0 + $0x8c] sm:$0xf]
  %v64 = vld [vmem:[%s0 + $0x90] sm:$0xf]
  %v65 = vld [vmem:[%s0 + $0x94] sm:$0xf]
  %v66 = vld [vmem:[%s0 + $0x98] sm:$0xf]
  %v67 = vld [vmem:[%s0 + $0x9c] sm:$0xf]
  %v68 = vld [vmem:[%s0 + $0xa0] sm:$0xf]
  %v69 = vld [vmem:[%s0 + $0xa4] sm:$0xf]
  %v70 = vld [vmem:[%s0 + $0xa8] sm:$0xf]
  %v71 = vld [vmem:[%s0 + $0xac] sm:$0xf]
  %v72 = vld [vmem:[%s0 + $0xb0] sm:$0xf]
  %v73 = vld [vmem:[%s0 + $0xb4] sm:$0xf]
  %v74 = vld [vmem:[%s0 + $0xb8] sm:$0xf]
  %v75 = vld [vmem:[%s0 + $0xbc] sm:$0xf]
  %v76 = vld [vmem:[%s0 + $0xc0] sm:$0xf]
  %v77 = vld [vmem:[%s0 + $0xc4] sm:$0xf]
  %v78 = vld [vmem:[%s0 + $0xc8] sm:$0xf]
  %v79 = vld [vmem:[%s0 + $0xcc] sm:$0xf]
  %v80 = vld [vmem:[%s0 + $0xd0] sm:$0xf]
  %v81 = vld [vmem:[%s0 + $0xd4] sm:$0xf]
  %v82 = vld [vmem:[%s0 + $0xd8] sm:$0xf]
  %v83 = vld [vmem:[%s0 + $0xdc] sm:$0xf]
  %v84 = vld [vmem:[%s0 + $0xe0] sm:$0x1]
  %v142 = vunpack.c.l.b16 %v28
  %v143 = vunpack.c.l.b16 %v29
  %v144 = vunpack.c.l.b16 %v30
  %v145 = vunpack.c.l.b16 %v31
  %v146 = vunpack.c.l.b16 %v32
  %v147 = vunpack.c.l.b16 %v33
  %v148 = vunpack.c.l.b16 %v34
  %v149 = vunpack.c.l.b16 %v35
  %v150 = vunpack.c.l.b16 %v36
  %v151 = vunpack.c.l.b16 %v37
  %v152 = vunpack.c.l.b16 %v38
  %v153 = vunpack.c.l.b16 %v39
  %v154 = vunpack.c.l.b16 %v40
  %v155 = vunpack.c.l.b16 %v41
  %v156 = vunpack.c.l.b16 %v42
  %v157 = vunpack.c.l.b16 %v43
  %v158 = vunpack.c.l.b16 %v44
  %v159 = vunpack.c.l.b16 %v45
  %v160 = vunpack.c.l.b16 %v46
  %v161 = vunpack.c.l.b16 %v47
  %v162 = vunpack.c.l.b16 %v48
  %v163 = vunpack.c.l.b16 %v49
  %v164 = vunpack.c.l.b16 %v50
  %v165 = vunpack.c.l.b16 %v51
  %v166 = vunpack.c.l.b16 %v52
  %v167 = vunpack.c.l.b16 %v53
  %v168 = vunpack.c.l.b16 %v54
  %v169 = vunpack.c.l.b16 %v55
  %v170 = vunpack.c.l.b16 %v56
  %v171 = vunpack.c.l.b16 %v57
  %v172 = vunpack.c.l.b16 %v58
  %v173 = vunpack.c.l.b16 %v59
  %v174 = vunpack.c.l.b16 %v60
  %v175 = vunpack.c.l.b16 %v61
  %v176 = vunpack.c.l.b16 %v62
  %v177 = vunpack.c.l.b16 %v63
  %v178 = vunpack.c.l.b16 %v64
  %v179 = vunpack.c.l.b16 %v65
  %v180 = vunpack.c.l.b16 %v66
  %v181 = vunpack.c.l.b16 %v67
  %v182 = vunpack.c.l.b16 %v68
  %v183 = vunpack.c.l.b16 %v69
  %v184 = vunpack.c.l.b16 %v70
  %v185 = vunpack.c.l.b16 %v71
  %v186 = vunpack.c.l.b16 %v72
  %v187 = vunpack.c.l.b16 %v73
  %v188 = vunpack.c.l.b16 %v74
  %v189 = vunpack.c.l.b16 %v75
  %v190 = vunpack.c.l.b16 %v76
  %v191 = vunpack.c.l.b16 %v77
  %v192 = vunpack.c.l.b16 %v78
  %v193 = vunpack.c.l.b16 %v79
  %v194 = vunpack.c.l.b16 %v80
  %v195 = vunpack.c.l.b16 %v81
  %v196 = vunpack.c.l.b16 %v82
  %v197 = vunpack.c.l.b16 %v83
  %v198 = vunpack.c.l.b16 %v84
  %v199 = vpack.c.b16 %v143, %v142
  %v200 = vpack.c.b16 %v145, %v144
  %v201 = vpack.c.b16 %v147, %v146
  %v202 = vpack.c.b16 %v149, %v148
  %v203 = vpack.c.b16 %v151, %v150
  %v204 = vpack.c.b16 %v153, %v152
  %v205 = vpack.c.b16 %v155, %v154
  %v206 = vpack.c.b16 %v157, %v156
  %v207 = vpack.c.b16 %v159, %v158
  %v208 = vpack.c.b16 %v161, %v160
  %v209 = vpack.c.b16 %v163, %v162
  %v210 = vpack.c.b16 %v165, %v164
  %v211 = vpack.c.b16 %v167, %v166
  %v212 = vpack.c.b16 %v169, %v168
  %v213 = vpack.c.b16 %v171, %v170
  %v214 = vpack.c.b16 %v173, %v172
  %v215 = vpack.c.b16 %v175, %v174
  %v216 = vpack.c.b16 %v177, %v176
  %v217 = vpack.c.b16 %v179, %v178
  %v218 = vpack.c.b16 %v181, %v180
  %v219 = vpack.c.b16 %v183, %v182
  %v220 = vpack.c.b16 %v185, %v184
  %v221 = vpack.c.b16 %v187, %v186
  %v222 = vpack.c.b16 %v189, %v188
  %v223 = vpack.c.b16 %v191, %v190
  %v224 = vpack.c.b16 %v193, %v192
  %v225 = vpack.c.b16 %v195, %v194
  %v226 = vpack.c.b16 %v197, %v196
  %v227 = vpack.c.b16 %v198, %v198
  %v232 = vunpack.c.l.b16 %v24
  %v233 = vunpack.c.l.b16 %v25
  %v234 = vunpack.c.l.b16 %v26
  %v235 = vunpack.c.l.b16 %v27
  %v236 = vpack.c.b16 %v233, %v232
  %v237 = vpack.c.b16 %v235, %v234
  %vm239 = vcmask 220160
  %v241 = vsel %vm239, %v199, 0
  %v244 = vsel %vm239, %v200, 0
  %v247 = vsel %vm239, %v201, 0
  %v250 = vsel %vm239, %v202, 0
  %v253 = vsel %vm239, %v203, 0
  %v256 = vsel %vm239, %v204, 0
  %v259 = vsel %vm239, %v205, 0
  %v262 = vsel %vm239, %v206, 0
  %v265 = vsel %vm239, %v207, 0
  %v268 = vsel %vm239, %v208, 0
  %v271 = vsel %vm239, %v209, 0
  %v274 = vsel %vm239, %v210, 0
  %v277 = vsel %vm239, %v211, 0
  %v280 = vsel %vm239, %v212, 0
  %v283 = vsel %vm239, %v213, 0
  %v286 = vsel %vm239, %v214, 0
  %v289 = vsel %vm239, %v215, 0
  %v292 = vsel %vm239, %v216, 0
  %v295 = vsel %vm239, %v217, 0
  %v298 = vsel %vm239, %v218, 0
  %v301 = vsel %vm239, %v219, 0
  %v304 = vsel %vm239, %v220, 0
  %v307 = vsel %vm239, %v221, 0
  %v310 = vsel %vm239, %v222, 0
  %v313 = vsel %vm239, %v223, 0
  %v316 = vsel %vm239, %v224, 0
  %v319 = vsel %vm239, %v225, 0
  %v322 = vsel %vm239, %v226, 0
  %v325 = vsel %vm239, %v227, 0
  %vm327 = vcmask 1044480
  %vm328 = vcmask 1045504
  %v329 = vsel %vm327, 4294967295, 65535
  %v330 = vsel %vm328, %v329, 0
  %v332 = vand.u32 %v237, %v330
  %334 = vmatprep.subr.bf16.mxu0 0
  %335 = vmatpush1.bf16.msra.mxu0 %v236
  %336 = vmatprep.subr.bf16.mxu0 0
  %337 = vmatpush1.bf16.msra.mxu0 %v332
  %338 = vmatprep.subr.bf16.mxu0 0
  %339 = vmatpush1.bf16.msra.mxu0 0
  %340 = vmatprep.subr.bf16.mxu0 0
  %341 = vmatpush1.bf16.msra.mxu0 0
  %342 = vmatprep.subr.bf16.mxu0 0
  %343 = vmatpush1.bf16.msra.mxu0 0
  %344 = vmatprep.subr.bf16.mxu0 0
  %345 = vmatpush1.bf16.msra.mxu0 0
  %346 = vmatprep.subr.bf16.mxu0 0
  %347 = vmatpush1.bf16.msra.mxu0 0
  %348 = vmatprep.subr.bf16.mxu0 0
  %349 = vmatpush1.bf16.msra.mxu0 0
  %350 = vmatprep.subr.bf16.mxu0 0
  %351 = vmatpush1.bf16.msra.mxu0 0
  %352 = vmatprep.subr.bf16.mxu0 0
  %353 = vmatpush1.bf16.msra.mxu0 0
  %354 = vmatprep.subr.bf16.mxu0 0
  %355 = vmatpush1.bf16.msra.mxu0 0
  %356 = vmatprep.subr.bf16.mxu0 0
  %357 = vmatpush1.bf16.msra.mxu0 0
  %358 = vmatprep.subr.bf16.mxu0 0
  %359 = vmatpush1.bf16.msra.mxu0 0
  %360 = vmatprep.subr.bf16.mxu0 0
  %361 = vmatpush1.bf16.msra.mxu0 0
  %362 = vmatprep.subr.bf16.mxu0 0
  %363 = vmatpush1.bf16.msra.mxu0 0
  %364 = vmatprep.subr.bf16.mxu0 0
  %365 = vmatpush1.bf16.msra.mxu0 0
  %366 = vmatprep.mubr.bf16.mxu0 0
  %367 = vmatmul.mubr.bf16.gmra.mrb[0].mxu0 %v241
  %v368 = vpop.f32.mrb[0].mxu0
  %v369 = vadd.f32 0.0, %v368
  %v370 = vpop.f32.mrb[0].mxu0
  %v371 = vpop.f32.mrb[0].mxu0
  %v372 = vadd.f32 0.0, %v371
  %v373 = vpop.f32.mrb[0].mxu0
  %374 = vmatprep.mubr.bf16.mxu0 0
  %375 = vmatmul.mubr.bf16.gmra.mrb[0].mxu0 %v244
  %v376 = vpop.f32.mrb[0].mxu0
  %v377 = vadd.f32 0.0, %v376
  %v378 = vpop.f32.mrb[0].mxu0
  %v379 = vpop.f32.mrb[0].mxu0
  %v380 = vadd.f32 0.0, %v379
  %v381 = vpop.f32.mrb[0].mxu0
  %382 = vmatprep.mubr.bf16.mxu0 0
  %383 = vmatmul.mubr.bf16.gmra.mrb[0].mxu0 %v247
  %v384 = vpop.f32.mrb[0].mxu0
  %v385 = vadd.f32 0.0, %v384
  %v386 = vpop.f32.mrb[0].mxu0
  %v387 = vpop.f32.mrb[0].mxu0
  %v388 = vadd.f32 0.0, %v387
  %v389 = vpop.f32.mrb[0].mxu0
  %390 = vmatprep.mubr.bf16.mxu0 0
  %391 = vmatmul.mubr.bf16.gmra.mrb[0].mxu0 %v250
  %v392 = vpop.f32.mrb[0].mxu0
  %v393 = vadd.f32 0.0, %v392
  %v394 = vpop.f32.mrb[0].mxu0
  %v395 = vpop.f32.mrb[0].mxu0
  %v396 = vadd.f32 0.0, %v395
  %v397 = vpop.f32.mrb[0].mxu0
  %398 = vmatprep.mubr.bf16.mxu0 0
  %399 = vmatmul.mubr.bf16.gmra.mrb[0].mxu0 %v253
  %v400 = vpop.f32.mrb[0].mxu0
  %v401 = vadd.f32 0.0, %v400
  %v402 = vpop.f32.mrb[0].mxu0
  %v403 = vpop.f32.mrb[0].mxu0
  %v404 = vadd.f32 0.0, %v403
  %v405 = vpop.f32.mrb[0].mxu0
  %406 = vmatprep.mubr.bf16.mxu0 0
  %407 = vmatmul.mubr.bf16.gmra.mrb[0].mxu0 %v256
  %v408 = vpop.f32.mrb[0].mxu0
  %v409 = vadd.f32 0.0, %v408
  %v410 = vpop.f32.mrb[0].mxu0
  %v411 = vpop.f32.mrb[0].mxu0
  %v412 = vadd.f32 0.0, %v411
  %v413 = vpop.f32.mrb[0].mxu0
  %414 = vmatprep.mubr.bf16.mxu0 0
  %415 = vmatmul.mubr.bf16.gmra.mrb[0].mxu0 %v259
  %v416 = vpop.f32.mrb[0].mxu0
  %v417 = vadd.f32 0.0, %v416
  %v418 = vpop.f32.mrb[0].mxu0
  %v419 = vpop.f32.mrb[0].mxu0
  %v420 = vadd.f32 0.0, %v419
  %v421 = vpop.f32.mrb[0].mxu0
  %422 = vmatprep.mubr.bf16.mxu0 0
  %423 = vmatmul.mubr.bf16.gmra.mrb[0].mxu0 %v262
  %v424 = vpop.f32.mrb[0].mxu0
  %v425 = vadd.f32 0.0, %v424
  %v426 = vpop.f32.mrb[0].mxu0
  %v427 = vpop.f32.mrb[0].mxu0
  %v428 = vadd.f32 0.0, %v427
  %v429 = vpop.f32.mrb[0].mxu0
  %430 = vmatprep.mubr.bf16.mxu0 0
  %431 = vmatmul.mubr.bf16.gmra.mrb[0].mxu0 %v265
  %v432 = vpop.f32.mrb[0].mxu0
  %v433 = vadd.f32 0.0, %v432
  %v434 = vpop.f32.mrb[0].mxu0
  %v435 = vpop.f32.mrb[0].mxu0
  %v436 = vadd.f32 0.0, %v435
  %v437 = vpop.f32.mrb[0].mxu0
  %438 = vmatprep.mubr.bf16.mxu0 0
  %439 = vmatmul.mubr.bf16.gmra.mrb[0].mxu0 %v268
  %v440 = vpop.f32.mrb[0].mxu0
  %v441 = vadd.f32 0.0, %v440
  %v442 = vpop.f32.mrb[0].mxu0
  %v443 = vpop.f32.mrb[0].mxu0
  %v444 = vadd.f32 0.0, %v443
  %v445 = vpop.f32.mrb[0].mxu0
  %446 = vmatprep.mubr.bf16.mxu0 0
  %447 = vmatmul.mubr.bf16.gmra.mrb[0].mxu0 %v271
  %v448 = vpop.f32.mrb[0].mxu0
  %v449 = vadd.f32 0.0, %v448
  %v450 = vpop.f32.mrb[0].mxu0
  %v451 = vpop.f32.mrb[0].mxu0
  %v452 = vadd.f32 0.0, %v451
  %v453 = vpop.f32.mrb[0].mxu0
  %454 = vmatprep.mubr.bf16.mxu0 0
  %455 = vmatmul.mubr.bf16.gmra.mrb[0].mxu0 %v274
  %v456 = vpop.f32.mrb[0].mxu0
  %v457 = vadd.f32 0.0, %v456
  %v458 = vpop.f32.mrb[0].mxu0
  %v459 = vpop.f32.mrb[0].mxu0
  %v460 = vadd.f32 0.0, %v459
  %v461 = vpop.f32.mrb[0].mxu0
  %462 = vmatprep.mubr.bf16.mxu0 0
  %463 = vmatmul.mubr.bf16.gmra.mrb[0].mxu0 %v277
  %v464 = vpop.f32.mrb[0].mxu0
  %v465 = vadd.f32 0.0, %v464
  %v466 = vpop.f32.mrb[0].mxu0
  %v467 = vpop.f32.mrb[0].mxu0
  %v468 = vadd.f32 0.0, %v467
  %v469 = vpop.f32.mrb[0].mxu0
  %470 = vmatprep.mubr.bf16.mxu0 0
  %471 = vmatmul.mubr.bf16.gmra.mrb[0].mxu0 %v280
  %v472 = vpop.f32.mrb[0].mxu0
  %v473 = vadd.f32 0.0, %v472
  %v474 = vpop.f32.mrb[0].mxu0
  %v475 = vpop.f32.mrb[0].mxu0
  %v476 = vadd.f32 0.0, %v475
  %v477 = vpop.f32.mrb[0].mxu0
  %478 = vmatprep.mubr.bf16.mxu0 0
  %479 = vmatmul.mubr.bf16.gmra.mrb[0].mxu0 %v283
  %v480 = vpop.f32.mrb[0].mxu0
  %v481 = vadd.f32 0.0, %v480
  %v482 = vpop.f32.mrb[0].mxu0
  %v483 = vpop.f32.mrb[0].mxu0
  %v484 = vadd.f32 0.0, %v483
  %v485 = vpop.f32.mrb[0].mxu0
  %486 = vmatprep.mubr.bf16.mxu0 0
  %487 = vmatmul.mubr.bf16.gmra.mrb[0].mxu0 %v286
  %v488 = vpop.f32.mrb[0].mxu0
  %v489 = vadd.f32 0.0, %v488
  %v490 = vpop.f32.mrb[0].mxu0
  %v491 = vpop.f32.mrb[0].mxu0
  %v492 = vadd.f32 0.0, %v491
  %v493 = vpop.f32.mrb[0].mxu0
  %494 = vmatprep.mubr.bf16.mxu0 0
  %495 = vmatmul.mubr.bf16.gmra.mrb[0].mxu0 %v289
  %v496 = vpop.f32.mrb[0].mxu0
  %v497 = vadd.f32 0.0, %v496
  %v498 = vpop.f32.mrb[0].mxu0
  %v499 = vpop.f32.mrb[0].mxu0
  %v500 = vadd.f32 0.0, %v499
  %v501 = vpop.f32.mrb[0].mxu0
  %502 = vmatprep.mubr.bf16.mxu0 0
  %503 = vmatmul.mubr.bf16.gmra.mrb[0].mxu0 %v292
  %v504 = vpop.f32.mrb[0].mxu0
  %v505 = vadd.f32 0.0, %v504
  %v506 = vpop.f32.mrb[0].mxu0
  %v507 = vpop.f32.mrb[0].mxu0
  %v508 = vadd.f32 0.0, %v507
  %v509 = vpop.f32.mrb[0].mxu0
  %510 = vmatprep.mubr.bf16.mxu0 0
  %511 = vmatmul.mubr.bf16.gmra.mrb[0].mxu0 %v295
  %v512 = vpop.f32.mrb[0].mxu0
  %v513 = vadd.f32 0.0, %v512
  %v514 = vpop.f32.mrb[0].mxu0
  %v515 = vpop.f32.mrb[0].mxu0
  %v516 = vadd.f32 0.0, %v515
  %v517 = vpop.f32.mrb[0].mxu0
  %518 = vmatprep.mubr.bf16.mxu0 0
  %519 = vmatmul.mubr.bf16.gmra.mrb[0].mxu0 %v298
  %v520 = vpop.f32.mrb[0].mxu0
  %v521 = vadd.f32 0.0, %v520
  %v522 = vpop.f32.mrb[0].mxu0
  %v523 = vpop.f32.mrb[0].mxu0
  %v524 = vadd.f32 0.0, %v523
  %v525 = vpop.f32.mrb[0].mxu0
  %526 = vmatprep.mubr.bf16.mxu0 0
  %527 = vmatmul.mubr.bf16.gmra.mrb[0].mxu0 %v301
  %v528 = vpop.f32.mrb[0].mxu0
  %v529 = vadd.f32 0.0, %v528
  %v530 = vpop.f32.mrb[0].mxu0
  %v531 = vpop.f32.mrb[0].mxu0
  %v532 = vadd.f32 0.0, %v531
  %v533 = vpop.f32.mrb[0].mxu0
  %534 = vmatprep.mubr.bf16.mxu0 0
  %535 = vmatmul.mubr.bf16.gmra.mrb[0].mxu0 %v304
  %v536 = vpop.f32.mrb[0].mxu0
  %v537 = vadd.f32 0.0, %v536
  %v538 = vpop.f32.mrb[0].mxu0
  %v539 = vpop.f32.mrb[0].mxu0
  %v540 = vadd.f32 0.0, %v539
  %v541 = vpop.f32.mrb[0].mxu0
  %542 = vmatprep.mubr.bf16.mxu0 0
  %543 = vmatmul.mubr.bf16.gmra.mrb[0].mxu0 %v307
  %v544 = vpop.f32.mrb[0].mxu0
  %v545 = vadd.f32 0.0, %v544
  %v546 = vpop.f32.mrb[0].mxu0
  %v547 = vpop.f32.mrb[0].mxu0
  %v548 = vadd.f32 0.0, %v547
  %v549 = vpop.f32.mrb[0].mxu0
  %550 = vmatprep.mubr.bf16.mxu0 0
  %551 = vmatmul.mubr.bf16.gmra.mrb[0].mxu0 %v310
  %v552 = vpop.f32.mrb[0].mxu0
  %v553 = vadd.f32 0.0, %v552
  %v554 = vpop.f32.mrb[0].mxu0
  %v555 = vpop.f32.mrb[0].mxu0
  %v556 = vadd.f32 0.0, %v555
  %v557 = vpop.f32.mrb[0].mxu0
  %558 = vmatprep.mubr.bf16.mxu0 0
  %559 = vmatmul.mubr.bf16.gmra.mrb[0].mxu0 %v313
  %v560 = vpop.f32.mrb[0].mxu0
  %v561 = vadd.f32 0.0, %v560
  %v562 = vpop.f32.mrb[0].mxu0
  %v563 = vpop.f32.mrb[0].mxu0
  %v564 = vadd.f32 0.0, %v563
  %v565 = vpop.f32.mrb[0].mxu0
  %566 = vmatprep.mubr.bf16.mxu0 0
  %567 = vmatmul.mubr.bf16.gmra.mrb[0].mxu0 %v316
  %v568 = vpop.f32.mrb[0].mxu0
  %v569 = vadd.f32 0.0, %v568
  %v570 = vpop.f32.mrb[0].mxu0
  %v571 = vpop.f32.mrb[0].mxu0
  %v572 = vadd.f32 0.0, %v571
  %v573 = vpop.f32.mrb[0].mxu0
  %574 = vmatprep.mubr.bf16.mxu0 0
  %575 = vmatmul.mubr.bf16.gmra.mrb[0].mxu0 %v319
  %v576 = vpop.f32.mrb[0].mxu0
  %v577 = vadd.f32 0.0, %v576
  %v578 = vpop.f32.mrb[0].mxu0
  %v579 = vpop.f32.mrb[0].mxu0
  %v580 = vadd.f32 0.0, %v579
  %v581 = vpop.f32.mrb[0].mxu0
  %582 = vmatprep.mubr.bf16.mxu0 0
  %583 = vmatmul.mubr.bf16.gmra.mrb[0].mxu0 %v322
  %v584 = vpop.f32.mrb[0].mxu0
  %v585 = vadd.f32 0.0, %v584
  %v586 = vpop.f32.mrb[0].mxu0
  %v587 = vpop.f32.mrb[0].mxu0
  %v588 = vadd.f32 0.0, %v587
  %v589 = vpop.f32.mrb[0].mxu0
  %590 = vmatprep.mubr.bf16.mxu0 0
  %591 = vmatmul.mubr.bf16.gmra.mrb[0].mxu0 %v325
  %v592 = vpop.f32.mrb[0].mxu0
  %v593 = vadd.f32 0.0, %v592
  %v594 = vpop.f32.mrb[0].mxu0
  %v595 = vpop.f32.mrb[0].mxu0
  %v596 = vpop.f32.mrb[0].mxu0
  %597 = vdwg.mxu0
  %v598 = vld [vmem:[%s1] sm:$0xf]
  %v599 = vld [vmem:[%s1 + $0x4] sm:$0xf]
  %v600 = vld [vmem:[%s1 + $0x8] sm:$0xf]
  %v601 = vld [vmem:[%s1 + $0xc] sm:$0xf]
  %v602 = vld [vmem:[%s1 + $0x10] sm:$0xf]
  %v603 = vld [vmem:[%s1 + $0x14] sm:$0xf]
  %v604 = vld [vmem:[%s1 + $0x18] sm:$0xf]
  %v605 = vld [vmem:[%s1 + $0x1c] sm:$0xf]
  %v606 = vld [vmem:[%s1 + $0x20] sm:$0xf]
  %v607 = vld [vmem:[%s1 + $0x24] sm:$0xf]
  %v608 = vld [vmem:[%s1 + $0x28] sm:$0xf]
  %v609 = vld [vmem:[%s1 + $0x2c] sm:$0xf]
  %v610 = vld [vmem:[%s1 + $0x30] sm:$0xf]
  %v611 = vld [vmem:[%s1 + $0x34] sm:$0xf]
  %v612 = vld [vmem:[%s1 + $0x38] sm:$0xf]
  %v613 = vld [vmem:[%s1 + $0x3c] sm:$0xf]
  %v614 = vld [vmem:[%s1 + $0x40] sm:$0xf]
  %v615 = vld [vmem:[%s1 + $0x44] sm:$0xf]
  %v616 = vld [vmem:[%s1 + $0x48] sm:$0xf]
  %v617 = vld [vmem:[%s1 + $0x4c] sm:$0xf]
  %v618 = vld [vmem:[%s1 + $0x50] sm:$0xf]
  %v619 = vld [vmem:[%s1 + $0x54] sm:$0xf]
  %v620 = vld [vmem:[%s1 + $0x58] sm:$0xf]
  %v621 = vld [vmem:[%s1 + $0x5c] sm:$0xf]
  %v622 = vld [vmem:[%s1 + $0x60] sm:$0xf]
  %v623 = vld [vmem:[%s1 + $0x64] sm:$0xf]
  %v624 = vld [vmem:[%s1 + $0x68] sm:$0xf]
  %v625 = vld [vmem:[%s1 + $0x6c] sm:$0xf]
  %v626 = vld [vmem:[%s1 + $0x70] sm:$0xf]
  %v627 = vld [vmem:[%s1 + $0x74] sm:$0xf]
  %v628 = vld [vmem:[%s1 + $0x78] sm:$0xf]
  %v629 = vld [vmem:[%s1 + $0x7c] sm:$0xf]
  %v630 = vld [vmem:[%s1 + $0x80] sm:$0xf]
  %v631 = vld [vmem:[%s1 + $0x84] sm:$0xf]
  %v632 = vld [vmem:[%s1 + $0x88] sm:$0xf]
  %v633 = vld [vmem:[%s1 + $0x8c] sm:$0xf]
  %v634 = vld [vmem:[%s1 + $0x90] sm:$0xf]
  %v635 = vld [vmem:[%s1 + $0x94] sm:$0xf]
  %v636 = vld [vmem:[%s1 + $0x98] sm:$0xf]
  %v637 = vld [vmem:[%s1 + $0x9c] sm:$0xf]
  %v638 = vld [vmem:[%s1 + $0xa0] sm:$0xf]
  %v639 = vld [vmem:[%s1 + $0xa4] sm:$0xf]
  %v640 = vld [vmem:[%s1 + $0xa8] sm:$0xf]
  %v641 = vld [vmem:[%s1 + $0xac] sm:$0xf]
  %v642 = vld [vmem:[%s1 + $0xb0] sm:$0xf]
  %v643 = vld [vmem:[%s1 + $0xb4] sm:$0xf]
  %v644 = vld [vmem:[%s1 + $0xb8] sm:$0xf]
  %v645 = vld [vmem:[%s1 + $0xbc] sm:$0xf]
  %v646 = vld [vmem:[%s1 + $0xc0] sm:$0xf]
  %v647 = vld [vmem:[%s1 + $0xc4] sm:$0xf]
  %v648 = vld [vmem:[%s1 + $0xc8] sm:$0xf]
  %v649 = vld [vmem:[%s1 + $0xcc] sm:$0xf]
  %v650 = vld [vmem:[%s1 + $0xd0] sm:$0xf]
  %v651 = vld [vmem:[%s1 + $0xd4] sm:$0xf]
  %v652 = vld [vmem:[%s1 + $0xd8] sm:$0xf]
  %v653 = vld [vmem:[%s1 + $0xdc] sm:$0xf]
  %v654 = vld [vmem:[%s1 + $0xe0] sm:$0x1]
  %v712 = vunpack.c.l.b16 %v598
  %v713 = vunpack.c.l.b16 %v599
  %v714 = vunpack.c.l.b16 %v600
  %v715 = vunpack.c.l.b16 %v601
  %v716 = vunpack.c.l.b16 %v602
  %v717 = vunpack.c.l.b16 %v603
  %v718 = vunpack.c.l.b16 %v604
  %v719 = vunpack.c.l.b16 %v605
  %v720 = vunpack.c.l.b16 %v606
  %v721 = vunpack.c.l.b16 %v607
  %v722 = vunpack.c.l.b16 %v608
  %v723 = vunpack.c.l.b16 %v609
  %v724 = vunpack.c.l.b16 %v610
  %v725 = vunpack.c.l.b16 %v611
  %v726 = vunpack.c.l.b16 %v612
  %v727 = vunpack.c.l.b16 %v613
  %v728 = vunpack.c.l.b16 %v614
  %v729 = vunpack.c.l.b16 %v615
  %v730 = vunpack.c.l.b16 %v616
  %v731 = vunpack.c.l.b16 %v617
  %v732 = vunpack.c.l.b16 %v618
  %v733 = vunpack.c.l.b16 %v619
  %v734 = vunpack.c.l.b16 %v620
  %v735 = vunpack.c.l.b16 %v621
  %v736 = vunpack.c.l.b16 %v622
  %v737 = vunpack.c.l.b16 %v623
  %v738 = vunpack.c.l.b16 %v624
  %v739 = vunpack.c.l.b16 %v625
  %v740 = vunpack.c.l.b16 %v626
  %v741 = vunpack.c.l.b16 %v627
  %v742 = vunpack.c.l.b16 %v628
  %v743 = vunpack.c.l.b16 %v629
  %v744 = vunpack.c.l.b16 %v630
  %v745 = vunpack.c.l.b16 %v631
  %v746 = vunpack.c.l.b16 %v632
  %v747 = vunpack.c.l.b16 %v633
  %v748 = vunpack.c.l.b16 %v634
  %v749 = vunpack.c.l.b16 %v635
  %v750 = vunpack.c.l.b16 %v636
  %v751 = vunpack.c.l.b16 %v637
  %v752 = vunpack.c.l.b16 %v638
  %v753 = vunpack.c.l.b16 %v639
  %v754 = vunpack.c.l.b16 %v640
  %v755 = vunpack.c.l.b16 %v641
  %v756 = vunpack.c.l.b16 %v642
  %v757 = vunpack.c.l.b16 %v643
  %v758 = vunpack.c.l.b16 %v644
  %v759 = vunpack.c.l.b16 %v645
  %v760 = vunpack.c.l.b16 %v646
  %v761 = vunpack.c.l.b16 %v647
  %v762 = vunpack.c.l.b16 %v648
  %v763 = vunpack.c.l.b16 %v649
  %v764 = vunpack.c.l.b16 %v650
  %v765 = vunpack.c.l.b16 %v651
  %v766 = vunpack.c.l.b16 %v652
  %v767 = vunpack.c.l.b16 %v653
  %v768 = vunpack.c.l.b16 %v654
  %v769 = vpack.c.b16 %v713, %v712
  %v770 = vpack.c.b16 %v715, %v714
  %v771 = vpack.c.b16 %v717, %v716
  %v772 = vpack.c.b16 %v719, %v718
  %v773 = vpack.c.b16 %v721, %v720
  %v774 = vpack.c.b16 %v723, %v722
  %v775 = vpack.c.b16 %v725, %v724
  %v776 = vpack.c.b16 %v727, %v726
  %v777 = vpack.c.b16 %v729, %v728
  %v778 = vpack.c.b16 %v731, %v730
  %v779 = vpack.c.b16 %v733, %v732
  %v780 = vpack.c.b16 %v735, %v734
  %v781 = vpack.c.b16 %v737, %v736
  %v782 = vpack.c.b16 %v739, %v738
  %v783 = vpack.c.b16 %v741, %v740
  %v784 = vpack.c.b16 %v743, %v742
  %v785 = vpack.c.b16 %v745, %v744
  %v786 = vpack.c.b16 %v747, %v746
  %v787 = vpack.c.b16 %v749, %v748
  %v788 = vpack.c.b16 %v751, %v750
  %v789 = vpack.c.b16 %v753, %v752
  %v790 = vpack.c.b16 %v755, %v754
  %v791 = vpack.c.b16 %v757, %v756
  %v792 = vpack.c.b16 %v759, %v758
  %v793 = vpack.c.b16 %v761, %v760
  %v794 = vpack.c.b16 %v763, %v762
  %v795 = vpack.c.b16 %v765, %v764
  %v796 = vpack.c.b16 %v767, %v766
  %v797 = vpack.c.b16 %v768, %v768
  %v799 = vsel %vm239, %v769, 0
  %v802 = vsel %vm239, %v770, 0
  %v805 = vsel %vm239, %v771, 0
  %v808 = vsel %vm239, %v772, 0
  %v811 = vsel %vm239, %v773, 0
  %v814 = vsel %vm239, %v774, 0
  %v817 = vsel %vm239, %v775, 0
  %v820 = vsel %vm239, %v776, 0
  %v823 = vsel %vm239, %v777, 0
  %v826 = vsel %vm239, %v778, 0
  %v829 = vsel %vm239, %v779, 0
  %v832 = vsel %vm239, %v780, 0
  %v835 = vsel %vm239, %v781, 0
  %v838 = vsel %vm239, %v782, 0
  %v841 = vsel %vm239, %v783, 0
  %v844 = vsel %vm239, %v784, 0
  %v847 = vsel %vm239, %v785, 0
  %v850 = vsel %vm239, %v786, 0
  %v853 = vsel %vm239, %v787, 0
  %v856 = vsel %vm239, %v788, 0
  %v859 = vsel %vm239, %v789, 0
  %v862 = vsel %vm239, %v790, 0
  %v865 = vsel %vm239, %v791, 0
  %v868 = vsel %vm239, %v792, 0
  %v871 = vsel %vm239, %v793, 0
  %v874 = vsel %vm239, %v794, 0
  %v877 = vsel %vm239, %v795, 0
  %v880 = vsel %vm239, %v796, 0
  %v883 = vsel %vm239, %v797, 0
  %885 = vmatprep.subr.bf16.mxu0 0
  %886 = vmatpush1.bf16.msra.mxu0 %v236
  %887 = vmatprep.subr.bf16.mxu0 0
  %888 = vmatpush1.bf16.msra.mxu0 %v332
  %889 = vmatprep.subr.bf16.mxu0 0
  %890 = vmatpush1.bf16.msra.mxu0 0
  %891 = vmatprep.subr.bf16.mxu0 0
  %892 = vmatpush1.bf16.msra.mxu0 0
  %893 = vmatprep.subr.bf16.mxu0 0
  %894 = vmatpush1.bf16.msra.mxu0 0
  %895 = vmatprep.subr.bf16.mxu0 0
  %896 = vmatpush1.bf16.msra.mxu0 0
  %897 = vmatprep.subr.bf16.mxu0 0
  %898 = vmatpush1.bf16.msra.mxu0 0
  %899 = vmatprep.subr.bf16.mxu0 0
  %900 = vmatpush1.bf16.msra.mxu0 0
  %901 = vmatprep.subr.bf16.mxu0 0
  %902 = vmatpush1.bf16.msra.mxu0 0
  %903 = vmatprep.subr.bf16.mxu0 0
  %904 = vmatpush1.bf16.msra.mxu0 0
  %905 = vmatprep.subr.bf16.mxu0 0
  %906 = vmatpush1.bf16.msra.mxu0 0
  %907 = vmatprep.subr.bf16.mxu0 0
  %908 = vmatpush1.bf16.msra.mxu0 0
  %909 = vmatprep.subr.bf16.mxu0 0
  %910 = vmatpush1.bf16.msra.mxu0 0
  %911 = vmatprep.subr.bf16.mxu0 0
  %912 = vmatpush1.bf16.msra.mxu0 0
  %913 = vmatprep.subr.bf16.mxu0 0
  %914 = vmatpush1.bf16.msra.mxu0 0
  %915 = vmatprep.subr.bf16.mxu0 0
  %916 = vmatpush1.bf16.msra.mxu0 0
  %917 = vmatprep.mubr.bf16.mxu0 0
  %918 = vmatmul.mubr.bf16.gmra.mrb[0].mxu0 %v799
  %v919 = vpop.f32.mrb[0].mxu0
  %v920 = vadd.f32 0.0, %v919
  %v921 = vpop.f32.mrb[0].mxu0
  %v922 = vpop.f32.mrb[0].mxu0
  %v923 = vadd.f32 0.0, %v922
  %v924 = vpop.f32.mrb[0].mxu0
  %925 = vmatprep.mubr.bf16.mxu0 0
  %926 = vmatmul.mubr.bf16.gmra.mrb[0].mxu0 %v802
  %v927 = vpop.f32.mrb[0].mxu0
  %v928 = vadd.f32 0.0, %v927
  %v929 = vpop.f32.mrb[0].mxu0
  %v930 = vpop.f32.mrb[0].mxu0
  %v931 = vadd.f32 0.0, %v930
  %v932 = vpop.f32.mrb[0].mxu0
  %933 = vmatprep.mubr.bf16.mxu0 0
  %934 = vmatmul.mubr.bf16.gmra.mrb[0].mxu0 %v805
  %v935 = vpop.f32.mrb[0].mxu0
  %v936 = vadd.f32 0.0, %v935
  %v937 = vpop.f32.mrb[0].mxu0
  %v938 = vpop.f32.mrb[0].mxu0
  %v939 = vadd.f32 0.0, %v938
  %v940 = vpop.f32.mrb[0].mxu0
  %941 = vmatprep.mubr.bf16.mxu0 0
  %942 = vmatmul.mubr.bf16.gmra.mrb[0].mxu0 %v808
  %v943 = vpop.f32.mrb[0].mxu0
  %v944 = vadd.f32 0.0, %v943
  %v945 = vpop.f32.mrb[0].mxu0
  %v946 = vpop.f32.mrb[0].mxu0
  %v947 = vadd.f32 0.0, %v946
  %v948 = vpop.f32.mrb[0].mxu0
  %949 = vmatprep.mubr.bf16.mxu0 0
  %950 = vmatmul.mubr.bf16.gmra.mrb[0].mxu0 %v811
  %v951 = vpop.f32.mrb[0].mxu0
  %v952 = vadd.f32 0.0, %v951
  %v953 = vpop.f32.mrb[0].mxu0
  %v954 = vpop.f32.mrb[0].mxu0
  %v955 = vadd.f32 0.0, %v954
  %v956 = vpop.f32.mrb[0].mxu0
  %957 = vmatprep.mubr.bf16.mxu0 0
  %958 = vmatmul.mubr.bf16.gmra.mrb[0].mxu0 %v814
  %v959 = vpop.f32.mrb[0].mxu0
  %v960 = vadd.f32 0.0, %v959
  %v961 = vpop.f32.mrb[0].mxu0
  %v962 = vpop.f32.mrb[0].mxu0
  %v963 = vadd.f32 0.0, %v962
  %v964 = vpop.f32.mrb[0].mxu0
  %965 = vmatprep.mubr.bf16.mxu0 0
  %966 = vmatmul.mubr.bf16.gmra.mrb[0].mxu0 %v817
  %v967 = vpop.f32.mrb[0].mxu0
  %v968 = vadd.f32 0.0, %v967
  %v969 = vpop.f32.mrb[0].mxu0
  %v970 = vpop.f32.mrb[0].mxu0
  %v971 = vadd.f32 0.0, %v970
  %v972 = vpop.f32.mrb[0].mxu0
  %973 = vmatprep.mubr.bf16.mxu0 0
  %974 = vmatmul.mubr.bf16.gmra.mrb[0].mxu0 %v820
  %v975 = vpop.f32.mrb[0].mxu0
  %v976 = vadd.f32 0.0, %v975
  %v977 = vpop.f32.mrb[0].mxu0
  %v978 = vpop.f32.mrb[0].mxu0
  %v979 = vadd.f32 0.0, %v978
  %v980 = vpop.f32.mrb[0].mxu0
  %981 = vmatprep.mubr.bf16.mxu0 0
  %982 = vmatmul.mubr.bf16.gmra.mrb[0].mxu0 %v823
  %v983 = vpop.f32.mrb[0].mxu0
  %v984 = vadd.f32 0.0, %v983
  %v985 = vpop.f32.mrb[0].mxu0
  %v986 = vpop.f32.mrb[0].mxu0
  %v987 = vadd.f32 0.0, %v986
  %v988 = vpop.f32.mrb[0].mxu0
  %989 = vmatprep.mubr.bf16.mxu0 0
  %990 = vmatmul.mubr.bf16.gmra.mrb[0].mxu0 %v826
  %v991 = vpop.f32.mrb[0].mxu0
  %v992 = vadd.f32 0.0, %v991
  %v993 = vpop.f32.mrb[0].mxu0
  %v994 = vpop.f32.mrb[0].mxu0
  %v995 = vadd.f32 0.0, %v994
  %v996 = vpop.f32.mrb[0].mxu0
  %997 = vmatprep.mubr.bf16.mxu0 0
  %998 = vmatmul.mubr.bf16.gmra.mrb[0].mxu0 %v829
  %v999 = vpop.f32.mrb[0].mxu0
  %v1000 = vadd.f32 0.0, %v999
  %v1001 = vpop.f32.mrb[0].mxu0
  %v1002 = vpop.f32.mrb[0].mxu0
  %v1003 = vadd.f32 0.0, %v1002
  %v1004 = vpop.f32.mrb[0].mxu0
  %1005 = vmatprep.mubr.bf16.mxu0 0
  %1006 = vmatmul.mubr.bf16.gmra.mrb[0].mxu0 %v832
  %v1007 = vpop.f32.mrb[0].mxu0
  %v1008 = vadd.f32 0.0, %v1007
  %v1009 = vpop.f32.mrb[0].mxu0
  %v1010 = vpop.f32.mrb[0].mxu0
  %v1011 = vadd.f32 0.0, %v1010
  %v1012 = vpop.f32.mrb[0].mxu0
  %1013 = vmatprep.mubr.bf16.mxu0 0
  %1014 = vmatmul.mubr.bf16.gmra.mrb[0].mxu0 %v835
  %v1015 = vpop.f32.mrb[0].mxu0
  %v1016 = vadd.f32 0.0, %v1015
  %v1017 = vpop.f32.mrb[0].mxu0
  %v1018 = vpop.f32.mrb[0].mxu0
  %v1019 = vadd.f32 0.0, %v1018
  %v1020 = vpop.f32.mrb[0].mxu0
  %1021 = vmatprep.mubr.bf16.mxu0 0
  %1022 = vmatmul.mubr.bf16.gmra.mrb[0].mxu0 %v838
  %v1023 = vpop.f32.mrb[0].mxu0
  %v1024 = vadd.f32 0.0, %v1023
  %v1025 = vpop.f32.mrb[0].mxu0
  %v1026 = vpop.f32.mrb[0].mxu0
  %v1027 = vadd.f32 0.0, %v1026
  %v1028 = vpop.f32.mrb[0].mxu0
  %1029 = vmatprep.mubr.bf16.mxu0 0
  %1030 = vmatmul.mubr.bf16.gmra.mrb[0].mxu0 %v841
  %v1031 = vpop.f32.mrb[0].mxu0
  %v1032 = vadd.f32 0.0, %v1031
  %v1033 = vpop.f32.mrb[0].mxu0
  %v1034 = vpop.f32.mrb[0].mxu0
  %v1035 = vadd.f32 0.0, %v1034
  %v1036 = vpop.f32.mrb[0].mxu0
  %1037 = vmatprep.mubr.bf16.mxu0 0
  %1038 = vmatmul.mubr.bf16.gmra.mrb[0].mxu0 %v844
  %v1039 = vpop.f32.mrb[0].mxu0
  %v1040 = vadd.f32 0.0, %v1039
  %v1041 = vpop.f32.mrb[0].mxu0
  %v1042 = vpop.f32.mrb[0].mxu0
  %v1043 = vadd.f32 0.0, %v1042
  %v1044 = vpop.f32.mrb[0].mxu0
  %1045 = vmatprep.mubr.bf16.mxu0 0
  %1046 = vmatmul.mubr.bf16.gmra.mrb[0].mxu0 %v847
  %v1047 = vpop.f32.mrb[0].mxu0
  %v1048 = vadd.f32 0.0, %v1047
  %v1049 = vpop.f32.mrb[0].mxu0
  %v1050 = vpop.f32.mrb[0].mxu0
  %v1051 = vadd.f32 0.0, %v1050
  %v1052 = vpop.f32.mrb[0].mxu0
  %1053 = vmatprep.mubr.bf16.mxu0 0
  %1054 = vmatmul.mubr.bf16.gmra.mrb[0].mxu0 %v850
  %v1055 = vpop.f32.mrb[0].mxu0
  %v1056 = vadd.f32 0.0, %v1055
  %v1057 = vpop.f32.mrb[0].mxu0
  %v1058 = vpop.f32.mrb[0].mxu0
  %v1059 = vadd.f32 0.0, %v1058
  %v1060 = vpop.f32.mrb[0].mxu0
  %1061 = vmatprep.mubr.bf16.mxu0 0
  %1062 = vmatmul.mubr.bf16.gmra.mrb[0].mxu0 %v853
  %v1063 = vpop.f32.mrb[0].mxu0
  %v1064 = vadd.f32 0.0, %v1063
  %v1065 = vpop.f32.mrb[0].mxu0
  %v1066 = vpop.f32.mrb[0].mxu0
  %v1067 = vadd.f32 0.0, %v1066
  %v1068 = vpop.f32.mrb[0].mxu0
  %1069 = vmatprep.mubr.bf16.mxu0 0
  %1070 = vmatmul.mubr.bf16.gmra.mrb[0].mxu0 %v856
  %v1071 = vpop.f32.mrb[0].mxu0
  %v1072 = vadd.f32 0.0, %v1071
  %v1073 = vpop.f32.mrb[0].mxu0
  %v1074 = vpop.f32.mrb[0].mxu0
  %v1075 = vadd.f32 0.0, %v1074
  %v1076 = vpop.f32.mrb[0].mxu0
  %1077 = vmatprep.mubr.bf16.mxu0 0
  %1078 = vmatmul.mubr.bf16.gmra.mrb[0].mxu0 %v859
  %v1079 = vpop.f32.mrb[0].mxu0
  %v1080 = vadd.f32 0.0, %v1079
  %v1081 = vpop.f32.mrb[0].mxu0
  %v1082 = vpop.f32.mrb[0].mxu0
  %v1083 = vadd.f32 0.0, %v1082
  %v1084 = vpop.f32.mrb[0].mxu0
  %1085 = vmatprep.mubr.bf16.mxu0 0
  %1086 = vmatmul.mubr.bf16.gmra.mrb[0].mxu0 %v862
  %v1087 = vpop.f32.mrb[0].mxu0
  %v1088 = vadd.f32 0.0, %v1087
  %v1089 = vpop.f32.mrb[0].mxu0
  %v1090 = vpop.f32.mrb[0].mxu0
  %v1091 = vadd.f32 0.0, %v1090
  %v1092 = vpop.f32.mrb[0].mxu0
  %1093 = vmatprep.mubr.bf16.mxu0 0
  %1094 = vmatmul.mubr.bf16.gmra.mrb[0].mxu0 %v865
  %v1095 = vpop.f32.mrb[0].mxu0
  %v1096 = vadd.f32 0.0, %v1095
  %v1097 = vpop.f32.mrb[0].mxu0
  %v1098 = vpop.f32.mrb[0].mxu0
  %v1099 = vadd.f32 0.0, %v1098
  %v1100 = vpop.f32.mrb[0].mxu0
  %1101 = vmatprep.mubr.bf16.mxu0 0
  %1102 = vmatmul.mubr.bf16.gmra.mrb[0].mxu0 %v868
  %v1103 = vpop.f32.mrb[0].mxu0
  %v1104 = vadd.f32 0.0, %v1103
  %v1105 = vpop.f32.mrb[0].mxu0
  %v1106 = vpop.f32.mrb[0].mxu0
  %v1107 = vadd.f32 0.0, %v1106
  %v1108 = vpop.f32.mrb[0].mxu0
  %1109 = vmatprep.mubr.bf16.mxu0 0
  %1110 = vmatmul.mubr.bf16.gmra.mrb[0].mxu0 %v871
  %v1111 = vpop.f32.mrb[0].mxu0
  %v1112 = vadd.f32 0.0, %v1111
  %v1113 = vpop.f32.mrb[0].mxu0
  %v1114 = vpop.f32.mrb[0].mxu0
  %v1115 = vadd.f32 0.0, %v1114
  %v1116 = vpop.f32.mrb[0].mxu0
  %1117 = vmatprep.mubr.bf16.mxu0 0
  %1118 = vmatmul.mubr.bf16.gmra.mrb[0].mxu0 %v874
  %v1119 = vpop.f32.mrb[0].mxu0
  %v1120 = vadd.f32 0.0, %v1119
  %v1121 = vpop.f32.mrb[0].mxu0
  %v1122 = vpop.f32.mrb[0].mxu0
  %v1123 = vadd.f32 0.0, %v1122
  %v1124 = vpop.f32.mrb[0].mxu0
  %1125 = vmatprep.mubr.bf16.mxu0 0
  %1126 = vmatmul.mubr.bf16.gmra.mrb[0].mxu0 %v877
  %v1127 = vpop.f32.mrb[0].mxu0
  %v1128 = vadd.f32 0.0, %v1127
  %v1129 = vpop.f32.mrb[0].mxu0
  %v1130 = vpop.f32.mrb[0].mxu0
  %v1131 = vadd.f32 0.0, %v1130
  %v1132 = vpop.f32.mrb[0].mxu0
  %1133 = vmatprep.mubr.bf16.mxu0 0
  %1134 = vmatmul.mubr.bf16.gmra.mrb[0].mxu0 %v880
  %v1135 = vpop.f32.mrb[0].mxu0
  %v1136 = vadd.f32 0.0, %v1135
  %v1137 = vpop.f32.mrb[0].mxu0
  %v1138 = vpop.f32.mrb[0].mxu0
  %v1139 = vadd.f32 0.0, %v1138
  %v1140 = vpop.f32.mrb[0].mxu0
  %1141 = vmatprep.mubr.bf16.mxu0 0
  %1142 = vmatmul.mubr.bf16.gmra.mrb[0].mxu0 %v883
  %v1143 = vpop.f32.mrb[0].mxu0
  %v1144 = vadd.f32 0.0, %v1143
  %v1145 = vpop.f32.mrb[0].mxu0
  %v1146 = vpop.f32.mrb[0].mxu0
  %v1147 = vpop.f32.mrb[0].mxu0
  %1148 = vdwg.mxu0
  %v1149 = vld [vmem:[%s2] sm:$0xf]
  %v1150 = vld [vmem:[%s2 + $0x4] sm:$0xf]
  %v1151 = vld [vmem:[%s2 + $0x8] sm:$0xf]
  %v1152 = vld [vmem:[%s2 + $0xc] sm:$0xf]
  %v1153 = vld [vmem:[%s2 + $0x10] sm:$0xf]
  %v1154 = vld [vmem:[%s2 + $0x14] sm:$0xf]
  %v1155 = vld [vmem:[%s2 + $0x18] sm:$0xf]
  %v1156 = vld [vmem:[%s2 + $0x1c] sm:$0xf]
  %v1157 = vld [vmem:[%s2 + $0x20] sm:$0xf]
  %v1158 = vld [vmem:[%s2 + $0x24] sm:$0xf]
  %v1159 = vld [vmem:[%s2 + $0x28] sm:$0xf]
  %v1160 = vld [vmem:[%s2 + $0x2c] sm:$0xf]
  %v1161 = vld [vmem:[%s2 + $0x30] sm:$0xf]
  %v1162 = vld [vmem:[%s2 + $0x34] sm:$0xf]
  %v1163 = vld [vmem:[%s2 + $0x38] sm:$0xf]
  %v1164 = vld [vmem:[%s2 + $0x3c] sm:$0xf]
  %v1165 = vld [vmem:[%s2 + $0x40] sm:$0xf]
  %v1166 = vld [vmem:[%s2 + $0x44] sm:$0xf]
  %v1167 = vld [vmem:[%s2 + $0x48] sm:$0xf]
  %v1168 = vld [vmem:[%s2 + $0x4c] sm:$0xf]
  %v1169 = vld [vmem:[%s2 + $0x50] sm:$0xf]
  %v1170 = vld [vmem:[%s2 + $0x54] sm:$0xf]
  %v1171 = vld [vmem:[%s2 + $0x58] sm:$0xf]
  %v1172 = vld [vmem:[%s2 + $0x5c] sm:$0xf]
  %v1173 = vld [vmem:[%s2 + $0x60] sm:$0xf]
  %v1174 = vld [vmem:[%s2 + $0x64] sm:$0xf]
  %v1175 = vld [vmem:[%s2 + $0x68] sm:$0xf]
  %v1176 = vld [vmem:[%s2 + $0x6c] sm:$0xf]
  %v1177 = vld [vmem:[%s2 + $0x70] sm:$0xf]
  %v1178 = vld [vmem:[%s2 + $0x74] sm:$0xf]
  %v1179 = vld [vmem:[%s2 + $0x78] sm:$0xf]
  %v1180 = vld [vmem:[%s2 + $0x7c] sm:$0xf]
  %v1181 = vld [vmem:[%s2 + $0x80] sm:$0xf]
  %v1182 = vld [vmem:[%s2 + $0x84] sm:$0xf]
  %v1183 = vld [vmem:[%s2 + $0x88] sm:$0xf]
  %v1184 = vld [vmem:[%s2 + $0x8c] sm:$0xf]
  %v1185 = vld [vmem:[%s2 + $0x90] sm:$0xf]
  %v1186 = vld [vmem:[%s2 + $0x94] sm:$0xf]
  %v1187 = vld [vmem:[%s2 + $0x98] sm:$0xf]
  %v1188 = vld [vmem:[%s2 + $0x9c] sm:$0xf]
  %v1189 = vld [vmem:[%s2 + $0xa0] sm:$0xf]
  %v1190 = vld [vmem:[%s2 + $0xa4] sm:$0xf]
  %v1191 = vld [vmem:[%s2 + $0xa8] sm:$0xf]
  %v1192 = vld [vmem:[%s2 + $0xac] sm:$0xf]
  %v1193 = vld [vmem:[%s2 + $0xb0] sm:$0xf]
  %v1194 = vld [vmem:[%s2 + $0xb4] sm:$0xf]
  %v1195 = vld [vmem:[%s2 + $0xb8] sm:$0xf]
  %v1196 = vld [vmem:[%s2 + $0xbc] sm:$0xf]
  %v1197 = vld [vmem:[%s2 + $0xc0] sm:$0xf]
  %v1198 = vld [vmem:[%s2 + $0xc4] sm:$0xf]
  %v1199 = vld [vmem:[%s2 + $0xc8] sm:$0xf]
  %v1200 = vld [vmem:[%s2 + $0xcc] sm:$0xf]
  %v1201 = vld [vmem:[%s2 + $0xd0] sm:$0xf]
  %v1202 = vld [vmem:[%s2 + $0xd4] sm:$0xf]
  %v1203 = vld [vmem:[%s2 + $0xd8] sm:$0xf]
  %v1204 = vld [vmem:[%s2 + $0xdc] sm:$0xf]
  %v1205 = vld [vmem:[%s2 + $0xe0] sm:$0x1]
  %v1263 = vunpack.c.l.b16 %v1149
  %v1264 = vunpack.c.l.b16 %v1150
  %v1265 = vunpack.c.l.b16 %v1151
  %v1266 = vunpack.c.l.b16 %v1152
  %v1267 = vunpack.c.l.b16 %v1153
  %v1268 = vunpack.c.l.b16 %v1154
  %v1269 = vunpack.c.l.b16 %v1155
  %v1270 = vunpack.c.l.b16 %v1156
  %v1271 = vunpack.c.l.b16 %v1157
  %v1272 = vunpack.c.l.b16 %v1158
  %v1273 = vunpack.c.l.b16 %v1159
  %v1274 = vunpack.c.l.b16 %v1160
  %v1275 = vunpack.c.l.b16 %v1161
  %v1276 = vunpack.c.l.b16 %v1162
  %v1277 = vunpack.c.l.b16 %v1163
  %v1278 = vunpack.c.l.b16 %v1164
  %v1279 = vunpack.c.l.b16 %v1165
  %v1280 = vunpack.c.l.b16 %v1166
  %v1281 = vunpack.c.l.b16 %v1167
  %v1282 = vunpack.c.l.b16 %v1168
  %v1283 = vunpack.c.l.b16 %v1169
  %v1284 = vunpack.c.l.b16 %v1170
  %v1285 = vunpack.c.l.b16 %v1171
  %v1286 = vunpack.c.l.b16 %v1172
  %v1287 = vunpack.c.l.b16 %v1173
  %v1288 = vunpack.c.l.b16 %v1174
  %v1289 = vunpack.c.l.b16 %v1175
  %v1290 = vunpack.c.l.b16 %v1176
  %v1291 = vunpack.c.l.b16 %v1177
  %v1292 = vunpack.c.l.b16 %v1178
  %v1293 = vunpack.c.l.b16 %v1179
  %v1294 = vunpack.c.l.b16 %v1180
  %v1295 = vunpack.c.l.b16 %v1181
  %v1296 = vunpack.c.l.b16 %v1182
  %v1297 = vunpack.c.l.b16 %v1183
  %v1298 = vunpack.c.l.b16 %v1184
  %v1299 = vunpack.c.l.b16 %v1185
  %v1300 = vunpack.c.l.b16 %v1186
  %v1301 = vunpack.c.l.b16 %v1187
  %v1302 = vunpack.c.l.b16 %v1188
  %v1303 = vunpack.c.l.b16 %v1189
  %v1304 = vunpack.c.l.b16 %v1190
  %v1305 = vunpack.c.l.b16 %v1191
  %v1306 = vunpack.c.l.b16 %v1192
  %v1307 = vunpack.c.l.b16 %v1193
  %v1308 = vunpack.c.l.b16 %v1194
  %v1309 = vunpack.c.l.b16 %v1195
  %v1310 = vunpack.c.l.b16 %v1196
  %v1311 = vunpack.c.l.b16 %v1197
  %v1312 = vunpack.c.l.b16 %v1198
  %v1313 = vunpack.c.l.b16 %v1199
  %v1314 = vunpack.c.l.b16 %v1200
  %v1315 = vunpack.c.l.b16 %v1201
  %v1316 = vunpack.c.l.b16 %v1202
  %v1317 = vunpack.c.l.b16 %v1203
  %v1318 = vunpack.c.l.b16 %v1204
  %v1319 = vunpack.c.l.b16 %v1205
  %v1320 = vpack.c.b16 %v1264, %v1263
  %v1321 = vpack.c.b16 %v1266, %v1265
  %v1322 = vpack.c.b16 %v1268, %v1267
  %v1323 = vpack.c.b16 %v1270, %v1269
  %v1324 = vpack.c.b16 %v1272, %v1271
  %v1325 = vpack.c.b16 %v1274, %v1273
  %v1326 = vpack.c.b16 %v1276, %v1275
  %v1327 = vpack.c.b16 %v1278, %v1277
  %v1328 = vpack.c.b16 %v1280, %v1279
  %v1329 = vpack.c.b16 %v1282, %v1281
  %v1330 = vpack.c.b16 %v1284, %v1283
  %v1331 = vpack.c.b16 %v1286, %v1285
  %v1332 = vpack.c.b16 %v1288, %v1287
  %v1333 = vpack.c.b16 %v1290, %v1289
  %v1334 = vpack.c.b16 %v1292, %v1291
  %v1335 = vpack.c.b16 %v1294, %v1293
  %v1336 = vpack.c.b16 %v1296, %v1295
  %v1337 = vpack.c.b16 %v1298, %v1297
  %v1338 = vpack.c.b16 %v1300, %v1299
  %v1339 = vpack.c.b16 %v1302, %v1301
  %v1340 = vpack.c.b16 %v1304, %v1303
  %v1341 = vpack.c.b16 %v1306, %v1305
  %v1342 = vpack.c.b16 %v1308, %v1307
  %v1343 = vpack.c.b16 %v1310, %v1309
  %v1344 = vpack.c.b16 %v1312, %v1311
  %v1345 = vpack.c.b16 %v1314, %v1313
  %v1346 = vpack.c.b16 %v1316, %v1315
  %v1347 = vpack.c.b16 %v1318, %v1317
  %v1348 = vpack.c.b16 %v1319, %v1319
  %v1350 = vsel %vm239, %v1320, 0
  %v1353 = vsel %vm239, %v1321, 0
  %v1356 = vsel %vm239, %v1322, 0
  %v1359 = vsel %vm239, %v1323, 0
  %v1362 = vsel %vm239, %v1324, 0
  %v1365 = vsel %vm239, %v1325, 0
  %v1368 = vsel %vm239, %v1326, 0
  %v1371 = vsel %vm239, %v1327, 0
  %v1374 = vsel %vm239, %v1328, 0
  %v1377 = vsel %vm239, %v1329, 0
  %v1380 = vsel %vm239, %v1330, 0
  %v1383 = vsel %vm239, %v1331, 0
  %v1386 = vsel %vm239, %v1332, 0
  %v1389 = vsel %vm239, %v1333, 0
  %v1392 = vsel %vm239, %v1334, 0
  %v1395 = vsel %vm239, %v1335, 0
  %v1398 = vsel %vm239, %v1336, 0
  %v1401 = vsel %vm239, %v1337, 0
  %v1404 = vsel %vm239, %v1338, 0
  %v1407 = vsel %vm239, %v1339, 0
  %v1410 = vsel %vm239, %v1340, 0
  %v1413 = vsel %vm239, %v1341, 0
  %v1416 = vsel %vm239, %v1342, 0
  %v1419 = vsel %vm239, %v1343, 0
  %v1422 = vsel %vm239, %v1344, 0
  %v1425 = vsel %vm239, %v1345, 0
  %v1428 = vsel %vm239, %v1346, 0
  %v1431 = vsel %vm239, %v1347, 0
  %v1434 = vsel %vm239, %v1348, 0
  %1436 = vmatprep.subr.bf16.mxu0 0
  %1437 = vmatpush1.bf16.msra.mxu0 %v236
  %1438 = vmatprep.subr.bf16.mxu0 0
  %1439 = vmatpush1.bf16.msra.mxu0 %v332
  %1440 = vmatprep.subr.bf16.mxu0 0
  %1441 = vmatpush1.bf16.msra.mxu0 0
  %1442 = vmatprep.subr.bf16.mxu0 0
  %1443 = vmatpush1.bf16.msra.mxu0 0
  %1444 = vmatprep.subr.bf16.mxu0 0
  %1445 = vmatpush1.bf16.msra.mxu0 0
  %1446 = vmatprep.subr.bf16.mxu0 0
  %1447 = vmatpush1.bf16.msra.mxu0 0
  %1448 = vmatprep.subr.bf16.mxu0 0
  %1449 = vmatpush1.bf16.msra.mxu0 0
  %1450 = vmatprep.subr.bf16.mxu0 0
  %1451 = vmatpush1.bf16.msra.mxu0 0
  %1452 = vmatprep.subr.bf16.mxu0 0
  %1453 = vmatpush1.bf16.msra.mxu0 0
  %1454 = vmatprep.subr.bf16.mxu0 0
  %1455 = vmatpush1.bf16.msra.mxu0 0
  %1456 = vmatprep.subr.bf16.mxu0 0
  %1457 = vmatpush1.bf16.msra.mxu0 0
  %1458 = vmatprep.subr.bf16.mxu0 0
  %1459 = vmatpush1.bf16.msra.mxu0 0
  %1460 = vmatprep.subr.bf16.mxu0 0
  %1461 = vmatpush1.bf16.msra.mxu0 0
  %1462 = vmatprep.subr.bf16.mxu0 0
  %1463 = vmatpush1.bf16.msra.mxu0 0
  %1464 = vmatprep.subr.bf16.mxu0 0
  %1465 = vmatpush1.bf16.msra.mxu0 0
  %1466 = vmatprep.subr.bf16.mxu0 0
  %1467 = vmatpush1.bf16.msra.mxu0 0
  %1468 = vmatprep.mubr.bf16.mxu0 0
  %1469 = vmatmul.mubr.bf16.gmra.mrb[0].mxu0 %v1350
  %v1470 = vpop.f32.mrb[0].mxu0
  %v1471 = vadd.f32 0.0, %v1470
  %v1472 = vpop.f32.mrb[0].mxu0
  %v1473 = vpop.f32.mrb[0].mxu0
  %v1474 = vadd.f32 0.0, %v1473
  %v1475 = vpop.f32.mrb[0].mxu0
  %1476 = vmatprep.mubr.bf16.mxu0 0
  %1477 = vmatmul.mubr.bf16.gmra.mrb[0].mxu0 %v1353
  %v1478 = vpop.f32.mrb[0].mxu0
  %v1479 = vadd.f32 0.0, %v1478
  %v1480 = vpop.f32.mrb[0].mxu0
  %v1481 = vpop.f32.mrb[0].mxu0
  %v1482 = vadd.f32 0.0, %v1481
  %v1483 = vpop.f32.mrb[0].mxu0
  %1484 = vmatprep.mubr.bf16.mxu0 0
  %1485 = vmatmul.mubr.bf16.gmra.mrb[0].mxu0 %v1356
  %v1486 = vpop.f32.mrb[0].mxu0
  %v1487 = vadd.f32 0.0, %v1486
  %v1488 = vpop.f32.mrb[0].mxu0
  %v1489 = vpop.f32.mrb[0].mxu0
  %v1490 = vadd.f32 0.0, %v1489
  %v1491 = vpop.f32.mrb[0].mxu0
  %1492 = vmatprep.mubr.bf16.mxu0 0
  %1493 = vmatmul.mubr.bf16.gmra.mrb[0].mxu0 %v1359
  %v1494 = vpop.f32.mrb[0].mxu0
  %v1495 = vadd.f32 0.0, %v1494
  %v1496 = vpop.f32.mrb[0].mxu0
  %v1497 = vpop.f32.mrb[0].mxu0
  %v1498 = vadd.f32 0.0, %v1497
  %v1499 = vpop.f32.mrb[0].mxu0
  %1500 = vmatprep.mubr.bf16.mxu0 0
  %1501 = vmatmul.mubr.bf16.gmra.mrb[0].mxu0 %v1362
  %v1502 = vpop.f32.mrb[0].mxu0
  %v1503 = vadd.f32 0.0, %v1502
  %v1504 = vpop.f32.mrb[0].mxu0
  %v1505 = vpop.f32.mrb[0].mxu0
  %v1506 = vadd.f32 0.0, %v1505
  %v1507 = vpop.f32.mrb[0].mxu0
  %1508 = vmatprep.mubr.bf16.mxu0 0
  %1509 = vmatmul.mubr.bf16.gmra.mrb[0].mxu0 %v1365
  %v1510 = vpop.f32.mrb[0].mxu0
  %v1511 = vadd.f32 0.0, %v1510
  %v1512 = vpop.f32.mrb[0].mxu0
  %v1513 = vpop.f32.mrb[0].mxu0
  %v1514 = vadd.f32 0.0, %v1513
  %v1515 = vpop.f32.mrb[0].mxu0
  %1516 = vmatprep.mubr.bf16.mxu0 0
  %1517 = vmatmul.mubr.bf16.gmra.mrb[0].mxu0 %v1368
  %v1518 = vpop.f32.mrb[0].mxu0
  %v1519 = vadd.f32 0.0, %v1518
  %v1520 = vpop.f32.mrb[0].mxu0
  %v1521 = vpop.f32.mrb[0].mxu0
  %v1522 = vadd.f32 0.0, %v1521
  %v1523 = vpop.f32.mrb[0].mxu0
  %1524 = vmatprep.mubr.bf16.mxu0 0
  %1525 = vmatmul.mubr.bf16.gmra.mrb[0].mxu0 %v1371
  %v1526 = vpop.f32.mrb[0].mxu0
  %v1527 = vadd.f32 0.0, %v1526
  %v1528 = vpop.f32.mrb[0].mxu0
  %v1529 = vpop.f32.mrb[0].mxu0
  %v1530 = vadd.f32 0.0, %v1529
  %v1531 = vpop.f32.mrb[0].mxu0
  %1532 = vmatprep.mubr.bf16.mxu0 0
  %1533 = vmatmul.mubr.bf16.gmra.mrb[0].mxu0 %v1374
  %v1534 = vpop.f32.mrb[0].mxu0
  %v1535 = vadd.f32 0.0, %v1534
  %v1536 = vpop.f32.mrb[0].mxu0
  %v1537 = vpop.f32.mrb[0].mxu0
  %v1538 = vadd.f32 0.0, %v1537
  %v1539 = vpop.f32.mrb[0].mxu0
  %1540 = vmatprep.mubr.bf16.mxu0 0
  %1541 = vmatmul.mubr.bf16.gmra.mrb[0].mxu0 %v1377
  %v1542 = vpop.f32.mrb[0].mxu0
  %v1543 = vadd.f32 0.0, %v1542
  %v1544 = vpop.f32.mrb[0].mxu0
  %v1545 = vpop.f32.mrb[0].mxu0
  %v1546 = vadd.f32 0.0, %v1545
  %v1547 = vpop.f32.mrb[0].mxu0
  %1548 = vmatprep.mubr.bf16.mxu0 0
  %1549 = vmatmul.mubr.bf16.gmra.mrb[0].mxu0 %v1380
  %v1550 = vpop.f32.mrb[0].mxu0
  %v1551 = vadd.f32 0.0, %v1550
  %v1552 = vpop.f32.mrb[0].mxu0
  %v1553 = vpop.f32.mrb[0].mxu0
  %v1554 = vadd.f32 0.0, %v1553
  %v1555 = vpop.f32.mrb[0].mxu0
  %1556 = vmatprep.mubr.bf16.mxu0 0
  %1557 = vmatmul.mubr.bf16.gmra.mrb[0].mxu0 %v1383
  %v1558 = vpop.f32.mrb[0].mxu0
  %v1559 = vadd.f32 0.0, %v1558
  %v1560 = vpop.f32.mrb[0].mxu0
  %v1561 = vpop.f32.mrb[0].mxu0
  %v1562 = vadd.f32 0.0, %v1561
  %v1563 = vpop.f32.mrb[0].mxu0
  %1564 = vmatprep.mubr.bf16.mxu0 0
  %1565 = vmatmul.mubr.bf16.gmra.mrb[0].mxu0 %v1386
  %v1566 = vpop.f32.mrb[0].mxu0
  %v1567 = vadd.f32 0.0, %v1566
  %v1568 = vpop.f32.mrb[0].mxu0
  %v1569 = vpop.f32.mrb[0].mxu0
  %v1570 = vadd.f32 0.0, %v1569
  %v1571 = vpop.f32.mrb[0].mxu0
  %1572 = vmatprep.mubr.bf16.mxu0 0
  %1573 = vmatmul.mubr.bf16.gmra.mrb[0].mxu0 %v1389
  %v1574 = vpop.f32.mrb[0].mxu0
  %v1575 = vadd.f32 0.0, %v1574
  %v1576 = vpop.f32.mrb[0].mxu0
  %v1577 = vpop.f32.mrb[0].mxu0
  %v1578 = vadd.f32 0.0, %v1577
  %v1579 = vpop.f32.mrb[0].mxu0
  %1580 = vmatprep.mubr.bf16.mxu0 0
  %1581 = vmatmul.mubr.bf16.gmra.mrb[0].mxu0 %v1392
  %v1582 = vpop.f32.mrb[0].mxu0
  %v1583 = vadd.f32 0.0, %v1582
  %v1584 = vpop.f32.mrb[0].mxu0
  %v1585 = vpop.f32.mrb[0].mxu0
  %v1586 = vadd.f32 0.0, %v1585
  %v1587 = vpop.f32.mrb[0].mxu0
  %1588 = vmatprep.mubr.bf16.mxu0 0
  %1589 = vmatmul.mubr.bf16.gmra.mrb[0].mxu0 %v1395
  %v1590 = vpop.f32.mrb[0].mxu0
  %v1591 = vadd.f32 0.0, %v1590
  %v1592 = vpop.f32.mrb[0].mxu0
  %v1593 = vpop.f32.mrb[0].mxu0
  %v1594 = vadd.f32 0.0, %v1593
  %v1595 = vpop.f32.mrb[0].mxu0
  %1596 = vmatprep.mubr.bf16.mxu0 0
  %1597 = vmatmul.mubr.bf16.gmra.mrb[0].mxu0 %v1398
  %v1598 = vpop.f32.mrb[0].mxu0
  %v1599 = vadd.f32 0.0, %v1598
  %v1600 = vpop.f32.mrb[0].mxu0
  %v1601 = vpop.f32.mrb[0].mxu0
  %v1602 = vadd.f32 0.0, %v1601
  %v1603 = vpop.f32.mrb[0].mxu0
  %1604 = vmatprep.mubr.bf16.mxu0 0
  %1605 = vmatmul.mubr.bf16.gmra.mrb[0].mxu0 %v1401
  %v1606 = vpop.f32.mrb[0].mxu0
  %v1607 = vadd.f32 0.0, %v1606
  %v1608 = vpop.f32.mrb[0].mxu0
  %v1609 = vpop.f32.mrb[0].mxu0
  %v1610 = vadd.f32 0.0, %v1609
  %v1611 = vpop.f32.mrb[0].mxu0
  %1612 = vmatprep.mubr.bf16.mxu0 0
  %1613 = vmatmul.mubr.bf16.gmra.mrb[0].mxu0 %v1404
  %v1614 = vpop.f32.mrb[0].mxu0
  %v1615 = vadd.f32 0.0, %v1614
  %v1616 = vpop.f32.mrb[0].mxu0
  %v1617 = vpop.f32.mrb[0].mxu0
  %v1618 = vadd.f32 0.0, %v1617
  %v1619 = vpop.f32.mrb[0].mxu0
  %1620 = vmatprep.mubr.bf16.mxu0 0
  %1621 = vmatmul.mubr.bf16.gmra.mrb[0].mxu0 %v1407
  %v1622 = vpop.f32.mrb[0].mxu0
  %v1623 = vadd.f32 0.0, %v1622
  %v1624 = vpop.f32.mrb[0].mxu0
  %v1625 = vpop.f32.mrb[0].mxu0
  %v1626 = vadd.f32 0.0, %v1625
  %v1627 = vpop.f32.mrb[0].mxu0
  %1628 = vmatprep.mubr.bf16.mxu0 0
  %1629 = vmatmul.mubr.bf16.gmra.mrb[0].mxu0 %v1410
  %v1630 = vpop.f32.mrb[0].mxu0
  %v1631 = vadd.f32 0.0, %v1630
  %v1632 = vpop.f32.mrb[0].mxu0
  %v1633 = vpop.f32.mrb[0].mxu0
  %v1634 = vadd.f32 0.0, %v1633
  %v1635 = vpop.f32.mrb[0].mxu0
  %1636 = vmatprep.mubr.bf16.mxu0 0
  %1637 = vmatmul.mubr.bf16.gmra.mrb[0].mxu0 %v1413
  %v1638 = vpop.f32.mrb[0].mxu0
  %v1639 = vadd.f32 0.0, %v1638
  %v1640 = vpop.f32.mrb[0].mxu0
  %v1641 = vpop.f32.mrb[0].mxu0
  %v1642 = vadd.f32 0.0, %v1641
  %v1643 = vpop.f32.mrb[0].mxu0
  %1644 = vmatprep.mubr.bf16.mxu0 0
  %1645 = vmatmul.mubr.bf16.gmra.mrb[0].mxu0 %v1416
  %v1646 = vpop.f32.mrb[0].mxu0
  %v1647 = vadd.f32 0.0, %v1646
  %v1648 = vpop.f32.mrb[0].mxu0
  %v1649 = vpop.f32.mrb[0].mxu0
  %v1650 = vadd.f32 0.0, %v1649
  %v1651 = vpop.f32.mrb[0].mxu0
  %1652 = vmatprep.mubr.bf16.mxu0 0
  %1653 = vmatmul.mubr.bf16.gmra.mrb[0].mxu0 %v1419
  %v1654 = vpop.f32.mrb[0].mxu0
  %v1655 = vadd.f32 0.0, %v1654
  %v1656 = vpop.f32.mrb[0].mxu0
  %v1657 = vpop.f32.mrb[0].mxu0
  %v1658 = vadd.f32 0.0, %v1657
  %v1659 = vpop.f32.mrb[0].mxu0
  %1660 = vmatprep.mubr.bf16.mxu0 0
  %1661 = vmatmul.mubr.bf16.gmra.mrb[0].mxu0 %v1422
  %v1662 = vpop.f32.mrb[0].mxu0
  %v1663 = vadd.f32 0.0, %v1662
  %v1664 = vpop.f32.mrb[0].mxu0
  %v1665 = vpop.f32.mrb[0].mxu0
  %v1666 = vadd.f32 0.0, %v1665
  %v1667 = vpop.f32.mrb[0].mxu0
  %1668 = vmatprep.mubr.bf16.mxu0 0
  %1669 = vmatmul.mubr.bf16.gmra.mrb[0].mxu0 %v1425
  %v1670 = vpop.f32.mrb[0].mxu0
  %v1671 = vadd.f32 0.0, %v1670
  %v1672 = vpop.f32.mrb[0].mxu0
  %v1673 = vpop.f32.mrb[0].mxu0
  %v1674 = vadd.f32 0.0, %v1673
  %v1675 = vpop.f32.mrb[0].mxu0
  %1676 = vmatprep.mubr.bf16.mxu0 0
  %1677 = vmatmul.mubr.bf16.gmra.mrb[0].mxu0 %v1428
  %v1678 = vpop.f32.mrb[0].mxu0
  %v1679 = vadd.f32 0.0, %v1678
  %v1680 = vpop.f32.mrb[0].mxu0
  %v1681 = vpop.f32.mrb[0].mxu0
  %v1682 = vadd.f32 0.0, %v1681
  %v1683 = vpop.f32.mrb[0].mxu0
  %1684 = vmatprep.mubr.bf16.mxu0 0
  %1685 = vmatmul.mubr.bf16.gmra.mrb[0].mxu0 %v1431
  %v1686 = vpop.f32.mrb[0].mxu0
  %v1687 = vadd.f32 0.0, %v1686
  %v1688 = vpop.f32.mrb[0].mxu0
  %v1689 = vpop.f32.mrb[0].mxu0
  %v1690 = vadd.f32 0.0, %v1689
  %v1691 = vpop.f32.mrb[0].mxu0
  %1692 = vmatprep.mubr.bf16.mxu0 0
  %1693 = vmatmul.mubr.bf16.gmra.mrb[0].mxu0 %v1434
  %v1694 = vpop.f32.mrb[0].mxu0
  %v1695 = vadd.f32 0.0, %v1694
  %v1696 = vpop.f32.mrb[0].mxu0
  %v1697 = vpop.f32.mrb[0].mxu0
  %v1698 = vpop.f32.mrb[0].mxu0
  %1699 = vdwg.mxu0
  %v1700 = vld [vmem:[%s3] sm:$0xf]
  %v1701 = vld [vmem:[%s3 + $0x4] sm:$0xf]
  %v1702 = vld [vmem:[%s3 + $0x8] sm:$0xf]
  %v1703 = vld [vmem:[%s3 + $0xc] sm:$0xf]
  %v1704 = vld [vmem:[%s3 + $0x10] sm:$0xf]
  %v1705 = vld [vmem:[%s3 + $0x14] sm:$0xf]
  %v1706 = vld [vmem:[%s3 + $0x18] sm:$0xf]
  %v1707 = vld [vmem:[%s3 + $0x1c] sm:$0xf]
  %v1708 = vld [vmem:[%s3 + $0x20] sm:$0xf]
  %v1709 = vld [vmem:[%s3 + $0x24] sm:$0xf]
  %v1710 = vld [vmem:[%s3 + $0x28] sm:$0xf]
  %v1711 = vld [vmem:[%s3 + $0x2c] sm:$0xf]
  %v1712 = vld [vmem:[%s3 + $0x30] sm:$0xf]
  %v1713 = vld [vmem:[%s3 + $0x34] sm:$0xf]
  %v1714 = vld [vmem:[%s3 + $0x38] sm:$0xf]
  %v1715 = vld [vmem:[%s3 + $0x3c] sm:$0xf]
  %v1716 = vld [vmem:[%s3 + $0x40] sm:$0xf]
  %v1717 = vld [vmem:[%s3 + $0x44] sm:$0xf]
  %v1718 = vld [vmem:[%s3 + $0x48] sm:$0xf]
  %v1719 = vld [vmem:[%s3 + $0x4c] sm:$0xf]
  %v1720 = vld [vmem:[%s3 + $0x50] sm:$0xf]
  %v1721 = vld [vmem:[%s3 + $0x54] sm:$0xf]
  %v1722 = vld [vmem:[%s3 + $0x58] sm:$0xf]
  %v1723 = vld [vmem:[%s3 + $0x5c] sm:$0xf]
  %v1724 = vld [vmem:[%s3 + $0x60] sm:$0xf]
  %v1725 = vld [vmem:[%s3 + $0x64] sm:$0xf]
  %v1726 = vld [vmem:[%s3 + $0x68] sm:$0xf]
  %v1727 = vld [vmem:[%s3 + $0x6c] sm:$0xf]
  %v1728 = vld [vmem:[%s3 + $0x70] sm:$0xf]
  %v1729 = vld [vmem:[%s3 + $0x74] sm:$0xf]
  %v1730 = vld [vmem:[%s3 + $0x78] sm:$0xf]
  %v1731 = vld [vmem:[%s3 + $0x7c] sm:$0xf]
  %v1732 = vld [vmem:[%s3 + $0x80] sm:$0xf]
  %v1733 = vld [vmem:[%s3 + $0x84] sm:$0xf]
  %v1734 = vld [vmem:[%s3 + $0x88] sm:$0xf]
  %v1735 = vld [vmem:[%s3 + $0x8c] sm:$0xf]
  %v1736 = vld [vmem:[%s3 + $0x90] sm:$0xf]
  %v1737 = vld [vmem:[%s3 + $0x94] sm:$0xf]
  %v1738 = vld [vmem:[%s3 + $0x98] sm:$0xf]
  %v1739 = vld [vmem:[%s3 + $0x9c] sm:$0xf]
  %v1740 = vld [vmem:[%s3 + $0xa0] sm:$0xf]
  %v1741 = vld [vmem:[%s3 + $0xa4] sm:$0xf]
  %v1742 = vld [vmem:[%s3 + $0xa8] sm:$0xf]
  %v1743 = vld [vmem:[%s3 + $0xac] sm:$0xf]
  %v1744 = vld [vmem:[%s3 + $0xb0] sm:$0xf]
  %v1745 = vld [vmem:[%s3 + $0xb4] sm:$0xf]
  %v1746 = vld [vmem:[%s3 + $0xb8] sm:$0xf]
  %v1747 = vld [vmem:[%s3 + $0xbc] sm:$0xf]
  %v1748 = vld [vmem:[%s3 + $0xc0] sm:$0xf]
  %v1749 = vld [vmem:[%s3 + $0xc4] sm:$0xf]
  %v1750 = vld [vmem:[%s3 + $0xc8] sm:$0xf]
  %v1751 = vld [vmem:[%s3 + $0xcc] sm:$0xf]
  %v1752 = vld [vmem:[%s3 + $0xd0] sm:$0xf]
  %v1753 = vld [vmem:[%s3 + $0xd4] sm:$0xf]
  %v1754 = vld [vmem:[%s3 + $0xd8] sm:$0xf]
  %v1755 = vld [vmem:[%s3 + $0xdc] sm:$0xf]
  %v1756 = vld [vmem:[%s3 + $0xe0] sm:$0x1]
  %v1814 = vunpack.c.l.b16 %v1700
  %v1815 = vunpack.c.l.b16 %v1701
  %v1816 = vunpack.c.l.b16 %v1702
  %v1817 = vunpack.c.l.b16 %v1703
  %v1818 = vunpack.c.l.b16 %v1704
  %v1819 = vunpack.c.l.b16 %v1705
  %v1820 = vunpack.c.l.b16 %v1706
  %v1821 = vunpack.c.l.b16 %v1707
  %v1822 = vunpack.c.l.b16 %v1708
  %v1823 = vunpack.c.l.b16 %v1709
  %v1824 = vunpack.c.l.b16 %v1710
  %v1825 = vunpack.c.l.b16 %v1711
  %v1826 = vunpack.c.l.b16 %v1712
  %v1827 = vunpack.c.l.b16 %v1713
  %v1828 = vunpack.c.l.b16 %v1714
  %v1829 = vunpack.c.l.b16 %v1715
  %v1830 = vunpack.c.l.b16 %v1716
  %v1831 = vunpack.c.l.b16 %v1717
  %v1832 = vunpack.c.l.b16 %v1718
  %v1833 = vunpack.c.l.b16 %v1719
  %v1834 = vunpack.c.l.b16 %v1720
  %v1835 = vunpack.c.l.b16 %v1721
  %v1836 = vunpack.c.l.b16 %v1722
  %v1837 = vunpack.c.l.b16 %v1723
  %v1838 = vunpack.c.l.b16 %v1724
  %v1839 = vunpack.c.l.b16 %v1725
  %v1840 = vunpack.c.l.b16 %v1726
  %v1841 = vunpack.c.l.b16 %v1727
  %v1842 = vunpack.c.l.b16 %v1728
  %v1843 = vunpack.c.l.b16 %v1729
  %v1844 = vunpack.c.l.b16 %v1730
  %v1845 = vunpack.c.l.b16 %v1731
  %v1846 = vunpack.c.l.b16 %v1732
  %v1847 = vunpack.c.l.b16 %v1733
  %v1848 = vunpack.c.l.b16 %v1734
  %v1849 = vunpack.c.l.b16 %v1735
  %v1850 = vunpack.c.l.b16 %v1736
  %v1851 = vunpack.c.l.b16 %v1737
  %v1852 = vunpack.c.l.b16 %v1738
  %v1853 = vunpack.c.l.b16 %v1739
  %v1854 = vunpack.c.l.b16 %v1740
  %v1855 = vunpack.c.l.b16 %v1741
  %v1856 = vunpack.c.l.b16 %v1742
  %v1857 = vunpack.c.l.b16 %v1743
  %v1858 = vunpack.c.l.b16 %v1744
  %v1859 = vunpack.c.l.b16 %v1745
  %v1860 = vunpack.c.l.b16 %v1746
  %v1861 = vunpack.c.l.b16 %v1747
  %v1862 = vunpack.c.l.b16 %v1748
  %v1863 = vunpack.c.l.b16 %v1749
  %v1864 = vunpack.c.l.b16 %v1750
  %v1865 = vunpack.c.l.b16 %v1751
  %v1866 = vunpack.c.l.b16 %v1752
  %v1867 = vunpack.c.l.b16 %v1753
  %v1868 = vunpack.c.l.b16 %v1754
  %v1869 = vunpack.c.l.b16 %v1755
  %v1870 = vunpack.c.l.b16 %v1756
  %v1871 = vpack.c.b16 %v1815, %v1814
  %v1872 = vpack.c.b16 %v1817, %v1816
  %v1873 = vpack.c.b16 %v1819, %v1818
  %v1874 = vpack.c.b16 %v1821, %v1820
  %v1875 = vpack.c.b16 %v1823, %v1822
  %v1876 = vpack.c.b16 %v1825, %v1824
  %v1877 = vpack.c.b16 %v1827, %v1826
  %v1878 = vpack.c.b16 %v1829, %v1828
  %v1879 = vpack.c.b16 %v1831, %v1830
  %v1880 = vpack.c.b16 %v1833, %v1832
  %v1881 = vpack.c.b16 %v1835, %v1834
  %v1882 = vpack.c.b16 %v1837, %v1836
  %v1883 = vpack.c.b16 %v1839, %v1838
  %v1884 = vpack.c.b16 %v1841, %v1840
  %v1885 = vpack.c.b16 %v1843, %v1842
  %v1886 = vpack.c.b16 %v1845, %v1844
  %v1887 = vpack.c.b16 %v1847, %v1846
  %v1888 = vpack.c.b16 %v1849, %v1848
  %v1889 = vpack.c.b16 %v1851, %v1850
  %v1890 = vpack.c.b16 %v1853, %v1852
  %v1891 = vpack.c.b16 %v1855, %v1854
  %v1892 = vpack.c.b16 %v1857, %v1856
  %v1893 = vpack.c.b16 %v1859, %v1858
  %v1894 = vpack.c.b16 %v1861, %v1860
  %v1895 = vpack.c.b16 %v1863, %v1862
  %v1896 = vpack.c.b16 %v1865, %v1864
  %v1897 = vpack.c.b16 %v1867, %v1866
  %v1898 = vpack.c.b16 %v1869, %v1868
  %v1899 = vpack.c.b16 %v1870, %v1870
  %v1901 = vsel %vm239, %v1871, 0
  %v1904 = vsel %vm239, %v1872, 0
  %v1907 = vsel %vm239, %v1873, 0
  %v1910 = vsel %vm239, %v1874, 0
  %v1913 = vsel %vm239, %v1875, 0
  %v1916 = vsel %vm239, %v1876, 0
  %v1919 = vsel %vm239, %v1877, 0
  %v1922 = vsel %vm239, %v1878, 0
  %v1925 = vsel %vm239, %v1879, 0
  %v1928 = vsel %vm239, %v1880, 0
  %v1931 = vsel %vm239, %v1881, 0
  %v1934 = vsel %vm239, %v1882, 0
  %v1937 = vsel %vm239, %v1883, 0
  %v1940 = vsel %vm239, %v1884, 0
  %v1943 = vsel %vm239, %v1885, 0
  %v1946 = vsel %vm239, %v1886, 0
  %v1949 = vsel %vm239, %v1887, 0
  %v1952 = vsel %vm239, %v1888, 0
  %v1955 = vsel %vm239, %v1889, 0
  %v1958 = vsel %vm239, %v1890, 0
  %v1961 = vsel %vm239, %v1891, 0
  %v1964 = vsel %vm239, %v1892, 0
  %v1967 = vsel %vm239, %v1893, 0
  %v1970 = vsel %vm239, %v1894, 0
  %v1973 = vsel %vm239, %v1895, 0
  %v1976 = vsel %vm239, %v1896, 0
  %v1979 = vsel %vm239, %v1897, 0
  %v1982 = vsel %vm239, %v1898, 0
  %v1985 = vsel %vm239, %v1899, 0
  %1987 = vmatprep.subr.bf16.mxu0 0
  %1988 = vmatpush1.bf16.msra.mxu0 %v236
  %1989 = vmatprep.subr.bf16.mxu0 0
  %1990 = vmatpush1.bf16.msra.mxu0 %v332
  %1991 = vmatprep.subr.bf16.mxu0 0
  %1992 = vmatpush1.bf16.msra.mxu0 0
  %1993 = vmatprep.subr.bf16.mxu0 0
  %1994 = vmatpush1.bf16.msra.mxu0 0
  %1995 = vmatprep.subr.bf16.mxu0 0
  %1996 = vmatpush1.bf16.msra.mxu0 0
  %1997 = vmatprep.subr.bf16.mxu0 0
  %1998 = vmatpush1.bf16.msra.mxu0 0
  %1999 = vmatprep.subr.bf16.mxu0 0
  %2000 = vmatpush1.bf16.msra.mxu0 0
  %2001 = vmatprep.subr.bf16.mxu0 0
  %2002 = vmatpush1.bf16.msra.mxu0 0
  %2003 = vmatprep.subr.bf16.mxu0 0
  %2004 = vmatpush1.bf16.msra.mxu0 0
  %2005 = vmatprep.subr.bf16.mxu0 0
  %2006 = vmatpush1.bf16.msra.mxu0 0
  %2007 = vmatprep.subr.bf16.mxu0 0
  %2008 = vmatpush1.bf16.msra.mxu0 0
  %2009 = vmatprep.subr.bf16.mxu0 0
  %2010 = vmatpush1.bf16.msra.mxu0 0
  %2011 = vmatprep.subr.bf16.mxu0 0
  %2012 = vmatpush1.bf16.msra.mxu0 0
  %2013 = vmatprep.subr.bf16.mxu0 0
  %2014 = vmatpush1.bf16.msra.mxu0 0
  %2015 = vmatprep.subr.bf16.mxu0 0
  %2016 = vmatpush1.bf16.msra.mxu0 0
  %2017 = vmatprep.subr.bf16.mxu0 0
  %2018 = vmatpush1.bf16.msra.mxu0 0
  %2019 = vmatprep.mubr.bf16.mxu0 0
  %2020 = vmatmul.mubr.bf16.gmra.mrb[0].mxu0 %v1901
  %v2021 = vpop.f32.mrb[0].mxu0
  %v2022 = vadd.f32 0.0, %v2021
  %v2023 = vpop.f32.mrb[0].mxu0
  %v2024 = vpop.f32.mrb[0].mxu0
  %v2025 = vadd.f32 0.0, %v2024
  %v2026 = vpop.f32.mrb[0].mxu0
  %2027 = vmatprep.mubr.bf16.mxu0 0
  %2028 = vmatmul.mubr.bf16.gmra.mrb[0].mxu0 %v1904
  %v2029 = vpop.f32.mrb[0].mxu0
  %v2030 = vadd.f32 0.0, %v2029
  %v2031 = vpop.f32.mrb[0].mxu0
  %v2032 = vpop.f32.mrb[0].mxu0
  %v2033 = vadd.f32 0.0, %v2032
  %v2034 = vpop.f32.mrb[0].mxu0
  %2035 = vmatprep.mubr.bf16.mxu0 0
  %2036 = vmatmul.mubr.bf16.gmra.mrb[0].mxu0 %v1907
  %v2037 = vpop.f32.mrb[0].mxu0
  %v2038 = vadd.f32 0.0, %v2037
  %v2039 = vpop.f32.mrb[0].mxu0
  %v2040 = vpop.f32.mrb[0].mxu0
  %v2041 = vadd.f32 0.0, %v2040
  %v2042 = vpop.f32.mrb[0].mxu0
  %2043 = vmatprep.mubr.bf16.mxu0 0
  %2044 = vmatmul.mubr.bf16.gmra.mrb[0].mxu0 %v1910
  %v2045 = vpop.f32.mrb[0].mxu0
  %v2046 = vadd.f32 0.0, %v2045
  %v2047 = vpop.f32.mrb[0].mxu0
  %v2048 = vpop.f32.mrb[0].mxu0
  %v2049 = vadd.f32 0.0, %v2048
  %v2050 = vpop.f32.mrb[0].mxu0
  %2051 = vmatprep.mubr.bf16.mxu0 0
  %2052 = vmatmul.mubr.bf16.gmra.mrb[0].mxu0 %v1913
  %v2053 = vpop.f32.mrb[0].mxu0
  %v2054 = vadd.f32 0.0, %v2053
  %v2055 = vpop.f32.mrb[0].mxu0
  %v2056 = vpop.f32.mrb[0].mxu0
  %v2057 = vadd.f32 0.0, %v2056
  %v2058 = vpop.f32.mrb[0].mxu0
  %2059 = vmatprep.mubr.bf16.mxu0 0
  %2060 = vmatmul.mubr.bf16.gmra.mrb[0].mxu0 %v1916
  %v2061 = vpop.f32.mrb[0].mxu0
  %v2062 = vadd.f32 0.0, %v2061
  %v2063 = vpop.f32.mrb[0].mxu0
  %v2064 = vpop.f32.mrb[0].mxu0
  %v2065 = vadd.f32 0.0, %v2064
  %v2066 = vpop.f32.mrb[0].mxu0
  %2067 = vmatprep.mubr.bf16.mxu0 0
  %2068 = vmatmul.mubr.bf16.gmra.mrb[0].mxu0 %v1919
  %v2069 = vpop.f32.mrb[0].mxu0
  %v2070 = vadd.f32 0.0, %v2069
  %v2071 = vpop.f32.mrb[0].mxu0
  %v2072 = vpop.f32.mrb[0].mxu0
  %v2073 = vadd.f32 0.0, %v2072
  %v2074 = vpop.f32.mrb[0].mxu0
  %2075 = vmatprep.mubr.bf16.mxu0 0
  %2076 = vmatmul.mubr.bf16.gmra.mrb[0].mxu0 %v1922
  %v2077 = vpop.f32.mrb[0].mxu0
  %v2078 = vadd.f32 0.0, %v2077
  %v2079 = vpop.f32.mrb[0].mxu0
  %v2080 = vpop.f32.mrb[0].mxu0
  %v2081 = vadd.f32 0.0, %v2080
  %v2082 = vpop.f32.mrb[0].mxu0
  %2083 = vmatprep.mubr.bf16.mxu0 0
  %2084 = vmatmul.mubr.bf16.gmra.mrb[0].mxu0 %v1925
  %v2085 = vpop.f32.mrb[0].mxu0
  %v2086 = vadd.f32 0.0, %v2085
  %v2087 = vpop.f32.mrb[0].mxu0
  %v2088 = vpop.f32.mrb[0].mxu0
  %v2089 = vadd.f32 0.0, %v2088
  %v2090 = vpop.f32.mrb[0].mxu0
  %2091 = vmatprep.mubr.bf16.mxu0 0
  %2092 = vmatmul.mubr.bf16.gmra.mrb[0].mxu0 %v1928
  %v2093 = vpop.f32.mrb[0].mxu0
  %v2094 = vadd.f32 0.0, %v2093
  %v2095 = vpop.f32.mrb[0].mxu0
  %v2096 = vpop.f32.mrb[0].mxu0
  %v2097 = vadd.f32 0.0, %v2096
  %v2098 = vpop.f32.mrb[0].mxu0
  %2099 = vmatprep.mubr.bf16.mxu0 0
  %2100 = vmatmul.mubr.bf16.gmra.mrb[0].mxu0 %v1931
  %v2101 = vpop.f32.mrb[0].mxu0
  %v2102 = vadd.f32 0.0, %v2101
  %v2103 = vpop.f32.mrb[0].mxu0
  %v2104 = vpop.f32.mrb[0].mxu0
  %v2105 = vadd.f32 0.0, %v2104
  %v2106 = vpop.f32.mrb[0].mxu0
  %2107 = vmatprep.mubr.bf16.mxu0 0
  %2108 = vmatmul.mubr.bf16.gmra.mrb[0].mxu0 %v1934
  %v2109 = vpop.f32.mrb[0].mxu0
  %v2110 = vadd.f32 0.0, %v2109
  %v2111 = vpop.f32.mrb[0].mxu0
  %v2112 = vpop.f32.mrb[0].mxu0
  %v2113 = vadd.f32 0.0, %v2112
  %v2114 = vpop.f32.mrb[0].mxu0
  %2115 = vmatprep.mubr.bf16.mxu0 0
  %2116 = vmatmul.mubr.bf16.gmra.mrb[0].mxu0 %v1937
  %v2117 = vpop.f32.mrb[0].mxu0
  %v2118 = vadd.f32 0.0, %v2117
  %v2119 = vpop.f32.mrb[0].mxu0
  %v2120 = vpop.f32.mrb[0].mxu0
  %v2121 = vadd.f32 0.0, %v2120
  %v2122 = vpop.f32.mrb[0].mxu0
  %2123 = vmatprep.mubr.bf16.mxu0 0
  %2124 = vmatmul.mubr.bf16.gmra.mrb[0].mxu0 %v1940
  %v2125 = vpop.f32.mrb[0].mxu0
  %v2126 = vadd.f32 0.0, %v2125
  %v2127 = vpop.f32.mrb[0].mxu0
  %v2128 = vpop.f32.mrb[0].mxu0
  %v2129 = vadd.f32 0.0, %v2128
  %v2130 = vpop.f32.mrb[0].mxu0
  %2131 = vmatprep.mubr.bf16.mxu0 0
  %2132 = vmatmul.mubr.bf16.gmra.mrb[0].mxu0 %v1943
  %v2133 = vpop.f32.mrb[0].mxu0
  %v2134 = vadd.f32 0.0, %v2133
  %v2135 = vpop.f32.mrb[0].mxu0
  %v2136 = vpop.f32.mrb[0].mxu0
  %v2137 = vadd.f32 0.0, %v2136
  %v2138 = vpop.f32.mrb[0].mxu0
  %2139 = vmatprep.mubr.bf16.mxu0 0
  %2140 = vmatmul.mubr.bf16.gmra.mrb[0].mxu0 %v1946
  %v2141 = vpop.f32.mrb[0].mxu0
  %v2142 = vadd.f32 0.0, %v2141
  %v2143 = vpop.f32.mrb[0].mxu0
  %v2144 = vpop.f32.mrb[0].mxu0
  %v2145 = vadd.f32 0.0, %v2144
  %v2146 = vpop.f32.mrb[0].mxu0
  %2147 = vmatprep.mubr.bf16.mxu0 0
  %2148 = vmatmul.mubr.bf16.gmra.mrb[0].mxu0 %v1949
  %v2149 = vpop.f32.mrb[0].mxu0
  %v2150 = vadd.f32 0.0, %v2149
  %v2151 = vpop.f32.mrb[0].mxu0
  %v2152 = vpop.f32.mrb[0].mxu0
  %v2153 = vadd.f32 0.0, %v2152
  %v2154 = vpop.f32.mrb[0].mxu0
  %2155 = vmatprep.mubr.bf16.mxu0 0
  %2156 = vmatmul.mubr.bf16.gmra.mrb[0].mxu0 %v1952
  %v2157 = vpop.f32.mrb[0].mxu0
  %v2158 = vadd.f32 0.0, %v2157
  %v2159 = vpop.f32.mrb[0].mxu0
  %v2160 = vpop.f32.mrb[0].mxu0
  %v2161 = vadd.f32 0.0, %v2160
  %v2162 = vpop.f32.mrb[0].mxu0
  %2163 = vmatprep.mubr.bf16.mxu0 0
  %2164 = vmatmul.mubr.bf16.gmra.mrb[0].mxu0 %v1955
  %v2165 = vpop.f32.mrb[0].mxu0
  %v2166 = vadd.f32 0.0, %v2165
  %v2167 = vpop.f32.mrb[0].mxu0
  %v2168 = vpop.f32.mrb[0].mxu0
  %v2169 = vadd.f32 0.0, %v2168
  %v2170 = vpop.f32.mrb[0].mxu0
  %2171 = vmatprep.mubr.bf16.mxu0 0
  %2172 = vmatmul.mubr.bf16.gmra.mrb[0].mxu0 %v1958
  %v2173 = vpop.f32.mrb[0].mxu0
  %v2174 = vadd.f32 0.0, %v2173
  %v2175 = vpop.f32.mrb[0].mxu0
  %v2176 = vpop.f32.mrb[0].mxu0
  %v2177 = vadd.f32 0.0, %v2176
  %v2178 = vpop.f32.mrb[0].mxu0
  %2179 = vmatprep.mubr.bf16.mxu0 0
  %2180 = vmatmul.mubr.bf16.gmra.mrb[0].mxu0 %v1961
  %v2181 = vpop.f32.mrb[0].mxu0
  %v2182 = vadd.f32 0.0, %v2181
  %v2183 = vpop.f32.mrb[0].mxu0
  %v2184 = vpop.f32.mrb[0].mxu0
  %v2185 = vadd.f32 0.0, %v2184
  %v2186 = vpop.f32.mrb[0].mxu0
  %2187 = vmatprep.mubr.bf16.mxu0 0
  %2188 = vmatmul.mubr.bf16.gmra.mrb[0].mxu0 %v1964
  %v2189 = vpop.f32.mrb[0].mxu0
  %v2190 = vadd.f32 0.0, %v2189
  %v2191 = vpop.f32.mrb[0].mxu0
  %v2192 = vpop.f32.mrb[0].mxu0
  %v2193 = vadd.f32 0.0, %v2192
  %v2194 = vpop.f32.mrb[0].mxu0
  %2195 = vmatprep.mubr.bf16.mxu0 0
  %2196 = vmatmul.mubr.bf16.gmra.mrb[0].mxu0 %v1967
  %v2197 = vpop.f32.mrb[0].mxu0
  %v2198 = vadd.f32 0.0, %v2197
  %v2199 = vpop.f32.mrb[0].mxu0
  %v2200 = vpop.f32.mrb[0].mxu0
  %v2201 = vadd.f32 0.0, %v2200
  %v2202 = vpop.f32.mrb[0].mxu0
  %2203 = vmatprep.mubr.bf16.mxu0 0
  %2204 = vmatmul.mubr.bf16.gmra.mrb[0].mxu0 %v1970
  %v2205 = vpop.f32.mrb[0].mxu0
  %v2206 = vadd.f32 0.0, %v2205
  %v2207 = vpop.f32.mrb[0].mxu0
  %v2208 = vpop.f32.mrb[0].mxu0
  %v2209 = vadd.f32 0.0, %v2208
  %v2210 = vpop.f32.mrb[0].mxu0
  %2211 = vmatprep.mubr.bf16.mxu0 0
  %2212 = vmatmul.mubr.bf16.gmra.mrb[0].mxu0 %v1973
  %v2213 = vpop.f32.mrb[0].mxu0
  %v2214 = vadd.f32 0.0, %v2213
  %v2215 = vpop.f32.mrb[0].mxu0
  %v2216 = vpop.f32.mrb[0].mxu0
  %v2217 = vadd.f32 0.0, %v2216
  %v2218 = vpop.f32.mrb[0].mxu0
  %2219 = vmatprep.mubr.bf16.mxu0 0
  %2220 = vmatmul.mubr.bf16.gmra.mrb[0].mxu0 %v1976
  %v2221 = vpop.f32.mrb[0].mxu0
  %v2222 = vadd.f32 0.0, %v2221
  %v2223 = vpop.f32.mrb[0].mxu0
  %v2224 = vpop.f32.mrb[0].mxu0
  %v2225 = vadd.f32 0.0, %v2224
  %v2226 = vpop.f32.mrb[0].mxu0
  %2227 = vmatprep.mubr.bf16.mxu0 0
  %2228 = vmatmul.mubr.bf16.gmra.mrb[0].mxu0 %v1979
  %v2229 = vpop.f32.mrb[0].mxu0
  %v2230 = vadd.f32 0.0, %v2229
  %v2231 = vpop.f32.mrb[0].mxu0
  %v2232 = vpop.f32.mrb[0].mxu0
  %v2233 = vadd.f32 0.0, %v2232
  %v2234 = vpop.f32.mrb[0].mxu0
  %2235 = vmatprep.mubr.bf16.mxu0 0
  %2236 = vmatmul.mubr.bf16.gmra.mrb[0].mxu0 %v1982
  %v2237 = vpop.f32.mrb[0].mxu0
  %v2238 = vadd.f32 0.0, %v2237
  %v2239 = vpop.f32.mrb[0].mxu0
  %v2240 = vpop.f32.mrb[0].mxu0
  %v2241 = vadd.f32 0.0, %v2240
  %v2242 = vpop.f32.mrb[0].mxu0
  %2243 = vmatprep.mubr.bf16.mxu0 0
  %2244 = vmatmul.mubr.bf16.gmra.mrb[0].mxu0 %v1985
  %v2245 = vpop.f32.mrb[0].mxu0
  %v2246 = vadd.f32 0.0, %v2245
  %v2247 = vpop.f32.mrb[0].mxu0
  %v2248 = vpop.f32.mrb[0].mxu0
  %v2249 = vpop.f32.mrb[0].mxu0
  %2250 = vdwg.mxu0
  %v2251 = vmax.f32 %v369, %v920
  %v2252 = vmax.f32 %v372, %v923
  %v2253 = vmax.f32 %v377, %v928
  %v2254 = vmax.f32 %v380, %v931
  %v2255 = vmax.f32 %v385, %v936
  %v2256 = vmax.f32 %v388, %v939
  %v2257 = vmax.f32 %v393, %v944
  %v2258 = vmax.f32 %v396, %v947
  %v2259 = vmax.f32 %v401, %v952
  %v2260 = vmax.f32 %v404, %v955
  %v2261 = vmax.f32 %v409, %v960
  %v2262 = vmax.f32 %v412, %v963
  %v2263 = vmax.f32 %v417, %v968
  %v2264 = vmax.f32 %v420, %v971
  %v2265 = vmax.f32 %v425, %v976
  %v2266 = vmax.f32 %v428, %v979
  %v2267 = vmax.f32 %v433, %v984
  %v2268 = vmax.f32 %v436, %v987
  %v2269 = vmax.f32 %v441, %v992
  %v2270 = vmax.f32 %v444, %v995
  %v2271 = vmax.f32 %v449, %v1000
  %v2272 = vmax.f32 %v452, %v1003
  %v2273 = vmax.f32 %v457, %v1008
  %v2274 = vmax.f32 %v460, %v1011
  %v2275 = vmax.f32 %v465, %v1016
  %v2276 = vmax.f32 %v468, %v1019
  %v2277 = vmax.f32 %v473, %v1024
  %v2278 = vmax.f32 %v476, %v1027
  %v2279 = vmax.f32 %v481, %v1032
  %v2280 = vmax.f32 %v484, %v1035
  %v2281 = vmax.f32 %v489, %v1040
  %v2282 = vmax.f32 %v492, %v1043
  %v2283 = vmax.f32 %v497, %v1048
  %v2284 = vmax.f32 %v500, %v1051
  %v2285 = vmax.f32 %v505, %v1056
  %v2286 = vmax.f32 %v508, %v1059
  %v2287 = vmax.f32 %v513, %v1064
  %v2288 = vmax.f32 %v516, %v1067
  %v2289 = vmax.f32 %v521, %v1072
  %v2290 = vmax.f32 %v524, %v1075
  %v2291 = vmax.f32 %v529, %v1080
  %v2292 = vmax.f32 %v532, %v1083
  %v2293 = vmax.f32 %v537, %v1088
  %v2294 = vmax.f32 %v540, %v1091
  %v2295 = vmax.f32 %v545, %v1096
  %v2296 = vmax.f32 %v548, %v1099
  %v2297 = vmax.f32 %v553, %v1104
  %v2298 = vmax.f32 %v556, %v1107
  %v2299 = vmax.f32 %v561, %v1112
  %v2300 = vmax.f32 %v564, %v1115
  %v2301 = vmax.f32 %v569, %v1120
  %v2302 = vmax.f32 %v572, %v1123
  %v2303 = vmax.f32 %v577, %v1128
  %v2304 = vmax.f32 %v580, %v1131
  %v2305 = vmax.f32 %v585, %v1136
  %v2306 = vmax.f32 %v588, %v1139
  %v2307 = vmax.f32 %v593, %v1144
  %v2308 = vmax.f32 %v1471, %v2022
  %v2309 = vmax.f32 %v1474, %v2025
  %v2310 = vmax.f32 %v1479, %v2030
  %v2311 = vmax.f32 %v1482, %v2033
  %v2312 = vmax.f32 %v1487, %v2038
  %v2313 = vmax.f32 %v1490, %v2041
  %v2314 = vmax.f32 %v1495, %v2046
  %v2315 = vmax.f32 %v1498, %v2049
  %v2316 = vmax.f32 %v1503, %v2054
  %v2317 = vmax.f32 %v1506, %v2057
  %v2318 = vmax.f32 %v1511, %v2062
  %v2319 = vmax.f32 %v1514, %v2065
  %v2320 = vmax.f32 %v1519, %v2070
  %v2321 = vmax.f32 %v1522, %v2073
  %v2322 = vmax.f32 %v1527, %v2078
  %v2323 = vmax.f32 %v1530, %v2081
  %v2324 = vmax.f32 %v1535, %v2086
  %v2325 = vmax.f32 %v1538, %v2089
  %v2326 = vmax.f32 %v1543, %v2094
  %v2327 = vmax.f32 %v1546, %v2097
  %v2328 = vmax.f32 %v1551, %v2102
  %v2329 = vmax.f32 %v1554, %v2105
  %v2330 = vmax.f32 %v1559, %v2110
  %v2331 = vmax.f32 %v1562, %v2113
  %v2332 = vmax.f32 %v1567, %v2118
  %v2333 = vmax.f32 %v1570, %v2121
  %v2334 = vmax.f32 %v1575, %v2126
  %v2335 = vmax.f32 %v1578, %v2129
  %v2336 = vmax.f32 %v1583, %v2134
  %v2337 = vmax.f32 %v1586, %v2137
  %v2338 = vmax.f32 %v1591, %v2142
  %v2339 = vmax.f32 %v1594, %v2145
  %v2340 = vmax.f32 %v1599, %v2150
  %v2341 = vmax.f32 %v1602, %v2153
  %v2342 = vmax.f32 %v1607, %v2158
  %v2343 = vmax.f32 %v1610, %v2161
  %v2344 = vmax.f32 %v1615, %v2166
  %v2345 = vmax.f32 %v1618, %v2169
  %v2346 = vmax.f32 %v1623, %v2174
  %v2347 = vmax.f32 %v1626, %v2177
  %v2348 = vmax.f32 %v1631, %v2182
  %v2349 = vmax.f32 %v1634, %v2185
  %v2350 = vmax.f32 %v1639, %v2190
  %v2351 = vmax.f32 %v1642, %v2193
  %v2352 = vmax.f32 %v1647, %v2198
  %v2353 = vmax.f32 %v1650, %v2201
  %v2354 = vmax.f32 %v1655, %v2206
  %v2355 = vmax.f32 %v1658, %v2209
  %v2356 = vmax.f32 %v1663, %v2214
  %v2357 = vmax.f32 %v1666, %v2217
  %v2358 = vmax.f32 %v1671, %v2222
  %v2359 = vmax.f32 %v1674, %v2225
  %v2360 = vmax.f32 %v1679, %v2230
  %v2361 = vmax.f32 %v1682, %v2233
  %v2362 = vmax.f32 %v1687, %v2238
  %v2363 = vmax.f32 %v1690, %v2241
  %v2364 = vmax.f32 %v1695, %v2246
  %v2365 = vmax.f32 %v2251, %v2308
  %v2366 = vmax.f32 %v2252, %v2309
  %v2367 = vmax.f32 %v2253, %v2310
  %v2368 = vmax.f32 %v2254, %v2311
  %v2369 = vmax.f32 %v2255, %v2312
  %v2370 = vmax.f32 %v2256, %v2313
  %v2371 = vmax.f32 %v2257, %v2314
  %v2372 = vmax.f32 %v2258, %v2315
  %v2373 = vmax.f32 %v2259, %v2316
  %v2374 = vmax.f32 %v2260, %v2317
  %v2375 = vmax.f32 %v2261, %v2318
  %v2376 = vmax.f32 %v2262, %v2319
  %v2377 = vmax.f32 %v2263, %v2320
  %v2378 = vmax.f32 %v2264, %v2321
  %v2379 = vmax.f32 %v2265, %v2322
  %v2380 = vmax.f32 %v2266, %v2323
  %v2381 = vmax.f32 %v2267, %v2324
  %v2382 = vmax.f32 %v2268, %v2325
  %v2383 = vmax.f32 %v2269, %v2326
  %v2384 = vmax.f32 %v2270, %v2327
  %v2385 = vmax.f32 %v2271, %v2328
  %v2386 = vmax.f32 %v2272, %v2329
  %v2387 = vmax.f32 %v2273, %v2330
  %v2388 = vmax.f32 %v2274, %v2331
  %v2389 = vmax.f32 %v2275, %v2332
  %v2390 = vmax.f32 %v2276, %v2333
  %v2391 = vmax.f32 %v2277, %v2334
  %v2392 = vmax.f32 %v2278, %v2335
  %v2393 = vmax.f32 %v2279, %v2336
  %v2394 = vmax.f32 %v2280, %v2337
  %v2395 = vmax.f32 %v2281, %v2338
  %v2396 = vmax.f32 %v2282, %v2339
  %v2397 = vmax.f32 %v2283, %v2340
  %v2398 = vmax.f32 %v2284, %v2341
  %v2399 = vmax.f32 %v2285, %v2342
  %v2400 = vmax.f32 %v2286, %v2343
  %v2401 = vmax.f32 %v2287, %v2344
  %v2402 = vmax.f32 %v2288, %v2345
  %v2403 = vmax.f32 %v2289, %v2346
  %v2404 = vmax.f32 %v2290, %v2347
  %v2405 = vmax.f32 %v2291, %v2348
  %v2406 = vmax.f32 %v2292, %v2349
  %v2407 = vmax.f32 %v2293, %v2350
  %v2408 = vmax.f32 %v2294, %v2351
  %v2409 = vmax.f32 %v2295, %v2352
  %v2410 = vmax.f32 %v2296, %v2353
  %v2411 = vmax.f32 %v2297, %v2354
  %v2412 = vmax.f32 %v2298, %v2355
  %v2413 = vmax.f32 %v2299, %v2356
  %v2414 = vmax.f32 %v2300, %v2357
  %v2415 = vmax.f32 %v2301, %v2358
  %v2416 = vmax.f32 %v2302, %v2359
  %v2417 = vmax.f32 %v2303, %v2360
  %v2418 = vmax.f32 %v2304, %v2361
  %v2419 = vmax.f32 %v2305, %v2362
  %v2420 = vmax.f32 %v2306, %v2363
  %v2421 = vmax.f32 %v2307, %v2364
  %v2422 = vld [vmem:[%s5] sm:$0x1]
  %v2424 = vlaneseq
  %v2425 = vshrl.u32 %v2424, 7
  %v2426 = vsub.s32 0, %v2425
  %v2427 = vrot.slane %v2422, %v2426
  %v2429 = vadd.f32 %v2365, %v2427
  %v2430 = vadd.f32 %v2366, %v2427
  %v2431 = vadd.f32 %v2367, %v2427
  %v2432 = vadd.f32 %v2368, %v2427
  %v2433 = vadd.f32 %v2369, %v2427
  %v2434 = vadd.f32 %v2370, %v2427
  %v2435 = vadd.f32 %v2371, %v2427
  %v2436 = vadd.f32 %v2372, %v2427
  %v2437 = vadd.f32 %v2373, %v2427
  %v2438 = vadd.f32 %v2374, %v2427
  %v2439 = vadd.f32 %v2375, %v2427
  %v2440 = vadd.f32 %v2376, %v2427
  %v2441 = vadd.f32 %v2377, %v2427
  %v2442 = vadd.f32 %v2378, %v2427
  %v2443 = vadd.f32 %v2379, %v2427
  %v2444 = vadd.f32 %v2380, %v2427
  %v2445 = vadd.f32 %v2381, %v2427
  %v2446 = vadd.f32 %v2382, %v2427
  %v2447 = vadd.f32 %v2383, %v2427
  %v2448 = vadd.f32 %v2384, %v2427
  %v2449 = vadd.f32 %v2385, %v2427
  %v2450 = vadd.f32 %v2386, %v2427
  %v2451 = vadd.f32 %v2387, %v2427
  %v2452 = vadd.f32 %v2388, %v2427
  %v2453 = vadd.f32 %v2389, %v2427
  %v2454 = vadd.f32 %v2390, %v2427
  %v2455 = vadd.f32 %v2391, %v2427
  %v2456 = vadd.f32 %v2392, %v2427
  %v2457 = vadd.f32 %v2393, %v2427
  %v2458 = vadd.f32 %v2394, %v2427
  %v2459 = vadd.f32 %v2395, %v2427
  %v2460 = vadd.f32 %v2396, %v2427
  %v2461 = vadd.f32 %v2397, %v2427
  %v2462 = vadd.f32 %v2398, %v2427
  %v2463 = vadd.f32 %v2399, %v2427
  %v2464 = vadd.f32 %v2400, %v2427
  %v2465 = vadd.f32 %v2401, %v2427
  %v2466 = vadd.f32 %v2402, %v2427
  %v2467 = vadd.f32 %v2403, %v2427
  %v2468 = vadd.f32 %v2404, %v2427
  %v2469 = vadd.f32 %v2405, %v2427
  %v2470 = vadd.f32 %v2406, %v2427
  %v2471 = vadd.f32 %v2407, %v2427
  %v2472 = vadd.f32 %v2408, %v2427
  %v2473 = vadd.f32 %v2409, %v2427
  %v2474 = vadd.f32 %v2410, %v2427
  %v2475 = vadd.f32 %v2411, %v2427
  %v2476 = vadd.f32 %v2412, %v2427
  %v2477 = vadd.f32 %v2413, %v2427
  %v2478 = vadd.f32 %v2414, %v2427
  %v2479 = vadd.f32 %v2415, %v2427
  %v2480 = vadd.f32 %v2416, %v2427
  %v2481 = vadd.f32 %v2417, %v2427
  %v2482 = vadd.f32 %v2418, %v2427
  %v2483 = vadd.f32 %v2419, %v2427
  %v2484 = vadd.f32 %v2420, %v2427
  %v2485 = vadd.f32 %v2421, %v2427
  %v2486 = vmax.f32 %v2429, 0.0
  %v2487 = vmax.f32 %v2430, 0.0
  %v2488 = vmax.f32 %v2431, 0.0
  %v2489 = vmax.f32 %v2432, 0.0
  %v2490 = vmax.f32 %v2433, 0.0
  %v2491 = vmax.f32 %v2434, 0.0
  %v2492 = vmax.f32 %v2435, 0.0
  %v2493 = vmax.f32 %v2436, 0.0
  %v2494 = vmax.f32 %v2437, 0.0
  %v2495 = vmax.f32 %v2438, 0.0
  %v2496 = vmax.f32 %v2439, 0.0
  %v2497 = vmax.f32 %v2440, 0.0
  %v2498 = vmax.f32 %v2441, 0.0
  %v2499 = vmax.f32 %v2442, 0.0
  %v2500 = vmax.f32 %v2443, 0.0
  %v2501 = vmax.f32 %v2444, 0.0
  %v2502 = vmax.f32 %v2445, 0.0
  %v2503 = vmax.f32 %v2446, 0.0
  %v2504 = vmax.f32 %v2447, 0.0
  %v2505 = vmax.f32 %v2448, 0.0
  %v2506 = vmax.f32 %v2449, 0.0
  %v2507 = vmax.f32 %v2450, 0.0
  %v2508 = vmax.f32 %v2451, 0.0
  %v2509 = vmax.f32 %v2452, 0.0
  %v2510 = vmax.f32 %v2453, 0.0
  %v2511 = vmax.f32 %v2454, 0.0
  %v2512 = vmax.f32 %v2455, 0.0
  %v2513 = vmax.f32 %v2456, 0.0
  %v2514 = vmax.f32 %v2457, 0.0
  %v2515 = vmax.f32 %v2458, 0.0
  %v2516 = vmax.f32 %v2459, 0.0
  %v2517 = vmax.f32 %v2460, 0.0
  %v2518 = vmax.f32 %v2461, 0.0
  %v2519 = vmax.f32 %v2462, 0.0
  %v2520 = vmax.f32 %v2463, 0.0
  %v2521 = vmax.f32 %v2464, 0.0
  %v2522 = vmax.f32 %v2465, 0.0
  %v2523 = vmax.f32 %v2466, 0.0
  %v2524 = vmax.f32 %v2467, 0.0
  %v2525 = vmax.f32 %v2468, 0.0
  %v2526 = vmax.f32 %v2469, 0.0
  %v2527 = vmax.f32 %v2470, 0.0
  %v2528 = vmax.f32 %v2471, 0.0
  %v2529 = vmax.f32 %v2472, 0.0
  %v2530 = vmax.f32 %v2473, 0.0
  %v2531 = vmax.f32 %v2474, 0.0
  %v2532 = vmax.f32 %v2475, 0.0
  %v2533 = vmax.f32 %v2476, 0.0
  %v2534 = vmax.f32 %v2477, 0.0
  %v2535 = vmax.f32 %v2478, 0.0
  %v2536 = vmax.f32 %v2479, 0.0
  %v2537 = vmax.f32 %v2480, 0.0
  %v2538 = vmax.f32 %v2481, 0.0
  %v2539 = vmax.f32 %v2482, 0.0
  %v2540 = vmax.f32 %v2483, 0.0
  %v2541 = vmax.f32 %v2484, 0.0
  %v2542 = vmax.f32 %v2485, 0.0
  %v2543 = vpack.c.bf16 %v2487, %v2486
  %v2544 = vpack.c.bf16 %v2489, %v2488
  %v2545 = vpack.c.bf16 %v2491, %v2490
  %v2546 = vpack.c.bf16 %v2493, %v2492
  %v2547 = vpack.c.bf16 %v2495, %v2494
  %v2548 = vpack.c.bf16 %v2497, %v2496
  %v2549 = vpack.c.bf16 %v2499, %v2498
  %v2550 = vpack.c.bf16 %v2501, %v2500
  %v2551 = vpack.c.bf16 %v2503, %v2502
  %v2552 = vpack.c.bf16 %v2505, %v2504
  %v2553 = vpack.c.bf16 %v2507, %v2506
  %v2554 = vpack.c.bf16 %v2509, %v2508
  %v2555 = vpack.c.bf16 %v2511, %v2510
  %v2556 = vpack.c.bf16 %v2513, %v2512
  %v2557 = vpack.c.bf16 %v2515, %v2514
  %v2558 = vpack.c.bf16 %v2517, %v2516
  %v2559 = vpack.c.bf16 %v2519, %v2518
  %v2560 = vpack.c.bf16 %v2521, %v2520
  %v2561 = vpack.c.bf16 %v2523, %v2522
  %v2562 = vpack.c.bf16 %v2525, %v2524
  %v2563 = vpack.c.bf16 %v2527, %v2526
  %v2564 = vpack.c.bf16 %v2529, %v2528
  %v2565 = vpack.c.bf16 %v2531, %v2530
  %v2566 = vpack.c.bf16 %v2533, %v2532
  %v2567 = vpack.c.bf16 %v2535, %v2534
  %v2568 = vpack.c.bf16 %v2537, %v2536
  %v2569 = vpack.c.bf16 %v2539, %v2538
  %v2570 = vpack.c.bf16 %v2541, %v2540
  %v2571 = vpack.c.bf16 %v2542, %v2542
  %v2601 = vunpack.c.l.b16 %v2543
  %v2602 = vunpack.c.h.b16 %v2543
  %v2603 = vunpack.c.l.b16 %v2544
  %v2604 = vunpack.c.h.b16 %v2544
  %v2605 = vunpack.c.l.b16 %v2545
  %v2606 = vunpack.c.h.b16 %v2545
  %v2607 = vunpack.c.l.b16 %v2546
  %v2608 = vunpack.c.h.b16 %v2546
  %v2609 = vunpack.c.l.b16 %v2547
  %v2610 = vunpack.c.h.b16 %v2547
  %v2611 = vunpack.c.l.b16 %v2548
  %v2612 = vunpack.c.h.b16 %v2548
  %v2613 = vunpack.c.l.b16 %v2549
  %v2614 = vunpack.c.h.b16 %v2549
  %v2615 = vunpack.c.l.b16 %v2550
  %v2616 = vunpack.c.h.b16 %v2550
  %v2617 = vunpack.c.l.b16 %v2551
  %v2618 = vunpack.c.h.b16 %v2551
  %v2619 = vunpack.c.l.b16 %v2552
  %v2620 = vunpack.c.h.b16 %v2552
  %v2621 = vunpack.c.l.b16 %v2553
  %v2622 = vunpack.c.h.b16 %v2553
  %v2623 = vunpack.c.l.b16 %v2554
  %v2624 = vunpack.c.h.b16 %v2554
  %v2625 = vunpack.c.l.b16 %v2555
  %v2626 = vunpack.c.h.b16 %v2555
  %v2627 = vunpack.c.l.b16 %v2556
  %v2628 = vunpack.c.h.b16 %v2556
  %v2629 = vunpack.c.l.b16 %v2557
  %v2630 = vunpack.c.h.b16 %v2557
  %v2631 = vunpack.c.l.b16 %v2558
  %v2632 = vunpack.c.h.b16 %v2558
  %v2633 = vunpack.c.l.b16 %v2559
  %v2634 = vunpack.c.h.b16 %v2559
  %v2635 = vunpack.c.l.b16 %v2560
  %v2636 = vunpack.c.h.b16 %v2560
  %v2637 = vunpack.c.l.b16 %v2561
  %v2638 = vunpack.c.h.b16 %v2561
  %v2639 = vunpack.c.l.b16 %v2562
  %v2640 = vunpack.c.h.b16 %v2562
  %v2641 = vunpack.c.l.b16 %v2563
  %v2642 = vunpack.c.h.b16 %v2563
  %v2643 = vunpack.c.l.b16 %v2564
  %v2644 = vunpack.c.h.b16 %v2564
  %v2645 = vunpack.c.l.b16 %v2565
  %v2646 = vunpack.c.h.b16 %v2565
  %v2647 = vunpack.c.l.b16 %v2566
  %v2648 = vunpack.c.h.b16 %v2566
  %v2649 = vunpack.c.l.b16 %v2567
  %v2650 = vunpack.c.h.b16 %v2567
  %v2651 = vunpack.c.l.b16 %v2568
  %v2652 = vunpack.c.h.b16 %v2568
  %v2653 = vunpack.c.l.b16 %v2569
  %v2654 = vunpack.c.h.b16 %v2569
  %v2655 = vunpack.c.l.b16 %v2570
  %v2656 = vunpack.c.h.b16 %v2570
  %v2657 = vunpack.c.l.b16 %v2571
  %v2658 = vpack.c.b16 %v2601, %v2601
  %v2659 = vpack.c.b16 %v2602, %v2602
  %v2660 = vpack.c.b16 %v2603, %v2603
  %v2661 = vpack.c.b16 %v2604, %v2604
  %v2662 = vpack.c.b16 %v2605, %v2605
  %v2663 = vpack.c.b16 %v2606, %v2606
  %v2664 = vpack.c.b16 %v2607, %v2607
  %v2665 = vpack.c.b16 %v2608, %v2608
  %v2666 = vpack.c.b16 %v2609, %v2609
  %v2667 = vpack.c.b16 %v2610, %v2610
  %v2668 = vpack.c.b16 %v2611, %v2611
  %v2669 = vpack.c.b16 %v2612, %v2612
  %v2670 = vpack.c.b16 %v2613, %v2613
  %v2671 = vpack.c.b16 %v2614, %v2614
  %v2672 = vpack.c.b16 %v2615, %v2615
  %v2673 = vpack.c.b16 %v2616, %v2616
  %v2674 = vpack.c.b16 %v2617, %v2617
  %v2675 = vpack.c.b16 %v2618, %v2618
  %v2676 = vpack.c.b16 %v2619, %v2619
  %v2677 = vpack.c.b16 %v2620, %v2620
  %v2678 = vpack.c.b16 %v2621, %v2621
  %v2679 = vpack.c.b16 %v2622, %v2622
  %v2680 = vpack.c.b16 %v2623, %v2623
  %v2681 = vpack.c.b16 %v2624, %v2624
  %v2682 = vpack.c.b16 %v2625, %v2625
  %v2683 = vpack.c.b16 %v2626, %v2626
  %v2684 = vpack.c.b16 %v2627, %v2627
  %v2685 = vpack.c.b16 %v2628, %v2628
  %v2686 = vpack.c.b16 %v2629, %v2629
  %v2687 = vpack.c.b16 %v2630, %v2630
  %v2688 = vpack.c.b16 %v2631, %v2631
  %v2689 = vpack.c.b16 %v2632, %v2632
  %v2690 = vpack.c.b16 %v2633, %v2633
  %v2691 = vpack.c.b16 %v2634, %v2634
  %v2692 = vpack.c.b16 %v2635, %v2635
  %v2693 = vpack.c.b16 %v2636, %v2636
  %v2694 = vpack.c.b16 %v2637, %v2637
  %v2695 = vpack.c.b16 %v2638, %v2638
  %v2696 = vpack.c.b16 %v2639, %v2639
  %v2697 = vpack.c.b16 %v2640, %v2640
  %v2698 = vpack.c.b16 %v2641, %v2641
  %v2699 = vpack.c.b16 %v2642, %v2642
  %v2700 = vpack.c.b16 %v2643, %v2643
  %v2701 = vpack.c.b16 %v2644, %v2644
  %v2702 = vpack.c.b16 %v2645, %v2645
  %v2703 = vpack.c.b16 %v2646, %v2646
  %v2704 = vpack.c.b16 %v2647, %v2647
  %v2705 = vpack.c.b16 %v2648, %v2648
  %v2706 = vpack.c.b16 %v2649, %v2649
  %v2707 = vpack.c.b16 %v2650, %v2650
  %v2708 = vpack.c.b16 %v2651, %v2651
  %v2709 = vpack.c.b16 %v2652, %v2652
  %v2710 = vpack.c.b16 %v2653, %v2653
  %v2711 = vpack.c.b16 %v2654, %v2654
  %v2712 = vpack.c.b16 %v2655, %v2655
  %v2713 = vpack.c.b16 %v2656, %v2656
  %v2714 = vpack.c.b16 %v2657, %v2657
  %vm2772 = vcmask 519168
  %2773 = vst.msk [vmem:[%s6] sm:$0xf] %vm2772, %v2658
  %2774 = vst.msk [vmem:[%s6 + $0x4] sm:$0xf] %vm2772, %v2659
  %2775 = vst.msk [vmem:[%s6 + $0x8] sm:$0xf] %vm2772, %v2660
  %2776 = vst.msk [vmem:[%s6 + $0xc] sm:$0xf] %vm2772, %v2661
  %2777 = vst.msk [vmem:[%s6 + $0x10] sm:$0xf] %vm2772, %v2662
  %2778 = vst.msk [vmem:[%s6 + $0x14] sm:$0xf] %vm2772, %v2663
  %2779 = vst.msk [vmem:[%s6 + $0x18] sm:$0xf] %vm2772, %v2664
  %2780 = vst.msk [vmem:[%s6 + $0x1c] sm:$0xf] %vm2772, %v2665
  %2781 = vst.msk [vmem:[%s6 + $0x20] sm:$0xf] %vm2772, %v2666
  %2782 = vst.msk [vmem:[%s6 + $0x24] sm:$0xf] %vm2772, %v2667
  %2783 = vst.msk [vmem:[%s6 + $0x28] sm:$0xf] %vm2772, %v2668
  %2784 = vst.msk [vmem:[%s6 + $0x2c] sm:$0xf] %vm2772, %v2669
  %2785 = vst.msk [vmem:[%s6 + $0x30] sm:$0xf] %vm2772, %v2670
  %2786 = vst.msk [vmem:[%s6 + $0x34] sm:$0xf] %vm2772, %v2671
  %2787 = vst.msk [vmem:[%s6 + $0x38] sm:$0xf] %vm2772, %v2672
  %2788 = vst.msk [vmem:[%s6 + $0x3c] sm:$0xf] %vm2772, %v2673
  %2789 = vst.msk [vmem:[%s6 + $0x40] sm:$0xf] %vm2772, %v2674
  %2790 = vst.msk [vmem:[%s6 + $0x44] sm:$0xf] %vm2772, %v2675
  %2791 = vst.msk [vmem:[%s6 + $0x48] sm:$0xf] %vm2772, %v2676
  %2792 = vst.msk [vmem:[%s6 + $0x4c] sm:$0xf] %vm2772, %v2677
  %2793 = vst.msk [vmem:[%s6 + $0x50] sm:$0xf] %vm2772, %v2678
  %2794 = vst.msk [vmem:[%s6 + $0x54] sm:$0xf] %vm2772, %v2679
  %2795 = vst.msk [vmem:[%s6 + $0x58] sm:$0xf] %vm2772, %v2680
  %2796 = vst.msk [vmem:[%s6 + $0x5c] sm:$0xf] %vm2772, %v2681
  %2797 = vst.msk [vmem:[%s6 + $0x60] sm:$0xf] %vm2772, %v2682
  %2798 = vst.msk [vmem:[%s6 + $0x64] sm:$0xf] %vm2772, %v2683
  %2799 = vst.msk [vmem:[%s6 + $0x68] sm:$0xf] %vm2772, %v2684
  %2800 = vst.msk [vmem:[%s6 + $0x6c] sm:$0xf] %vm2772, %v2685
  %2801 = vst.msk [vmem:[%s6 + $0x70] sm:$0xf] %vm2772, %v2686
  %2802 = vst.msk [vmem:[%s6 + $0x74] sm:$0xf] %vm2772, %v2687
  %2803 = vst.msk [vmem:[%s6 + $0x78] sm:$0xf] %vm2772, %v2688
  %2804 = vst.msk [vmem:[%s6 + $0x7c] sm:$0xf] %vm2772, %v2689
  %2805 = vst.msk [vmem:[%s6 + $0x80] sm:$0xf] %vm2772, %v2690
  %2806 = vst.msk [vmem:[%s6 + $0x84] sm:$0xf] %vm2772, %v2691
  %2807 = vst.msk [vmem:[%s6 + $0x88] sm:$0xf] %vm2772, %v2692
  %2808 = vst.msk [vmem:[%s6 + $0x8c] sm:$0xf] %vm2772, %v2693
  %2809 = vst.msk [vmem:[%s6 + $0x90] sm:$0xf] %vm2772, %v2694
  %2810 = vst.msk [vmem:[%s6 + $0x94] sm:$0xf] %vm2772, %v2695
  %2811 = vst.msk [vmem:[%s6 + $0x98] sm:$0xf] %vm2772, %v2696
  %2812 = vst.msk [vmem:[%s6 + $0x9c] sm:$0xf] %vm2772, %v2697
  %2813 = vst.msk [vmem:[%s6 + $0xa0] sm:$0xf] %vm2772, %v2698
  %2814 = vst.msk [vmem:[%s6 + $0xa4] sm:$0xf] %vm2772, %v2699
  %2815 = vst.msk [vmem:[%s6 + $0xa8] sm:$0xf] %vm2772, %v2700
  %2816 = vst.msk [vmem:[%s6 + $0xac] sm:$0xf] %vm2772, %v2701
  %2817 = vst.msk [vmem:[%s6 + $0xb0] sm:$0xf] %vm2772, %v2702
  %2818 = vst.msk [vmem:[%s6 + $0xb4] sm:$0xf] %vm2772, %v2703
  %2819 = vst.msk [vmem:[%s6 + $0xb8] sm:$0xf] %vm2772, %v2704
  %2820 = vst.msk [vmem:[%s6 + $0xbc] sm:$0xf] %vm2772, %v2705
  %2821 = vst.msk [vmem:[%s6 + $0xc0] sm:$0xf] %vm2772, %v2706
  %2822 = vst.msk [vmem:[%s6 + $0xc4] sm:$0xf] %vm2772, %v2707
  %2823 = vst.msk [vmem:[%s6 + $0xc8] sm:$0xf] %vm2772, %v2708
  %2824 = vst.msk [vmem:[%s6 + $0xcc] sm:$0xf] %vm2772, %v2709
  %2825 = vst.msk [vmem:[%s6 + $0xd0] sm:$0xf] %vm2772, %v2710
  %2826 = vst.msk [vmem:[%s6 + $0xd4] sm:$0xf] %vm2772, %v2711
  %2827 = vst.msk [vmem:[%s6 + $0xd8] sm:$0xf] %vm2772, %v2712
  %2828 = vst.msk [vmem:[%s6 + $0xdc] sm:$0xf] %vm2772, %v2713
  %vm2829 = vcmask 516096
  %2830 = vst.msk [vmem:[%s6 + $0xe0] sm:$0x1] %vm2829, %v2714
  // Predicated region
  $region26: #{model_forward.4} parent=0 // pred_check
    _
  $region27: #{model_forward.4} parent=0 // pred_check_branch
    %2832 = sbr.rel (0) target = $region29
  $region28: #{model_forward.4} parent=0 // pred_region
    _
  $region29: #{model_forward.4} parent=0 // pred_fallthru
    _
  // Predicated region
  $region30: #{model_forward.4} parent=0 // pred_check
    _
  $region31: #{model_forward.4} parent=0 // pred_check_branch
    %2834 = sbr.rel (0) target = $region33
  $region32: #{model_forward.4} parent=0 // pred_region
    _
  $region33: #{model_forward.4} parent=0 // pred_fallthru
    _

// kernel: model_forward.5
$region0: #{model_forward.5}
  #allocation0 [shape = 'u32[]', space=smem, size = 0x4, offset = 0x4, fixed_abs, tag = 'smem constant byte address 0x4 - core index']
  #allocation1 [shape = 'u32[144,128]{1,0:T(1,128)}', space=vmem, size = 0x12000, scoped, tag = 'internal scratch']
  %s0 = inlined_call_operand.vmem [shape: bf16[72,576], index: 0, kind: input, shape index: {}]
  %s1 = inlined_call_operand.vmem [shape: bf16[72,576], index: 1, kind: input, shape index: {}]
  %s2 = inlined_call_operand.vmem [shape: bf16[72,576], index: 2, kind: input, shape index: {}]
  %s3 = inlined_call_operand.vmem [shape: bf16[72,576], index: 3, kind: input, shape index: {}]
  %s4 = inlined_call_operand.vmem [shape: bf16[576,128], index: 4, kind: input, shape index: {}]
  %s5 = inlined_call_operand.vmem [shape: f32[1,128], index: 5, kind: input, shape index: {}]
  %s6 = inlined_call_operand.vmem [shape: bf16[72,128], index: 6, kind: output, shape index: {}]
  %s7 = sld [smem:[#allocation0]]
  $region34: #{model_forward.5} parent=0
    _
  %s9 = ssub.s32 1, %s7
  %s10 = scalar_select 0, %s9, %s7
  // Predicated region
  $region2: #{model_forward.5} parent=0 // pred_check
    _
  $region3: #{model_forward.5} parent=0 // pred_check_branch
    %12 = sbr.rel (0) target = $region5
  $region4: #{model_forward.5} parent=0 // pred_region
    _
  $region5: #{model_forward.5} parent=0 // pred_fallthru
    _
  // Predicated region
  $region6: #{model_forward.5} parent=0 // pred_check
    _
  $region7: #{model_forward.5} parent=0 // pred_check_branch
    %14 = sbr.rel (0) target = $region9
  $region8: #{model_forward.5} parent=0 // pred_region
    _
  $region9: #{model_forward.5} parent=0 // pred_fallthru
    _
  // Predicated region
  $region10: #{model_forward.5} parent=0 // pred_check
    _
  $region11: #{model_forward.5} parent=0 // pred_check_branch
    %16 = sbr.rel (0) target = $region13
  $region12: #{model_forward.5} parent=0 // pred_region
    _
  $region13: #{model_forward.5} parent=0 // pred_fallthru
    _
  // Predicated region
  $region14: #{model_forward.5} parent=0 // pred_check
    _
  $region15: #{model_forward.5} parent=0 // pred_check_branch
    %18 = sbr.rel (0) target = $region17
  $region16: #{model_forward.5} parent=0 // pred_region
    _
  $region17: #{model_forward.5} parent=0 // pred_fallthru
    _
  // Predicated region
  $region18: #{model_forward.5} parent=0 // pred_check
    _
  $region19: #{model_forward.5} parent=0 // pred_check_branch
    %20 = sbr.rel (0) target = $region21
  $region20: #{model_forward.5} parent=0 // pred_region
    _
  $region21: #{model_forward.5} parent=0 // pred_fallthru
    _
  // Predicated region
  $region22: #{model_forward.5} parent=0 // pred_check
    _
  $region23: #{model_forward.5} parent=0 // pred_check_branch
    %22 = sbr.rel (0) target = $region25
  $region24: #{model_forward.5} parent=0 // pred_region
    _
  $region25: #{model_forward.5} parent=0 // pred_fallthru
    _
  %v24 = vld [vmem:[%s4] sm:$0xf]
  %v25 = vld [vmem:[%s4 + $0x4] sm:$0xf]
  %v26 = vld [vmem:[%s4 + $0x8] sm:$0xf]
  %v27 = vld [vmem:[%s4 + $0xc] sm:$0xf]
  %v28 = vld [vmem:[%s4 + $0x10] sm:$0xf]
  %v29 = vld [vmem:[%s4 + $0x14] sm:$0xf]
  %v30 = vld [vmem:[%s4 + $0x18] sm:$0xf]
  %v31 = vld [vmem:[%s4 + $0x1c] sm:$0xf]
  %v32 = vld [vmem:[%s4 + $0x20] sm:$0xf]
  %v33 = vld [vmem:[%s4 + $0x24] sm:$0xf]
  %v34 = vld [vmem:[%s4 + $0x28] sm:$0xf]
  %v35 = vld [vmem:[%s4 + $0x2c] sm:$0xf]
  %v36 = vld [vmem:[%s4 + $0x30] sm:$0xf]
  %v37 = vld [vmem:[%s4 + $0x34] sm:$0xf]
  %v38 = vld [vmem:[%s4 + $0x38] sm:$0xf]
  %v39 = vld [vmem:[%s4 + $0x3c] sm:$0xf]
  %v40 = vld [vmem:[%s4 + $0x40] sm:$0xf]
  %v41 = vld [vmem:[%s4 + $0x44] sm:$0xf]
  %v42 = vld [vmem:[%s4 + $0x48] sm:$0xf]
  %v43 = vld [vmem:[%s4 + $0x4c] sm:$0xf]
  %v44 = vld [vmem:[%s4 + $0x50] sm:$0xf]
  %v45 = vld [vmem:[%s4 + $0x54] sm:$0xf]
  %v46 = vld [vmem:[%s4 + $0x58] sm:$0xf]
  %v47 = vld [vmem:[%s4 + $0x5c] sm:$0xf]
  %v48 = vld [vmem:[%s4 + $0x60] sm:$0xf]
  %v49 = vld [vmem:[%s4 + $0x64] sm:$0xf]
  %v50 = vld [vmem:[%s4 + $0x68] sm:$0xf]
  %v51 = vld [vmem:[%s4 + $0x6c] sm:$0xf]
  %v52 = vld [vmem:[%s4 + $0x70] sm:$0xf]
  %v53 = vld [vmem:[%s4 + $0x74] sm:$0xf]
  %v54 = vld [vmem:[%s4 + $0x78] sm:$0xf]
  %v55 = vld [vmem:[%s4 + $0x7c] sm:$0xf]
  %v56 = vld [vmem:[%s4 + $0x80] sm:$0xf]
  %v57 = vld [vmem:[%s4 + $0x84] sm:$0xf]
  %v58 = vld [vmem:[%s4 + $0x88] sm:$0xf]
  %v59 = vld [vmem:[%s4 + $0x8c] sm:$0xf]
  %v60 = vld [vmem:[%s4 + $0x90] sm:$0xf]
  %v61 = vld [vmem:[%s4 + $0x94] sm:$0xf]
  %v62 = vld [vmem:[%s4 + $0x98] sm:$0xf]
  %v63 = vld [vmem:[%s4 + $0x9c] sm:$0xf]
  %v64 = vld [vmem:[%s4 + $0xa0] sm:$0xf]
  %v65 = vld [vmem:[%s4 + $0xa4] sm:$0xf]
  %v66 = vld [vmem:[%s4 + $0xa8] sm:$0xf]
  %v67 = vld [vmem:[%s4 + $0xac] sm:$0xf]
  %v68 = vld [vmem:[%s4 + $0xb0] sm:$0xf]
  %v69 = vld [vmem:[%s4 + $0xb4] sm:$0xf]
  %v70 = vld [vmem:[%s4 + $0xb8] sm:$0xf]
  %v71 = vld [vmem:[%s4 + $0xbc] sm:$0xf]
  %v72 = vld [vmem:[%s4 + $0xc0] sm:$0xf]
  %v73 = vld [vmem:[%s4 + $0xc4] sm:$0xf]
  %v74 = vld [vmem:[%s4 + $0xc8] sm:$0xf]
  %v75 = vld [vmem:[%s4 + $0xcc] sm:$0xf]
  %v76 = vld [vmem:[%s4 + $0xd0] sm:$0xf]
  %v77 = vld [vmem:[%s4 + $0xd4] sm:$0xf]
  %v78 = vld [vmem:[%s4 + $0xd8] sm:$0xf]
  %v79 = vld [vmem:[%s4 + $0xdc] sm:$0xf]
  %v80 = vld [vmem:[%s4 + $0xe0] sm:$0xf]
  %v81 = vld [vmem:[%s4 + $0xe4] sm:$0xf]
  %v82 = vld [vmem:[%s4 + $0xe8] sm:$0xf]
  %v83 = vld [vmem:[%s4 + $0xec] sm:$0xf]
  %v84 = vld [vmem:[%s4 + $0xf0] sm:$0xf]
  %v85 = vld [vmem:[%s4 + $0xf4] sm:$0xf]
  %v86 = vld [vmem:[%s4 + $0xf8] sm:$0xf]
  %v87 = vld [vmem:[%s4 + $0xfc] sm:$0xf]
  %v88 = vld [vmem:[%s4 + $0x100] sm:$0xf]
  %v89 = vld [vmem:[%s4 + $0x104] sm:$0xf]
  %v90 = vld [vmem:[%s4 + $0x108] sm:$0xf]
  %v91 = vld [vmem:[%s4 + $0x10c] sm:$0xf]
  %v92 = vld [vmem:[%s4 + $0x110] sm:$0xf]
  %v93 = vld [vmem:[%s4 + $0x114] sm:$0xf]
  %v94 = vld [vmem:[%s4 + $0x118] sm:$0xf]
  %v95 = vld [vmem:[%s4 + $0x11c] sm:$0xf]
  %v96 = vld [vmem:[%s0] sm:$0xff]
  %v97 = vld [vmem:[%s0 + $0x8] sm:$0xff]
  %v98 = vld [vmem:[%s0 + $0x10] sm:$0xf]
  %v99 = vld [vmem:[%s0 + $0x14] sm:$0xff]
  %v100 = vld [vmem:[%s0 + $0x1c] sm:$0xff]
  %v101 = vld [vmem:[%s0 + $0x24] sm:$0xf]
  %v102 = vld [vmem:[%s0 + $0x28] sm:$0xff]
  %v103 = vld [vmem:[%s0 + $0x30] sm:$0xff]
  %v104 = vld [vmem:[%s0 + $0x38] sm:$0xf]
  %v105 = vld [vmem:[%s0 + $0x3c] sm:$0xff]
  %v106 = vld [vmem:[%s0 + $0x44] sm:$0xff]
  %v107 = vld [vmem:[%s0 + $0x4c] sm:$0xf]
  %v108 = vld [vmem:[%s0 + $0x50] sm:$0xff]
  %v109 = vld [vmem:[%s0 + $0x58] sm:$0xff]
  %v110 = vld [vmem:[%s0 + $0x60] sm:$0xf]
  %v111 = vld [vmem:[%s0 + $0x64] sm:$0xff]
  %v112 = vld [vmem:[%s0 + $0x6c] sm:$0xff]
  %v113 = vld [vmem:[%s0 + $0x74] sm:$0xf]
  %v114 = vld [vmem:[%s0 + $0x78] sm:$0xff]
  %v115 = vld [vmem:[%s0 + $0x80] sm:$0xff]
  %v116 = vld [vmem:[%s0 + $0x88] sm:$0xf]
  %v117 = vld [vmem:[%s0 + $0x8c] sm:$0xff]
  %v118 = vld [vmem:[%s0 + $0x94] sm:$0xff]
  %v119 = vld [vmem:[%s0 + $0x9c] sm:$0xf]
  %v120 = vld [vmem:[%s0 + $0xa0] sm:$0xff]
  %v121 = vld [vmem:[%s0 + $0xa8] sm:$0xff]
  %v122 = vld [vmem:[%s0 + $0xb0] sm:$0xf]
  %v150 = vunpack.c.l.b16 %v96
  %v151 = vunpack.c.h.b16 %v96
  %v152 = vunpack.c.l.b16 %v97
  %v153 = vunpack.c.h.b16 %v97
  %v154 = vunpack.c.l.b16 %v98
  %v155 = vunpack.c.l.b16 %v99
  %v156 = vunpack.c.h.b16 %v99
  %v157 = vunpack.c.l.b16 %v100
  %v158 = vunpack.c.h.b16 %v100
  %v159 = vunpack.c.l.b16 %v101
  %v160 = vunpack.c.l.b16 %v102
  %v161 = vunpack.c.h.b16 %v102
  %v162 = vunpack.c.l.b16 %v103
  %v163 = vunpack.c.h.b16 %v103
  %v164 = vunpack.c.l.b16 %v104
  %v165 = vunpack.c.l.b16 %v105
  %v166 = vunpack.c.h.b16 %v105
  %v167 = vunpack.c.l.b16 %v106
  %v168 = vunpack.c.h.b16 %v106
  %v169 = vunpack.c.l.b16 %v107
  %v170 = vunpack.c.l.b16 %v108
  %v171 = vunpack.c.h.b16 %v108
  %v172 = vunpack.c.l.b16 %v109
  %v173 = vunpack.c.h.b16 %v109
  %v174 = vunpack.c.l.b16 %v110
  %v175 = vunpack.c.l.b16 %v111
  %v176 = vunpack.c.h.b16 %v111
  %v177 = vunpack.c.l.b16 %v112
  %v178 = vunpack.c.h.b16 %v112
  %v179 = vunpack.c.l.b16 %v113
  %v180 = vunpack.c.l.b16 %v114
  %v181 = vunpack.c.h.b16 %v114
  %v182 = vunpack.c.l.b16 %v115
  %v183 = vunpack.c.h.b16 %v115
  %v184 = vunpack.c.l.b16 %v116
  %v185 = vunpack.c.l.b16 %v117
  %v186 = vunpack.c.h.b16 %v117
  %v187 = vunpack.c.l.b16 %v118
  %v188 = vunpack.c.h.b16 %v118
  %v189 = vunpack.c.l.b16 %v119
  %v190 = vunpack.c.l.b16 %v120
  %v191 = vunpack.c.h.b16 %v120
  %v192 = vunpack.c.l.b16 %v121
  %v193 = vunpack.c.h.b16 %v121
  %v194 = vunpack.c.l.b16 %v122
  %v195 = vpack.c.b16 %v155, %v150
  %v196 = vpack.c.b16 %v156, %v151
  %v197 = vpack.c.b16 %v157, %v152
  %v198 = vpack.c.b16 %v158, %v153
  %v199 = vpack.c.b16 %v159, %v154
  %v200 = vpack.c.b16 %v165, %v160
  %v201 = vpack.c.b16 %v166, %v161
  %v202 = vpack.c.b16 %v167, %v162
  %v203 = vpack.c.b16 %v168, %v163
  %v204 = vpack.c.b16 %v169, %v164
  %v205 = vpack.c.b16 %v175, %v170
  %v206 = vpack.c.b16 %v176, %v171
  %v207 = vpack.c.b16 %v177, %v172
  %v208 = vpack.c.b16 %v178, %v173
  %v209 = vpack.c.b16 %v179, %v174
  %v210 = vpack.c.b16 %v185, %v180
  %v211 = vpack.c.b16 %v186, %v181
  %v212 = vpack.c.b16 %v187, %v182
  %v213 = vpack.c.b16 %v188, %v183
  %v214 = vpack.c.b16 %v189, %v184
  %v215 = vpack.c.b16 %v190, %v190
  %v216 = vpack.c.b16 %v191, %v191
  %v217 = vpack.c.b16 %v192, %v192
  %v218 = vpack.c.b16 %v193, %v193
  %v219 = vpack.c.b16 %v194, %v194
  %v312 = vunpack.c.l.b16 %v24
  %v313 = vunpack.c.l.b16 %v25
  %v314 = vunpack.c.l.b16 %v26
  %v315 = vunpack.c.l.b16 %v27
  %v316 = vunpack.c.l.b16 %v28
  %v317 = vunpack.c.l.b16 %v29
  %v318 = vunpack.c.l.b16 %v30
  %v319 = vunpack.c.l.b16 %v31
  %v320 = vunpack.c.l.b16 %v32
  %v321 = vunpack.c.l.b16 %v33
  %v322 = vunpack.c.l.b16 %v34
  %v323 = vunpack.c.l.b16 %v35
  %v324 = vunpack.c.l.b16 %v36
  %v325 = vunpack.c.l.b16 %v37
  %v326 = vunpack.c.l.b16 %v38
  %v327 = vunpack.c.l.b16 %v39
  %v328 = vunpack.c.l.b16 %v40
  %v329 = vunpack.c.l.b16 %v41
  %v330 = vunpack.c.l.b16 %v42
  %v331 = vunpack.c.l.b16 %v43
  %v332 = vunpack.c.l.b16 %v44
  %v333 = vunpack.c.l.b16 %v45
  %v334 = vunpack.c.l.b16 %v46
  %v335 = vunpack.c.l.b16 %v47
  %v336 = vunpack.c.l.b16 %v48
  %v337 = vunpack.c.l.b16 %v49
  %v338 = vunpack.c.l.b16 %v50
  %v339 = vunpack.c.l.b16 %v51
  %v340 = vunpack.c.l.b16 %v52
  %v341 = vunpack.c.l.b16 %v53
  %v342 = vunpack.c.l.b16 %v54
  %v343 = vunpack.c.l.b16 %v55
  %v344 = vunpack.c.l.b16 %v56
  %v345 = vunpack.c.l.b16 %v57
  %v346 = vunpack.c.l.b16 %v58
  %v347 = vunpack.c.l.b16 %v59
  %v348 = vunpack.c.l.b16 %v60
  %v349 = vunpack.c.l.b16 %v61
  %v350 = vunpack.c.l.b16 %v62
  %v351 = vunpack.c.l.b16 %v63
  %v352 = vunpack.c.l.b16 %v64
  %v353 = vunpack.c.l.b16 %v65
  %v354 = vunpack.c.l.b16 %v66
  %v355 = vunpack.c.l.b16 %v67
  %v356 = vunpack.c.l.b16 %v68
  %v357 = vunpack.c.l.b16 %v69
  %v358 = vunpack.c.l.b16 %v70
  %v359 = vunpack.c.l.b16 %v71
  %v360 = vunpack.c.l.b16 %v72
  %v361 = vunpack.c.l.b16 %v73
  %v362 = vunpack.c.l.b16 %v74
  %v363 = vunpack.c.l.b16 %v75
  %v364 = vunpack.c.l.b16 %v76
  %v365 = vunpack.c.l.b16 %v77
  %v366 = vunpack.c.l.b16 %v78
  %v367 = vunpack.c.l.b16 %v79
  %v368 = vunpack.c.l.b16 %v80
  %v369 = vunpack.c.l.b16 %v81
  %v370 = vunpack.c.l.b16 %v82
  %v371 = vunpack.c.l.b16 %v83
  %v372 = vunpack.c.l.b16 %v84
  %v373 = vunpack.c.l.b16 %v85
  %v374 = vunpack.c.l.b16 %v86
  %v375 = vunpack.c.l.b16 %v87
  %v376 = vunpack.c.l.b16 %v88
  %v377 = vunpack.c.l.b16 %v89
  %v378 = vunpack.c.l.b16 %v90
  %v379 = vunpack.c.l.b16 %v91
  %v380 = vunpack.c.l.b16 %v92
  %v381 = vunpack.c.l.b16 %v93
  %v382 = vunpack.c.l.b16 %v94
  %v383 = vunpack.c.l.b16 %v95
  %v384 = vpack.c.b16 %v313, %v312
  %v385 = vpack.c.b16 %v315, %v314
  %v386 = vpack.c.b16 %v317, %v316
  %v387 = vpack.c.b16 %v319, %v318
  %v388 = vpack.c.b16 %v321, %v320
  %v389 = vpack.c.b16 %v323, %v322
  %v390 = vpack.c.b16 %v325, %v324
  %v391 = vpack.c.b16 %v327, %v326
  %v392 = vpack.c.b16 %v329, %v328
  %v393 = vpack.c.b16 %v331, %v330
  %v394 = vpack.c.b16 %v333, %v332
  %v395 = vpack.c.b16 %v335, %v334
  %v396 = vpack.c.b16 %v337, %v336
  %v397 = vpack.c.b16 %v339, %v338
  %v398 = vpack.c.b16 %v341, %v340
  %v399 = vpack.c.b16 %v343, %v342
  %v400 = vpack.c.b16 %v345, %v344
  %v401 = vpack.c.b16 %v347, %v346
  %v402 = vpack.c.b16 %v349, %v348
  %v403 = vpack.c.b16 %v351, %v350
  %v404 = vpack.c.b16 %v353, %v352
  %v405 = vpack.c.b16 %v355, %v354
  %v406 = vpack.c.b16 %v357, %v356
  %v407 = vpack.c.b16 %v359, %v358
  %v408 = vpack.c.b16 %v361, %v360
  %v409 = vpack.c.b16 %v363, %v362
  %v410 = vpack.c.b16 %v365, %v364
  %v411 = vpack.c.b16 %v367, %v366
  %v412 = vpack.c.b16 %v369, %v368
  %v413 = vpack.c.b16 %v371, %v370
  %v414 = vpack.c.b16 %v373, %v372
  %v415 = vpack.c.b16 %v375, %v374
  %v416 = vpack.c.b16 %v377, %v376
  %v417 = vpack.c.b16 %v379, %v378
  %v418 = vpack.c.b16 %v381, %v380
  %v419 = vpack.c.b16 %v383, %v382
  %vm456 = vcmask 523264
  %v458 = vsel %vm456, %v199, 0
  %v461 = vsel %vm456, %v204, 0
  %v464 = vsel %vm456, %v209, 0
  %v467 = vsel %vm456, %v214, 0
  %v470 = vsel %vm456, %v219, 0
  %472 = vmatprep.subr.bf16.mxu0 0
  %473 = vmatpush1.bf16.msra.mxu0 %v384
  %474 = vmatprep.subr.bf16.mxu0 0
  %475 = vmatpush1.bf16.msra.mxu0 %v385
  %476 = vmatprep.subr.bf16.mxu0 0
  %477 = vmatpush1.bf16.msra.mxu0 %v386
  %478 = vmatprep.subr.bf16.mxu0 0
  %479 = vmatpush1.bf16.msra.mxu0 %v387
  %480 = vmatprep.subr.bf16.mxu0 0
  %481 = vmatpush1.bf16.msra.mxu0 %v388
  %482 = vmatprep.subr.bf16.mxu0 0
  %483 = vmatpush1.bf16.msra.mxu0 %v389
  %484 = vmatprep.subr.bf16.mxu0 0
  %485 = vmatpush1.bf16.msra.mxu0 %v390
  %486 = vmatprep.subr.bf16.mxu0 0
  %487 = vmatpush1.bf16.msra.mxu0 %v391
  %488 = vmatprep.subr.bf16.mxu0 0
  %489 = vmatpush1.bf16.msra.mxu0 %v392
  %490 = vmatprep.subr.bf16.mxu0 0
  %491 = vmatpush1.bf16.msra.mxu0 %v393
  %492 = vmatprep.subr.bf16.mxu0 0
  %493 = vmatpush1.bf16.msra.mxu0 %v394
  %494 = vmatprep.subr.bf16.mxu0 0
  %495 = vmatpush1.bf16.msra.mxu0 %v395
  %496 = vmatprep.subr.bf16.mxu0 0
  %497 = vmatpush1.bf16.msra.mxu0 %v396
  %498 = vmatprep.subr.bf16.mxu0 0
  %499 = vmatpush1.bf16.msra.mxu0 %v397
  %500 = vmatprep.subr.bf16.mxu0 0
  %501 = vmatpush1.bf16.msra.mxu0 %v398
  %502 = vmatprep.subr.bf16.mxu0 0
  %503 = vmatpush1.bf16.msra.mxu0 %v399
  %504 = vmatprep.mubr.bf16.mxu0 %v196
  %505 = vmatmul.mubr.bf16.gmra.mrb[0].mxu0 %v195
  %v506 = vpop.f32.mrb[0].mxu0
  %v507 = vadd.f32 0.0, %v506
  %v508 = vpop.f32.mrb[0].mxu0
  %v509 = vpop.f32.mrb[0].mxu0
  %v510 = vadd.f32 0.0, %v509
  %v511 = vpop.f32.mrb[0].mxu0
  %512 = vmatprep.mubr.bf16.mxu0 %v201
  %513 = vmatmul.mubr.bf16.gmra.mrb[0].mxu0 %v200
  %v514 = vpop.f32.mrb[0].mxu0
  %v515 = vadd.f32 0.0, %v514
  %v516 = vpop.f32.mrb[0].mxu0
  %v517 = vpop.f32.mrb[0].mxu0
  %v518 = vadd.f32 0.0, %v517
  %v519 = vpop.f32.mrb[0].mxu0
  %520 = vmatprep.mubr.bf16.mxu0 %v206
  %521 = vmatmul.mubr.bf16.gmra.mrb[0].mxu0 %v205
  %v522 = vpop.f32.mrb[0].mxu0
  %v523 = vadd.f32 0.0, %v522
  %v524 = vpop.f32.mrb[0].mxu0
  %v525 = vpop.f32.mrb[0].mxu0
  %v526 = vadd.f32 0.0, %v525
  %v527 = vpop.f32.mrb[0].mxu0
  %528 = vmatprep.mubr.bf16.mxu0 %v211
  %529 = vmatmul.mubr.bf16.gmra.mrb[0].mxu0 %v210
  %v530 = vpop.f32.mrb[0].mxu0
  %v531 = vadd.f32 0.0, %v530
  %v532 = vpop.f32.mrb[0].mxu0
  %v533 = vpop.f32.mrb[0].mxu0
  %v534 = vadd.f32 0.0, %v533
  %v535 = vpop.f32.mrb[0].mxu0
  %536 = vmatprep.mubr.bf16.mxu0 %v216
  %537 = vmatmul.mubr.bf16.gmra.mrb[0].mxu0 %v215
  %v538 = vpop.f32.mrb[0].mxu0
  %v539 = vadd.f32 0.0, %v538
  %v540 = vpop.f32.mrb[0].mxu0
  %v541 = vpop.f32.mrb[0].mxu0
  %v542 = vpop.f32.mrb[0].mxu0
  %543 = vdwg.mxu0
  %544 = vmatprep.subr.bf16.mxu0 0
  %545 = vmatpush1.bf16.msra.mxu0 %v400
  %546 = vmatprep.subr.bf16.mxu0 0
  %547 = vmatpush1.bf16.msra.mxu0 %v401
  %548 = vmatprep.subr.bf16.mxu0 0
  %549 = vmatpush1.bf16.msra.mxu0 %v402
  %550 = vmatprep.subr.bf16.mxu0 0
  %551 = vmatpush1.bf16.msra.mxu0 %v403
  %552 = vmatprep.subr.bf16.mxu0 0
  %553 = vmatpush1.bf16.msra.mxu0 %v404
  %554 = vmatprep.subr.bf16.mxu0 0
  %555 = vmatpush1.bf16.msra.mxu0 %v405
  %556 = vmatprep.subr.bf16.mxu0 0
  %557 = vmatpush1.bf16.msra.mxu0 %v406
  %558 = vmatprep.subr.bf16.mxu0 0
  %559 = vmatpush1.bf16.msra.mxu0 %v407
  %560 = vmatprep.subr.bf16.mxu0 0
  %561 = vmatpush1.bf16.msra.mxu0 %v408
  %562 = vmatprep.subr.bf16.mxu0 0
  %563 = vmatpush1.bf16.msra.mxu0 %v409
  %564 = vmatprep.subr.bf16.mxu0 0
  %565 = vmatpush1.bf16.msra.mxu0 %v410
  %566 = vmatprep.subr.bf16.mxu0 0
  %567 = vmatpush1.bf16.msra.mxu0 %v411
  %568 = vmatprep.subr.bf16.mxu0 0
  %569 = vmatpush1.bf16.msra.mxu0 %v412
  %570 = vmatprep.subr.bf16.mxu0 0
  %571 = vmatpush1.bf16.msra.mxu0 %v413
  %572 = vmatprep.subr.bf16.mxu0 0
  %573 = vmatpush1.bf16.msra.mxu0 %v414
  %574 = vmatprep.subr.bf16.mxu0 0
  %575 = vmatpush1.bf16.msra.mxu0 %v415
  %576 = vmatprep.mubr.bf16.mxu0 %v198
  %577 = vmatmul.mubr.bf16.gmra.mrb[0].mxu0 %v197
  %v578 = vpop.f32.mrb[0].mxu0
  %v579 = vadd.f32 %v507, %v578
  %v580 = vpop.f32.mrb[0].mxu0
  %v581 = vpop.f32.mrb[0].mxu0
  %v582 = vadd.f32 %v510, %v581
  %v583 = vpop.f32.mrb[0].mxu0
  %584 = vmatprep.mubr.bf16.mxu0 %v203
  %585 = vmatmul.mubr.bf16.gmra.mrb[0].mxu0 %v202
  %v586 = vpop.f32.mrb[0].mxu0
  %v587 = vadd.f32 %v515, %v586
  %v588 = vpop.f32.mrb[0].mxu0
  %v589 = vpop.f32.mrb[0].mxu0
  %v590 = vadd.f32 %v518, %v589
  %v591 = vpop.f32.mrb[0].mxu0
  %592 = vmatprep.mubr.bf16.mxu0 %v208
  %593 = vmatmul.mubr.bf16.gmra.mrb[0].mxu0 %v207
  %v594 = vpop.f32.mrb[0].mxu0
  %v595 = vadd.f32 %v523, %v594
  %v596 = vpop.f32.mrb[0].mxu0
  %v597 = vpop.f32.mrb[0].mxu0
  %v598 = vadd.f32 %v526, %v597
  %v599 = vpop.f32.mrb[0].mxu0
  %600 = vmatprep.mubr.bf16.mxu0 %v213
  %601 = vmatmul.mubr.bf16.gmra.mrb[0].mxu0 %v212
  %v602 = vpop.f32.mrb[0].mxu0
  %v603 = vadd.f32 %v531, %v602
  %v604 = vpop.f32.mrb[0].mxu0
  %v605 = vpop.f32.mrb[0].mxu0
  %v606 = vadd.f32 %v534, %v605
  %v607 = vpop.f32.mrb[0].mxu0
  %608 = vmatprep.mubr.bf16.mxu0 %v218
  %609 = vmatmul.mubr.bf16.gmra.mrb[0].mxu0 %v217
  %v610 = vpop.f32.mrb[0].mxu0
  %v611 = vadd.f32 %v539, %v610
  %v612 = vpop.f32.mrb[0].mxu0
  %v613 = vpop.f32.mrb[0].mxu0
  %v614 = vpop.f32.mrb[0].mxu0
  %615 = vdwg.mxu0
  %616 = vmatprep.subr.bf16.mxu0 0
  %617 = vmatpush1.bf16.msra.mxu0 %v416
  %618 = vmatprep.subr.bf16.mxu0 0
  %619 = vmatpush1.bf16.msra.mxu0 %v417
  %620 = vmatprep.subr.bf16.mxu0 0
  %621 = vmatpush1.bf16.msra.mxu0 %v418
  %622 = vmatprep.subr.bf16.mxu0 0
  %623 = vmatpush1.bf16.msra.mxu0 %v419
  %624 = vmatprep.subr.bf16.mxu0 0
  %625 = vmatpush1.bf16.msra.mxu0 0
  %626 = vmatprep.subr.bf16.mxu0 0
  %627 = vmatpush1.bf16.msra.mxu0 0
  %628 = vmatprep.subr.bf16.mxu0 0
  %629 = vmatpush1.bf16.msra.mxu0 0
  %630 = vmatprep.subr.bf16.mxu0 0
  %631 = vmatpush1.bf16.msra.mxu0 0
  %632 = vmatprep.subr.bf16.mxu0 0
  %633 = vmatpush1.bf16.msra.mxu0 0
  %634 = vmatprep.subr.bf16.mxu0 0
  %635 = vmatpush1.bf16.msra.mxu0 0
  %636 = vmatprep.subr.bf16.mxu0 0
  %637 = vmatpush1.bf16.msra.mxu0 0
  %638 = vmatprep.subr.bf16.mxu0 0
  %639 = vmatpush1.bf16.msra.mxu0 0
  %640 = vmatprep.subr.bf16.mxu0 0
  %641 = vmatpush1.bf16.msra.mxu0 0
  %642 = vmatprep.subr.bf16.mxu0 0
  %643 = vmatpush1.bf16.msra.mxu0 0
  %644 = vmatprep.subr.bf16.mxu0 0
  %645 = vmatpush1.bf16.msra.mxu0 0
  %646 = vmatprep.subr.bf16.mxu0 0
  %647 = vmatpush1.bf16.msra.mxu0 0
  %648 = vmatprep.mubr.bf16.mxu0 0
  %649 = vmatmul.mubr.bf16.gmra.mrb[0].mxu0 %v458
  %v650 = vpop.f32.mrb[0].mxu0
  %v651 = vadd.f32 %v579, %v650
  %v652 = vpop.f32.mrb[0].mxu0
  %v653 = vpop.f32.mrb[0].mxu0
  %v654 = vadd.f32 %v582, %v653
  %v655 = vpop.f32.mrb[0].mxu0
  %656 = vmatprep.mubr.bf16.mxu0 0
  %657 = vmatmul.mubr.bf16.gmra.mrb[0].mxu0 %v461
  %v658 = vpop.f32.mrb[0].mxu0
  %v659 = vadd.f32 %v587, %v658
  %v660 = vpop.f32.mrb[0].mxu0
  %v661 = vpop.f32.mrb[0].mxu0
  %v662 = vadd.f32 %v590, %v661
  %v663 = vpop.f32.mrb[0].mxu0
  %664 = vmatprep.mubr.bf16.mxu0 0
  %665 = vmatmul.mubr.bf16.gmra.mrb[0].mxu0 %v464
  %v666 = vpop.f32.mrb[0].mxu0
  %v667 = vadd.f32 %v595, %v666
  %v668 = vpop.f32.mrb[0].mxu0
  %v669 = vpop.f32.mrb[0].mxu0
  %v670 = vadd.f32 %v598, %v669
  %v671 = vpop.f32.mrb[0].mxu0
  %672 = vmatprep.mubr.bf16.mxu0 0
  %673 = vmatmul.mubr.bf16.gmra.mrb[0].mxu0 %v467
  %v674 = vpop.f32.mrb[0].mxu0
  %v675 = vadd.f32 %v603, %v674
  %v676 = vpop.f32.mrb[0].mxu0
  %v677 = vpop.f32.mrb[0].mxu0
  %v678 = vadd.f32 %v606, %v677
  %v679 = vpop.f32.mrb[0].mxu0
  %680 = vmatprep.mubr.bf16.mxu0 0
  %681 = vmatmul.mubr.bf16.gmra.mrb[0].mxu0 %v470
  %v682 = vpop.f32.mrb[0].mxu0
  %v683 = vadd.f32 %v611, %v682
  %v684 = vpop.f32.mrb[0].mxu0
  %v685 = vpop.f32.mrb[0].mxu0
  %v686 = vpop.f32.mrb[0].mxu0
  %687 = vdwg.mxu0
  %v688 = vld [vmem:[%s1] sm:$0xff]
  %v689 = vld [vmem:[%s1 + $0x8] sm:$0xff]
  %v690 = vld [vmem:[%s1 + $0x10] sm:$0xf]
  %v691 = vld [vmem:[%s1 + $0x14] sm:$0xff]
  %v692 = vld [vmem:[%s1 + $0x1c] sm:$0xff]
  %v693 = vld [vmem:[%s1 + $0x24] sm:$0xf]
  %v694 = vld [vmem:[%s1 + $0x28] sm:$0xff]
  %v695 = vld [vmem:[%s1 + $0x30] sm:$0xff]
  %v696 = vld [vmem:[%s1 + $0x38] sm:$0xf]
  %v697 = vld [vmem:[%s1 + $0x3c] sm:$0xff]
  %v698 = vld [vmem:[%s1 + $0x44] sm:$0xff]
  %v699 = vld [vmem:[%s1 + $0x4c] sm:$0xf]
  %v700 = vld [vmem:[%s1 + $0x50] sm:$0xff]
  %v701 = vld [vmem:[%s1 + $0x58] sm:$0xff]
  %v702 = vld [vmem:[%s1 + $0x60] sm:$0xf]
  %v703 = vld [vmem:[%s1 + $0x64] sm:$0xff]
  %v704 = vld [vmem:[%s1 + $0x6c] sm:$0xff]
  %v705 = vld [vmem:[%s1 + $0x74] sm:$0xf]
  %v706 = vld [vmem:[%s1 + $0x78] sm:$0xff]
  %v707 = vld [vmem:[%s1 + $0x80] sm:$0xff]
  %v708 = vld [vmem:[%s1 + $0x88] sm:$0xf]
  %v709 = vld [vmem:[%s1 + $0x8c] sm:$0xff]
  %v710 = vld [vmem:[%s1 + $0x94] sm:$0xff]
  %v711 = vld [vmem:[%s1 + $0x9c] sm:$0xf]
  %v712 = vld [vmem:[%s1 + $0xa0] sm:$0xff]
  %v713 = vld [vmem:[%s1 + $0xa8] sm:$0xff]
  %v714 = vld [vmem:[%s1 + $0xb0] sm:$0xf]
  %v742 = vunpack.c.l.b16 %v688
  %v743 = vunpack.c.h.b16 %v688
  %v744 = vunpack.c.l.b16 %v689
  %v745 = vunpack.c.h.b16 %v689
  %v746 = vunpack.c.l.b16 %v690
  %v747 = vunpack.c.l.b16 %v691
  %v748 = vunpack.c.h.b16 %v691
  %v749 = vunpack.c.l.b16 %v692
  %v750 = vunpack.c.h.b16 %v692
  %v751 = vunpack.c.l.b16 %v693
  %v752 = vunpack.c.l.b16 %v694
  %v753 = vunpack.c.h.b16 %v694
  %v754 = vunpack.c.l.b16 %v695
  %v755 = vunpack.c.h.b16 %v695
  %v756 = vunpack.c.l.b16 %v696
  %v757 = vunpack.c.l.b16 %v697
  %v758 = vunpack.c.h.b16 %v697
  %v759 = vunpack.c.l.b16 %v698
  %v760 = vunpack.c.h.b16 %v698
  %v761 = vunpack.c.l.b16 %v699
  %v762 = vunpack.c.l.b16 %v700
  %v763 = vunpack.c.h.b16 %v700
  %v764 = vunpack.c.l.b16 %v701
  %v765 = vunpack.c.h.b16 %v701
  %v766 = vunpack.c.l.b16 %v702
  %v767 = vunpack.c.l.b16 %v703
  %v768 = vunpack.c.h.b16 %v703
  %v769 = vunpack.c.l.b16 %v704
  %v770 = vunpack.c.h.b16 %v704
  %v771 = vunpack.c.l.b16 %v705
  %v772 = vunpack.c.l.b16 %v706
  %v773 = vunpack.c.h.b16 %v706
  %v774 = vunpack.c.l.b16 %v707
  %v775 = vunpack.c.h.b16 %v707
  %v776 = vunpack.c.l.b16 %v708
  %v777 = vunpack.c.l.b16 %v709
  %v778 = vunpack.c.h.b16 %v709
  %v779 = vunpack.c.l.b16 %v710
  %v780 = vunpack.c.h.b16 %v710
  %v781 = vunpack.c.l.b16 %v711
  %v782 = vunpack.c.l.b16 %v712
  %v783 = vunpack.c.h.b16 %v712
  %v784 = vunpack.c.l.b16 %v713
  %v785 = vunpack.c.h.b16 %v713
  %v786 = vunpack.c.l.b16 %v714
  %v787 = vpack.c.b16 %v747, %v742
  %v788 = vpack.c.b16 %v748, %v743
  %v789 = vpack.c.b16 %v749, %v744
  %v790 = vpack.c.b16 %v750, %v745
  %v791 = vpack.c.b16 %v751, %v746
  %v792 = vpack.c.b16 %v757, %v752
  %v793 = vpack.c.b16 %v758, %v753
  %v794 = vpack.c.b16 %v759, %v754
  %v795 = vpack.c.b16 %v760, %v755
  %v796 = vpack.c.b16 %v761, %v756
  %v797 = vpack.c.b16 %v767, %v762
  %v798 = vpack.c.b16 %v768, %v763
  %v799 = vpack.c.b16 %v769, %v764
  %v800 = vpack.c.b16 %v770, %v765
  %v801 = vpack.c.b16 %v771, %v766
  %v802 = vpack.c.b16 %v777, %v772
  %v803 = vpack.c.b16 %v778, %v773
  %v804 = vpack.c.b16 %v779, %v774
  %v805 = vpack.c.b16 %v780, %v775
  %v806 = vpack.c.b16 %v781, %v776
  %v807 = vpack.c.b16 %v782, %v782
  %v808 = vpack.c.b16 %v783, %v783
  %v809 = vpack.c.b16 %v784, %v784
  %v810 = vpack.c.b16 %v785, %v785
  %v811 = vpack.c.b16 %v786, %v786
  %v833 = vsel %vm456, %v791, 0
  %v836 = vsel %vm456, %v796, 0
  %v839 = vsel %vm456, %v801, 0
  %v842 = vsel %vm456, %v806, 0
  %v845 = vsel %vm456, %v811, 0
  %847 = vmatprep.subr.bf16.mxu0 0
  %848 = vmatpush1.bf16.msra.mxu0 %v384
  %849 = vmatprep.subr.bf16.mxu0 0
  %850 = vmatpush1.bf16.msra.mxu0 %v385
  %851 = vmatprep.subr.bf16.mxu0 0
  %852 = vmatpush1.bf16.msra.mxu0 %v386
  %853 = vmatprep.subr.bf16.mxu0 0
  %854 = vmatpush1.bf16.msra.mxu0 %v387
  %855 = vmatprep.subr.bf16.mxu0 0
  %856 = vmatpush1.bf16.msra.mxu0 %v388
  %857 = vmatprep.subr.bf16.mxu0 0
  %858 = vmatpush1.bf16.msra.mxu0 %v389
  %859 = vmatprep.subr.bf16.mxu0 0
  %860 = vmatpush1.bf16.msra.mxu0 %v390
  %861 = vmatprep.subr.bf16.mxu0 0
  %862 = vmatpush1.bf16.msra.mxu0 %v391
  %863 = vmatprep.subr.bf16.mxu0 0
  %864 = vmatpush1.bf16.msra.mxu0 %v392
  %865 = vmatprep.subr.bf16.mxu0 0
  %866 = vmatpush1.bf16.msra.mxu0 %v393
  %867 = vmatprep.subr.bf16.mxu0 0
  %868 = vmatpush1.bf16.msra.mxu0 %v394
  %869 = vmatprep.subr.bf16.mxu0 0
  %870 = vmatpush1.bf16.msra.mxu0 %v395
  %871 = vmatprep.subr.bf16.mxu0 0
  %872 = vmatpush1.bf16.msra.mxu0 %v396
  %873 = vmatprep.subr.bf16.mxu0 0
  %874 = vmatpush1.bf16.msra.mxu0 %v397
  %875 = vmatprep.subr.bf16.mxu0 0
  %876 = vmatpush1.bf16.msra.mxu0 %v398
  %877 = vmatprep.subr.bf16.mxu0 0
  %878 = vmatpush1.bf16.msra.mxu0 %v399
  %879 = vmatprep.mubr.bf16.mxu0 %v788
  %880 = vmatmul.mubr.bf16.gmra.mrb[0].mxu0 %v787
  %v881 = vpop.f32.mrb[0].mxu0
  %v882 = vadd.f32 0.0, %v881
  %v883 = vpop.f32.mrb[0].mxu0
  %v884 = vpop.f32.mrb[0].mxu0
  %v885 = vadd.f32 0.0, %v884
  %v886 = vpop.f32.mrb[0].mxu0
  %887 = vmatprep.mubr.bf16.mxu0 %v793
  %888 = vmatmul.mubr.bf16.gmra.mrb[0].mxu0 %v792
  %v889 = vpop.f32.mrb[0].mxu0
  %v890 = vadd.f32 0.0, %v889
  %v891 = vpop.f32.mrb[0].mxu0
  %v892 = vpop.f32.mrb[0].mxu0
  %v893 = vadd.f32 0.0, %v892
  %v894 = vpop.f32.mrb[0].mxu0
  %895 = vmatprep.mubr.bf16.mxu0 %v798
  %896 = vmatmul.mubr.bf16.gmra.mrb[0].mxu0 %v797
  %v897 = vpop.f32.mrb[0].mxu0
  %v898 = vadd.f32 0.0, %v897
  %v899 = vpop.f32.mrb[0].mxu0
  %v900 = vpop.f32.mrb[0].mxu0
  %v901 = vadd.f32 0.0, %v900
  %v902 = vpop.f32.mrb[0].mxu0
  %903 = vmatprep.mubr.bf16.mxu0 %v803
  %904 = vmatmul.mubr.bf16.gmra.mrb[0].mxu0 %v802
  %v905 = vpop.f32.mrb[0].mxu0
  %v906 = vadd.f32 0.0, %v905
  %v907 = vpop.f32.mrb[0].mxu0
  %v908 = vpop.f32.mrb[0].mxu0
  %v909 = vadd.f32 0.0, %v908
  %v910 = vpop.f32.mrb[0].mxu0
  %911 = vmatprep.mubr.bf16.mxu0 %v808
  %912 = vmatmul.mubr.bf16.gmra.mrb[0].mxu0 %v807
  %v913 = vpop.f32.mrb[0].mxu0
  %v914 = vadd.f32 0.0, %v913
  %v915 = vpop.f32.mrb[0].mxu0
  %v916 = vpop.f32.mrb[0].mxu0
  %v917 = vpop.f32.mrb[0].mxu0
  %918 = vdwg.mxu0
  %919 = vmatprep.subr.bf16.mxu0 0
  %920 = vmatpush1.bf16.msra.mxu0 %v400
  %921 = vmatprep.subr.bf16.mxu0 0
  %922 = vmatpush1.bf16.msra.mxu0 %v401
  %923 = vmatprep.subr.bf16.mxu0 0
  %924 = vmatpush1.bf16.msra.mxu0 %v402
  %925 = vmatprep.subr.bf16.mxu0 0
  %926 = vmatpush1.bf16.msra.mxu0 %v403
  %927 = vmatprep.subr.bf16.mxu0 0
  %928 = vmatpush1.bf16.msra.mxu0 %v404
  %929 = vmatprep.subr.bf16.mxu0 0
  %930 = vmatpush1.bf16.msra.mxu0 %v405
  %931 = vmatprep.subr.bf16.mxu0 0
  %932 = vmatpush1.bf16.msra.mxu0 %v406
  %933 = vmatprep.subr.bf16.mxu0 0
  %934 = vmatpush1.bf16.msra.mxu0 %v407
  %935 = vmatprep.subr.bf16.mxu0 0
  %936 = vmatpush1.bf16.msra.mxu0 %v408
  %937 = vmatprep.subr.bf16.mxu0 0
  %938 = vmatpush1.bf16.msra.mxu0 %v409
  %939 = vmatprep.subr.bf16.mxu0 0
  %940 = vmatpush1.bf16.msra.mxu0 %v410
  %941 = vmatprep.subr.bf16.mxu0 0
  %942 = vmatpush1.bf16.msra.mxu0 %v411
  %943 = vmatprep.subr.bf16.mxu0 0
  %944 = vmatpush1.bf16.msra.mxu0 %v412
  %945 = vmatprep.subr.bf16.mxu0 0
  %946 = vmatpush1.bf16.msra.mxu0 %v413
  %947 = vmatprep.subr.bf16.mxu0 0
  %948 = vmatpush1.bf16.msra.mxu0 %v414
  %949 = vmatprep.subr.bf16.mxu0 0
  %950 = vmatpush1.bf16.msra.mxu0 %v415
  %951 = vmatprep.mubr.bf16.mxu0 %v790
  %952 = vmatmul.mubr.bf16.gmra.mrb[0].mxu0 %v789
  %v953 = vpop.f32.mrb[0].mxu0
  %v954 = vadd.f32 %v882, %v953
  %v955 = vpop.f32.mrb[0].mxu0
  %v956 = vpop.f32.mrb[0].mxu0
  %v957 = vadd.f32 %v885, %v956
  %v958 = vpop.f32.mrb[0].mxu0
  %959 = vmatprep.mubr.bf16.mxu0 %v795
  %960 = vmatmul.mubr.bf16.gmra.mrb[0].mxu0 %v794
  %v961 = vpop.f32.mrb[0].mxu0
  %v962 = vadd.f32 %v890, %v961
  %v963 = vpop.f32.mrb[0].mxu0
  %v964 = vpop.f32.mrb[0].mxu0
  %v965 = vadd.f32 %v893, %v964
  %v966 = vpop.f32.mrb[0].mxu0
  %967 = vmatprep.mubr.bf16.mxu0 %v800
  %968 = vmatmul.mubr.bf16.gmra.mrb[0].mxu0 %v799
  %v969 = vpop.f32.mrb[0].mxu0
  %v970 = vadd.f32 %v898, %v969
  %v971 = vpop.f32.mrb[0].mxu0
  %v972 = vpop.f32.mrb[0].mxu0
  %v973 = vadd.f32 %v901, %v972
  %v974 = vpop.f32.mrb[0].mxu0
  %975 = vmatprep.mubr.bf16.mxu0 %v805
  %976 = vmatmul.mubr.bf16.gmra.mrb[0].mxu0 %v804
  %v977 = vpop.f32.mrb[0].mxu0
  %v978 = vadd.f32 %v906, %v977
  %v979 = vpop.f32.mrb[0].mxu0
  %v980 = vpop.f32.mrb[0].mxu0
  %v981 = vadd.f32 %v909, %v980
  %v982 = vpop.f32.mrb[0].mxu0
  %983 = vmatprep.mubr.bf16.mxu0 %v810
  %984 = vmatmul.mubr.bf16.gmra.mrb[0].mxu0 %v809
  %v985 = vpop.f32.mrb[0].mxu0
  %v986 = vadd.f32 %v914, %v985
  %v987 = vpop.f32.mrb[0].mxu0
  %v988 = vpop.f32.mrb[0].mxu0
  %v989 = vpop.f32.mrb[0].mxu0
  %990 = vdwg.mxu0
  %991 = vmatprep.subr.bf16.mxu0 0
  %992 = vmatpush1.bf16.msra.mxu0 %v416
  %993 = vmatprep.subr.bf16.mxu0 0
  %994 = vmatpush1.bf16.msra.mxu0 %v417
  %995 = vmatprep.subr.bf16.mxu0 0
  %996 = vmatpush1.bf16.msra.mxu0 %v418
  %997 = vmatprep.subr.bf16.mxu0 0
  %998 = vmatpush1.bf16.msra.mxu0 %v419
  %999 = vmatprep.subr.bf16.mxu0 0
  %1000 = vmatpush1.bf16.msra.mxu0 0
  %1001 = vmatprep.subr.bf16.mxu0 0
  %1002 = vmatpush1.bf16.msra.mxu0 0
  %1003 = vmatprep.subr.bf16.mxu0 0
  %1004 = vmatpush1.bf16.msra.mxu0 0
  %1005 = vmatprep.subr.bf16.mxu0 0
  %1006 = vmatpush1.bf16.msra.mxu0 0
  %1007 = vmatprep.subr.bf16.mxu0 0
  %1008 = vmatpush1.bf16.msra.mxu0 0
  %1009 = vmatprep.subr.bf16.mxu0 0
  %1010 = vmatpush1.bf16.msra.mxu0 0
  %1011 = vmatprep.subr.bf16.mxu0 0
  %1012 = vmatpush1.bf16.msra.mxu0 0
  %1013 = vmatprep.subr.bf16.mxu0 0
  %1014 = vmatpush1.bf16.msra.mxu0 0
  %1015 = vmatprep.subr.bf16.mxu0 0
  %1016 = vmatpush1.bf16.msra.mxu0 0
  %1017 = vmatprep.subr.bf16.mxu0 0
  %1018 = vmatpush1.bf16.msra.mxu0 0
  %1019 = vmatprep.subr.bf16.mxu0 0
  %1020 = vmatpush1.bf16.msra.mxu0 0
  %1021 = vmatprep.subr.bf16.mxu0 0
  %1022 = vmatpush1.bf16.msra.mxu0 0
  %1023 = vmatprep.mubr.bf16.mxu0 0
  %1024 = vmatmul.mubr.bf16.gmra.mrb[0].mxu0 %v833
  %v1025 = vpop.f32.mrb[0].mxu0
  %v1026 = vadd.f32 %v954, %v1025
  %v1027 = vpop.f32.mrb[0].mxu0
  %v1028 = vpop.f32.mrb[0].mxu0
  %v1029 = vadd.f32 %v957, %v1028
  %v1030 = vpop.f32.mrb[0].mxu0
  %1031 = vmatprep.mubr.bf16.mxu0 0
  %1032 = vmatmul.mubr.bf16.gmra.mrb[0].mxu0 %v836
  %v1033 = vpop.f32.mrb[0].mxu0
  %v1034 = vadd.f32 %v962, %v1033
  %v1035 = vpop.f32.mrb[0].mxu0
  %v1036 = vpop.f32.mrb[0].mxu0
  %v1037 = vadd.f32 %v965, %v1036
  %v1038 = vpop.f32.mrb[0].mxu0
  %1039 = vmatprep.mubr.bf16.mxu0 0
  %1040 = vmatmul.mubr.bf16.gmra.mrb[0].mxu0 %v839
  %v1041 = vpop.f32.mrb[0].mxu0
  %v1042 = vadd.f32 %v970, %v1041
  %v1043 = vpop.f32.mrb[0].mxu0
  %v1044 = vpop.f32.mrb[0].mxu0
  %v1045 = vadd.f32 %v973, %v1044
  %v1046 = vpop.f32.mrb[0].mxu0
  %1047 = vmatprep.mubr.bf16.mxu0 0
  %1048 = vmatmul.mubr.bf16.gmra.mrb[0].mxu0 %v842
  %v1049 = vpop.f32.mrb[0].mxu0
  %v1050 = vadd.f32 %v978, %v1049
  %v1051 = vpop.f32.mrb[0].mxu0
  %v1052 = vpop.f32.mrb[0].mxu0
  %v1053 = vadd.f32 %v981, %v1052
  %v1054 = vpop.f32.mrb[0].mxu0
  %1055 = vmatprep.mubr.bf16.mxu0 0
  %1056 = vmatmul.mubr.bf16.gmra.mrb[0].mxu0 %v845
  %v1057 = vpop.f32.mrb[0].mxu0
  %v1058 = vadd.f32 %v986, %v1057
  %v1059 = vpop.f32.mrb[0].mxu0
  %v1060 = vpop.f32.mrb[0].mxu0
  %v1061 = vpop.f32.mrb[0].mxu0
  %1062 = vdwg.mxu0
  %v1063 = vld [vmem:[%s2] sm:$0xff]
  %v1064 = vld [vmem:[%s2 + $0x8] sm:$0xff]
  %v1065 = vld [vmem:[%s2 + $0x10] sm:$0xf]
  %v1066 = vld [vmem:[%s2 + $0x14] sm:$0xff]
  %v1067 = vld [vmem:[%s2 + $0x1c] sm:$0xff]
  %v1068 = vld [vmem:[%s2 + $0x24] sm:$0xf]
  %v1069 = vld [vmem:[%s2 + $0x28] sm:$0xff]
  %v1070 = vld [vmem:[%s2 + $0x30] sm:$0xff]
  %v1071 = vld [vmem:[%s2 + $0x38] sm:$0xf]
  %v1072 = vld [vmem:[%s2 + $0x3c] sm:$0xff]
  %v1073 = vld [vmem:[%s2 + $0x44] sm:$0xff]
  %v1074 = vld [vmem:[%s2 + $0x4c] sm:$0xf]
  %v1075 = vld [vmem:[%s2 + $0x50] sm:$0xff]
  %v1076 = vld [vmem:[%s2 + $0x58] sm:$0xff]
  %v1077 = vld [vmem:[%s2 + $0x60] sm:$0xf]
  %v1078 = vld [vmem:[%s2 + $0x64] sm:$0xff]
  %v1079 = vld [vmem:[%s2 + $0x6c] sm:$0xff]
  %v1080 = vld [vmem:[%s2 + $0x74] sm:$0xf]
  %v1081 = vld [vmem:[%s2 + $0x78] sm:$0xff]
  %v1082 = vld [vmem:[%s2 + $0x80] sm:$0xff]
  %v1083 = vld [vmem:[%s2 + $0x88] sm:$0xf]
  %v1084 = vld [vmem:[%s2 + $0x8c] sm:$0xff]
  %v1085 = vld [vmem:[%s2 + $0x94] sm:$0xff]
  %v1086 = vld [vmem:[%s2 + $0x9c] sm:$0xf]
  %v1087 = vld [vmem:[%s2 + $0xa0] sm:$0xff]
  %v1088 = vld [vmem:[%s2 + $0xa8] sm:$0xff]
  %v1089 = vld [vmem:[%s2 + $0xb0] sm:$0xf]
  %v1117 = vunpack.c.l.b16 %v1063
  %v1118 = vunpack.c.h.b16 %v1063
  %v1119 = vunpack.c.l.b16 %v1064
  %v1120 = vunpack.c.h.b16 %v1064
  %v1121 = vunpack.c.l.b16 %v1065
  %v1122 = vunpack.c.l.b16 %v1066
  %v1123 = vunpack.c.h.b16 %v1066
  %v1124 = vunpack.c.l.b16 %v1067
  %v1125 = vunpack.c.h.b16 %v1067
  %v1126 = vunpack.c.l.b16 %v1068
  %v1127 = vunpack.c.l.b16 %v1069
  %v1128 = vunpack.c.h.b16 %v1069
  %v1129 = vunpack.c.l.b16 %v1070
  %v1130 = vunpack.c.h.b16 %v1070
  %v1131 = vunpack.c.l.b16 %v1071
  %v1132 = vunpack.c.l.b16 %v1072
  %v1133 = vunpack.c.h.b16 %v1072
  %v1134 = vunpack.c.l.b16 %v1073
  %v1135 = vunpack.c.h.b16 %v1073
  %v1136 = vunpack.c.l.b16 %v1074
  %v1137 = vunpack.c.l.b16 %v1075
  %v1138 = vunpack.c.h.b16 %v1075
  %v1139 = vunpack.c.l.b16 %v1076
  %v1140 = vunpack.c.h.b16 %v1076
  %v1141 = vunpack.c.l.b16 %v1077
  %v1142 = vunpack.c.l.b16 %v1078
  %v1143 = vunpack.c.h.b16 %v1078
  %v1144 = vunpack.c.l.b16 %v1079
  %v1145 = vunpack.c.h.b16 %v1079
  %v1146 = vunpack.c.l.b16 %v1080
  %v1147 = vunpack.c.l.b16 %v1081
  %v1148 = vunpack.c.h.b16 %v1081
  %v1149 = vunpack.c.l.b16 %v1082
  %v1150 = vunpack.c.h.b16 %v1082
  %v1151 = vunpack.c.l.b16 %v1083
  %v1152 = vunpack.c.l.b16 %v1084
  %v1153 = vunpack.c.h.b16 %v1084
  %v1154 = vunpack.c.l.b16 %v1085
  %v1155 = vunpack.c.h.b16 %v1085
  %v1156 = vunpack.c.l.b16 %v1086
  %v1157 = vunpack.c.l.b16 %v1087
  %v1158 = vunpack.c.h.b16 %v1087
  %v1159 = vunpack.c.l.b16 %v1088
  %v1160 = vunpack.c.h.b16 %v1088
  %v1161 = vunpack.c.l.b16 %v1089
  %v1162 = vpack.c.b16 %v1122, %v1117
  %v1163 = vpack.c.b16 %v1123, %v1118
  %v1164 = vpack.c.b16 %v1124, %v1119
  %v1165 = vpack.c.b16 %v1125, %v1120
  %v1166 = vpack.c.b16 %v1126, %v1121
  %v1167 = vpack.c.b16 %v1132, %v1127
  %v1168 = vpack.c.b16 %v1133, %v1128
  %v1169 = vpack.c.b16 %v1134, %v1129
  %v1170 = vpack.c.b16 %v1135, %v1130
  %v1171 = vpack.c.b16 %v1136, %v1131
  %v1172 = vpack.c.b16 %v1142, %v1137
  %v1173 = vpack.c.b16 %v1143, %v1138
  %v1174 = vpack.c.b16 %v1144, %v1139
  %v1175 = vpack.c.b16 %v1145, %v1140
  %v1176 = vpack.c.b16 %v1146, %v1141
  %v1177 = vpack.c.b16 %v1152, %v1147
  %v1178 = vpack.c.b16 %v1153, %v1148
  %v1179 = vpack.c.b16 %v1154, %v1149
  %v1180 = vpack.c.b16 %v1155, %v1150
  %v1181 = vpack.c.b16 %v1156, %v1151
  %v1182 = vpack.c.b16 %v1157, %v1157
  %v1183 = vpack.c.b16 %v1158, %v1158
  %v1184 = vpack.c.b16 %v1159, %v1159
  %v1185 = vpack.c.b16 %v1160, %v1160
  %v1186 = vpack.c.b16 %v1161, %v1161
  %v1208 = vsel %vm456, %v1166, 0
  %v1211 = vsel %vm456, %v1171, 0
  %v1214 = vsel %vm456, %v1176, 0
  %v1217 = vsel %vm456, %v1181, 0
  %v1220 = vsel %vm456, %v1186, 0
  %1222 = vmatprep.subr.bf16.mxu0 0
  %1223 = vmatpush1.bf16.msra.mxu0 %v384
  %1224 = vmatprep.subr.bf16.mxu0 0
  %1225 = vmatpush1.bf16.msra.mxu0 %v385
  %1226 = vmatprep.subr.bf16.mxu0 0
  %1227 = vmatpush1.bf16.msra.mxu0 %v386
  %1228 = vmatprep.subr.bf16.mxu0 0
  %1229 = vmatpush1.bf16.msra.mxu0 %v387
  %1230 = vmatprep.subr.bf16.mxu0 0
  %1231 = vmatpush1.bf16.msra.mxu0 %v388
  %1232 = vmatprep.subr.bf16.mxu0 0
  %1233 = vmatpush1.bf16.msra.mxu0 %v389
  %1234 = vmatprep.subr.bf16.mxu0 0
  %1235 = vmatpush1.bf16.msra.mxu0 %v390
  %1236 = vmatprep.subr.bf16.mxu0 0
  %1237 = vmatpush1.bf16.msra.mxu0 %v391
  %1238 = vmatprep.subr.bf16.mxu0 0
  %1239 = vmatpush1.bf16.msra.mxu0 %v392
  %1240 = vmatprep.subr.bf16.mxu0 0
  %1241 = vmatpush1.bf16.msra.mxu0 %v393
  %1242 = vmatprep.subr.bf16.mxu0 0
  %1243 = vmatpush1.bf16.msra.mxu0 %v394
  %1244 = vmatprep.subr.bf16.mxu0 0
  %1245 = vmatpush1.bf16.msra.mxu0 %v395
  %1246 = vmatprep.subr.bf16.mxu0 0
  %1247 = vmatpush1.bf16.msra.mxu0 %v396
  %1248 = vmatprep.subr.bf16.mxu0 0
  %1249 = vmatpush1.bf16.msra.mxu0 %v397
  %1250 = vmatprep.subr.bf16.mxu0 0
  %1251 = vmatpush1.bf16.msra.mxu0 %v398
  %1252 = vmatprep.subr.bf16.mxu0 0
  %1253 = vmatpush1.bf16.msra.mxu0 %v399
  %1254 = vmatprep.mubr.bf16.mxu0 %v1163
  %1255 = vmatmul.mubr.bf16.gmra.mrb[0].mxu0 %v1162
  %v1256 = vpop.f32.mrb[0].mxu0
  %v1257 = vadd.f32 0.0, %v1256
  %v1258 = vpop.f32.mrb[0].mxu0
  %v1259 = vpop.f32.mrb[0].mxu0
  %v1260 = vadd.f32 0.0, %v1259
  %v1261 = vpop.f32.mrb[0].mxu0
  %1262 = vmatprep.mubr.bf16.mxu0 %v1168
  %1263 = vmatmul.mubr.bf16.gmra.mrb[0].mxu0 %v1167
  %v1264 = vpop.f32.mrb[0].mxu0
  %v1265 = vadd.f32 0.0, %v1264
  %v1266 = vpop.f32.mrb[0].mxu0
  %v1267 = vpop.f32.mrb[0].mxu0
  %v1268 = vadd.f32 0.0, %v1267
  %v1269 = vpop.f32.mrb[0].mxu0
  %1270 = vmatprep.mubr.bf16.mxu0 %v1173
  %1271 = vmatmul.mubr.bf16.gmra.mrb[0].mxu0 %v1172
  %v1272 = vpop.f32.mrb[0].mxu0
  %v1273 = vadd.f32 0.0, %v1272
  %v1274 = vpop.f32.mrb[0].mxu0
  %v1275 = vpop.f32.mrb[0].mxu0
  %v1276 = vadd.f32 0.0, %v1275
  %v1277 = vpop.f32.mrb[0].mxu0
  %1278 = vmatprep.mubr.bf16.mxu0 %v1178
  %1279 = vmatmul.mubr.bf16.gmra.mrb[0].mxu0 %v1177
  %v1280 = vpop.f32.mrb[0].mxu0
  %v1281 = vadd.f32 0.0, %v1280
  %v1282 = vpop.f32.mrb[0].mxu0
  %v1283 = vpop.f32.mrb[0].mxu0
  %v1284 = vadd.f32 0.0, %v1283
  %v1285 = vpop.f32.mrb[0].mxu0
  %1286 = vmatprep.mubr.bf16.mxu0 %v1183
  %1287 = vmatmul.mubr.bf16.gmra.mrb[0].mxu0 %v1182
  %v1288 = vpop.f32.mrb[0].mxu0
  %v1289 = vadd.f32 0.0, %v1288
  %v1290 = vpop.f32.mrb[0].mxu0
  %v1291 = vpop.f32.mrb[0].mxu0
  %v1292 = vpop.f32.mrb[0].mxu0
  %1293 = vdwg.mxu0
  %1294 = vmatprep.subr.bf16.mxu0 0
  %1295 = vmatpush1.bf16.msra.mxu0 %v400
  %1296 = vmatprep.subr.bf16.mxu0 0
  %1297 = vmatpush1.bf16.msra.mxu0 %v401
  %1298 = vmatprep.subr.bf16.mxu0 0
  %1299 = vmatpush1.bf16.msra.mxu0 %v402
  %1300 = vmatprep.subr.bf16.mxu0 0
  %1301 = vmatpush1.bf16.msra.mxu0 %v403
  %1302 = vmatprep.subr.bf16.mxu0 0
  %1303 = vmatpush1.bf16.msra.mxu0 %v404
  %1304 = vmatprep.subr.bf16.mxu0 0
  %1305 = vmatpush1.bf16.msra.mxu0 %v405
  %1306 = vmatprep.subr.bf16.mxu0 0
  %1307 = vmatpush1.bf16.msra.mxu0 %v406
  %1308 = vmatprep.subr.bf16.mxu0 0
  %1309 = vmatpush1.bf16.msra.mxu0 %v407
  %1310 = vmatprep.subr.bf16.mxu0 0
  %1311 = vmatpush1.bf16.msra.mxu0 %v408
  %1312 = vmatprep.subr.bf16.mxu0 0
  %1313 = vmatpush1.bf16.msra.mxu0 %v409
  %1314 = vmatprep.subr.bf16.mxu0 0
  %1315 = vmatpush1.bf16.msra.mxu0 %v410
  %1316 = vmatprep.subr.bf16.mxu0 0
  %1317 = vmatpush1.bf16.msra.mxu0 %v411
  %1318 = vmatprep.subr.bf16.mxu0 0
  %1319 = vmatpush1.bf16.msra.mxu0 %v412
  %1320 = vmatprep.subr.bf16.mxu0 0
  %1321 = vmatpush1.bf16.msra.mxu0 %v413
  %1322 = vmatprep.subr.bf16.mxu0 0
  %1323 = vmatpush1.bf16.msra.mxu0 %v414
  %1324 = vmatprep.subr.bf16.mxu0 0
  %1325 = vmatpush1.bf16.msra.mxu0 %v415
  %1326 = vmatprep.mubr.bf16.mxu0 %v1165
  %1327 = vmatmul.mubr.bf16.gmra.mrb[0].mxu0 %v1164
  %v1328 = vpop.f32.mrb[0].mxu0
  %v1329 = vadd.f32 %v1257, %v1328
  %v1330 = vpop.f32.mrb[0].mxu0
  %v1331 = vpop.f32.mrb[0].mxu0
  %v1332 = vadd.f32 %v1260, %v1331
  %v1333 = vpop.f32.mrb[0].mxu0
  %1334 = vmatprep.mubr.bf16.mxu0 %v1170
  %1335 = vmatmul.mubr.bf16.gmra.mrb[0].mxu0 %v1169
  %v1336 = vpop.f32.mrb[0].mxu0
  %v1337 = vadd.f32 %v1265, %v1336
  %v1338 = vpop.f32.mrb[0].mxu0
  %v1339 = vpop.f32.mrb[0].mxu0
  %v1340 = vadd.f32 %v1268, %v1339
  %v1341 = vpop.f32.mrb[0].mxu0
  %1342 = vmatprep.mubr.bf16.mxu0 %v1175
  %1343 = vmatmul.mubr.bf16.gmra.mrb[0].mxu0 %v1174
  %v1344 = vpop.f32.mrb[0].mxu0
  %v1345 = vadd.f32 %v1273, %v1344
  %v1346 = vpop.f32.mrb[0].mxu0
  %v1347 = vpop.f32.mrb[0].mxu0
  %v1348 = vadd.f32 %v1276, %v1347
  %v1349 = vpop.f32.mrb[0].mxu0
  %1350 = vmatprep.mubr.bf16.mxu0 %v1180
  %1351 = vmatmul.mubr.bf16.gmra.mrb[0].mxu0 %v1179
  %v1352 = vpop.f32.mrb[0].mxu0
  %v1353 = vadd.f32 %v1281, %v1352
  %v1354 = vpop.f32.mrb[0].mxu0
  %v1355 = vpop.f32.mrb[0].mxu0
  %v1356 = vadd.f32 %v1284, %v1355
  %v1357 = vpop.f32.mrb[0].mxu0
  %1358 = vmatprep.mubr.bf16.mxu0 %v1185
  %1359 = vmatmul.mubr.bf16.gmra.mrb[0].mxu0 %v1184
  %v1360 = vpop.f32.mrb[0].mxu0
  %v1361 = vadd.f32 %v1289, %v1360
  %v1362 = vpop.f32.mrb[0].mxu0
  %v1363 = vpop.f32.mrb[0].mxu0
  %v1364 = vpop.f32.mrb[0].mxu0
  %1365 = vdwg.mxu0
  %1366 = vmatprep.subr.bf16.mxu0 0
  %1367 = vmatpush1.bf16.msra.mxu0 %v416
  %1368 = vmatprep.subr.bf16.mxu0 0
  %1369 = vmatpush1.bf16.msra.mxu0 %v417
  %1370 = vmatprep.subr.bf16.mxu0 0
  %1371 = vmatpush1.bf16.msra.mxu0 %v418
  %1372 = vmatprep.subr.bf16.mxu0 0
  %1373 = vmatpush1.bf16.msra.mxu0 %v419
  %1374 = vmatprep.subr.bf16.mxu0 0
  %1375 = vmatpush1.bf16.msra.mxu0 0
  %1376 = vmatprep.subr.bf16.mxu0 0
  %1377 = vmatpush1.bf16.msra.mxu0 0
  %1378 = vmatprep.subr.bf16.mxu0 0
  %1379 = vmatpush1.bf16.msra.mxu0 0
  %1380 = vmatprep.subr.bf16.mxu0 0
  %1381 = vmatpush1.bf16.msra.mxu0 0
  %1382 = vmatprep.subr.bf16.mxu0 0
  %1383 = vmatpush1.bf16.msra.mxu0 0
  %1384 = vmatprep.subr.bf16.mxu0 0
  %1385 = vmatpush1.bf16.msra.mxu0 0
  %1386 = vmatprep.subr.bf16.mxu0 0
  %1387 = vmatpush1.bf16.msra.mxu0 0
  %1388 = vmatprep.subr.bf16.mxu0 0
  %1389 = vmatpush1.bf16.msra.mxu0 0
  %1390 = vmatprep.subr.bf16.mxu0 0
  %1391 = vmatpush1.bf16.msra.mxu0 0
  %1392 = vmatprep.subr.bf16.mxu0 0
  %1393 = vmatpush1.bf16.msra.mxu0 0
  %1394 = vmatprep.subr.bf16.mxu0 0
  %1395 = vmatpush1.bf16.msra.mxu0 0
  %1396 = vmatprep.subr.bf16.mxu0 0
  %1397 = vmatpush1.bf16.msra.mxu0 0
  %1398 = vmatprep.mubr.bf16.mxu0 0
  %1399 = vmatmul.mubr.bf16.gmra.mrb[0].mxu0 %v1208
  %v1400 = vpop.f32.mrb[0].mxu0
  %v1401 = vadd.f32 %v1329, %v1400
  %v1402 = vpop.f32.mrb[0].mxu0
  %v1403 = vpop.f32.mrb[0].mxu0
  %v1404 = vadd.f32 %v1332, %v1403
  %v1405 = vpop.f32.mrb[0].mxu0
  %1406 = vmatprep.mubr.bf16.mxu0 0
  %1407 = vmatmul.mubr.bf16.gmra.mrb[0].mxu0 %v1211
  %v1408 = vpop.f32.mrb[0].mxu0
  %v1409 = vadd.f32 %v1337, %v1408
  %v1410 = vpop.f32.mrb[0].mxu0
  %v1411 = vpop.f32.mrb[0].mxu0
  %v1412 = vadd.f32 %v1340, %v1411
  %v1413 = vpop.f32.mrb[0].mxu0
  %1414 = vmatprep.mubr.bf16.mxu0 0
  %1415 = vmatmul.mubr.bf16.gmra.mrb[0].mxu0 %v1214
  %v1416 = vpop.f32.mrb[0].mxu0
  %v1417 = vadd.f32 %v1345, %v1416
  %v1418 = vpop.f32.mrb[0].mxu0
  %v1419 = vpop.f32.mrb[0].mxu0
  %v1420 = vadd.f32 %v1348, %v1419
  %v1421 = vpop.f32.mrb[0].mxu0
  %1422 = vmatprep.mubr.bf16.mxu0 0
  %1423 = vmatmul.mubr.bf16.gmra.mrb[0].mxu0 %v1217
  %v1424 = vpop.f32.mrb[0].mxu0
  %v1425 = vadd.f32 %v1353, %v1424
  %v1426 = vpop.f32.mrb[0].mxu0
  %v1427 = vpop.f32.mrb[0].mxu0
  %v1428 = vadd.f32 %v1356, %v1427
  %v1429 = vpop.f32.mrb[0].mxu0
  %1430 = vmatprep.mubr.bf16.mxu0 0
  %1431 = vmatmul.mubr.bf16.gmra.mrb[0].mxu0 %v1220
  %v1432 = vpop.f32.mrb[0].mxu0
  %v1433 = vadd.f32 %v1361, %v1432
  %v1434 = vpop.f32.mrb[0].mxu0
  %v1435 = vpop.f32.mrb[0].mxu0
  %v1436 = vpop.f32.mrb[0].mxu0
  %1437 = vdwg.mxu0
  %v1438 = vld [vmem:[%s3] sm:$0xff]
  %v1439 = vld [vmem:[%s3 + $0x8] sm:$0xff]
  %v1440 = vld [vmem:[%s3 + $0x10] sm:$0xf]
  %v1441 = vld [vmem:[%s3 + $0x14] sm:$0xff]
  %v1442 = vld [vmem:[%s3 + $0x1c] sm:$0xff]
  %v1443 = vld [vmem:[%s3 + $0x24] sm:$0xf]
  %v1444 = vld [vmem:[%s3 + $0x28] sm:$0xff]
  %v1445 = vld [vmem:[%s3 + $0x30] sm:$0xff]
  %v1446 = vld [vmem:[%s3 + $0x38] sm:$0xf]
  %v1447 = vld [vmem:[%s3 + $0x3c] sm:$0xff]
  %v1448 = vld [vmem:[%s3 + $0x44] sm:$0xff]
  %v1449 = vld [vmem:[%s3 + $0x4c] sm:$0xf]
  %v1450 = vld [vmem:[%s3 + $0x50] sm:$0xff]
  %v1451 = vld [vmem:[%s3 + $0x58] sm:$0xff]
  %v1452 = vld [vmem:[%s3 + $0x60] sm:$0xf]
  %v1453 = vld [vmem:[%s3 + $0x64] sm:$0xff]
  %v1454 = vld [vmem:[%s3 + $0x6c] sm:$0xff]
  %v1455 = vld [vmem:[%s3 + $0x74] sm:$0xf]
  %v1456 = vld [vmem:[%s3 + $0x78] sm:$0xff]
  %v1457 = vld [vmem:[%s3 + $0x80] sm:$0xff]
  %v1458 = vld [vmem:[%s3 + $0x88] sm:$0xf]
  %v1459 = vld [vmem:[%s3 + $0x8c] sm:$0xff]
  %v1460 = vld [vmem:[%s3 + $0x94] sm:$0xff]
  %v1461 = vld [vmem:[%s3 + $0x9c] sm:$0xf]
  %v1462 = vld [vmem:[%s3 + $0xa0] sm:$0xff]
  %v1463 = vld [vmem:[%s3 + $0xa8] sm:$0xff]
  %v1464 = vld [vmem:[%s3 + $0xb0] sm:$0xf]
  %v1492 = vunpack.c.l.b16 %v1438
  %v1493 = vunpack.c.h.b16 %v1438
  %v1494 = vunpack.c.l.b16 %v1439
  %v1495 = vunpack.c.h.b16 %v1439
  %v1496 = vunpack.c.l.b16 %v1440
  %v1497 = vunpack.c.l.b16 %v1441
  %v1498 = vunpack.c.h.b16 %v1441
  %v1499 = vunpack.c.l.b16 %v1442
  %v1500 = vunpack.c.h.b16 %v1442
  %v1501 = vunpack.c.l.b16 %v1443
  %v1502 = vunpack.c.l.b16 %v1444
  %v1503 = vunpack.c.h.b16 %v1444
  %v1504 = vunpack.c.l.b16 %v1445
  %v1505 = vunpack.c.h.b16 %v1445
  %v1506 = vunpack.c.l.b16 %v1446
  %v1507 = vunpack.c.l.b16 %v1447
  %v1508 = vunpack.c.h.b16 %v1447
  %v1509 = vunpack.c.l.b16 %v1448
  %v1510 = vunpack.c.h.b16 %v1448
  %v1511 = vunpack.c.l.b16 %v1449
  %v1512 = vunpack.c.l.b16 %v1450
  %v1513 = vunpack.c.h.b16 %v1450
  %v1514 = vunpack.c.l.b16 %v1451
  %v1515 = vunpack.c.h.b16 %v1451
  %v1516 = vunpack.c.l.b16 %v1452
  %v1517 = vunpack.c.l.b16 %v1453
  %v1518 = vunpack.c.h.b16 %v1453
  %v1519 = vunpack.c.l.b16 %v1454
  %v1520 = vunpack.c.h.b16 %v1454
  %v1521 = vunpack.c.l.b16 %v1455
  %v1522 = vunpack.c.l.b16 %v1456
  %v1523 = vunpack.c.h.b16 %v1456
  %v1524 = vunpack.c.l.b16 %v1457
  %v1525 = vunpack.c.h.b16 %v1457
  %v1526 = vunpack.c.l.b16 %v1458
  %v1527 = vunpack.c.l.b16 %v1459
  %v1528 = vunpack.c.h.b16 %v1459
  %v1529 = vunpack.c.l.b16 %v1460
  %v1530 = vunpack.c.h.b16 %v1460
  %v1531 = vunpack.c.l.b16 %v1461
  %v1532 = vunpack.c.l.b16 %v1462
  %v1533 = vunpack.c.h.b16 %v1462
  %v1534 = vunpack.c.l.b16 %v1463
  %v1535 = vunpack.c.h.b16 %v1463
  %v1536 = vunpack.c.l.b16 %v1464
  %v1537 = vpack.c.b16 %v1497, %v1492
  %v1538 = vpack.c.b16 %v1498, %v1493
  %v1539 = vpack.c.b16 %v1499, %v1494
  %v1540 = vpack.c.b16 %v1500, %v1495
  %v1541 = vpack.c.b16 %v1501, %v1496
  %v1542 = vpack.c.b16 %v1507, %v1502
  %v1543 = vpack.c.b16 %v1508, %v1503
  %v1544 = vpack.c.b16 %v1509, %v1504
  %v1545 = vpack.c.b16 %v1510, %v1505
  %v1546 = vpack.c.b16 %v1511, %v1506
  %v1547 = vpack.c.b16 %v1517, %v1512
  %v1548 = vpack.c.b16 %v1518, %v1513
  %v1549 = vpack.c.b16 %v1519, %v1514
  %v1550 = vpack.c.b16 %v1520, %v1515
  %v1551 = vpack.c.b16 %v1521, %v1516
  %v1552 = vpack.c.b16 %v1527, %v1522
  %v1553 = vpack.c.b16 %v1528, %v1523
  %v1554 = vpack.c.b16 %v1529, %v1524
  %v1555 = vpack.c.b16 %v1530, %v1525
  %v1556 = vpack.c.b16 %v1531, %v1526
  %v1557 = vpack.c.b16 %v1532, %v1532
  %v1558 = vpack.c.b16 %v1533, %v1533
  %v1559 = vpack.c.b16 %v1534, %v1534
  %v1560 = vpack.c.b16 %v1535, %v1535
  %v1561 = vpack.c.b16 %v1536, %v1536
  %v1583 = vsel %vm456, %v1541, 0
  %v1586 = vsel %vm456, %v1546, 0
  %v1589 = vsel %vm456, %v1551, 0
  %v1592 = vsel %vm456, %v1556, 0
  %v1595 = vsel %vm456, %v1561, 0
  %1597 = vmatprep.subr.bf16.mxu0 0
  %1598 = vmatpush1.bf16.msra.mxu0 %v384
  %1599 = vmatprep.subr.bf16.mxu0 0
  %1600 = vmatpush1.bf16.msra.mxu0 %v385
  %1601 = vmatprep.subr.bf16.mxu0 0
  %1602 = vmatpush1.bf16.msra.mxu0 %v386
  %1603 = vmatprep.subr.bf16.mxu0 0
  %1604 = vmatpush1.bf16.msra.mxu0 %v387
  %1605 = vmatprep.subr.bf16.mxu0 0
  %1606 = vmatpush1.bf16.msra.mxu0 %v388
  %1607 = vmatprep.subr.bf16.mxu0 0
  %1608 = vmatpush1.bf16.msra.mxu0 %v389
  %1609 = vmatprep.subr.bf16.mxu0 0
  %1610 = vmatpush1.bf16.msra.mxu0 %v390
  %1611 = vmatprep.subr.bf16.mxu0 0
  %1612 = vmatpush1.bf16.msra.mxu0 %v391
  %1613 = vmatprep.subr.bf16.mxu0 0
  %1614 = vmatpush1.bf16.msra.mxu0 %v392
  %1615 = vmatprep.subr.bf16.mxu0 0
  %1616 = vmatpush1.bf16.msra.mxu0 %v393
  %1617 = vmatprep.subr.bf16.mxu0 0
  %1618 = vmatpush1.bf16.msra.mxu0 %v394
  %1619 = vmatprep.subr.bf16.mxu0 0
  %1620 = vmatpush1.bf16.msra.mxu0 %v395
  %1621 = vmatprep.subr.bf16.mxu0 0
  %1622 = vmatpush1.bf16.msra.mxu0 %v396
  %1623 = vmatprep.subr.bf16.mxu0 0
  %1624 = vmatpush1.bf16.msra.mxu0 %v397
  %1625 = vmatprep.subr.bf16.mxu0 0
  %1626 = vmatpush1.bf16.msra.mxu0 %v398
  %1627 = vmatprep.subr.bf16.mxu0 0
  %1628 = vmatpush1.bf16.msra.mxu0 %v399
  %1629 = vmatprep.mubr.bf16.mxu0 %v1538
  %1630 = vmatmul.mubr.bf16.gmra.mrb[0].mxu0 %v1537
  %v1631 = vpop.f32.mrb[0].mxu0
  %v1632 = vadd.f32 0.0, %v1631
  %v1633 = vpop.f32.mrb[0].mxu0
  %v1634 = vpop.f32.mrb[0].mxu0
  %v1635 = vadd.f32 0.0, %v1634
  %v1636 = vpop.f32.mrb[0].mxu0
  %1637 = vmatprep.mubr.bf16.mxu0 %v1543
  %1638 = vmatmul.mubr.bf16.gmra.mrb[0].mxu0 %v1542
  %v1639 = vpop.f32.mrb[0].mxu0
  %v1640 = vadd.f32 0.0, %v1639
  %v1641 = vpop.f32.mrb[0].mxu0
  %v1642 = vpop.f32.mrb[0].mxu0
  %v1643 = vadd.f32 0.0, %v1642
  %v1644 = vpop.f32.mrb[0].mxu0
  %1645 = vmatprep.mubr.bf16.mxu0 %v1548
  %1646 = vmatmul.mubr.bf16.gmra.mrb[0].mxu0 %v1547
  %v1647 = vpop.f32.mrb[0].mxu0
  %v1648 = vadd.f32 0.0, %v1647
  %v1649 = vpop.f32.mrb[0].mxu0
  %v1650 = vpop.f32.mrb[0].mxu0
  %v1651 = vadd.f32 0.0, %v1650
  %v1652 = vpop.f32.mrb[0].mxu0
  %1653 = vmatprep.mubr.bf16.mxu0 %v1553
  %1654 = vmatmul.mubr.bf16.gmra.mrb[0].mxu0 %v1552
  %v1655 = vpop.f32.mrb[0].mxu0
  %v1656 = vadd.f32 0.0, %v1655
  %v1657 = vpop.f32.mrb[0].mxu0
  %v1658 = vpop.f32.mrb[0].mxu0
  %v1659 = vadd.f32 0.0, %v1658
  %v1660 = vpop.f32.mrb[0].mxu0
  %1661 = vmatprep.mubr.bf16.mxu0 %v1558
  %1662 = vmatmul.mubr.bf16.gmra.mrb[0].mxu0 %v1557
  %v1663 = vpop.f32.mrb[0].mxu0
  %v1664 = vadd.f32 0.0, %v1663
  %v1665 = vpop.f32.mrb[0].mxu0
  %v1666 = vpop.f32.mrb[0].mxu0
  %v1667 = vpop.f32.mrb[0].mxu0
  %1668 = vdwg.mxu0
  %1669 = vmatprep.subr.bf16.mxu0 0
  %1670 = vmatpush1.bf16.msra.mxu0 %v400
  %1671 = vmatprep.subr.bf16.mxu0 0
  %1672 = vmatpush1.bf16.msra.mxu0 %v401
  %1673 = vmatprep.subr.bf16.mxu0 0
  %1674 = vmatpush1.bf16.msra.mxu0 %v402
  %1675 = vmatprep.subr.bf16.mxu0 0
  %1676 = vmatpush1.bf16.msra.mxu0 %v403
  %1677 = vmatprep.subr.bf16.mxu0 0
  %1678 = vmatpush1.bf16.msra.mxu0 %v404
  %1679 = vmatprep.subr.bf16.mxu0 0
  %1680 = vmatpush1.bf16.msra.mxu0 %v405
  %1681 = vmatprep.subr.bf16.mxu0 0
  %1682 = vmatpush1.bf16.msra.mxu0 %v406
  %1683 = vmatprep.subr.bf16.mxu0 0
  %1684 = vmatpush1.bf16.msra.mxu0 %v407
  %1685 = vmatprep.subr.bf16.mxu0 0
  %1686 = vmatpush1.bf16.msra.mxu0 %v408
  %1687 = vmatprep.subr.bf16.mxu0 0
  %1688 = vmatpush1.bf16.msra.mxu0 %v409
  %1689 = vmatprep.subr.bf16.mxu0 0
  %1690 = vmatpush1.bf16.msra.mxu0 %v410
  %1691 = vmatprep.subr.bf16.mxu0 0
  %1692 = vmatpush1.bf16.msra.mxu0 %v411
  %1693 = vmatprep.subr.bf16.mxu0 0
  %1694 = vmatpush1.bf16.msra.mxu0 %v412
  %1695 = vmatprep.subr.bf16.mxu0 0
  %1696 = vmatpush1.bf16.msra.mxu0 %v413
  %1697 = vmatprep.subr.bf16.mxu0 0
  %1698 = vmatpush1.bf16.msra.mxu0 %v414
  %1699 = vmatprep.subr.bf16.mxu0 0
  %1700 = vmatpush1.bf16.msra.mxu0 %v415
  %1701 = vmatprep.mubr.bf16.mxu0 %v1540
  %1702 = vmatmul.mubr.bf16.gmra.mrb[0].mxu0 %v1539
  %v1703 = vpop.f32.mrb[0].mxu0
  %v1704 = vadd.f32 %v1632, %v1703
  %v1705 = vpop.f32.mrb[0].mxu0
  %v1706 = vpop.f32.mrb[0].mxu0
  %v1707 = vadd.f32 %v1635, %v1706
  %v1708 = vpop.f32.mrb[0].mxu0
  %1709 = vmatprep.mubr.bf16.mxu0 %v1545
  %1710 = vmatmul.mubr.bf16.gmra.mrb[0].mxu0 %v1544
  %v1711 = vpop.f32.mrb[0].mxu0
  %v1712 = vadd.f32 %v1640, %v1711
  %v1713 = vpop.f32.mrb[0].mxu0
  %v1714 = vpop.f32.mrb[0].mxu0
  %v1715 = vadd.f32 %v1643, %v1714
  %v1716 = vpop.f32.mrb[0].mxu0
  %1717 = vmatprep.mubr.bf16.mxu0 %v1550
  %1718 = vmatmul.mubr.bf16.gmra.mrb[0].mxu0 %v1549
  %v1719 = vpop.f32.mrb[0].mxu0
  %v1720 = vadd.f32 %v1648, %v1719
  %v1721 = vpop.f32.mrb[0].mxu0
  %v1722 = vpop.f32.mrb[0].mxu0
  %v1723 = vadd.f32 %v1651, %v1722
  %v1724 = vpop.f32.mrb[0].mxu0
  %1725 = vmatprep.mubr.bf16.mxu0 %v1555
  %1726 = vmatmul.mubr.bf16.gmra.mrb[0].mxu0 %v1554
  %v1727 = vpop.f32.mrb[0].mxu0
  %v1728 = vadd.f32 %v1656, %v1727
  %v1729 = vpop.f32.mrb[0].mxu0
  %v1730 = vpop.f32.mrb[0].mxu0
  %v1731 = vadd.f32 %v1659, %v1730
  %v1732 = vpop.f32.mrb[0].mxu0
  %1733 = vmatprep.mubr.bf16.mxu0 %v1560
  %1734 = vmatmul.mubr.bf16.gmra.mrb[0].mxu0 %v1559
  %v1735 = vpop.f32.mrb[0].mxu0
  %v1736 = vadd.f32 %v1664, %v1735
  %v1737 = vpop.f32.mrb[0].mxu0
  %v1738 = vpop.f32.mrb[0].mxu0
  %v1739 = vpop.f32.mrb[0].mxu0
  %1740 = vdwg.mxu0
  %1741 = vmatprep.subr.bf16.mxu0 0
  %1742 = vmatpush1.bf16.msra.mxu0 %v416
  %1743 = vmatprep.subr.bf16.mxu0 0
  %1744 = vmatpush1.bf16.msra.mxu0 %v417
  %1745 = vmatprep.subr.bf16.mxu0 0
  %1746 = vmatpush1.bf16.msra.mxu0 %v418
  %1747 = vmatprep.subr.bf16.mxu0 0
  %1748 = vmatpush1.bf16.msra.mxu0 %v419
  %1749 = vmatprep.subr.bf16.mxu0 0
  %1750 = vmatpush1.bf16.msra.mxu0 0
  %1751 = vmatprep.subr.bf16.mxu0 0
  %1752 = vmatpush1.bf16.msra.mxu0 0
  %1753 = vmatprep.subr.bf16.mxu0 0
  %1754 = vmatpush1.bf16.msra.mxu0 0
  %1755 = vmatprep.subr.bf16.mxu0 0
  %1756 = vmatpush1.bf16.msra.mxu0 0
  %1757 = vmatprep.subr.bf16.mxu0 0
  %1758 = vmatpush1.bf16.msra.mxu0 0
  %1759 = vmatprep.subr.bf16.mxu0 0
  %1760 = vmatpush1.bf16.msra.mxu0 0
  %1761 = vmatprep.subr.bf16.mxu0 0
  %1762 = vmatpush1.bf16.msra.mxu0 0
  %1763 = vmatprep.subr.bf16.mxu0 0
  %1764 = vmatpush1.bf16.msra.mxu0 0
  %1765 = vmatprep.subr.bf16.mxu0 0
  %1766 = vmatpush1.bf16.msra.mxu0 0
  %1767 = vmatprep.subr.bf16.mxu0 0
  %1768 = vmatpush1.bf16.msra.mxu0 0
  %1769 = vmatprep.subr.bf16.mxu0 0
  %1770 = vmatpush1.bf16.msra.mxu0 0
  %1771 = vmatprep.subr.bf16.mxu0 0
  %1772 = vmatpush1.bf16.msra.mxu0 0
  %1773 = vmatprep.mubr.bf16.mxu0 0
  %1774 = vmatmul.mubr.bf16.gmra.mrb[0].mxu0 %v1583
  %v1775 = vpop.f32.mrb[0].mxu0
  %v1776 = vadd.f32 %v1704, %v1775
  %v1777 = vpop.f32.mrb[0].mxu0
  %v1778 = vpop.f32.mrb[0].mxu0
  %v1779 = vadd.f32 %v1707, %v1778
  %v1780 = vpop.f32.mrb[0].mxu0
  %1781 = vmatprep.mubr.bf16.mxu0 0
  %1782 = vmatmul.mubr.bf16.gmra.mrb[0].mxu0 %v1586
  %v1783 = vpop.f32.mrb[0].mxu0
  %v1784 = vadd.f32 %v1712, %v1783
  %v1785 = vpop.f32.mrb[0].mxu0
  %v1786 = vpop.f32.mrb[0].mxu0
  %v1787 = vadd.f32 %v1715, %v1786
  %v1788 = vpop.f32.mrb[0].mxu0
  %1789 = vmatprep.mubr.bf16.mxu0 0
  %1790 = vmatmul.mubr.bf16.gmra.mrb[0].mxu0 %v1589
  %v1791 = vpop.f32.mrb[0].mxu0
  %v1792 = vadd.f32 %v1720, %v1791
  %v1793 = vpop.f32.mrb[0].mxu0
  %v1794 = vpop.f32.mrb[0].mxu0
  %v1795 = vadd.f32 %v1723, %v1794
  %v1796 = vpop.f32.mrb[0].mxu0
  %1797 = vmatprep.mubr.bf16.mxu0 0
  %1798 = vmatmul.mubr.bf16.gmra.mrb[0].mxu0 %v1592
  %v1799 = vpop.f32.mrb[0].mxu0
  %v1800 = vadd.f32 %v1728, %v1799
  %v1801 = vpop.f32.mrb[0].mxu0
  %v1802 = vpop.f32.mrb[0].mxu0
  %v1803 = vadd.f32 %v1731, %v1802
  %v1804 = vpop.f32.mrb[0].mxu0
  %1805 = vmatprep.mubr.bf16.mxu0 0
  %1806 = vmatmul.mubr.bf16.gmra.mrb[0].mxu0 %v1595
  %v1807 = vpop.f32.mrb[0].mxu0
  %v1808 = vadd.f32 %v1736, %v1807
  %v1809 = vpop.f32.mrb[0].mxu0
  %v1810 = vpop.f32.mrb[0].mxu0
  %v1811 = vpop.f32.mrb[0].mxu0
  %1812 = vdwg.mxu0
  %v1813 = vmax.f32 %v651, %v1026
  %v1814 = vmax.f32 %v654, %v1029
  %v1815 = vmax.f32 %v659, %v1034
  %v1816 = vmax.f32 %v662, %v1037
  %v1817 = vmax.f32 %v667, %v1042
  %v1818 = vmax.f32 %v670, %v1045
  %v1819 = vmax.f32 %v675, %v1050
  %v1820 = vmax.f32 %v678, %v1053
  %v1821 = vmax.f32 %v683, %v1058
  %v1822 = vmax.f32 %v1401, %v1776
  %v1823 = vmax.f32 %v1404, %v1779
  %v1824 = vmax.f32 %v1409, %v1784
  %v1825 = vmax.f32 %v1412, %v1787
  %v1826 = vmax.f32 %v1417, %v1792
  %v1827 = vmax.f32 %v1420, %v1795
  %v1828 = vmax.f32 %v1425, %v1800
  %v1829 = vmax.f32 %v1428, %v1803
  %v1830 = vmax.f32 %v1433, %v1808
  %v1831 = vmax.f32 %v1813, %v1822
  %v1832 = vmax.f32 %v1814, %v1823
  %v1833 = vmax.f32 %v1815, %v1824
  %v1834 = vmax.f32 %v1816, %v1825
  %v1835 = vmax.f32 %v1817, %v1826
  %v1836 = vmax.f32 %v1818, %v1827
  %v1837 = vmax.f32 %v1819, %v1828
  %v1838 = vmax.f32 %v1820, %v1829
  %v1839 = vmax.f32 %v1821, %v1830
  %v1840 = vld [vmem:[%s5] sm:$0x1]
  %v1842 = vlaneseq
  %v1843 = vshrl.u32 %v1842, 7
  %v1844 = vsub.s32 0, %v1843
  %v1845 = vrot.slane %v1840, %v1844
  %v1847 = vadd.f32 %v1831, %v1845
  %v1848 = vadd.f32 %v1832, %v1845
  %v1849 = vadd.f32 %v1833, %v1845
  %v1850 = vadd.f32 %v1834, %v1845
  %v1851 = vadd.f32 %v1835, %v1845
  %v1852 = vadd.f32 %v1836, %v1845
  %v1853 = vadd.f32 %v1837, %v1845
  %v1854 = vadd.f32 %v1838, %v1845
  %v1855 = vadd.f32 %v1839, %v1845
  %v1856 = vmax.f32 %v1847, 0.0
  %v1857 = vmax.f32 %v1848, 0.0
  %v1858 = vmax.f32 %v1849, 0.0
  %v1859 = vmax.f32 %v1850, 0.0
  %v1860 = vmax.f32 %v1851, 0.0
  %v1861 = vmax.f32 %v1852, 0.0
  %v1862 = vmax.f32 %v1853, 0.0
  %v1863 = vmax.f32 %v1854, 0.0
  %v1864 = vmax.f32 %v1855, 0.0
  %v1865 = vpack.c.bf16 %v1857, %v1856
  %v1866 = vpack.c.bf16 %v1859, %v1858
  %v1867 = vpack.c.bf16 %v1861, %v1860
  %v1868 = vpack.c.bf16 %v1863, %v1862
  %v1869 = vpack.c.bf16 %v1864, %v1864
  %v1875 = vunpack.c.l.b16 %v1865
  %v1876 = vunpack.c.h.b16 %v1865
  %v1877 = vunpack.c.l.b16 %v1866
  %v1878 = vunpack.c.h.b16 %v1866
  %v1879 = vunpack.c.l.b16 %v1867
  %v1880 = vunpack.c.h.b16 %v1867
  %v1881 = vunpack.c.l.b16 %v1868
  %v1882 = vunpack.c.h.b16 %v1868
  %v1883 = vunpack.c.l.b16 %v1869
  %v1884 = vpack.c.b16 %v1875, %v1875
  %v1885 = vpack.c.b16 %v1876, %v1876
  %v1886 = vpack.c.b16 %v1877, %v1877
  %v1887 = vpack.c.b16 %v1878, %v1878
  %v1888 = vpack.c.b16 %v1879, %v1879
  %v1889 = vpack.c.b16 %v1880, %v1880
  %v1890 = vpack.c.b16 %v1881, %v1881
  %v1891 = vpack.c.b16 %v1882, %v1882
  %v1892 = vpack.c.b16 %v1883, %v1883
  %1902 = vst [vmem:[%s6] sm:$0xf] %v1884
  %1903 = vst [vmem:[%s6 + $0x4] sm:$0xf] %v1885
  %1904 = vst [vmem:[%s6 + $0x8] sm:$0xf] %v1886
  %1905 = vst [vmem:[%s6 + $0xc] sm:$0xf] %v1887
  %1906 = vst [vmem:[%s6 + $0x10] sm:$0xf] %v1888
  %1907 = vst [vmem:[%s6 + $0x14] sm:$0xf] %v1889
  %1908 = vst [vmem:[%s6 + $0x18] sm:$0xf] %v1890
  %1909 = vst [vmem:[%s6 + $0x1c] sm:$0xf] %v1891
  %1910 = vst [vmem:[%s6 + $0x20] sm:$0xf] %v1892
  // Predicated region
  $region26: #{model_forward.5} parent=0 // pred_check
    _
  $region27: #{model_forward.5} parent=0 // pred_check_branch
    %1912 = sbr.rel (0) target = $region29
  $region28: #{model_forward.5} parent=0 // pred_region
    _
  $region29: #{model_forward.5} parent=0 // pred_fallthru
    _
  // Predicated region
  $region30: #{model_forward.5} parent=0 // pred_check
    _
  $region31: #{model_forward.5} parent=0 // pred_check_branch
    %1914 = sbr.rel (0) target = $region33
  $region32: #{model_forward.5} parent=0 // pred_region
    _
  $region33: #{model_forward.5} parent=0 // pred_fallthru
    _

// kernel: model_forward.6
$region0: #{model_forward.6}
  #allocation0 [shape = 'u32[]', space=smem, size = 0x4, offset = 0x4, fixed_abs, tag = 'smem constant byte address 0x4 - core index']
  #allocation1 [shape = 'u32[144,128]{1,0:T(1,128)}', space=vmem, size = 0x12000, scoped, tag = 'internal scratch']
  %s0 = inlined_call_operand.vmem [shape: bf16[8,1152], index: 0, kind: input, shape index: {}]
  %s1 = inlined_call_operand.vmem [shape: bf16[8,1152], index: 1, kind: input, shape index: {}]
  %s2 = inlined_call_operand.vmem [shape: bf16[8,1152], index: 2, kind: input, shape index: {}]
  %s3 = inlined_call_operand.vmem [shape: bf16[8,1152], index: 3, kind: input, shape index: {}]
  %s4 = inlined_call_operand.vmem [shape: bf16[1152,256], index: 4, kind: input, shape index: {}]
  %s5 = inlined_call_operand.vmem [shape: f32[1,256], index: 5, kind: input, shape index: {}]
  %s6 = inlined_call_operand.vmem [shape: bf16[8,256], index: 6, kind: output, shape index: {}]
  %s7 = sld [smem:[#allocation0]]
  $region34: #{model_forward.6} parent=0
    _
  %s9 = ssub.s32 1, %s7
  %s10 = scalar_select 0, %s9, %s7
  // Predicated region
  $region2: #{model_forward.6} parent=0 // pred_check
    _
  $region3: #{model_forward.6} parent=0 // pred_check_branch
    %12 = sbr.rel (0) target = $region5
  $region4: #{model_forward.6} parent=0 // pred_region
    _
  $region5: #{model_forward.6} parent=0 // pred_fallthru
    _
  // Predicated region
  $region6: #{model_forward.6} parent=0 // pred_check
    _
  $region7: #{model_forward.6} parent=0 // pred_check_branch
    %14 = sbr.rel (0) target = $region9
  $region8: #{model_forward.6} parent=0 // pred_region
    _
  $region9: #{model_forward.6} parent=0 // pred_fallthru
    _
  // Predicated region
  $region10: #{model_forward.6} parent=0 // pred_check
    _
  $region11: #{model_forward.6} parent=0 // pred_check_branch
    %16 = sbr.rel (0) target = $region13
  $region12: #{model_forward.6} parent=0 // pred_region
    _
  $region13: #{model_forward.6} parent=0 // pred_fallthru
    _
  // Predicated region
  $region14: #{model_forward.6} parent=0 // pred_check
    _
  $region15: #{model_forward.6} parent=0 // pred_check_branch
    %18 = sbr.rel (0) target = $region17
  $region16: #{model_forward.6} parent=0 // pred_region
    _
  $region17: #{model_forward.6} parent=0 // pred_fallthru
    _
  // Predicated region
  $region18: #{model_forward.6} parent=0 // pred_check
    _
  $region19: #{model_forward.6} parent=0 // pred_check_branch
    %20 = sbr.rel (0) target = $region21
  $region20: #{model_forward.6} parent=0 // pred_region
    _
  $region21: #{model_forward.6} parent=0 // pred_fallthru
    _
  // Predicated region
  $region22: #{model_forward.6} parent=0 // pred_check
    _
  $region23: #{model_forward.6} parent=0 // pred_check_branch
    %22 = sbr.rel (0) target = $region25
  $region24: #{model_forward.6} parent=0 // pred_region
    _
  $region25: #{model_forward.6} parent=0 // pred_fallthru
    _
  %v24 = vld [vmem:[%s4] sm:$0xff]
  %v25 = vld [vmem:[%s4 + $0x8] sm:$0xff]
  %v26 = vld [vmem:[%s4 + $0x10] sm:$0xff]
  %v27 = vld [vmem:[%s4 + $0x18] sm:$0xff]
  %v28 = vld [vmem:[%s4 + $0x20] sm:$0xff]
  %v29 = vld [vmem:[%s4 + $0x28] sm:$0xff]
  %v30 = vld [vmem:[%s4 + $0x30] sm:$0xff]
  %v31 = vld [vmem:[%s4 + $0x38] sm:$0xff]
  %v32 = vld [vmem:[%s4 + $0x40] sm:$0xff]
  %v33 = vld [vmem:[%s4 + $0x48] sm:$0xff]
  %v34 = vld [vmem:[%s4 + $0x50] sm:$0xff]
  %v35 = vld [vmem:[%s4 + $0x58] sm:$0xff]
  %v36 = vld [vmem:[%s4 + $0x60] sm:$0xff]
  %v37 = vld [vmem:[%s4 + $0x68] sm:$0xff]
  %v38 = vld [vmem:[%s4 + $0x70] sm:$0xff]
  %v39 = vld [vmem:[%s4 + $0x78] sm:$0xff]
  %v40 = vld [vmem:[%s4 + $0x80] sm:$0xff]
  %v41 = vld [vmem:[%s4 + $0x88] sm:$0xff]
  %v42 = vld [vmem:[%s4 + $0x90] sm:$0xff]
  %v43 = vld [vmem:[%s4 + $0x98] sm:$0xff]
  %v44 = vld [vmem:[%s4 + $0xa0] sm:$0xff]
  %v45 = vld [vmem:[%s4 + $0xa8] sm:$0xff]
  %v46 = vld [vmem:[%s4 + $0xb0] sm:$0xff]
  %v47 = vld [vmem:[%s4 + $0xb8] sm:$0xff]
  %v48 = vld [vmem:[%s4 + $0xc0] sm:$0xff]
  %v49 = vld [vmem:[%s4 + $0xc8] sm:$0xff]
  %v50 = vld [vmem:[%s4 + $0xd0] sm:$0xff]
  %v51 = vld [vmem:[%s4 + $0xd8] sm:$0xff]
  %v52 = vld [vmem:[%s4 + $0xe0] sm:$0xff]
  %v53 = vld [vmem:[%s4 + $0xe8] sm:$0xff]
  %v54 = vld [vmem:[%s4 + $0xf0] sm:$0xff]
  %v55 = vld [vmem:[%s4 + $0xf8] sm:$0xff]
  %v56 = vld [vmem:[%s4 + $0x100] sm:$0xff]
  %v57 = vld [vmem:[%s4 + $0x108] sm:$0xff]
  %v58 = vld [vmem:[%s4 + $0x110] sm:$0xff]
  %v59 = vld [vmem:[%s4 + $0x118] sm:$0xff]
  %v60 = vld [vmem:[%s4 + $0x120] sm:$0xff]
  %v61 = vld [vmem:[%s4 + $0x128] sm:$0xff]
  %v62 = vld [vmem:[%s4 + $0x130] sm:$0xff]
  %v63 = vld [vmem:[%s4 + $0x138] sm:$0xff]
  %v64 = vld [vmem:[%s4 + $0x140] sm:$0xff]
  %v65 = vld [vmem:[%s4 + $0x148] sm:$0xff]
  %v66 = vld [vmem:[%s4 + $0x150] sm:$0xff]
  %v67 = vld [vmem:[%s4 + $0x158] sm:$0xff]
  %v68 = vld [vmem:[%s4 + $0x160] sm:$0xff]
  %v69 = vld [vmem:[%s4 + $0x168] sm:$0xff]
  %v70 = vld [vmem:[%s4 + $0x170] sm:$0xff]
  %v71 = vld [vmem:[%s4 + $0x178] sm:$0xff]
  %v72 = vld [vmem:[%s4 + $0x180] sm:$0xff]
  %v73 = vld [vmem:[%s4 + $0x188] sm:$0xff]
  %v74 = vld [vmem:[%s4 + $0x190] sm:$0xff]
  %v75 = vld [vmem:[%s4 + $0x198] sm:$0xff]
  %v76 = vld [vmem:[%s4 + $0x1a0] sm:$0xff]
  %v77 = vld [vmem:[%s4 + $0x1a8] sm:$0xff]
  %v78 = vld [vmem:[%s4 + $0x1b0] sm:$0xff]
  %v79 = vld [vmem:[%s4 + $0x1b8] sm:$0xff]
  %v80 = vld [vmem:[%s4 + $0x1c0] sm:$0xff]
  %v81 = vld [vmem:[%s4 + $0x1c8] sm:$0xff]
  %v82 = vld [vmem:[%s4 + $0x1d0] sm:$0xff]
  %v83 = vld [vmem:[%s4 + $0x1d8] sm:$0xff]
  %v84 = vld [vmem:[%s4 + $0x1e0] sm:$0xff]
  %v85 = vld [vmem:[%s4 + $0x1e8] sm:$0xff]
  %v86 = vld [vmem:[%s4 + $0x1f0] sm:$0xff]
  %v87 = vld [vmem:[%s4 + $0x1f8] sm:$0xff]
  %v88 = vld [vmem:[%s4 + $0x200] sm:$0xff]
  %v89 = vld [vmem:[%s4 + $0x208] sm:$0xff]
  %v90 = vld [vmem:[%s4 + $0x210] sm:$0xff]
  %v91 = vld [vmem:[%s4 + $0x218] sm:$0xff]
  %v92 = vld [vmem:[%s4 + $0x220] sm:$0xff]
  %v93 = vld [vmem:[%s4 + $0x228] sm:$0xff]
  %v94 = vld [vmem:[%s4 + $0x230] sm:$0xff]
  %v95 = vld [vmem:[%s4 + $0x238] sm:$0xff]
  %v96 = vld [vmem:[%s4 + $0x240] sm:$0xff]
  %v97 = vld [vmem:[%s4 + $0x248] sm:$0xff]
  %v98 = vld [vmem:[%s4 + $0x250] sm:$0xff]
  %v99 = vld [vmem:[%s4 + $0x258] sm:$0xff]
  %v100 = vld [vmem:[%s4 + $0x260] sm:$0xff]
  %v101 = vld [vmem:[%s4 + $0x268] sm:$0xff]
  %v102 = vld [vmem:[%s4 + $0x270] sm:$0xff]
  %v103 = vld [vmem:[%s4 + $0x278] sm:$0xff]
  %v104 = vld [vmem:[%s4 + $0x280] sm:$0xff]
  %v105 = vld [vmem:[%s4 + $0x288] sm:$0xff]
  %v106 = vld [vmem:[%s4 + $0x290] sm:$0xff]
  %v107 = vld [vmem:[%s4 + $0x298] sm:$0xff]
  %v108 = vld [vmem:[%s4 + $0x2a0] sm:$0xff]
  %v109 = vld [vmem:[%s4 + $0x2a8] sm:$0xff]
  %v110 = vld [vmem:[%s4 + $0x2b0] sm:$0xff]
  %v111 = vld [vmem:[%s4 + $0x2b8] sm:$0xff]
  %v112 = vld [vmem:[%s4 + $0x2c0] sm:$0xff]
  %v113 = vld [vmem:[%s4 + $0x2c8] sm:$0xff]
  %v114 = vld [vmem:[%s4 + $0x2d0] sm:$0xff]
  %v115 = vld [vmem:[%s4 + $0x2d8] sm:$0xff]
  %v116 = vld [vmem:[%s4 + $0x2e0] sm:$0xff]
  %v117 = vld [vmem:[%s4 + $0x2e8] sm:$0xff]
  %v118 = vld [vmem:[%s4 + $0x2f0] sm:$0xff]
  %v119 = vld [vmem:[%s4 + $0x2f8] sm:$0xff]
  %v120 = vld [vmem:[%s4 + $0x300] sm:$0xff]
  %v121 = vld [vmem:[%s4 + $0x308] sm:$0xff]
  %v122 = vld [vmem:[%s4 + $0x310] sm:$0xff]
  %v123 = vld [vmem:[%s4 + $0x318] sm:$0xff]
  %v124 = vld [vmem:[%s4 + $0x320] sm:$0xff]
  %v125 = vld [vmem:[%s4 + $0x328] sm:$0xff]
  %v126 = vld [vmem:[%s4 + $0x330] sm:$0xff]
  %v127 = vld [vmem:[%s4 + $0x338] sm:$0xff]
  %v128 = vld [vmem:[%s4 + $0x340] sm:$0xff]
  %v129 = vld [vmem:[%s4 + $0x348] sm:$0xff]
  %v130 = vld [vmem:[%s4 + $0x350] sm:$0xff]
  %v131 = vld [vmem:[%s4 + $0x358] sm:$0xff]
  %v132 = vld [vmem:[%s4 + $0x360] sm:$0xff]
  %v133 = vld [vmem:[%s4 + $0x368] sm:$0xff]
  %v134 = vld [vmem:[%s4 + $0x370] sm:$0xff]
  %v135 = vld [vmem:[%s4 + $0x378] sm:$0xff]
  %v136 = vld [vmem:[%s4 + $0x380] sm:$0xff]
  %v137 = vld [vmem:[%s4 + $0x388] sm:$0xff]
  %v138 = vld [vmem:[%s4 + $0x390] sm:$0xff]
  %v139 = vld [vmem:[%s4 + $0x398] sm:$0xff]
  %v140 = vld [vmem:[%s4 + $0x3a0] sm:$0xff]
  %v141 = vld [vmem:[%s4 + $0x3a8] sm:$0xff]
  %v142 = vld [vmem:[%s4 + $0x3b0] sm:$0xff]
  %v143 = vld [vmem:[%s4 + $0x3b8] sm:$0xff]
  %v144 = vld [vmem:[%s4 + $0x3c0] sm:$0xff]
  %v145 = vld [vmem:[%s4 + $0x3c8] sm:$0xff]
  %v146 = vld [vmem:[%s4 + $0x3d0] sm:$0xff]
  %v147 = vld [vmem:[%s4 + $0x3d8] sm:$0xff]
  %v148 = vld [vmem:[%s4 + $0x3e0] sm:$0xff]
  %v149 = vld [vmem:[%s4 + $0x3e8] sm:$0xff]
  %v150 = vld [vmem:[%s4 + $0x3f0] sm:$0xff]
  %v151 = vld [vmem:[%s4 + $0x3f8] sm:$0xff]
  %v152 = vld [vmem:[%s4 + $0x400] sm:$0xff]
  %v153 = vld [vmem:[%s4 + $0x408] sm:$0xff]
  %v154 = vld [vmem:[%s4 + $0x410] sm:$0xff]
  %v155 = vld [vmem:[%s4 + $0x418] sm:$0xff]
  %v156 = vld [vmem:[%s4 + $0x420] sm:$0xff]
  %v157 = vld [vmem:[%s4 + $0x428] sm:$0xff]
  %v158 = vld [vmem:[%s4 + $0x430] sm:$0xff]
  %v159 = vld [vmem:[%s4 + $0x438] sm:$0xff]
  %v160 = vld [vmem:[%s4 + $0x440] sm:$0xff]
  %v161 = vld [vmem:[%s4 + $0x448] sm:$0xff]
  %v162 = vld [vmem:[%s4 + $0x450] sm:$0xff]
  %v163 = vld [vmem:[%s4 + $0x458] sm:$0xff]
  %v164 = vld [vmem:[%s4 + $0x460] sm:$0xff]
  %v165 = vld [vmem:[%s4 + $0x468] sm:$0xff]
  %v166 = vld [vmem:[%s4 + $0x470] sm:$0xff]
  %v167 = vld [vmem:[%s4 + $0x478] sm:$0xff]
  %v168 = vld [vmem:[%s0] sm:$0xff]
  %v169 = vld [vmem:[%s0 + $0x8] sm:$0xff]
  %v170 = vld [vmem:[%s0 + $0x10] sm:$0xff]
  %v171 = vld [vmem:[%s0 + $0x18] sm:$0xff]
  %v172 = vld [vmem:[%s0 + $0x20] sm:$0xf]
  %v178 = vunpack.c.l.b16 %v168
  %v179 = vunpack.c.h.b16 %v168
  %v180 = vunpack.c.l.b16 %v169
  %v181 = vunpack.c.h.b16 %v169
  %v182 = vunpack.c.l.b16 %v170
  %v183 = vunpack.c.h.b16 %v170
  %v184 = vunpack.c.l.b16 %v171
  %v185 = vunpack.c.h.b16 %v171
  %v186 = vunpack.c.l.b16 %v172
  %v187 = vpack.c.b16 %v178, %v178
  %v188 = vpack.c.b16 %v179, %v179
  %v189 = vpack.c.b16 %v180, %v180
  %v190 = vpack.c.b16 %v181, %v181
  %v191 = vpack.c.b16 %v182, %v182
  %v192 = vpack.c.b16 %v183, %v183
  %v193 = vpack.c.b16 %v184, %v184
  %v194 = vpack.c.b16 %v185, %v185
  %v195 = vpack.c.b16 %v186, %v186
  %v349 = vunpack.c.l.b16 %v24
  %v350 = vunpack.c.h.b16 %v24
  %v351 = vunpack.c.l.b16 %v25
  %v352 = vunpack.c.h.b16 %v25
  %v353 = vunpack.c.l.b16 %v26
  %v354 = vunpack.c.h.b16 %v26
  %v355 = vunpack.c.l.b16 %v27
  %v356 = vunpack.c.h.b16 %v27
  %v357 = vunpack.c.l.b16 %v28
  %v358 = vunpack.c.h.b16 %v28
  %v359 = vunpack.c.l.b16 %v29
  %v360 = vunpack.c.h.b16 %v29
  %v361 = vunpack.c.l.b16 %v30
  %v362 = vunpack.c.h.b16 %v30
  %v363 = vunpack.c.l.b16 %v31
  %v364 = vunpack.c.h.b16 %v31
  %v365 = vunpack.c.l.b16 %v32
  %v366 = vunpack.c.h.b16 %v32
  %v367 = vunpack.c.l.b16 %v33
  %v368 = vunpack.c.h.b16 %v33
  %v369 = vunpack.c.l.b16 %v34
  %v370 = vunpack.c.h.b16 %v34
  %v371 = vunpack.c.l.b16 %v35
  %v372 = vunpack.c.h.b16 %v35
  %v373 = vunpack.c.l.b16 %v36
  %v374 = vunpack.c.h.b16 %v36
  %v375 = vunpack.c.l.b16 %v37
  %v376 = vunpack.c.h.b16 %v37
  %v377 = vunpack.c.l.b16 %v38
  %v378 = vunpack.c.h.b16 %v38
  %v379 = vunpack.c.l.b16 %v39
  %v380 = vunpack.c.h.b16 %v39
  %v381 = vunpack.c.l.b16 %v40
  %v382 = vunpack.c.h.b16 %v40
  %v383 = vunpack.c.l.b16 %v41
  %v384 = vunpack.c.h.b16 %v41
  %v385 = vunpack.c.l.b16 %v42
  %v386 = vunpack.c.h.b16 %v42
  %v387 = vunpack.c.l.b16 %v43
  %v388 = vunpack.c.h.b16 %v43
  %v389 = vunpack.c.l.b16 %v44
  %v390 = vunpack.c.h.b16 %v44
  %v391 = vunpack.c.l.b16 %v45
  %v392 = vunpack.c.h.b16 %v45
  %v393 = vunpack.c.l.b16 %v46
  %v394 = vunpack.c.h.b16 %v46
  %v395 = vunpack.c.l.b16 %v47
  %v396 = vunpack.c.h.b16 %v47
  %v397 = vunpack.c.l.b16 %v48
  %v398 = vunpack.c.h.b16 %v48
  %v399 = vunpack.c.l.b16 %v49
  %v400 = vunpack.c.h.b16 %v49
  %v401 = vunpack.c.l.b16 %v50
  %v402 = vunpack.c.h.b16 %v50
  %v403 = vunpack.c.l.b16 %v51
  %v404 = vunpack.c.h.b16 %v51
  %v405 = vunpack.c.l.b16 %v52
  %v406 = vunpack.c.h.b16 %v52
  %v407 = vunpack.c.l.b16 %v53
  %v408 = vunpack.c.h.b16 %v53
  %v409 = vunpack.c.l.b16 %v54
  %v410 = vunpack.c.h.b16 %v54
  %v411 = vunpack.c.l.b16 %v55
  %v412 = vunpack.c.h.b16 %v55
  %v413 = vunpack.c.l.b16 %v56
  %v414 = vunpack.c.h.b16 %v56
  %v415 = vunpack.c.l.b16 %v57
  %v416 = vunpack.c.h.b16 %v57
  %v417 = vunpack.c.l.b16 %v58
  %v418 = vunpack.c.h.b16 %v58
  %v419 = vunpack.c.l.b16 %v59
  %v420 = vunpack.c.h.b16 %v59
  %v421 = vunpack.c.l.b16 %v60
  %v422 = vunpack.c.h.b16 %v60
  %v423 = vunpack.c.l.b16 %v61
  %v424 = vunpack.c.h.b16 %v61
  %v425 = vunpack.c.l.b16 %v62
  %v426 = vunpack.c.h.b16 %v62
  %v427 = vunpack.c.l.b16 %v63
  %v428 = vunpack.c.h.b16 %v63
  %v429 = vunpack.c.l.b16 %v64
  %v430 = vunpack.c.h.b16 %v64
  %v431 = vunpack.c.l.b16 %v65
  %v432 = vunpack.c.h.b16 %v65
  %v433 = vunpack.c.l.b16 %v66
  %v434 = vunpack.c.h.b16 %v66
  %v435 = vunpack.c.l.b16 %v67
  %v436 = vunpack.c.h.b16 %v67
  %v437 = vunpack.c.l.b16 %v68
  %v438 = vunpack.c.h.b16 %v68
  %v439 = vunpack.c.l.b16 %v69
  %v440 = vunpack.c.h.b16 %v69
  %v441 = vunpack.c.l.b16 %v70
  %v442 = vunpack.c.h.b16 %v70
  %v443 = vunpack.c.l.b16 %v71
  %v444 = vunpack.c.h.b16 %v71
  %v445 = vunpack.c.l.b16 %v72
  %v446 = vunpack.c.h.b16 %v72
  %v447 = vunpack.c.l.b16 %v73
  %v448 = vunpack.c.h.b16 %v73
  %v449 = vunpack.c.l.b16 %v74
  %v450 = vunpack.c.h.b16 %v74
  %v451 = vunpack.c.l.b16 %v75
  %v452 = vunpack.c.h.b16 %v75
  %v453 = vunpack.c.l.b16 %v76
  %v454 = vunpack.c.h.b16 %v76
  %v455 = vunpack.c.l.b16 %v77
  %v456 = vunpack.c.h.b16 %v77
  %v457 = vunpack.c.l.b16 %v78
  %v458 = vunpack.c.h.b16 %v78
  %v459 = vunpack.c.l.b16 %v79
  %v460 = vunpack.c.h.b16 %v79
  %v461 = vunpack.c.l.b16 %v80
  %v462 = vunpack.c.h.b16 %v80
  %v463 = vunpack.c.l.b16 %v81
  %v464 = vunpack.c.h.b16 %v81
  %v465 = vunpack.c.l.b16 %v82
  %v466 = vunpack.c.h.b16 %v82
  %v467 = vunpack.c.l.b16 %v83
  %v468 = vunpack.c.h.b16 %v83
  %v469 = vunpack.c.l.b16 %v84
  %v470 = vunpack.c.h.b16 %v84
  %v471 = vunpack.c.l.b16 %v85
  %v472 = vunpack.c.h.b16 %v85
  %v473 = vunpack.c.l.b16 %v86
  %v474 = vunpack.c.h.b16 %v86
  %v475 = vunpack.c.l.b16 %v87
  %v476 = vunpack.c.h.b16 %v87
  %v477 = vunpack.c.l.b16 %v88
  %v478 = vunpack.c.h.b16 %v88
  %v479 = vunpack.c.l.b16 %v89
  %v480 = vunpack.c.h.b16 %v89
  %v481 = vunpack.c.l.b16 %v90
  %v482 = vunpack.c.h.b16 %v90
  %v483 = vunpack.c.l.b16 %v91
  %v484 = vunpack.c.h.b16 %v91
  %v485 = vunpack.c.l.b16 %v92
  %v486 = vunpack.c.h.b16 %v92
  %v487 = vunpack.c.l.b16 %v93
  %v488 = vunpack.c.h.b16 %v93
  %v489 = vunpack.c.l.b16 %v94
  %v490 = vunpack.c.h.b16 %v94
  %v491 = vunpack.c.l.b16 %v95
  %v492 = vunpack.c.h.b16 %v95
  %v493 = vunpack.c.l.b16 %v96
  %v494 = vunpack.c.h.b16 %v96
  %v495 = vunpack.c.l.b16 %v97
  %v496 = vunpack.c.h.b16 %v97
  %v497 = vunpack.c.l.b16 %v98
  %v498 = vunpack.c.h.b16 %v98
  %v499 = vunpack.c.l.b16 %v99
  %v500 = vunpack.c.h.b16 %v99
  %v501 = vunpack.c.l.b16 %v100
  %v502 = vunpack.c.h.b16 %v100
  %v503 = vunpack.c.l.b16 %v101
  %v504 = vunpack.c.h.b16 %v101
  %v505 = vunpack.c.l.b16 %v102
  %v506 = vunpack.c.h.b16 %v102
  %v507 = vunpack.c.l.b16 %v103
  %v508 = vunpack.c.h.b16 %v103
  %v509 = vunpack.c.l.b16 %v104
  %v510 = vunpack.c.h.b16 %v104
  %v511 = vunpack.c.l.b16 %v105
  %v512 = vunpack.c.h.b16 %v105
  %v513 = vunpack.c.l.b16 %v106
  %v514 = vunpack.c.h.b16 %v106
  %v515 = vunpack.c.l.b16 %v107
  %v516 = vunpack.c.h.b16 %v107
  %v517 = vunpack.c.l.b16 %v108
  %v518 = vunpack.c.h.b16 %v108
  %v519 = vunpack.c.l.b16 %v109
  %v520 = vunpack.c.h.b16 %v109
  %v521 = vunpack.c.l.b16 %v110
  %v522 = vunpack.c.h.b16 %v110
  %v523 = vunpack.c.l.b16 %v111
  %v524 = vunpack.c.h.b16 %v111
  %v525 = vunpack.c.l.b16 %v112
  %v526 = vunpack.c.h.b16 %v112
  %v527 = vunpack.c.l.b16 %v113
  %v528 = vunpack.c.h.b16 %v113
  %v529 = vunpack.c.l.b16 %v114
  %v530 = vunpack.c.h.b16 %v114
  %v531 = vunpack.c.l.b16 %v115
  %v532 = vunpack.c.h.b16 %v115
  %v533 = vunpack.c.l.b16 %v116
  %v534 = vunpack.c.h.b16 %v116
  %v535 = vunpack.c.l.b16 %v117
  %v536 = vunpack.c.h.b16 %v117
  %v537 = vunpack.c.l.b16 %v118
  %v538 = vunpack.c.h.b16 %v118
  %v539 = vunpack.c.l.b16 %v119
  %v540 = vunpack.c.h.b16 %v119
  %v541 = vunpack.c.l.b16 %v120
  %v542 = vunpack.c.h.b16 %v120
  %v543 = vunpack.c.l.b16 %v121
  %v544 = vunpack.c.h.b16 %v121
  %v545 = vunpack.c.l.b16 %v122
  %v546 = vunpack.c.h.b16 %v122
  %v547 = vunpack.c.l.b16 %v123
  %v548 = vunpack.c.h.b16 %v123
  %v549 = vunpack.c.l.b16 %v124
  %v550 = vunpack.c.h.b16 %v124
  %v551 = vunpack.c.l.b16 %v125
  %v552 = vunpack.c.h.b16 %v125
  %v553 = vunpack.c.l.b16 %v126
  %v554 = vunpack.c.h.b16 %v126
  %v555 = vunpack.c.l.b16 %v127
  %v556 = vunpack.c.h.b16 %v127
  %v557 = vunpack.c.l.b16 %v128
  %v558 = vunpack.c.h.b16 %v128
  %v559 = vunpack.c.l.b16 %v129
  %v560 = vunpack.c.h.b16 %v129
  %v561 = vunpack.c.l.b16 %v130
  %v562 = vunpack.c.h.b16 %v130
  %v563 = vunpack.c.l.b16 %v131
  %v564 = vunpack.c.h.b16 %v131
  %v565 = vunpack.c.l.b16 %v132
  %v566 = vunpack.c.h.b16 %v132
  %v567 = vunpack.c.l.b16 %v133
  %v568 = vunpack.c.h.b16 %v133
  %v569 = vunpack.c.l.b16 %v134
  %v570 = vunpack.c.h.b16 %v134
  %v571 = vunpack.c.l.b16 %v135
  %v572 = vunpack.c.h.b16 %v135
  %v573 = vunpack.c.l.b16 %v136
  %v574 = vunpack.c.h.b16 %v136
  %v575 = vunpack.c.l.b16 %v137
  %v576 = vunpack.c.h.b16 %v137
  %v577 = vunpack.c.l.b16 %v138
  %v578 = vunpack.c.h.b16 %v138
  %v579 = vunpack.c.l.b16 %v139
  %v580 = vunpack.c.h.b16 %v139
  %v581 = vunpack.c.l.b16 %v140
  %v582 = vunpack.c.h.b16 %v140
  %v583 = vunpack.c.l.b16 %v141
  %v584 = vunpack.c.h.b16 %v141
  %v585 = vunpack.c.l.b16 %v142
  %v586 = vunpack.c.h.b16 %v142
  %v587 = vunpack.c.l.b16 %v143
  %v588 = vunpack.c.h.b16 %v143
  %v589 = vunpack.c.l.b16 %v144
  %v590 = vunpack.c.h.b16 %v144
  %v591 = vunpack.c.l.b16 %v145
  %v592 = vunpack.c.h.b16 %v145
  %v593 = vunpack.c.l.b16 %v146
  %v594 = vunpack.c.h.b16 %v146
  %v595 = vunpack.c.l.b16 %v147
  %v596 = vunpack.c.h.b16 %v147
  %v597 = vunpack.c.l.b16 %v148
  %v598 = vunpack.c.h.b16 %v148
  %v599 = vunpack.c.l.b16 %v149
  %v600 = vunpack.c.h.b16 %v149
  %v601 = vunpack.c.l.b16 %v150
  %v602 = vunpack.c.h.b16 %v150
  %v603 = vunpack.c.l.b16 %v151
  %v604 = vunpack.c.h.b16 %v151
  %v605 = vunpack.c.l.b16 %v152
  %v606 = vunpack.c.h.b16 %v152
  %v607 = vunpack.c.l.b16 %v153
  %v608 = vunpack.c.h.b16 %v153
  %v609 = vunpack.c.l.b16 %v154
  %v610 = vunpack.c.h.b16 %v154
  %v611 = vunpack.c.l.b16 %v155
  %v612 = vunpack.c.h.b16 %v155
  %v613 = vunpack.c.l.b16 %v156
  %v614 = vunpack.c.h.b16 %v156
  %v615 = vunpack.c.l.b16 %v157
  %v616 = vunpack.c.h.b16 %v157
  %v617 = vunpack.c.l.b16 %v158
  %v618 = vunpack.c.h.b16 %v158
  %v619 = vunpack.c.l.b16 %v159
  %v620 = vunpack.c.h.b16 %v159
  %v621 = vunpack.c.l.b16 %v160
  %v622 = vunpack.c.h.b16 %v160
  %v623 = vunpack.c.l.b16 %v161
  %v624 = vunpack.c.h.b16 %v161
  %v625 = vunpack.c.l.b16 %v162
  %v626 = vunpack.c.h.b16 %v162
  %v627 = vunpack.c.l.b16 %v163
  %v628 = vunpack.c.h.b16 %v163
  %v629 = vunpack.c.l.b16 %v164
  %v630 = vunpack.c.h.b16 %v164
  %v631 = vunpack.c.l.b16 %v165
  %v632 = vunpack.c.h.b16 %v165
  %v633 = vunpack.c.l.b16 %v166
  %v634 = vunpack.c.h.b16 %v166
  %v635 = vunpack.c.l.b16 %v167
  %v636 = vunpack.c.h.b16 %v167
  %v637 = vpack.c.b16 %v351, %v349
  %v638 = vpack.c.b16 %v352, %v350
  %v639 = vpack.c.b16 %v355, %v353
  %v640 = vpack.c.b16 %v356, %v354
  %v641 = vpack.c.b16 %v359, %v357
  %v642 = vpack.c.b16 %v360, %v358
  %v643 = vpack.c.b16 %v363, %v361
  %v644 = vpack.c.b16 %v364, %v362
  %v645 = vpack.c.b16 %v367, %v365
  %v646 = vpack.c.b16 %v368, %v366
  %v647 = vpack.c.b16 %v371, %v369
  %v648 = vpack.c.b16 %v372, %v370
  %v649 = vpack.c.b16 %v375, %v373
  %v650 = vpack.c.b16 %v376, %v374
  %v651 = vpack.c.b16 %v379, %v377
  %v652 = vpack.c.b16 %v380, %v378
  %v653 = vpack.c.b16 %v383, %v381
  %v654 = vpack.c.b16 %v384, %v382
  %v655 = vpack.c.b16 %v387, %v385
  %v656 = vpack.c.b16 %v388, %v386
  %v657 = vpack.c.b16 %v391, %v389
  %v658 = vpack.c.b16 %v392, %v390
  %v659 = vpack.c.b16 %v395, %v393
  %v660 = vpack.c.b16 %v396, %v394
  %v661 = vpack.c.b16 %v399, %v397
  %v662 = vpack.c.b16 %v400, %v398
  %v663 = vpack.c.b16 %v403, %v401
  %v664 = vpack.c.b16 %v404, %v402
  %v665 = vpack.c.b16 %v407, %v405
  %v666 = vpack.c.b16 %v408, %v406
  %v667 = vpack.c.b16 %v411, %v409
  %v668 = vpack.c.b16 %v412, %v410
  %v669 = vpack.c.b16 %v415, %v413
  %v670 = vpack.c.b16 %v416, %v414
  %v671 = vpack.c.b16 %v419, %v417
  %v672 = vpack.c.b16 %v420, %v418
  %v673 = vpack.c.b16 %v423, %v421
  %v674 = vpack.c.b16 %v424, %v422
  %v675 = vpack.c.b16 %v427, %v425
  %v676 = vpack.c.b16 %v428, %v426
  %v677 = vpack.c.b16 %v431, %v429
  %v678 = vpack.c.b16 %v432, %v430
  %v679 = vpack.c.b16 %v435, %v433
  %v680 = vpack.c.b16 %v436, %v434
  %v681 = vpack.c.b16 %v439, %v437
  %v682 = vpack.c.b16 %v440, %v438
  %v683 = vpack.c.b16 %v443, %v441
  %v684 = vpack.c.b16 %v444, %v442
  %v685 = vpack.c.b16 %v447, %v445
  %v686 = vpack.c.b16 %v448, %v446
  %v687 = vpack.c.b16 %v451, %v449
  %v688 = vpack.c.b16 %v452, %v450
  %v689 = vpack.c.b16 %v455, %v453
  %v690 = vpack.c.b16 %v456, %v454
  %v691 = vpack.c.b16 %v459, %v457
  %v692 = vpack.c.b16 %v460, %v458
  %v693 = vpack.c.b16 %v463, %v461
  %v694 = vpack.c.b16 %v464, %v462
  %v695 = vpack.c.b16 %v467, %v465
  %v696 = vpack.c.b16 %v468, %v466
  %v697 = vpack.c.b16 %v471, %v469
  %v698 = vpack.c.b16 %v472, %v470
  %v699 = vpack.c.b16 %v475, %v473
  %v700 = vpack.c.b16 %v476, %v474
  %v701 = vpack.c.b16 %v479, %v477
  %v702 = vpack.c.b16 %v480, %v478
  %v703 = vpack.c.b16 %v483, %v481
  %v704 = vpack.c.b16 %v484, %v482
  %v705 = vpack.c.b16 %v487, %v485
  %v706 = vpack.c.b16 %v488, %v486
  %v707 = vpack.c.b16 %v491, %v489
  %v708 = vpack.c.b16 %v492, %v490
  %v709 = vpack.c.b16 %v495, %v493
  %v710 = vpack.c.b16 %v496, %v494
  %v711 = vpack.c.b16 %v499, %v497
  %v712 = vpack.c.b16 %v500, %v498
  %v713 = vpack.c.b16 %v503, %v501
  %v714 = vpack.c.b16 %v504, %v502
  %v715 = vpack.c.b16 %v507, %v505
  %v716 = vpack.c.b16 %v508, %v506
  %v717 = vpack.c.b16 %v511, %v509
  %v718 = vpack.c.b16 %v512, %v510
  %v719 = vpack.c.b16 %v515, %v513
  %v720 = vpack.c.b16 %v516, %v514
  %v721 = vpack.c.b16 %v519, %v517
  %v722 = vpack.c.b16 %v520, %v518
  %v723 = vpack.c.b16 %v523, %v521
  %v724 = vpack.c.b16 %v524, %v522
  %v725 = vpack.c.b16 %v527, %v525
  %v726 = vpack.c.b16 %v528, %v526
  %v727 = vpack.c.b16 %v531, %v529
  %v728 = vpack.c.b16 %v532, %v530
  %v729 = vpack.c.b16 %v535, %v533
  %v730 = vpack.c.b16 %v536, %v534
  %v731 = vpack.c.b16 %v539, %v537
  %v732 = vpack.c.b16 %v540, %v538
  %v733 = vpack.c.b16 %v543, %v541
  %v734 = vpack.c.b16 %v544, %v542
  %v735 = vpack.c.b16 %v547, %v545
  %v736 = vpack.c.b16 %v548, %v546
  %v737 = vpack.c.b16 %v551, %v549
  %v738 = vpack.c.b16 %v552, %v550
  %v739 = vpack.c.b16 %v555, %v553
  %v740 = vpack.c.b16 %v556, %v554
  %v741 = vpack.c.b16 %v559, %v557
  %v742 = vpack.c.b16 %v560, %v558
  %v743 = vpack.c.b16 %v563, %v561
  %v744 = vpack.c.b16 %v564, %v562
  %v745 = vpack.c.b16 %v567, %v565
  %v746 = vpack.c.b16 %v568, %v566
  %v747 = vpack.c.b16 %v571, %v569
  %v748 = vpack.c.b16 %v572, %v570
  %v749 = vpack.c.b16 %v575, %v573
  %v750 = vpack.c.b16 %v576, %v574
  %v751 = vpack.c.b16 %v579, %v577
  %v752 = vpack.c.b16 %v580, %v578
  %v753 = vpack.c.b16 %v583, %v581
  %v754 = vpack.c.b16 %v584, %v582
  %v755 = vpack.c.b16 %v587, %v585
  %v756 = vpack.c.b16 %v588, %v586
  %v757 = vpack.c.b16 %v591, %v589
  %v758 = vpack.c.b16 %v592, %v590
  %v759 = vpack.c.b16 %v595, %v593
  %v760 = vpack.c.b16 %v596, %v594
  %v761 = vpack.c.b16 %v599, %v597
  %v762 = vpack.c.b16 %v600, %v598
  %v763 = vpack.c.b16 %v603, %v601
  %v764 = vpack.c.b16 %v604, %v602
  %v765 = vpack.c.b16 %v607, %v605
  %v766 = vpack.c.b16 %v608, %v606
  %v767 = vpack.c.b16 %v611, %v609
  %v768 = vpack.c.b16 %v612, %v610
  %v769 = vpack.c.b16 %v615, %v613
  %v770 = vpack.c.b16 %v616, %v614
  %v771 = vpack.c.b16 %v619, %v617
  %v772 = vpack.c.b16 %v620, %v618
  %v773 = vpack.c.b16 %v623, %v621
  %v774 = vpack.c.b16 %v624, %v622
  %v775 = vpack.c.b16 %v627, %v625
  %v776 = vpack.c.b16 %v628, %v626
  %v777 = vpack.c.b16 %v631, %v629
  %v778 = vpack.c.b16 %v632, %v630
  %v779 = vpack.c.b16 %v635, %v633
  %v780 = vpack.c.b16 %v636, %v634
  %925 = vmatprep.subr.bf16.mxu0 %v638
  %926 = vmatpush1.bf16.msra.mxu0 %v637
  %927 = vmatprep.subr.bf16.mxu0 %v640
  %928 = vmatpush1.bf16.msra.mxu0 %v639
  %929 = vmatprep.subr.bf16.mxu0 %v642
  %930 = vmatpush1.bf16.msra.mxu0 %v641
  %931 = vmatprep.subr.bf16.mxu0 %v644
  %932 = vmatpush1.bf16.msra.mxu0 %v643
  %933 = vmatprep.subr.bf16.mxu0 %v646
  %934 = vmatpush1.bf16.msra.mxu0 %v645
  %935 = vmatprep.subr.bf16.mxu0 %v648
  %936 = vmatpush1.bf16.msra.mxu0 %v647
  %937 = vmatprep.subr.bf16.mxu0 %v650
  %938 = vmatpush1.bf16.msra.mxu0 %v649
  %939 = vmatprep.subr.bf16.mxu0 %v652
  %940 = vmatpush1.bf16.msra.mxu0 %v651
  %941 = vmatprep.subr.bf16.mxu0 %v654
  %942 = vmatpush1.bf16.msra.mxu0 %v653
  %943 = vmatprep.subr.bf16.mxu0 %v656
  %944 = vmatpush1.bf16.msra.mxu0 %v655
  %945 = vmatprep.subr.bf16.mxu0 %v658
  %946 = vmatpush1.bf16.msra.mxu0 %v657
  %947 = vmatprep.subr.bf16.mxu0 %v660
  %948 = vmatpush1.bf16.msra.mxu0 %v659
  %949 = vmatprep.subr.bf16.mxu0 %v662
  %950 = vmatpush1.bf16.msra.mxu0 %v661
  %951 = vmatprep.subr.bf16.mxu0 %v664
  %952 = vmatpush1.bf16.msra.mxu0 %v663
  %953 = vmatprep.subr.bf16.mxu0 %v666
  %954 = vmatpush1.bf16.msra.mxu0 %v665
  %955 = vmatprep.subr.bf16.mxu0 %v668
  %956 = vmatpush1.bf16.msra.mxu0 %v667
  %957 = vmatprep.mubr.bf16.mxu0 %v188
  %958 = vmatmul.mubr.bf16.gmra.mrb[0].mxu0 %v187
  %v959 = vpop.f32.mrb[0].mxu0
  %v960 = vadd.f32 0.0, %v959
  %v961 = vpop.f32.mrb[0].mxu0
  %v962 = vadd.f32 0.0, %v961
  %v963 = vpop.f32.mrb[0].mxu0
  %v964 = vpop.f32.mrb[0].mxu0
  %965 = vdwg.mxu0
  %966 = vmatprep.subr.bf16.mxu0 %v670
  %967 = vmatpush1.bf16.msra.mxu0 %v669
  %968 = vmatprep.subr.bf16.mxu0 %v672
  %969 = vmatpush1.bf16.msra.mxu0 %v671
  %970 = vmatprep.subr.bf16.mxu0 %v674
  %971 = vmatpush1.bf16.msra.mxu0 %v673
  %972 = vmatprep.subr.bf16.mxu0 %v676
  %973 = vmatpush1.bf16.msra.mxu0 %v675
  %974 = vmatprep.subr.bf16.mxu0 %v678
  %975 = vmatpush1.bf16.msra.mxu0 %v677
  %976 = vmatprep.subr.bf16.mxu0 %v680
  %977 = vmatpush1.bf16.msra.mxu0 %v679
  %978 = vmatprep.subr.bf16.mxu0 %v682
  %979 = vmatpush1.bf16.msra.mxu0 %v681
  %980 = vmatprep.subr.bf16.mxu0 %v684
  %981 = vmatpush1.bf16.msra.mxu0 %v683
  %982 = vmatprep.subr.bf16.mxu0 %v686
  %983 = vmatpush1.bf16.msra.mxu0 %v685
  %984 = vmatprep.subr.bf16.mxu0 %v688
  %985 = vmatpush1.bf16.msra.mxu0 %v687
  %986 = vmatprep.subr.bf16.mxu0 %v690
  %987 = vmatpush1.bf16.msra.mxu0 %v689
  %988 = vmatprep.subr.bf16.mxu0 %v692
  %989 = vmatpush1.bf16.msra.mxu0 %v691
  %990 = vmatprep.subr.bf16.mxu0 %v694
  %991 = vmatpush1.bf16.msra.mxu0 %v693
  %992 = vmatprep.subr.bf16.mxu0 %v696
  %993 = vmatpush1.bf16.msra.mxu0 %v695
  %994 = vmatprep.subr.bf16.mxu0 %v698
  %995 = vmatpush1.bf16.msra.mxu0 %v697
  %996 = vmatprep.subr.bf16.mxu0 %v700
  %997 = vmatpush1.bf16.msra.mxu0 %v699
  %998 = vmatprep.mubr.bf16.mxu0 %v190
  %999 = vmatmul.mubr.bf16.gmra.mrb[0].mxu0 %v189
  %v1000 = vpop.f32.mrb[0].mxu0
  %v1001 = vadd.f32 %v960, %v1000
  %v1002 = vpop.f32.mrb[0].mxu0
  %v1003 = vadd.f32 %v962, %v1002
  %v1004 = vpop.f32.mrb[0].mxu0
  %v1005 = vpop.f32.mrb[0].mxu0
  %1006 = vdwg.mxu0
  %1007 = vmatprep.subr.bf16.mxu0 %v702
  %1008 = vmatpush1.bf16.msra.mxu0 %v701
  %1009 = vmatprep.subr.bf16.mxu0 %v704
  %1010 = vmatpush1.bf16.msra.mxu0 %v703
  %1011 = vmatprep.subr.bf16.mxu0 %v706
  %1012 = vmatpush1.bf16.msra.mxu0 %v705
  %1013 = vmatprep.subr.bf16.mxu0 %v708
  %1014 = vmatpush1.bf16.msra.mxu0 %v707
  %1015 = vmatprep.subr.bf16.mxu0 %v710
  %1016 = vmatpush1.bf16.msra.mxu0 %v709
  %1017 = vmatprep.subr.bf16.mxu0 %v712
  %1018 = vmatpush1.bf16.msra.mxu0 %v711
  %1019 = vmatprep.subr.bf16.mxu0 %v714
  %1020 = vmatpush1.bf16.msra.mxu0 %v713
  %1021 = vmatprep.subr.bf16.mxu0 %v716
  %1022 = vmatpush1.bf16.msra.mxu0 %v715
  %1023 = vmatprep.subr.bf16.mxu0 %v718
  %1024 = vmatpush1.bf16.msra.mxu0 %v717
  %1025 = vmatprep.subr.bf16.mxu0 %v720
  %1026 = vmatpush1.bf16.msra.mxu0 %v719
  %1027 = vmatprep.subr.bf16.mxu0 %v722
  %1028 = vmatpush1.bf16.msra.mxu0 %v721
  %1029 = vmatprep.subr.bf16.mxu0 %v724
  %1030 = vmatpush1.bf16.msra.mxu0 %v723
  %1031 = vmatprep.subr.bf16.mxu0 %v726
  %1032 = vmatpush1.bf16.msra.mxu0 %v725
  %1033 = vmatprep.subr.bf16.mxu0 %v728
  %1034 = vmatpush1.bf16.msra.mxu0 %v727
  %1035 = vmatprep.subr.bf16.mxu0 %v730
  %1036 = vmatpush1.bf16.msra.mxu0 %v729
  %1037 = vmatprep.subr.bf16.mxu0 %v732
  %1038 = vmatpush1.bf16.msra.mxu0 %v731
  %1039 = vmatprep.mubr.bf16.mxu0 %v192
  %1040 = vmatmul.mubr.bf16.gmra.mrb[0].mxu0 %v191
  %v1041 = vpop.f32.mrb[0].mxu0
  %v1042 = vadd.f32 %v1001, %v1041
  %v1043 = vpop.f32.mrb[0].mxu0
  %v1044 = vadd.f32 %v1003, %v1043
  %v1045 = vpop.f32.mrb[0].mxu0
  %v1046 = vpop.f32.mrb[0].mxu0
  %1047 = vdwg.mxu0
  %1048 = vmatprep.subr.bf16.mxu0 %v734
  %1049 = vmatpush1.bf16.msra.mxu0 %v733
  %1050 = vmatprep.subr.bf16.mxu0 %v736
  %1051 = vmatpush1.bf16.msra.mxu0 %v735
  %1052 = vmatprep.subr.bf16.mxu0 %v738
  %1053 = vmatpush1.bf16.msra.mxu0 %v737
  %1054 = vmatprep.subr.bf16.mxu0 %v740
  %1055 = vmatpush1.bf16.msra.mxu0 %v739
  %1056 = vmatprep.subr.bf16.mxu0 %v742
  %1057 = vmatpush1.bf16.msra.mxu0 %v741
  %1058 = vmatprep.subr.bf16.mxu0 %v744
  %1059 = vmatpush1.bf16.msra.mxu0 %v743
  %1060 = vmatprep.subr.bf16.mxu0 %v746
  %1061 = vmatpush1.bf16.msra.mxu0 %v745
  %1062 = vmatprep.subr.bf16.mxu0 %v748
  %1063 = vmatpush1.bf16.msra.mxu0 %v747
  %1064 = vmatprep.subr.bf16.mxu0 %v750
  %1065 = vmatpush1.bf16.msra.mxu0 %v749
  %1066 = vmatprep.subr.bf16.mxu0 %v752
  %1067 = vmatpush1.bf16.msra.mxu0 %v751
  %1068 = vmatprep.subr.bf16.mxu0 %v754
  %1069 = vmatpush1.bf16.msra.mxu0 %v753
  %1070 = vmatprep.subr.bf16.mxu0 %v756
  %1071 = vmatpush1.bf16.msra.mxu0 %v755
  %1072 = vmatprep.subr.bf16.mxu0 %v758
  %1073 = vmatpush1.bf16.msra.mxu0 %v757
  %1074 = vmatprep.subr.bf16.mxu0 %v760
  %1075 = vmatpush1.bf16.msra.mxu0 %v759
  %1076 = vmatprep.subr.bf16.mxu0 %v762
  %1077 = vmatpush1.bf16.msra.mxu0 %v761
  %1078 = vmatprep.subr.bf16.mxu0 %v764
  %1079 = vmatpush1.bf16.msra.mxu0 %v763
  %1080 = vmatprep.mubr.bf16.mxu0 %v194
  %1081 = vmatmul.mubr.bf16.gmra.mrb[0].mxu0 %v193
  %v1082 = vpop.f32.mrb[0].mxu0
  %v1083 = vadd.f32 %v1042, %v1082
  %v1084 = vpop.f32.mrb[0].mxu0
  %v1085 = vadd.f32 %v1044, %v1084
  %v1086 = vpop.f32.mrb[0].mxu0
  %v1087 = vpop.f32.mrb[0].mxu0
  %1088 = vdwg.mxu0
  %1089 = vmatprep.subr.bf16.mxu0 %v766
  %1090 = vmatpush1.bf16.msra.mxu0 %v765
  %1091 = vmatprep.subr.bf16.mxu0 %v768
  %1092 = vmatpush1.bf16.msra.mxu0 %v767
  %1093 = vmatprep.subr.bf16.mxu0 %v770
  %1094 = vmatpush1.bf16.msra.mxu0 %v769
  %1095 = vmatprep.subr.bf16.mxu0 %v772
  %1096 = vmatpush1.bf16.msra.mxu0 %v771
  %1097 = vmatprep.subr.bf16.mxu0 %v774
  %1098 = vmatpush1.bf16.msra.mxu0 %v773
  %1099 = vmatprep.subr.bf16.mxu0 %v776
  %1100 = vmatpush1.bf16.msra.mxu0 %v775
  %1101 = vmatprep.subr.bf16.mxu0 %v778
  %1102 = vmatpush1.bf16.msra.mxu0 %v777
  %1103 = vmatprep.subr.bf16.mxu0 %v780
  %1104 = vmatpush1.bf16.msra.mxu0 %v779
  %1105 = vmatprep.subr.bf16.mxu0 0
  %1106 = vmatpush1.bf16.msra.mxu0 0
  %1107 = vmatprep.subr.bf16.mxu0 0
  %1108 = vmatpush1.bf16.msra.mxu0 0
  %1109 = vmatprep.subr.bf16.mxu0 0
  %1110 = vmatpush1.bf16.msra.mxu0 0
  %1111 = vmatprep.subr.bf16.mxu0 0
  %1112 = vmatpush1.bf16.msra.mxu0 0
  %1113 = vmatprep.subr.bf16.mxu0 0
  %1114 = vmatpush1.bf16.msra.mxu0 0
  %1115 = vmatprep.subr.bf16.mxu0 0
  %1116 = vmatpush1.bf16.msra.mxu0 0
  %1117 = vmatprep.subr.bf16.mxu0 0
  %1118 = vmatpush1.bf16.msra.mxu0 0
  %1119 = vmatprep.subr.bf16.mxu0 0
  %1120 = vmatpush1.bf16.msra.mxu0 0
  %1121 = vmatprep.mubr.bf16.mxu0 0
  %1122 = vmatmul.mubr.bf16.gmra.mrb[0].mxu0 %v195
  %v1123 = vpop.f32.mrb[0].mxu0
  %v1124 = vadd.f32 %v1083, %v1123
  %v1125 = vpop.f32.mrb[0].mxu0
  %v1126 = vadd.f32 %v1085, %v1125
  %v1127 = vpop.f32.mrb[0].mxu0
  %v1128 = vpop.f32.mrb[0].mxu0
  %1129 = vdwg.mxu0
  %v1130 = vld [vmem:[%s1] sm:$0xff]
  %v1131 = vld [vmem:[%s1 + $0x8] sm:$0xff]
  %v1132 = vld [vmem:[%s1 + $0x10] sm:$0xff]
  %v1133 = vld [vmem:[%s1 + $0x18] sm:$0xff]
  %v1134 = vld [vmem:[%s1 + $0x20] sm:$0xf]
  %v1140 = vunpack.c.l.b16 %v1130
  %v1141 = vunpack.c.h.b16 %v1130
  %v1142 = vunpack.c.l.b16 %v1131
  %v1143 = vunpack.c.h.b16 %v1131
  %v1144 = vunpack.c.l.b16 %v1132
  %v1145 = vunpack.c.h.b16 %v1132
  %v1146 = vunpack.c.l.b16 %v1133
  %v1147 = vunpack.c.h.b16 %v1133
  %v1148 = vunpack.c.l.b16 %v1134
  %v1149 = vpack.c.b16 %v1140, %v1140
  %v1150 = vpack.c.b16 %v1141, %v1141
  %v1151 = vpack.c.b16 %v1142, %v1142
  %v1152 = vpack.c.b16 %v1143, %v1143
  %v1153 = vpack.c.b16 %v1144, %v1144
  %v1154 = vpack.c.b16 %v1145, %v1145
  %v1155 = vpack.c.b16 %v1146, %v1146
  %v1156 = vpack.c.b16 %v1147, %v1147
  %v1157 = vpack.c.b16 %v1148, %v1148
  %1167 = vmatprep.subr.bf16.mxu0 %v638
  %1168 = vmatpush1.bf16.msra.mxu0 %v637
  %1169 = vmatprep.subr.bf16.mxu0 %v640
  %1170 = vmatpush1.bf16.msra.mxu0 %v639
  %1171 = vmatprep.subr.bf16.mxu0 %v642
  %1172 = vmatpush1.bf16.msra.mxu0 %v641
  %1173 = vmatprep.subr.bf16.mxu0 %v644
  %1174 = vmatpush1.bf16.msra.mxu0 %v643
  %1175 = vmatprep.subr.bf16.mxu0 %v646
  %1176 = vmatpush1.bf16.msra.mxu0 %v645
  %1177 = vmatprep.subr.bf16.mxu0 %v648
  %1178 = vmatpush1.bf16.msra.mxu0 %v647
  %1179 = vmatprep.subr.bf16.mxu0 %v650
  %1180 = vmatpush1.bf16.msra.mxu0 %v649
  %1181 = vmatprep.subr.bf16.mxu0 %v652
  %1182 = vmatpush1.bf16.msra.mxu0 %v651
  %1183 = vmatprep.subr.bf16.mxu0 %v654
  %1184 = vmatpush1.bf16.msra.mxu0 %v653
  %1185 = vmatprep.subr.bf16.mxu0 %v656
  %1186 = vmatpush1.bf16.msra.mxu0 %v655
  %1187 = vmatprep.subr.bf16.mxu0 %v658
  %1188 = vmatpush1.bf16.msra.mxu0 %v657
  %1189 = vmatprep.subr.bf16.mxu0 %v660
  %1190 = vmatpush1.bf16.msra.mxu0 %v659
  %1191 = vmatprep.subr.bf16.mxu0 %v662
  %1192 = vmatpush1.bf16.msra.mxu0 %v661
  %1193 = vmatprep.subr.bf16.mxu0 %v664
  %1194 = vmatpush1.bf16.msra.mxu0 %v663
  %1195 = vmatprep.subr.bf16.mxu0 %v666
  %1196 = vmatpush1.bf16.msra.mxu0 %v665
  %1197 = vmatprep.subr.bf16.mxu0 %v668
  %1198 = vmatpush1.bf16.msra.mxu0 %v667
  %1199 = vmatprep.mubr.bf16.mxu0 %v1150
  %1200 = vmatmul.mubr.bf16.gmra.mrb[0].mxu0 %v1149
  %v1201 = vpop.f32.mrb[0].mxu0
  %v1202 = vadd.f32 0.0, %v1201
  %v1203 = vpop.f32.mrb[0].mxu0
  %v1204 = vadd.f32 0.0, %v1203
  %v1205 = vpop.f32.mrb[0].mxu0
  %v1206 = vpop.f32.mrb[0].mxu0
  %1207 = vdwg.mxu0
  %1208 = vmatprep.subr.bf16.mxu0 %v670
  %1209 = vmatpush1.bf16.msra.mxu0 %v669
  %1210 = vmatprep.subr.bf16.mxu0 %v672
  %1211 = vmatpush1.bf16.msra.mxu0 %v671
  %1212 = vmatprep.subr.bf16.mxu0 %v674
  %1213 = vmatpush1.bf16.msra.mxu0 %v673
  %1214 = vmatprep.subr.bf16.mxu0 %v676
  %1215 = vmatpush1.bf16.msra.mxu0 %v675
  %1216 = vmatprep.subr.bf16.mxu0 %v678
  %1217 = vmatpush1.bf16.msra.mxu0 %v677
  %1218 = vmatprep.subr.bf16.mxu0 %v680
  %1219 = vmatpush1.bf16.msra.mxu0 %v679
  %1220 = vmatprep.subr.bf16.mxu0 %v682
  %1221 = vmatpush1.bf16.msra.mxu0 %v681
  %1222 = vmatprep.subr.bf16.mxu0 %v684
  %1223 = vmatpush1.bf16.msra.mxu0 %v683
  %1224 = vmatprep.subr.bf16.mxu0 %v686
  %1225 = vmatpush1.bf16.msra.mxu0 %v685
  %1226 = vmatprep.subr.bf16.mxu0 %v688
  %1227 = vmatpush1.bf16.msra.mxu0 %v687
  %1228 = vmatprep.subr.bf16.mxu0 %v690
  %1229 = vmatpush1.bf16.msra.mxu0 %v689
  %1230 = vmatprep.subr.bf16.mxu0 %v692
  %1231 = vmatpush1.bf16.msra.mxu0 %v691
  %1232 = vmatprep.subr.bf16.mxu0 %v694
  %1233 = vmatpush1.bf16.msra.mxu0 %v693
  %1234 = vmatprep.subr.bf16.mxu0 %v696
  %1235 = vmatpush1.bf16.msra.mxu0 %v695
  %1236 = vmatprep.subr.bf16.mxu0 %v698
  %1237 = vmatpush1.bf16.msra.mxu0 %v697
  %1238 = vmatprep.subr.bf16.mxu0 %v700
  %1239 = vmatpush1.bf16.msra.mxu0 %v699
  %1240 = vmatprep.mubr.bf16.mxu0 %v1152
  %1241 = vmatmul.mubr.bf16.gmra.mrb[0].mxu0 %v1151
  %v1242 = vpop.f32.mrb[0].mxu0
  %v1243 = vadd.f32 %v1202, %v1242
  %v1244 = vpop.f32.mrb[0].mxu0
  %v1245 = vadd.f32 %v1204, %v1244
  %v1246 = vpop.f32.mrb[0].mxu0
  %v1247 = vpop.f32.mrb[0].mxu0
  %1248 = vdwg.mxu0
  %1249 = vmatprep.subr.bf16.mxu0 %v702
  %1250 = vmatpush1.bf16.msra.mxu0 %v701
  %1251 = vmatprep.subr.bf16.mxu0 %v704
  %1252 = vmatpush1.bf16.msra.mxu0 %v703
  %1253 = vmatprep.subr.bf16.mxu0 %v706
  %1254 = vmatpush1.bf16.msra.mxu0 %v705
  %1255 = vmatprep.subr.bf16.mxu0 %v708
  %1256 = vmatpush1.bf16.msra.mxu0 %v707
  %1257 = vmatprep.subr.bf16.mxu0 %v710
  %1258 = vmatpush1.bf16.msra.mxu0 %v709
  %1259 = vmatprep.subr.bf16.mxu0 %v712
  %1260 = vmatpush1.bf16.msra.mxu0 %v711
  %1261 = vmatprep.subr.bf16.mxu0 %v714
  %1262 = vmatpush1.bf16.msra.mxu0 %v713
  %1263 = vmatprep.subr.bf16.mxu0 %v716
  %1264 = vmatpush1.bf16.msra.mxu0 %v715
  %1265 = vmatprep.subr.bf16.mxu0 %v718
  %1266 = vmatpush1.bf16.msra.mxu0 %v717
  %1267 = vmatprep.subr.bf16.mxu0 %v720
  %1268 = vmatpush1.bf16.msra.mxu0 %v719
  %1269 = vmatprep.subr.bf16.mxu0 %v722
  %1270 = vmatpush1.bf16.msra.mxu0 %v721
  %1271 = vmatprep.subr.bf16.mxu0 %v724
  %1272 = vmatpush1.bf16.msra.mxu0 %v723
  %1273 = vmatprep.subr.bf16.mxu0 %v726
  %1274 = vmatpush1.bf16.msra.mxu0 %v725
  %1275 = vmatprep.subr.bf16.mxu0 %v728
  %1276 = vmatpush1.bf16.msra.mxu0 %v727
  %1277 = vmatprep.subr.bf16.mxu0 %v730
  %1278 = vmatpush1.bf16.msra.mxu0 %v729
  %1279 = vmatprep.subr.bf16.mxu0 %v732
  %1280 = vmatpush1.bf16.msra.mxu0 %v731
  %1281 = vmatprep.mubr.bf16.mxu0 %v1154
  %1282 = vmatmul.mubr.bf16.gmra.mrb[0].mxu0 %v1153
  %v1283 = vpop.f32.mrb[0].mxu0
  %v1284 = vadd.f32 %v1243, %v1283
  %v1285 = vpop.f32.mrb[0].mxu0
  %v1286 = vadd.f32 %v1245, %v1285
  %v1287 = vpop.f32.mrb[0].mxu0
  %v1288 = vpop.f32.mrb[0].mxu0
  %1289 = vdwg.mxu0
  %1290 = vmatprep.subr.bf16.mxu0 %v734
  %1291 = vmatpush1.bf16.msra.mxu0 %v733
  %1292 = vmatprep.subr.bf16.mxu0 %v736
  %1293 = vmatpush1.bf16.msra.mxu0 %v735
  %1294 = vmatprep.subr.bf16.mxu0 %v738
  %1295 = vmatpush1.bf16.msra.mxu0 %v737
  %1296 = vmatprep.subr.bf16.mxu0 %v740
  %1297 = vmatpush1.bf16.msra.mxu0 %v739
  %1298 = vmatprep.subr.bf16.mxu0 %v742
  %1299 = vmatpush1.bf16.msra.mxu0 %v741
  %1300 = vmatprep.subr.bf16.mxu0 %v744
  %1301 = vmatpush1.bf16.msra.mxu0 %v743
  %1302 = vmatprep.subr.bf16.mxu0 %v746
  %1303 = vmatpush1.bf16.msra.mxu0 %v745
  %1304 = vmatprep.subr.bf16.mxu0 %v748
  %1305 = vmatpush1.bf16.msra.mxu0 %v747
  %1306 = vmatprep.subr.bf16.mxu0 %v750
  %1307 = vmatpush1.bf16.msra.mxu0 %v749
  %1308 = vmatprep.subr.bf16.mxu0 %v752
  %1309 = vmatpush1.bf16.msra.mxu0 %v751
  %1310 = vmatprep.subr.bf16.mxu0 %v754
  %1311 = vmatpush1.bf16.msra.mxu0 %v753
  %1312 = vmatprep.subr.bf16.mxu0 %v756
  %1313 = vmatpush1.bf16.msra.mxu0 %v755
  %1314 = vmatprep.subr.bf16.mxu0 %v758
  %1315 = vmatpush1.bf16.msra.mxu0 %v757
  %1316 = vmatprep.subr.bf16.mxu0 %v760
  %1317 = vmatpush1.bf16.msra.mxu0 %v759
  %1318 = vmatprep.subr.bf16.mxu0 %v762
  %1319 = vmatpush1.bf16.msra.mxu0 %v761
  %1320 = vmatprep.subr.bf16.mxu0 %v764
  %1321 = vmatpush1.bf16.msra.mxu0 %v763
  %1322 = vmatprep.mubr.bf16.mxu0 %v1156
  %1323 = vmatmul.mubr.bf16.gmra.mrb[0].mxu0 %v1155
  %v1324 = vpop.f32.mrb[0].mxu0
  %v1325 = vadd.f32 %v1284, %v1324
  %v1326 = vpop.f32.mrb[0].mxu0
  %v1327 = vadd.f32 %v1286, %v1326
  %v1328 = vpop.f32.mrb[0].mxu0
  %v1329 = vpop.f32.mrb[0].mxu0
  %1330 = vdwg.mxu0
  %1331 = vmatprep.subr.bf16.mxu0 %v766
  %1332 = vmatpush1.bf16.msra.mxu0 %v765
  %1333 = vmatprep.subr.bf16.mxu0 %v768
  %1334 = vmatpush1.bf16.msra.mxu0 %v767
  %1335 = vmatprep.subr.bf16.mxu0 %v770
  %1336 = vmatpush1.bf16.msra.mxu0 %v769
  %1337 = vmatprep.subr.bf16.mxu0 %v772
  %1338 = vmatpush1.bf16.msra.mxu0 %v771
  %1339 = vmatprep.subr.bf16.mxu0 %v774
  %1340 = vmatpush1.bf16.msra.mxu0 %v773
  %1341 = vmatprep.subr.bf16.mxu0 %v776
  %1342 = vmatpush1.bf16.msra.mxu0 %v775
  %1343 = vmatprep.subr.bf16.mxu0 %v778
  %1344 = vmatpush1.bf16.msra.mxu0 %v777
  %1345 = vmatprep.subr.bf16.mxu0 %v780
  %1346 = vmatpush1.bf16.msra.mxu0 %v779
  %1347 = vmatprep.subr.bf16.mxu0 0
  %1348 = vmatpush1.bf16.msra.mxu0 0
  %1349 = vmatprep.subr.bf16.mxu0 0
  %1350 = vmatpush1.bf16.msra.mxu0 0
  %1351 = vmatprep.subr.bf16.mxu0 0
  %1352 = vmatpush1.bf16.msra.mxu0 0
  %1353 = vmatprep.subr.bf16.mxu0 0
  %1354 = vmatpush1.bf16.msra.mxu0 0
  %1355 = vmatprep.subr.bf16.mxu0 0
  %1356 = vmatpush1.bf16.msra.mxu0 0
  %1357 = vmatprep.subr.bf16.mxu0 0
  %1358 = vmatpush1.bf16.msra.mxu0 0
  %1359 = vmatprep.subr.bf16.mxu0 0
  %1360 = vmatpush1.bf16.msra.mxu0 0
  %1361 = vmatprep.subr.bf16.mxu0 0
  %1362 = vmatpush1.bf16.msra.mxu0 0
  %1363 = vmatprep.mubr.bf16.mxu0 0
  %1364 = vmatmul.mubr.bf16.gmra.mrb[0].mxu0 %v1157
  %v1365 = vpop.f32.mrb[0].mxu0
  %v1366 = vadd.f32 %v1325, %v1365
  %v1367 = vpop.f32.mrb[0].mxu0
  %v1368 = vadd.f32 %v1327, %v1367
  %v1369 = vpop.f32.mrb[0].mxu0
  %v1370 = vpop.f32.mrb[0].mxu0
  %1371 = vdwg.mxu0
  %v1372 = vld [vmem:[%s2] sm:$0xff]
  %v1373 = vld [vmem:[%s2 + $0x8] sm:$0xff]
  %v1374 = vld [vmem:[%s2 + $0x10] sm:$0xff]
  %v1375 = vld [vmem:[%s2 + $0x18] sm:$0xff]
  %v1376 = vld [vmem:[%s2 + $0x20] sm:$0xf]
  %v1382 = vunpack.c.l.b16 %v1372
  %v1383 = vunpack.c.h.b16 %v1372
  %v1384 = vunpack.c.l.b16 %v1373
  %v1385 = vunpack.c.h.b16 %v1373
  %v1386 = vunpack.c.l.b16 %v1374
  %v1387 = vunpack.c.h.b16 %v1374
  %v1388 = vunpack.c.l.b16 %v1375
  %v1389 = vunpack.c.h.b16 %v1375
  %v1390 = vunpack.c.l.b16 %v1376
  %v1391 = vpack.c.b16 %v1382, %v1382
  %v1392 = vpack.c.b16 %v1383, %v1383
  %v1393 = vpack.c.b16 %v1384, %v1384
  %v1394 = vpack.c.b16 %v1385, %v1385
  %v1395 = vpack.c.b16 %v1386, %v1386
  %v1396 = vpack.c.b16 %v1387, %v1387
  %v1397 = vpack.c.b16 %v1388, %v1388
  %v1398 = vpack.c.b16 %v1389, %v1389
  %v1399 = vpack.c.b16 %v1390, %v1390
  %1409 = vmatprep.subr.bf16.mxu0 %v638
  %1410 = vmatpush1.bf16.msra.mxu0 %v637
  %1411 = vmatprep.subr.bf16.mxu0 %v640
  %1412 = vmatpush1.bf16.msra.mxu0 %v639
  %1413 = vmatprep.subr.bf16.mxu0 %v642
  %1414 = vmatpush1.bf16.msra.mxu0 %v641
  %1415 = vmatprep.subr.bf16.mxu0 %v644
  %1416 = vmatpush1.bf16.msra.mxu0 %v643
  %1417 = vmatprep.subr.bf16.mxu0 %v646
  %1418 = vmatpush1.bf16.msra.mxu0 %v645
  %1419 = vmatprep.subr.bf16.mxu0 %v648
  %1420 = vmatpush1.bf16.msra.mxu0 %v647
  %1421 = vmatprep.subr.bf16.mxu0 %v650
  %1422 = vmatpush1.bf16.msra.mxu0 %v649
  %1423 = vmatprep.subr.bf16.mxu0 %v652
  %1424 = vmatpush1.bf16.msra.mxu0 %v651
  %1425 = vmatprep.subr.bf16.mxu0 %v654
  %1426 = vmatpush1.bf16.msra.mxu0 %v653
  %1427 = vmatprep.subr.bf16.mxu0 %v656
  %1428 = vmatpush1.bf16.msra.mxu0 %v655
  %1429 = vmatprep.subr.bf16.mxu0 %v658
  %1430 = vmatpush1.bf16.msra.mxu0 %v657
  %1431 = vmatprep.subr.bf16.mxu0 %v660
  %1432 = vmatpush1.bf16.msra.mxu0 %v659
  %1433 = vmatprep.subr.bf16.mxu0 %v662
  %1434 = vmatpush1.bf16.msra.mxu0 %v661
  %1435 = vmatprep.subr.bf16.mxu0 %v664
  %1436 = vmatpush1.bf16.msra.mxu0 %v663
  %1437 = vmatprep.subr.bf16.mxu0 %v666
  %1438 = vmatpush1.bf16.msra.mxu0 %v665
  %1439 = vmatprep.subr.bf16.mxu0 %v668
  %1440 = vmatpush1.bf16.msra.mxu0 %v667
  %1441 = vmatprep.mubr.bf16.mxu0 %v1392
  %1442 = vmatmul.mubr.bf16.gmra.mrb[0].mxu0 %v1391
  %v1443 = vpop.f32.mrb[0].mxu0
  %v1444 = vadd.f32 0.0, %v1443
  %v1445 = vpop.f32.mrb[0].mxu0
  %v1446 = vadd.f32 0.0, %v1445
  %v1447 = vpop.f32.mrb[0].mxu0
  %v1448 = vpop.f32.mrb[0].mxu0
  %1449 = vdwg.mxu0
  %1450 = vmatprep.subr.bf16.mxu0 %v670
  %1451 = vmatpush1.bf16.msra.mxu0 %v669
  %1452 = vmatprep.subr.bf16.mxu0 %v672
  %1453 = vmatpush1.bf16.msra.mxu0 %v671
  %1454 = vmatprep.subr.bf16.mxu0 %v674
  %1455 = vmatpush1.bf16.msra.mxu0 %v673
  %1456 = vmatprep.subr.bf16.mxu0 %v676
  %1457 = vmatpush1.bf16.msra.mxu0 %v675
  %1458 = vmatprep.subr.bf16.mxu0 %v678
  %1459 = vmatpush1.bf16.msra.mxu0 %v677
  %1460 = vmatprep.subr.bf16.mxu0 %v680
  %1461 = vmatpush1.bf16.msra.mxu0 %v679
  %1462 = vmatprep.subr.bf16.mxu0 %v682
  %1463 = vmatpush1.bf16.msra.mxu0 %v681
  %1464 = vmatprep.subr.bf16.mxu0 %v684
  %1465 = vmatpush1.bf16.msra.mxu0 %v683
  %1466 = vmatprep.subr.bf16.mxu0 %v686
  %1467 = vmatpush1.bf16.msra.mxu0 %v685
  %1468 = vmatprep.subr.bf16.mxu0 %v688
  %1469 = vmatpush1.bf16.msra.mxu0 %v687
  %1470 = vmatprep.subr.bf16.mxu0 %v690
  %1471 = vmatpush1.bf16.msra.mxu0 %v689
  %1472 = vmatprep.subr.bf16.mxu0 %v692
  %1473 = vmatpush1.bf16.msra.mxu0 %v691
  %1474 = vmatprep.subr.bf16.mxu0 %v694
  %1475 = vmatpush1.bf16.msra.mxu0 %v693
  %1476 = vmatprep.subr.bf16.mxu0 %v696
  %1477 = vmatpush1.bf16.msra.mxu0 %v695
  %1478 = vmatprep.subr.bf16.mxu0 %v698
  %1479 = vmatpush1.bf16.msra.mxu0 %v697
  %1480 = vmatprep.subr.bf16.mxu0 %v700
  %1481 = vmatpush1.bf16.msra.mxu0 %v699
  %1482 = vmatprep.mubr.bf16.mxu0 %v1394
  %1483 = vmatmul.mubr.bf16.gmra.mrb[0].mxu0 %v1393
  %v1484 = vpop.f32.mrb[0].mxu0
  %v1485 = vadd.f32 %v1444, %v1484
  %v1486 = vpop.f32.mrb[0].mxu0
  %v1487 = vadd.f32 %v1446, %v1486
  %v1488 = vpop.f32.mrb[0].mxu0
  %v1489 = vpop.f32.mrb[0].mxu0
  %1490 = vdwg.mxu0
  %1491 = vmatprep.subr.bf16.mxu0 %v702
  %1492 = vmatpush1.bf16.msra.mxu0 %v701
  %1493 = vmatprep.subr.bf16.mxu0 %v704
  %1494 = vmatpush1.bf16.msra.mxu0 %v703
  %1495 = vmatprep.subr.bf16.mxu0 %v706
  %1496 = vmatpush1.bf16.msra.mxu0 %v705
  %1497 = vmatprep.subr.bf16.mxu0 %v708
  %1498 = vmatpush1.bf16.msra.mxu0 %v707
  %1499 = vmatprep.subr.bf16.mxu0 %v710
  %1500 = vmatpush1.bf16.msra.mxu0 %v709
  %1501 = vmatprep.subr.bf16.mxu0 %v712
  %1502 = vmatpush1.bf16.msra.mxu0 %v711
  %1503 = vmatprep.subr.bf16.mxu0 %v714
  %1504 = vmatpush1.bf16.msra.mxu0 %v713
  %1505 = vmatprep.subr.bf16.mxu0 %v716
  %1506 = vmatpush1.bf16.msra.mxu0 %v715
  %1507 = vmatprep.subr.bf16.mxu0 %v718
  %1508 = vmatpush1.bf16.msra.mxu0 %v717
  %1509 = vmatprep.subr.bf16.mxu0 %v720
  %1510 = vmatpush1.bf16.msra.mxu0 %v719
  %1511 = vmatprep.subr.bf16.mxu0 %v722
  %1512 = vmatpush1.bf16.msra.mxu0 %v721
  %1513 = vmatprep.subr.bf16.mxu0 %v724
  %1514 = vmatpush1.bf16.msra.mxu0 %v723
  %1515 = vmatprep.subr.bf16.mxu0 %v726
  %1516 = vmatpush1.bf16.msra.mxu0 %v725
  %1517 = vmatprep.subr.bf16.mxu0 %v728
  %1518 = vmatpush1.bf16.msra.mxu0 %v727
  %1519 = vmatprep.subr.bf16.mxu0 %v730
  %1520 = vmatpush1.bf16.msra.mxu0 %v729
  %1521 = vmatprep.subr.bf16.mxu0 %v732
  %1522 = vmatpush1.bf16.msra.mxu0 %v731
  %1523 = vmatprep.mubr.bf16.mxu0 %v1396
  %1524 = vmatmul.mubr.bf16.gmra.mrb[0].mxu0 %v1395
  %v1525 = vpop.f32.mrb[0].mxu0
  %v1526 = vadd.f32 %v1485, %v1525
  %v1527 = vpop.f32.mrb[0].mxu0
  %v1528 = vadd.f32 %v1487, %v1527
  %v1529 = vpop.f32.mrb[0].mxu0
  %v1530 = vpop.f32.mrb[0].mxu0
  %1531 = vdwg.mxu0
  %1532 = vmatprep.subr.bf16.mxu0 %v734
  %1533 = vmatpush1.bf16.msra.mxu0 %v733
  %1534 = vmatprep.subr.bf16.mxu0 %v736
  %1535 = vmatpush1.bf16.msra.mxu0 %v735
  %1536 = vmatprep.subr.bf16.mxu0 %v738
  %1537 = vmatpush1.bf16.msra.mxu0 %v737
  %1538 = vmatprep.subr.bf16.mxu0 %v740
  %1539 = vmatpush1.bf16.msra.mxu0 %v739
  %1540 = vmatprep.subr.bf16.mxu0 %v742
  %1541 = vmatpush1.bf16.msra.mxu0 %v741
  %1542 = vmatprep.subr.bf16.mxu0 %v744
  %1543 = vmatpush1.bf16.msra.mxu0 %v743
  %1544 = vmatprep.subr.bf16.mxu0 %v746
  %1545 = vmatpush1.bf16.msra.mxu0 %v745
  %1546 = vmatprep.subr.bf16.mxu0 %v748
  %1547 = vmatpush1.bf16.msra.mxu0 %v747
  %1548 = vmatprep.subr.bf16.mxu0 %v750
  %1549 = vmatpush1.bf16.msra.mxu0 %v749
  %1550 = vmatprep.subr.bf16.mxu0 %v752
  %1551 = vmatpush1.bf16.msra.mxu0 %v751
  %1552 = vmatprep.subr.bf16.mxu0 %v754
  %1553 = vmatpush1.bf16.msra.mxu0 %v753
  %1554 = vmatprep.subr.bf16.mxu0 %v756
  %1555 = vmatpush1.bf16.msra.mxu0 %v755
  %1556 = vmatprep.subr.bf16.mxu0 %v758
  %1557 = vmatpush1.bf16.msra.mxu0 %v757
  %1558 = vmatprep.subr.bf16.mxu0 %v760
  %1559 = vmatpush1.bf16.msra.mxu0 %v759
  %1560 = vmatprep.subr.bf16.mxu0 %v762
  %1561 = vmatpush1.bf16.msra.mxu0 %v761
  %1562 = vmatprep.subr.bf16.mxu0 %v764
  %1563 = vmatpush1.bf16.msra.mxu0 %v763
  %1564 = vmatprep.mubr.bf16.mxu0 %v1398
  %1565 = vmatmul.mubr.bf16.gmra.mrb[0].mxu0 %v1397
  %v1566 = vpop.f32.mrb[0].mxu0
  %v1567 = vadd.f32 %v1526, %v1566
  %v1568 = vpop.f32.mrb[0].mxu0
  %v1569 = vadd.f32 %v1528, %v1568
  %v1570 = vpop.f32.mrb[0].mxu0
  %v1571 = vpop.f32.mrb[0].mxu0
  %1572 = vdwg.mxu0
  %1573 = vmatprep.subr.bf16.mxu0 %v766
  %1574 = vmatpush1.bf16.msra.mxu0 %v765
  %1575 = vmatprep.subr.bf16.mxu0 %v768
  %1576 = vmatpush1.bf16.msra.mxu0 %v767
  %1577 = vmatprep.subr.bf16.mxu0 %v770
  %1578 = vmatpush1.bf16.msra.mxu0 %v769
  %1579 = vmatprep.subr.bf16.mxu0 %v772
  %1580 = vmatpush1.bf16.msra.mxu0 %v771
  %1581 = vmatprep.subr.bf16.mxu0 %v774
  %1582 = vmatpush1.bf16.msra.mxu0 %v773
  %1583 = vmatprep.subr.bf16.mxu0 %v776
  %1584 = vmatpush1.bf16.msra.mxu0 %v775
  %1585 = vmatprep.subr.bf16.mxu0 %v778
  %1586 = vmatpush1.bf16.msra.mxu0 %v777
  %1587 = vmatprep.subr.bf16.mxu0 %v780
  %1588 = vmatpush1.bf16.msra.mxu0 %v779
  %1589 = vmatprep.subr.bf16.mxu0 0
  %1590 = vmatpush1.bf16.msra.mxu0 0
  %1591 = vmatprep.subr.bf16.mxu0 0
  %1592 = vmatpush1.bf16.msra.mxu0 0
  %1593 = vmatprep.subr.bf16.mxu0 0
  %1594 = vmatpush1.bf16.msra.mxu0 0
  %1595 = vmatprep.subr.bf16.mxu0 0
  %1596 = vmatpush1.bf16.msra.mxu0 0
  %1597 = vmatprep.subr.bf16.mxu0 0
  %1598 = vmatpush1.bf16.msra.mxu0 0
  %1599 = vmatprep.subr.bf16.mxu0 0
  %1600 = vmatpush1.bf16.msra.mxu0 0
  %1601 = vmatprep.subr.bf16.mxu0 0
  %1602 = vmatpush1.bf16.msra.mxu0 0
  %1603 = vmatprep.subr.bf16.mxu0 0
  %1604 = vmatpush1.bf16.msra.mxu0 0
  %1605 = vmatprep.mubr.bf16.mxu0 0
  %1606 = vmatmul.mubr.bf16.gmra.mrb[0].mxu0 %v1399
  %v1607 = vpop.f32.mrb[0].mxu0
  %v1608 = vadd.f32 %v1567, %v1607
  %v1609 = vpop.f32.mrb[0].mxu0
  %v1610 = vadd.f32 %v1569, %v1609
  %v1611 = vpop.f32.mrb[0].mxu0
  %v1612 = vpop.f32.mrb[0].mxu0
  %1613 = vdwg.mxu0
  %v1614 = vld [vmem:[%s3] sm:$0xff]
  %v1615 = vld [vmem:[%s3 + $0x8] sm:$0xff]
  %v1616 = vld [vmem:[%s3 + $0x10] sm:$0xff]
  %v1617 = vld [vmem:[%s3 + $0x18] sm:$0xff]
  %v1618 = vld [vmem:[%s3 + $0x20] sm:$0xf]
  %v1624 = vunpack.c.l.b16 %v1614
  %v1625 = vunpack.c.h.b16 %v1614
  %v1626 = vunpack.c.l.b16 %v1615
  %v1627 = vunpack.c.h.b16 %v1615
  %v1628 = vunpack.c.l.b16 %v1616
  %v1629 = vunpack.c.h.b16 %v1616
  %v1630 = vunpack.c.l.b16 %v1617
  %v1631 = vunpack.c.h.b16 %v1617
  %v1632 = vunpack.c.l.b16 %v1618
  %v1633 = vpack.c.b16 %v1624, %v1624
  %v1634 = vpack.c.b16 %v1625, %v1625
  %v1635 = vpack.c.b16 %v1626, %v1626
  %v1636 = vpack.c.b16 %v1627, %v1627
  %v1637 = vpack.c.b16 %v1628, %v1628
  %v1638 = vpack.c.b16 %v1629, %v1629
  %v1639 = vpack.c.b16 %v1630, %v1630
  %v1640 = vpack.c.b16 %v1631, %v1631
  %v1641 = vpack.c.b16 %v1632, %v1632
  %1651 = vmatprep.subr.bf16.mxu0 %v638
  %1652 = vmatpush1.bf16.msra.mxu0 %v637
  %1653 = vmatprep.subr.bf16.mxu0 %v640
  %1654 = vmatpush1.bf16.msra.mxu0 %v639
  %1655 = vmatprep.subr.bf16.mxu0 %v642
  %1656 = vmatpush1.bf16.msra.mxu0 %v641
  %1657 = vmatprep.subr.bf16.mxu0 %v644
  %1658 = vmatpush1.bf16.msra.mxu0 %v643
  %1659 = vmatprep.subr.bf16.mxu0 %v646
  %1660 = vmatpush1.bf16.msra.mxu0 %v645
  %1661 = vmatprep.subr.bf16.mxu0 %v648
  %1662 = vmatpush1.bf16.msra.mxu0 %v647
  %1663 = vmatprep.subr.bf16.mxu0 %v650
  %1664 = vmatpush1.bf16.msra.mxu0 %v649
  %1665 = vmatprep.subr.bf16.mxu0 %v652
  %1666 = vmatpush1.bf16.msra.mxu0 %v651
  %1667 = vmatprep.subr.bf16.mxu0 %v654
  %1668 = vmatpush1.bf16.msra.mxu0 %v653
  %1669 = vmatprep.subr.bf16.mxu0 %v656
  %1670 = vmatpush1.bf16.msra.mxu0 %v655
  %1671 = vmatprep.subr.bf16.mxu0 %v658
  %1672 = vmatpush1.bf16.msra.mxu0 %v657
  %1673 = vmatprep.subr.bf16.mxu0 %v660
  %1674 = vmatpush1.bf16.msra.mxu0 %v659
  %1675 = vmatprep.subr.bf16.mxu0 %v662
  %1676 = vmatpush1.bf16.msra.mxu0 %v661
  %1677 = vmatprep.subr.bf16.mxu0 %v664
  %1678 = vmatpush1.bf16.msra.mxu0 %v663
  %1679 = vmatprep.subr.bf16.mxu0 %v666
  %1680 = vmatpush1.bf16.msra.mxu0 %v665
  %1681 = vmatprep.subr.bf16.mxu0 %v668
  %1682 = vmatpush1.bf16.msra.mxu0 %v667
  %1683 = vmatprep.mubr.bf16.mxu0 %v1634
  %1684 = vmatmul.mubr.bf16.gmra.mrb[0].mxu0 %v1633
  %v1685 = vpop.f32.mrb[0].mxu0
  %v1686 = vadd.f32 0.0, %v1685
  %v1687 = vpop.f32.mrb[0].mxu0
  %v1688 = vadd.f32 0.0, %v1687
  %v1689 = vpop.f32.mrb[0].mxu0
  %v1690 = vpop.f32.mrb[0].mxu0
  %1691 = vdwg.mxu0
  %1692 = vmatprep.subr.bf16.mxu0 %v670
  %1693 = vmatpush1.bf16.msra.mxu0 %v669
  %1694 = vmatprep.subr.bf16.mxu0 %v672
  %1695 = vmatpush1.bf16.msra.mxu0 %v671
  %1696 = vmatprep.subr.bf16.mxu0 %v674
  %1697 = vmatpush1.bf16.msra.mxu0 %v673
  %1698 = vmatprep.subr.bf16.mxu0 %v676
  %1699 = vmatpush1.bf16.msra.mxu0 %v675
  %1700 = vmatprep.subr.bf16.mxu0 %v678
  %1701 = vmatpush1.bf16.msra.mxu0 %v677
  %1702 = vmatprep.subr.bf16.mxu0 %v680
  %1703 = vmatpush1.bf16.msra.mxu0 %v679
  %1704 = vmatprep.subr.bf16.mxu0 %v682
  %1705 = vmatpush1.bf16.msra.mxu0 %v681
  %1706 = vmatprep.subr.bf16.mxu0 %v684
  %1707 = vmatpush1.bf16.msra.mxu0 %v683
  %1708 = vmatprep.subr.bf16.mxu0 %v686
  %1709 = vmatpush1.bf16.msra.mxu0 %v685
  %1710 = vmatprep.subr.bf16.mxu0 %v688
  %1711 = vmatpush1.bf16.msra.mxu0 %v687
  %1712 = vmatprep.subr.bf16.mxu0 %v690
  %1713 = vmatpush1.bf16.msra.mxu0 %v689
  %1714 = vmatprep.subr.bf16.mxu0 %v692
  %1715 = vmatpush1.bf16.msra.mxu0 %v691
  %1716 = vmatprep.subr.bf16.mxu0 %v694
  %1717 = vmatpush1.bf16.msra.mxu0 %v693
  %1718 = vmatprep.subr.bf16.mxu0 %v696
  %1719 = vmatpush1.bf16.msra.mxu0 %v695
  %1720 = vmatprep.subr.bf16.mxu0 %v698
  %1721 = vmatpush1.bf16.msra.mxu0 %v697
  %1722 = vmatprep.subr.bf16.mxu0 %v700
  %1723 = vmatpush1.bf16.msra.mxu0 %v699
  %1724 = vmatprep.mubr.bf16.mxu0 %v1636
  %1725 = vmatmul.mubr.bf16.gmra.mrb[0].mxu0 %v1635
  %v1726 = vpop.f32.mrb[0].mxu0
  %v1727 = vadd.f32 %v1686, %v1726
  %v1728 = vpop.f32.mrb[0].mxu0
  %v1729 = vadd.f32 %v1688, %v1728
  %v1730 = vpop.f32.mrb[0].mxu0
  %v1731 = vpop.f32.mrb[0].mxu0
  %1732 = vdwg.mxu0
  %1733 = vmatprep.subr.bf16.mxu0 %v702
  %1734 = vmatpush1.bf16.msra.mxu0 %v701
  %1735 = vmatprep.subr.bf16.mxu0 %v704
  %1736 = vmatpush1.bf16.msra.mxu0 %v703
  %1737 = vmatprep.subr.bf16.mxu0 %v706
  %1738 = vmatpush1.bf16.msra.mxu0 %v705
  %1739 = vmatprep.subr.bf16.mxu0 %v708
  %1740 = vmatpush1.bf16.msra.mxu0 %v707
  %1741 = vmatprep.subr.bf16.mxu0 %v710
  %1742 = vmatpush1.bf16.msra.mxu0 %v709
  %1743 = vmatprep.subr.bf16.mxu0 %v712
  %1744 = vmatpush1.bf16.msra.mxu0 %v711
  %1745 = vmatprep.subr.bf16.mxu0 %v714
  %1746 = vmatpush1.bf16.msra.mxu0 %v713
  %1747 = vmatprep.subr.bf16.mxu0 %v716
  %1748 = vmatpush1.bf16.msra.mxu0 %v715
  %1749 = vmatprep.subr.bf16.mxu0 %v718
  %1750 = vmatpush1.bf16.msra.mxu0 %v717
  %1751 = vmatprep.subr.bf16.mxu0 %v720
  %1752 = vmatpush1.bf16.msra.mxu0 %v719
  %1753 = vmatprep.subr.bf16.mxu0 %v722
  %1754 = vmatpush1.bf16.msra.mxu0 %v721
  %1755 = vmatprep.subr.bf16.mxu0 %v724
  %1756 = vmatpush1.bf16.msra.mxu0 %v723
  %1757 = vmatprep.subr.bf16.mxu0 %v726
  %1758 = vmatpush1.bf16.msra.mxu0 %v725
  %1759 = vmatprep.subr.bf16.mxu0 %v728
  %1760 = vmatpush1.bf16.msra.mxu0 %v727
  %1761 = vmatprep.subr.bf16.mxu0 %v730
  %1762 = vmatpush1.bf16.msra.mxu0 %v729
  %1763 = vmatprep.subr.bf16.mxu0 %v732
  %1764 = vmatpush1.bf16.msra.mxu0 %v731
  %1765 = vmatprep.mubr.bf16.mxu0 %v1638
  %1766 = vmatmul.mubr.bf16.gmra.mrb[0].mxu0 %v1637
  %v1767 = vpop.f32.mrb[0].mxu0
  %v1768 = vadd.f32 %v1727, %v1767
  %v1769 = vpop.f32.mrb[0].mxu0
  %v1770 = vadd.f32 %v1729, %v1769
  %v1771 = vpop.f32.mrb[0].mxu0
  %v1772 = vpop.f32.mrb[0].mxu0
  %1773 = vdwg.mxu0
  %1774 = vmatprep.subr.bf16.mxu0 %v734
  %1775 = vmatpush1.bf16.msra.mxu0 %v733
  %1776 = vmatprep.subr.bf16.mxu0 %v736
  %1777 = vmatpush1.bf16.msra.mxu0 %v735
  %1778 = vmatprep.subr.bf16.mxu0 %v738
  %1779 = vmatpush1.bf16.msra.mxu0 %v737
  %1780 = vmatprep.subr.bf16.mxu0 %v740
  %1781 = vmatpush1.bf16.msra.mxu0 %v739
  %1782 = vmatprep.subr.bf16.mxu0 %v742
  %1783 = vmatpush1.bf16.msra.mxu0 %v741
  %1784 = vmatprep.subr.bf16.mxu0 %v744
  %1785 = vmatpush1.bf16.msra.mxu0 %v743
  %1786 = vmatprep.subr.bf16.mxu0 %v746
  %1787 = vmatpush1.bf16.msra.mxu0 %v745
  %1788 = vmatprep.subr.bf16.mxu0 %v748
  %1789 = vmatpush1.bf16.msra.mxu0 %v747
  %1790 = vmatprep.subr.bf16.mxu0 %v750
  %1791 = vmatpush1.bf16.msra.mxu0 %v749
  %1792 = vmatprep.subr.bf16.mxu0 %v752
  %1793 = vmatpush1.bf16.msra.mxu0 %v751
  %1794 = vmatprep.subr.bf16.mxu0 %v754
  %1795 = vmatpush1.bf16.msra.mxu0 %v753
  %1796 = vmatprep.subr.bf16.mxu0 %v756
  %1797 = vmatpush1.bf16.msra.mxu0 %v755
  %1798 = vmatprep.subr.bf16.mxu0 %v758
  %1799 = vmatpush1.bf16.msra.mxu0 %v757
  %1800 = vmatprep.subr.bf16.mxu0 %v760
  %1801 = vmatpush1.bf16.msra.mxu0 %v759
  %1802 = vmatprep.subr.bf16.mxu0 %v762
  %1803 = vmatpush1.bf16.msra.mxu0 %v761
  %1804 = vmatprep.subr.bf16.mxu0 %v764
  %1805 = vmatpush1.bf16.msra.mxu0 %v763
  %1806 = vmatprep.mubr.bf16.mxu0 %v1640
  %1807 = vmatmul.mubr.bf16.gmra.mrb[0].mxu0 %v1639
  %v1808 = vpop.f32.mrb[0].mxu0
  %v1809 = vadd.f32 %v1768, %v1808
  %v1810 = vpop.f32.mrb[0].mxu0
  %v1811 = vadd.f32 %v1770, %v1810
  %v1812 = vpop.f32.mrb[0].mxu0
  %v1813 = vpop.f32.mrb[0].mxu0
  %1814 = vdwg.mxu0
  %1815 = vmatprep.subr.bf16.mxu0 %v766
  %1816 = vmatpush1.bf16.msra.mxu0 %v765
  %1817 = vmatprep.subr.bf16.mxu0 %v768
  %1818 = vmatpush1.bf16.msra.mxu0 %v767
  %1819 = vmatprep.subr.bf16.mxu0 %v770
  %1820 = vmatpush1.bf16.msra.mxu0 %v769
  %1821 = vmatprep.subr.bf16.mxu0 %v772
  %1822 = vmatpush1.bf16.msra.mxu0 %v771
  %1823 = vmatprep.subr.bf16.mxu0 %v774
  %1824 = vmatpush1.bf16.msra.mxu0 %v773
  %1825 = vmatprep.subr.bf16.mxu0 %v776
  %1826 = vmatpush1.bf16.msra.mxu0 %v775
  %1827 = vmatprep.subr.bf16.mxu0 %v778
  %1828 = vmatpush1.bf16.msra.mxu0 %v777
  %1829 = vmatprep.subr.bf16.mxu0 %v780
  %1830 = vmatpush1.bf16.msra.mxu0 %v779
  %1831 = vmatprep.subr.bf16.mxu0 0
  %1832 = vmatpush1.bf16.msra.mxu0 0
  %1833 = vmatprep.subr.bf16.mxu0 0
  %1834 = vmatpush1.bf16.msra.mxu0 0
  %1835 = vmatprep.subr.bf16.mxu0 0
  %1836 = vmatpush1.bf16.msra.mxu0 0
  %1837 = vmatprep.subr.bf16.mxu0 0
  %1838 = vmatpush1.bf16.msra.mxu0 0
  %1839 = vmatprep.subr.bf16.mxu0 0
  %1840 = vmatpush1.bf16.msra.mxu0 0
  %1841 = vmatprep.subr.bf16.mxu0 0
  %1842 = vmatpush1.bf16.msra.mxu0 0
  %1843 = vmatprep.subr.bf16.mxu0 0
  %1844 = vmatpush1.bf16.msra.mxu0 0
  %1845 = vmatprep.subr.bf16.mxu0 0
  %1846 = vmatpush1.bf16.msra.mxu0 0
  %1847 = vmatprep.mubr.bf16.mxu0 0
  %1848 = vmatmul.mubr.bf16.gmra.mrb[0].mxu0 %v1641
  %v1849 = vpop.f32.mrb[0].mxu0
  %v1850 = vadd.f32 %v1809, %v1849
  %v1851 = vpop.f32.mrb[0].mxu0
  %v1852 = vadd.f32 %v1811, %v1851
  %v1853 = vpop.f32.mrb[0].mxu0
  %v1854 = vpop.f32.mrb[0].mxu0
  %1855 = vdwg.mxu0
  %v1856 = vmax.f32 %v1124, %v1366
  %v1857 = vmax.f32 %v1126, %v1368
  %v1858 = vmax.f32 %v1608, %v1850
  %v1859 = vmax.f32 %v1610, %v1852
  %v1860 = vmax.f32 %v1856, %v1858
  %v1861 = vmax.f32 %v1857, %v1859
  %v1862 = vld [vmem:[%s5] sm:$0x3]
  %v1864 = vlaneseq
  %v1865 = vshrl.u32 %v1864, 7
  %v1866 = vsub.s32 0, %v1865
  %v1867 = vrot.slane %v1862, %v1866
  %v1868 = vlaneseq
  %v1869 = vshrl.u32 %v1868, 7
  %v1870 = vsub.s32 1, %v1869
  %v1871 = vrot.slane %v1862, %v1870
  %v1874 = vadd.f32 %v1860, %v1867
  %v1875 = vadd.f32 %v1861, %v1871
  %v1876 = vmax.f32 %v1874, 0.0
  %v1877 = vmax.f32 %v1875, 0.0
  %v1878 = vpack.c.bf16 %v1876, %v1876
  %v1879 = vpack.c.bf16 %v1877, %v1877
  %v1882 = vunpack.c.l.b16 %v1878
  %v1883 = vunpack.c.l.b16 %v1879
  %v1884 = vpack.c.b16 %v1883, %v1882
  %1886 = vst [vmem:[%s6] sm:$0xff] %v1884
  // Predicated region
  $region26: #{model_forward.6} parent=0 // pred_check
    _
  $region27: #{model_forward.6} parent=0 // pred_check_branch
    %1888 = sbr.rel (0) target = $region29
  $region28: #{model_forward.6} parent=0 // pred_region
    _
  $region29: #{model_forward.6} parent=0 // pred_fallthru
    _
  // Predicated region
  $region30: #{model_forward.6} parent=0 // pred_check
    _
  $region31: #{model_forward.6} parent=0 // pred_check_branch
    %1890 = sbr.rel (0) target = $region33
  $region32: #{model_forward.6} parent=0 // pred_region
    _
  $region33: #{model_forward.6} parent=0 // pred_fallthru
    _

// kernel: model_forward.7
$region0: #{model_forward.7}
  #allocation0 [shape = 'u32[]', space=smem, size = 0x4, offset = 0x4, fixed_abs, tag = 'smem constant byte address 0x4 - core index']
  #allocation1 [shape = 'u32[144,128]{1,0:T(1,128)}', space=vmem, size = 0x12000, scoped, tag = 'internal scratch']
  %s0 = inlined_call_operand.vmem [shape: bf16[2,1024], index: 0, kind: input, shape index: {}]
  %s1 = inlined_call_operand.vmem [shape: bf16[1024,1024], index: 1, kind: input, shape index: {}]
  %s2 = inlined_call_operand.vmem [shape: f32[1,1024], index: 2, kind: input, shape index: {}]
  %s3 = inlined_call_operand.vmem [shape: bf16[1024,512], index: 3, kind: input, shape index: {}]
  %s4 = inlined_call_operand.vmem [shape: f32[1,512], index: 4, kind: input, shape index: {}]
  %s5 = inlined_call_operand.vmem [shape: bf16[512,10], index: 5, kind: input, shape index: {}]
  %s6 = inlined_call_operand.vmem [shape: f32[1,10], index: 6, kind: input, shape index: {}]
  %s7 = inlined_call_operand.hbm [shape: f32[2,10], index: 7, kind: output, shape index: {}]
  %s8 = sld [smem:[#allocation0]]
  $region38: #{model_forward.7} parent=0
    _
  %s10 = ssub.s32 1, %s8
  %s11 = scalar_select 0, %s10, %s8
  $region1: #{model_forward.7} parent=0
    #allocation2 [shape = 'u8[1024]{0}', space=vmem, size = 0x400, scoped, tag = 'output window, operand 0, single buffered']
    #allocation3 [shape = 's32[1]{0}', space=sflag, size = 0x4, scoped, tag = 'scoped memory for model_forward.7']
    %12 = vsyncpa [#allocation3], 0
    // Predicated region
    $region2: #{model_forward.7} parent=1 // pred_check
      _
    $region3: #{model_forward.7} parent=1 // pred_check_branch
      %14 = sbr.rel (0) target = $region5
    $region4: #{model_forward.7} parent=1 // pred_region
      _
    $region5: #{model_forward.7} parent=1 // pred_fallthru
      _
    // Predicated region
    $region6: #{model_forward.7} parent=1 // pred_check
      _
    $region7: #{model_forward.7} parent=1 // pred_check_branch
      %16 = sbr.rel (0) target = $region9
    $region8: #{model_forward.7} parent=1 // pred_region
      _
    $region9: #{model_forward.7} parent=1 // pred_fallthru
      _
    // Predicated region
    $region10: #{model_forward.7} parent=1 // pred_check
      _
    $region11: #{model_forward.7} parent=1 // pred_check_branch
      %18 = sbr.rel (0) target = $region13
    $region12: #{model_forward.7} parent=1 // pred_region
      _
    $region13: #{model_forward.7} parent=1 // pred_fallthru
      _
    // Predicated region
    $region14: #{model_forward.7} parent=1 // pred_check
      _
    $region15: #{model_forward.7} parent=1 // pred_check_branch
      %20 = sbr.rel (0) target = $region17
    $region16: #{model_forward.7} parent=1 // pred_region
      _
    $region17: #{model_forward.7} parent=1 // pred_fallthru
      _
    // Predicated region
    $region18: #{model_forward.7} parent=1 // pred_check
      _
    $region19: #{model_forward.7} parent=1 // pred_check_branch
      %22 = sbr.rel (0) target = $region21
    $region20: #{model_forward.7} parent=1 // pred_region
      _
    $region21: #{model_forward.7} parent=1 // pred_fallthru
      _
    // Predicated region
    $region22: #{model_forward.7} parent=1 // pred_check
      _
    $region23: #{model_forward.7} parent=1 // pred_check_branch
      %24 = sbr.rel (0) target = $region25
    $region24: #{model_forward.7} parent=1 // pred_region
      _
    $region25: #{model_forward.7} parent=1 // pred_fallthru
      _
    // Predicated region
    $region26: #{model_forward.7} parent=1 // pred_check
      _
    $region27: #{model_forward.7} parent=1 // pred_check_branch
      %26 = sbr.rel (0) target = $region29
    $region28: #{model_forward.7} parent=1 // pred_region
      _
    $region29: #{model_forward.7} parent=1 // pred_fallthru
      _
    %v28 = vld [vmem:[%s0] sm:$0xff]
    %v29 = vld [vmem:[%s1] sm:$0xff]
    %v30 = vld [vmem:[%s1 + $0x8] sm:$0xff]
    %v31 = vld [vmem:[%s1 + $0x10] sm:$0xff]
    %v32 = vld [vmem:[%s1 + $0x18] sm:$0xff]
    %v33 = vld [vmem:[%s1 + $0x20] sm:$0xff]
    %v34 = vld [vmem:[%s1 + $0x28] sm:$0xff]
    %v35 = vld [vmem:[%s1 + $0x30] sm:$0xff]
    %v36 = vld [vmem:[%s1 + $0x38] sm:$0xff]
    %v37 = vld [vmem:[%s1 + $0x40] sm:$0xff]
    %v38 = vld [vmem:[%s1 + $0x48] sm:$0xff]
    %v39 = vld [vmem:[%s1 + $0x50] sm:$0xff]
    %v40 = vld [vmem:[%s1 + $0x58] sm:$0xff]
    %v41 = vld [vmem:[%s1 + $0x60] sm:$0xff]
    %v42 = vld [vmem:[%s1 + $0x68] sm:$0xff]
    %v43 = vld [vmem:[%s1 + $0x70] sm:$0xff]
    %v44 = vld [vmem:[%s1 + $0x78] sm:$0xff]
    %v45 = vld [vmem:[%s1 + $0x80] sm:$0xff]
    %v46 = vld [vmem:[%s1 + $0x88] sm:$0xff]
    %v47 = vld [vmem:[%s1 + $0x90] sm:$0xff]
    %v48 = vld [vmem:[%s1 + $0x98] sm:$0xff]
    %v49 = vld [vmem:[%s1 + $0xa0] sm:$0xff]
    %v50 = vld [vmem:[%s1 + $0xa8] sm:$0xff]
    %v51 = vld [vmem:[%s1 + $0xb0] sm:$0xff]
    %v52 = vld [vmem:[%s1 + $0xb8] sm:$0xff]
    %v53 = vld [vmem:[%s1 + $0xc0] sm:$0xff]
    %v54 = vld [vmem:[%s1 + $0xc8] sm:$0xff]
    %v55 = vld [vmem:[%s1 + $0xd0] sm:$0xff]
    %v56 = vld [vmem:[%s1 + $0xd8] sm:$0xff]
    %v57 = vld [vmem:[%s1 + $0xe0] sm:$0xff]
    %v58 = vld [vmem:[%s1 + $0xe8] sm:$0xff]
    %v59 = vld [vmem:[%s1 + $0xf0] sm:$0xff]
    %v60 = vld [vmem:[%s1 + $0xf8] sm:$0xff]
    %v61 = vld [vmem:[%s1 + $0x100] sm:$0xff]
    %v62 = vld [vmem:[%s1 + $0x108] sm:$0xff]
    %v63 = vld [vmem:[%s1 + $0x110] sm:$0xff]
    %v64 = vld [vmem:[%s1 + $0x118] sm:$0xff]
    %v65 = vld [vmem:[%s1 + $0x120] sm:$0xff]
    %v66 = vld [vmem:[%s1 + $0x128] sm:$0xff]
    %v67 = vld [vmem:[%s1 + $0x130] sm:$0xff]
    %v68 = vld [vmem:[%s1 + $0x138] sm:$0xff]
    %v69 = vld [vmem:[%s1 + $0x140] sm:$0xff]
    %v70 = vld [vmem:[%s1 + $0x148] sm:$0xff]
    %v71 = vld [vmem:[%s1 + $0x150] sm:$0xff]
    %v72 = vld [vmem:[%s1 + $0x158] sm:$0xff]
    %v73 = vld [vmem:[%s1 + $0x160] sm:$0xff]
    %v74 = vld [vmem:[%s1 + $0x168] sm:$0xff]
    %v75 = vld [vmem:[%s1 + $0x170] sm:$0xff]
    %v76 = vld [vmem:[%s1 + $0x178] sm:$0xff]
    %v77 = vld [vmem:[%s1 + $0x180] sm:$0xff]
    %v78 = vld [vmem:[%s1 + $0x188] sm:$0xff]
    %v79 = vld [vmem:[%s1 + $0x190] sm:$0xff]
    %v80 = vld [vmem:[%s1 + $0x198] sm:$0xff]
    %v81 = vld [vmem:[%s1 + $0x1a0] sm:$0xff]
    %v82 = vld [vmem:[%s1 + $0x1a8] sm:$0xff]
    %v83 = vld [vmem:[%s1 + $0x1b0] sm:$0xff]
    %v84 = vld [vmem:[%s1 + $0x1b8] sm:$0xff]
    %v85 = vld [vmem:[%s1 + $0x1c0] sm:$0xff]
    %v86 = vld [vmem:[%s1 + $0x1c8] sm:$0xff]
    %v87 = vld [vmem:[%s1 + $0x1d0] sm:$0xff]
    %v88 = vld [vmem:[%s1 + $0x1d8] sm:$0xff]
    %v89 = vld [vmem:[%s1 + $0x1e0] sm:$0xff]
    %v90 = vld [vmem:[%s1 + $0x1e8] sm:$0xff]
    %v91 = vld [vmem:[%s1 + $0x1f0] sm:$0xff]
    %v92 = vld [vmem:[%s1 + $0x1f8] sm:$0xff]
    %v93 = vld [vmem:[%s1 + $0x200] sm:$0xff]
    %v94 = vld [vmem:[%s1 + $0x208] sm:$0xff]
    %v95 = vld [vmem:[%s1 + $0x210] sm:$0xff]
    %v96 = vld [vmem:[%s1 + $0x218] sm:$0xff]
    %v97 = vld [vmem:[%s1 + $0x220] sm:$0xff]
    %v98 = vld [vmem:[%s1 + $0x228] sm:$0xff]
    %v99 = vld [vmem:[%s1 + $0x230] sm:$0xff]
    %v100 = vld [vmem:[%s1 + $0x238] sm:$0xff]
    %v101 = vld [vmem:[%s1 + $0x240] sm:$0xff]
    %v102 = vld [vmem:[%s1 + $0x248] sm:$0xff]
    %v103 = vld [vmem:[%s1 + $0x250] sm:$0xff]
    %v104 = vld [vmem:[%s1 + $0x258] sm:$0xff]
    %v105 = vld [vmem:[%s1 + $0x260] sm:$0xff]
    %v106 = vld [vmem:[%s1 + $0x268] sm:$0xff]
    %v107 = vld [vmem:[%s1 + $0x270] sm:$0xff]
    %v108 = vld [vmem:[%s1 + $0x278] sm:$0xff]
    %v109 = vld [vmem:[%s1 + $0x280] sm:$0xff]
    %v110 = vld [vmem:[%s1 + $0x288] sm:$0xff]
    %v111 = vld [vmem:[%s1 + $0x290] sm:$0xff]
    %v112 = vld [vmem:[%s1 + $0x298] sm:$0xff]
    %v113 = vld [vmem:[%s1 + $0x2a0] sm:$0xff]
    %v114 = vld [vmem:[%s1 + $0x2a8] sm:$0xff]
    %v115 = vld [vmem:[%s1 + $0x2b0] sm:$0xff]
    %v116 = vld [vmem:[%s1 + $0x2b8] sm:$0xff]
    %v117 = vld [vmem:[%s1 + $0x2c0] sm:$0xff]
    %v118 = vld [vmem:[%s1 + $0x2c8] sm:$0xff]
    %v119 = vld [vmem:[%s1 + $0x2d0] sm:$0xff]
    %v120 = vld [vmem:[%s1 + $0x2d8] sm:$0xff]
    %v121 = vld [vmem:[%s1 + $0x2e0] sm:$0xff]
    %v122 = vld [vmem:[%s1 + $0x2e8] sm:$0xff]
    %v123 = vld [vmem:[%s1 + $0x2f0] sm:$0xff]
    %v124 = vld [vmem:[%s1 + $0x2f8] sm:$0xff]
    %v125 = vld [vmem:[%s1 + $0x300] sm:$0xff]
    %v126 = vld [vmem:[%s1 + $0x308] sm:$0xff]
    %v127 = vld [vmem:[%s1 + $0x310] sm:$0xff]
    %v128 = vld [vmem:[%s1 + $0x318] sm:$0xff]
    %v129 = vld [vmem:[%s1 + $0x320] sm:$0xff]
    %v130 = vld [vmem:[%s1 + $0x328] sm:$0xff]
    %v131 = vld [vmem:[%s1 + $0x330] sm:$0xff]
    %v132 = vld [vmem:[%s1 + $0x338] sm:$0xff]
    %v133 = vld [vmem:[%s1 + $0x340] sm:$0xff]
    %v134 = vld [vmem:[%s1 + $0x348] sm:$0xff]
    %v135 = vld [vmem:[%s1 + $0x350] sm:$0xff]
    %v136 = vld [vmem:[%s1 + $0x358] sm:$0xff]
    %v137 = vld [vmem:[%s1 + $0x360] sm:$0xff]
    %v138 = vld [vmem:[%s1 + $0x368] sm:$0xff]
    %v139 = vld [vmem:[%s1 + $0x370] sm:$0xff]
    %v140 = vld [vmem:[%s1 + $0x378] sm:$0xff]
    %v141 = vld [vmem:[%s1 + $0x380] sm:$0xff]
    %v142 = vld [vmem:[%s1 + $0x388] sm:$0xff]
    %v143 = vld [vmem:[%s1 + $0x390] sm:$0xff]
    %v144 = vld [vmem:[%s1 + $0x398] sm:$0xff]
    %v145 = vld [vmem:[%s1 + $0x3a0] sm:$0xff]
    %v146 = vld [vmem:[%s1 + $0x3a8] sm:$0xff]
    %v147 = vld [vmem:[%s1 + $0x3b0] sm:$0xff]
    %v148 = vld [vmem:[%s1 + $0x3b8] sm:$0xff]
    %v149 = vld [vmem:[%s1 + $0x3c0] sm:$0xff]
    %v150 = vld [vmem:[%s1 + $0x3c8] sm:$0xff]
    %v151 = vld [vmem:[%s1 + $0x3d0] sm:$0xff]
    %v152 = vld [vmem:[%s1 + $0x3d8] sm:$0xff]
    %v153 = vld [vmem:[%s1 + $0x3e0] sm:$0xff]
    %v154 = vld [vmem:[%s1 + $0x3e8] sm:$0xff]
    %v155 = vld [vmem:[%s1 + $0x3f0] sm:$0xff]
    %v156 = vld [vmem:[%s1 + $0x3f8] sm:$0xff]
    %v157 = vld [vmem:[%s1 + $0x400] sm:$0xff]
    %v158 = vld [vmem:[%s1 + $0x408] sm:$0xff]
    %v159 = vld [vmem:[%s1 + $0x410] sm:$0xff]
    %v160 = vld [vmem:[%s1 + $0x418] sm:$0xff]
    %v161 = vld [vmem:[%s1 + $0x420] sm:$0xff]
    %v162 = vld [vmem:[%s1 + $0x428] sm:$0xff]
    %v163 = vld [vmem:[%s1 + $0x430] sm:$0xff]
    %v164 = vld [vmem:[%s1 + $0x438] sm:$0xff]
    %v165 = vld [vmem:[%s1 + $0x440] sm:$0xff]
    %v166 = vld [vmem:[%s1 + $0x448] sm:$0xff]
    %v167 = vld [vmem:[%s1 + $0x450] sm:$0xff]
    %v168 = vld [vmem:[%s1 + $0x458] sm:$0xff]
    %v169 = vld [vmem:[%s1 + $0x460] sm:$0xff]
    %v170 = vld [vmem:[%s1 + $0x468] sm:$0xff]
    %v171 = vld [vmem:[%s1 + $0x470] sm:$0xff]
    %v172 = vld [vmem:[%s1 + $0x478] sm:$0xff]
    %v173 = vld [vmem:[%s1 + $0x480] sm:$0xff]
    %v174 = vld [vmem:[%s1 + $0x488] sm:$0xff]
    %v175 = vld [vmem:[%s1 + $0x490] sm:$0xff]
    %v176 = vld [vmem:[%s1 + $0x498] sm:$0xff]
    %v177 = vld [vmem:[%s1 + $0x4a0] sm:$0xff]
    %v178 = vld [vmem:[%s1 + $0x4a8] sm:$0xff]
    %v179 = vld [vmem:[%s1 + $0x4b0] sm:$0xff]
    %v180 = vld [vmem:[%s1 + $0x4b8] sm:$0xff]
    %v181 = vld [vmem:[%s1 + $0x4c0] sm:$0xff]
    %v182 = vld [vmem:[%s1 + $0x4c8] sm:$0xff]
    %v183 = vld [vmem:[%s1 + $0x4d0] sm:$0xff]
    %v184 = vld [vmem:[%s1 + $0x4d8] sm:$0xff]
    %v185 = vld [vmem:[%s1 + $0x4e0] sm:$0xff]
    %v186 = vld [vmem:[%s1 + $0x4e8] sm:$0xff]
    %v187 = vld [vmem:[%s1 + $0x4f0] sm:$0xff]
    %v188 = vld [vmem:[%s1 + $0x4f8] sm:$0xff]
    %v189 = vld [vmem:[%s1 + $0x500] sm:$0xff]
    %v190 = vld [vmem:[%s1 + $0x508] sm:$0xff]
    %v191 = vld [vmem:[%s1 + $0x510] sm:$0xff]
    %v192 = vld [vmem:[%s1 + $0x518] sm:$0xff]
    %v193 = vld [vmem:[%s1 + $0x520] sm:$0xff]
    %v194 = vld [vmem:[%s1 + $0x528] sm:$0xff]
    %v195 = vld [vmem:[%s1 + $0x530] sm:$0xff]
    %v196 = vld [vmem:[%s1 + $0x538] sm:$0xff]
    %v197 = vld [vmem:[%s1 + $0x540] sm:$0xff]
    %v198 = vld [vmem:[%s1 + $0x548] sm:$0xff]
    %v199 = vld [vmem:[%s1 + $0x550] sm:$0xff]
    %v200 = vld [vmem:[%s1 + $0x558] sm:$0xff]
    %v201 = vld [vmem:[%s1 + $0x560] sm:$0xff]
    %v202 = vld [vmem:[%s1 + $0x568] sm:$0xff]
    %v203 = vld [vmem:[%s1 + $0x570] sm:$0xff]
    %v204 = vld [vmem:[%s1 + $0x578] sm:$0xff]
    %v205 = vld [vmem:[%s1 + $0x580] sm:$0xff]
    %v206 = vld [vmem:[%s1 + $0x588] sm:$0xff]
    %v207 = vld [vmem:[%s1 + $0x590] sm:$0xff]
    %v208 = vld [vmem:[%s1 + $0x598] sm:$0xff]
    %v209 = vld [vmem:[%s1 + $0x5a0] sm:$0xff]
    %v210 = vld [vmem:[%s1 + $0x5a8] sm:$0xff]
    %v211 = vld [vmem:[%s1 + $0x5b0] sm:$0xff]
    %v212 = vld [vmem:[%s1 + $0x5b8] sm:$0xff]
    %v213 = vld [vmem:[%s1 + $0x5c0] sm:$0xff]
    %v214 = vld [vmem:[%s1 + $0x5c8] sm:$0xff]
    %v215 = vld [vmem:[%s1 + $0x5d0] sm:$0xff]
    %v216 = vld [vmem:[%s1 + $0x5d8] sm:$0xff]
    %v217 = vld [vmem:[%s1 + $0x5e0] sm:$0xff]
    %v218 = vld [vmem:[%s1 + $0x5e8] sm:$0xff]
    %v219 = vld [vmem:[%s1 + $0x5f0] sm:$0xff]
    %v220 = vld [vmem:[%s1 + $0x5f8] sm:$0xff]
    %v221 = vld [vmem:[%s1 + $0x600] sm:$0xff]
    %v222 = vld [vmem:[%s1 + $0x608] sm:$0xff]
    %v223 = vld [vmem:[%s1 + $0x610] sm:$0xff]
    %v224 = vld [vmem:[%s1 + $0x618] sm:$0xff]
    %v225 = vld [vmem:[%s1 + $0x620] sm:$0xff]
    %v226 = vld [vmem:[%s1 + $0x628] sm:$0xff]
    %v227 = vld [vmem:[%s1 + $0x630] sm:$0xff]
    %v228 = vld [vmem:[%s1 + $0x638] sm:$0xff]
    %v229 = vld [vmem:[%s1 + $0x640] sm:$0xff]
    %v230 = vld [vmem:[%s1 + $0x648] sm:$0xff]
    %v231 = vld [vmem:[%s1 + $0x650] sm:$0xff]
    %v232 = vld [vmem:[%s1 + $0x658] sm:$0xff]
    %v233 = vld [vmem:[%s1 + $0x660] sm:$0xff]
    %v234 = vld [vmem:[%s1 + $0x668] sm:$0xff]
    %v235 = vld [vmem:[%s1 + $0x670] sm:$0xff]
    %v236 = vld [vmem:[%s1 + $0x678] sm:$0xff]
    %v237 = vld [vmem:[%s1 + $0x680] sm:$0xff]
    %v238 = vld [vmem:[%s1 + $0x688] sm:$0xff]
    %v239 = vld [vmem:[%s1 + $0x690] sm:$0xff]
    %v240 = vld [vmem:[%s1 + $0x698] sm:$0xff]
    %v241 = vld [vmem:[%s1 + $0x6a0] sm:$0xff]
    %v242 = vld [vmem:[%s1 + $0x6a8] sm:$0xff]
    %v243 = vld [vmem:[%s1 + $0x6b0] sm:$0xff]
    %v244 = vld [vmem:[%s1 + $0x6b8] sm:$0xff]
    %v245 = vld [vmem:[%s1 + $0x6c0] sm:$0xff]
    %v246 = vld [vmem:[%s1 + $0x6c8] sm:$0xff]
    %v247 = vld [vmem:[%s1 + $0x6d0] sm:$0xff]
    %v248 = vld [vmem:[%s1 + $0x6d8] sm:$0xff]
    %v249 = vld [vmem:[%s1 + $0x6e0] sm:$0xff]
    %v250 = vld [vmem:[%s1 + $0x6e8] sm:$0xff]
    %v251 = vld [vmem:[%s1 + $0x6f0] sm:$0xff]
    %v252 = vld [vmem:[%s1 + $0x6f8] sm:$0xff]
    %v253 = vld [vmem:[%s1 + $0x700] sm:$0xff]
    %v254 = vld [vmem:[%s1 + $0x708] sm:$0xff]
    %v255 = vld [vmem:[%s1 + $0x710] sm:$0xff]
    %v256 = vld [vmem:[%s1 + $0x718] sm:$0xff]
    %v257 = vld [vmem:[%s1 + $0x720] sm:$0xff]
    %v258 = vld [vmem:[%s1 + $0x728] sm:$0xff]
    %v259 = vld [vmem:[%s1 + $0x730] sm:$0xff]
    %v260 = vld [vmem:[%s1 + $0x738] sm:$0xff]
    %v261 = vld [vmem:[%s1 + $0x740] sm:$0xff]
    %v262 = vld [vmem:[%s1 + $0x748] sm:$0xff]
    %v263 = vld [vmem:[%s1 + $0x750] sm:$0xff]
    %v264 = vld [vmem:[%s1 + $0x758] sm:$0xff]
    %v265 = vld [vmem:[%s1 + $0x760] sm:$0xff]
    %v266 = vld [vmem:[%s1 + $0x768] sm:$0xff]
    %v267 = vld [vmem:[%s1 + $0x770] sm:$0xff]
    %v268 = vld [vmem:[%s1 + $0x778] sm:$0xff]
    %v269 = vld [vmem:[%s1 + $0x780] sm:$0xff]
    %v270 = vld [vmem:[%s1 + $0x788] sm:$0xff]
    %v271 = vld [vmem:[%s1 + $0x790] sm:$0xff]
    %v272 = vld [vmem:[%s1 + $0x798] sm:$0xff]
    %v273 = vld [vmem:[%s1 + $0x7a0] sm:$0xff]
    %v274 = vld [vmem:[%s1 + $0x7a8] sm:$0xff]
    %v275 = vld [vmem:[%s1 + $0x7b0] sm:$0xff]
    %v276 = vld [vmem:[%s1 + $0x7b8] sm:$0xff]
    %v277 = vld [vmem:[%s1 + $0x7c0] sm:$0xff]
    %v278 = vld [vmem:[%s1 + $0x7c8] sm:$0xff]
    %v279 = vld [vmem:[%s1 + $0x7d0] sm:$0xff]
    %v280 = vld [vmem:[%s1 + $0x7d8] sm:$0xff]
    %v281 = vld [vmem:[%s1 + $0x7e0] sm:$0xff]
    %v282 = vld [vmem:[%s1 + $0x7e8] sm:$0xff]
    %v283 = vld [vmem:[%s1 + $0x7f0] sm:$0xff]
    %v284 = vld [vmem:[%s1 + $0x7f8] sm:$0xff]
    %v285 = vld [vmem:[%s1 + $0x800] sm:$0xff]
    %v286 = vld [vmem:[%s1 + $0x808] sm:$0xff]
    %v287 = vld [vmem:[%s1 + $0x810] sm:$0xff]
    %v288 = vld [vmem:[%s1 + $0x818] sm:$0xff]
    %v289 = vld [vmem:[%s1 + $0x820] sm:$0xff]
    %v290 = vld [vmem:[%s1 + $0x828] sm:$0xff]
    %v291 = vld [vmem:[%s1 + $0x830] sm:$0xff]
    %v292 = vld [vmem:[%s1 + $0x838] sm:$0xff]
    %v293 = vld [vmem:[%s1 + $0x840] sm:$0xff]
    %v294 = vld [vmem:[%s1 + $0x848] sm:$0xff]
    %v295 = vld [vmem:[%s1 + $0x850] sm:$0xff]
    %v296 = vld [vmem:[%s1 + $0x858] sm:$0xff]
    %v297 = vld [vmem:[%s1 + $0x860] sm:$0xff]
    %v298 = vld [vmem:[%s1 + $0x868] sm:$0xff]
    %v299 = vld [vmem:[%s1 + $0x870] sm:$0xff]
    %v300 = vld [vmem:[%s1 + $0x878] sm:$0xff]
    %v301 = vld [vmem:[%s1 + $0x880] sm:$0xff]
    %v302 = vld [vmem:[%s1 + $0x888] sm:$0xff]
    %v303 = vld [vmem:[%s1 + $0x890] sm:$0xff]
    %v304 = vld [vmem:[%s1 + $0x898] sm:$0xff]
    %v305 = vld [vmem:[%s1 + $0x8a0] sm:$0xff]
    %v306 = vld [vmem:[%s1 + $0x8a8] sm:$0xff]
    %v307 = vld [vmem:[%s1 + $0x8b0] sm:$0xff]
    %v308 = vld [vmem:[%s1 + $0x8b8] sm:$0xff]
    %v309 = vld [vmem:[%s1 + $0x8c0] sm:$0xff]
    %v310 = vld [vmem:[%s1 + $0x8c8] sm:$0xff]
    %v311 = vld [vmem:[%s1 + $0x8d0] sm:$0xff]
    %v312 = vld [vmem:[%s1 + $0x8d8] sm:$0xff]
    %v313 = vld [vmem:[%s1 + $0x8e0] sm:$0xff]
    %v314 = vld [vmem:[%s1 + $0x8e8] sm:$0xff]
    %v315 = vld [vmem:[%s1 + $0x8f0] sm:$0xff]
    %v316 = vld [vmem:[%s1 + $0x8f8] sm:$0xff]
    %v317 = vld [vmem:[%s1 + $0x900] sm:$0xff]
    %v318 = vld [vmem:[%s1 + $0x908] sm:$0xff]
    %v319 = vld [vmem:[%s1 + $0x910] sm:$0xff]
    %v320 = vld [vmem:[%s1 + $0x918] sm:$0xff]
    %v321 = vld [vmem:[%s1 + $0x920] sm:$0xff]
    %v322 = vld [vmem:[%s1 + $0x928] sm:$0xff]
    %v323 = vld [vmem:[%s1 + $0x930] sm:$0xff]
    %v324 = vld [vmem:[%s1 + $0x938] sm:$0xff]
    %v325 = vld [vmem:[%s1 + $0x940] sm:$0xff]
    %v326 = vld [vmem:[%s1 + $0x948] sm:$0xff]
    %v327 = vld [vmem:[%s1 + $0x950] sm:$0xff]
    %v328 = vld [vmem:[%s1 + $0x958] sm:$0xff]
    %v329 = vld [vmem:[%s1 + $0x960] sm:$0xff]
    %v330 = vld [vmem:[%s1 + $0x968] sm:$0xff]
    %v331 = vld [vmem:[%s1 + $0x970] sm:$0xff]
    %v332 = vld [vmem:[%s1 + $0x978] sm:$0xff]
    %v333 = vld [vmem:[%s1 + $0x980] sm:$0xff]
    %v334 = vld [vmem:[%s1 + $0x988] sm:$0xff]
    %v335 = vld [vmem:[%s1 + $0x990] sm:$0xff]
    %v336 = vld [vmem:[%s1 + $0x998] sm:$0xff]
    %v337 = vld [vmem:[%s1 + $0x9a0] sm:$0xff]
    %v338 = vld [vmem:[%s1 + $0x9a8] sm:$0xff]
    %v339 = vld [vmem:[%s1 + $0x9b0] sm:$0xff]
    %v340 = vld [vmem:[%s1 + $0x9b8] sm:$0xff]
    %v341 = vld [vmem:[%s1 + $0x9c0] sm:$0xff]
    %v342 = vld [vmem:[%s1 + $0x9c8] sm:$0xff]
    %v343 = vld [vmem:[%s1 + $0x9d0] sm:$0xff]
    %v344 = vld [vmem:[%s1 + $0x9d8] sm:$0xff]
    %v345 = vld [vmem:[%s1 + $0x9e0] sm:$0xff]
    %v346 = vld [vmem:[%s1 + $0x9e8] sm:$0xff]
    %v347 = vld [vmem:[%s1 + $0x9f0] sm:$0xff]
    %v348 = vld [vmem:[%s1 + $0x9f8] sm:$0xff]
    %v349 = vld [vmem:[%s1 + $0xa00] sm:$0xff]
    %v350 = vld [vmem:[%s1 + $0xa08] sm:$0xff]
    %v351 = vld [vmem:[%s1 + $0xa10] sm:$0xff]
    %v352 = vld [vmem:[%s1 + $0xa18] sm:$0xff]
    %v353 = vld [vmem:[%s1 + $0xa20] sm:$0xff]
    %v354 = vld [vmem:[%s1 + $0xa28] sm:$0xff]
    %v355 = vld [vmem:[%s1 + $0xa30] sm:$0xff]
    %v356 = vld [vmem:[%s1 + $0xa38] sm:$0xff]
    %v357 = vld [vmem:[%s1 + $0xa40] sm:$0xff]
    %v358 = vld [vmem:[%s1 + $0xa48] sm:$0xff]
    %v359 = vld [vmem:[%s1 + $0xa50] sm:$0xff]
    %v360 = vld [vmem:[%s1 + $0xa58] sm:$0xff]
    %v361 = vld [vmem:[%s1 + $0xa60] sm:$0xff]
    %v362 = vld [vmem:[%s1 + $0xa68] sm:$0xff]
    %v363 = vld [vmem:[%s1 + $0xa70] sm:$0xff]
    %v364 = vld [vmem:[%s1 + $0xa78] sm:$0xff]
    %v365 = vld [vmem:[%s1 + $0xa80] sm:$0xff]
    %v366 = vld [vmem:[%s1 + $0xa88] sm:$0xff]
    %v367 = vld [vmem:[%s1 + $0xa90] sm:$0xff]
    %v368 = vld [vmem:[%s1 + $0xa98] sm:$0xff]
    %v369 = vld [vmem:[%s1 + $0xaa0] sm:$0xff]
    %v370 = vld [vmem:[%s1 + $0xaa8] sm:$0xff]
    %v371 = vld [vmem:[%s1 + $0xab0] sm:$0xff]
    %v372 = vld [vmem:[%s1 + $0xab8] sm:$0xff]
    %v373 = vld [vmem:[%s1 + $0xac0] sm:$0xff]
    %v374 = vld [vmem:[%s1 + $0xac8] sm:$0xff]
    %v375 = vld [vmem:[%s1 + $0xad0] sm:$0xff]
    %v376 = vld [vmem:[%s1 + $0xad8] sm:$0xff]
    %v377 = vld [vmem:[%s1 + $0xae0] sm:$0xff]
    %v378 = vld [vmem:[%s1 + $0xae8] sm:$0xff]
    %v379 = vld [vmem:[%s1 + $0xaf0] sm:$0xff]
    %v380 = vld [vmem:[%s1 + $0xaf8] sm:$0xff]
    %v381 = vld [vmem:[%s1 + $0xb00] sm:$0xff]
    %v382 = vld [vmem:[%s1 + $0xb08] sm:$0xff]
    %v383 = vld [vmem:[%s1 + $0xb10] sm:$0xff]
    %v384 = vld [vmem:[%s1 + $0xb18] sm:$0xff]
    %v385 = vld [vmem:[%s1 + $0xb20] sm:$0xff]
    %v386 = vld [vmem:[%s1 + $0xb28] sm:$0xff]
    %v387 = vld [vmem:[%s1 + $0xb30] sm:$0xff]
    %v388 = vld [vmem:[%s1 + $0xb38] sm:$0xff]
    %v389 = vld [vmem:[%s1 + $0xb40] sm:$0xff]
    %v390 = vld [vmem:[%s1 + $0xb48] sm:$0xff]
    %v391 = vld [vmem:[%s1 + $0xb50] sm:$0xff]
    %v392 = vld [vmem:[%s1 + $0xb58] sm:$0xff]
    %v393 = vld [vmem:[%s1 + $0xb60] sm:$0xff]
    %v394 = vld [vmem:[%s1 + $0xb68] sm:$0xff]
    %v395 = vld [vmem:[%s1 + $0xb70] sm:$0xff]
    %v396 = vld [vmem:[%s1 + $0xb78] sm:$0xff]
    %v397 = vld [vmem:[%s1 + $0xb80] sm:$0xff]
    %v398 = vld [vmem:[%s1 + $0xb88] sm:$0xff]
    %v399 = vld [vmem:[%s1 + $0xb90] sm:$0xff]
    %v400 = vld [vmem:[%s1 + $0xb98] sm:$0xff]
    %v401 = vld [vmem:[%s1 + $0xba0] sm:$0xff]
    %v402 = vld [vmem:[%s1 + $0xba8] sm:$0xff]
    %v403 = vld [vmem:[%s1 + $0xbb0] sm:$0xff]
    %v404 = vld [vmem:[%s1 + $0xbb8] sm:$0xff]
    %v405 = vld [vmem:[%s1 + $0xbc0] sm:$0xff]
    %v406 = vld [vmem:[%s1 + $0xbc8] sm:$0xff]
    %v407 = vld [vmem:[%s1 + $0xbd0] sm:$0xff]
    %v408 = vld [vmem:[%s1 + $0xbd8] sm:$0xff]
    %v409 = vld [vmem:[%s1 + $0xbe0] sm:$0xff]
    %v410 = vld [vmem:[%s1 + $0xbe8] sm:$0xff]
    %v411 = vld [vmem:[%s1 + $0xbf0] sm:$0xff]
    %v412 = vld [vmem:[%s1 + $0xbf8] sm:$0xff]
    %v413 = vld [vmem:[%s1 + $0xc00] sm:$0xff]
    %v414 = vld [vmem:[%s1 + $0xc08] sm:$0xff]
    %v415 = vld [vmem:[%s1 + $0xc10] sm:$0xff]
    %v416 = vld [vmem:[%s1 + $0xc18] sm:$0xff]
    %v417 = vld [vmem:[%s1 + $0xc20] sm:$0xff]
    %v418 = vld [vmem:[%s1 + $0xc28] sm:$0xff]
    %v419 = vld [vmem:[%s1 + $0xc30] sm:$0xff]
    %v420 = vld [vmem:[%s1 + $0xc38] sm:$0xff]
    %v421 = vld [vmem:[%s1 + $0xc40] sm:$0xff]
    %v422 = vld [vmem:[%s1 + $0xc48] sm:$0xff]
    %v423 = vld [vmem:[%s1 + $0xc50] sm:$0xff]
    %v424 = vld [vmem:[%s1 + $0xc58] sm:$0xff]
    %v425 = vld [vmem:[%s1 + $0xc60] sm:$0xff]
    %v426 = vld [vmem:[%s1 + $0xc68] sm:$0xff]
    %v427 = vld [vmem:[%s1 + $0xc70] sm:$0xff]
    %v428 = vld [vmem:[%s1 + $0xc78] sm:$0xff]
    %v429 = vld [vmem:[%s1 + $0xc80] sm:$0xff]
    %v430 = vld [vmem:[%s1 + $0xc88] sm:$0xff]
    %v431 = vld [vmem:[%s1 + $0xc90] sm:$0xff]
    %v432 = vld [vmem:[%s1 + $0xc98] sm:$0xff]
    %v433 = vld [vmem:[%s1 + $0xca0] sm:$0xff]
    %v434 = vld [vmem:[%s1 + $0xca8] sm:$0xff]
    %v435 = vld [vmem:[%s1 + $0xcb0] sm:$0xff]
    %v436 = vld [vmem:[%s1 + $0xcb8] sm:$0xff]
    %v437 = vld [vmem:[%s1 + $0xcc0] sm:$0xff]
    %v438 = vld [vmem:[%s1 + $0xcc8] sm:$0xff]
    %v439 = vld [vmem:[%s1 + $0xcd0] sm:$0xff]
    %v440 = vld [vmem:[%s1 + $0xcd8] sm:$0xff]
    %v441 = vld [vmem:[%s1 + $0xce0] sm:$0xff]
    %v442 = vld [vmem:[%s1 + $0xce8] sm:$0xff]
    %v443 = vld [vmem:[%s1 + $0xcf0] sm:$0xff]
    %v444 = vld [vmem:[%s1 + $0xcf8] sm:$0xff]
    %v445 = vld [vmem:[%s1 + $0xd00] sm:$0xff]
    %v446 = vld [vmem:[%s1 + $0xd08] sm:$0xff]
    %v447 = vld [vmem:[%s1 + $0xd10] sm:$0xff]
    %v448 = vld [vmem:[%s1 + $0xd18] sm:$0xff]
    %v449 = vld [vmem:[%s1 + $0xd20] sm:$0xff]
    %v450 = vld [vmem:[%s1 + $0xd28] sm:$0xff]
    %v451 = vld [vmem:[%s1 + $0xd30] sm:$0xff]
    %v452 = vld [vmem:[%s1 + $0xd38] sm:$0xff]
    %v453 = vld [vmem:[%s1 + $0xd40] sm:$0xff]
    %v454 = vld [vmem:[%s1 + $0xd48] sm:$0xff]
    %v455 = vld [vmem:[%s1 + $0xd50] sm:$0xff]
    %v456 = vld [vmem:[%s1 + $0xd58] sm:$0xff]
    %v457 = vld [vmem:[%s1 + $0xd60] sm:$0xff]
    %v458 = vld [vmem:[%s1 + $0xd68] sm:$0xff]
    %v459 = vld [vmem:[%s1 + $0xd70] sm:$0xff]
    %v460 = vld [vmem:[%s1 + $0xd78] sm:$0xff]
    %v461 = vld [vmem:[%s1 + $0xd80] sm:$0xff]
    %v462 = vld [vmem:[%s1 + $0xd88] sm:$0xff]
    %v463 = vld [vmem:[%s1 + $0xd90] sm:$0xff]
    %v464 = vld [vmem:[%s1 + $0xd98] sm:$0xff]
    %v465 = vld [vmem:[%s1 + $0xda0] sm:$0xff]
    %v466 = vld [vmem:[%s1 + $0xda8] sm:$0xff]
    %v467 = vld [vmem:[%s1 + $0xdb0] sm:$0xff]
    %v468 = vld [vmem:[%s1 + $0xdb8] sm:$0xff]
    %v469 = vld [vmem:[%s1 + $0xdc0] sm:$0xff]
    %v470 = vld [vmem:[%s1 + $0xdc8] sm:$0xff]
    %v471 = vld [vmem:[%s1 + $0xdd0] sm:$0xff]
    %v472 = vld [vmem:[%s1 + $0xdd8] sm:$0xff]
    %v473 = vld [vmem:[%s1 + $0xde0] sm:$0xff]
    %v474 = vld [vmem:[%s1 + $0xde8] sm:$0xff]
    %v475 = vld [vmem:[%s1 + $0xdf0] sm:$0xff]
    %v476 = vld [vmem:[%s1 + $0xdf8] sm:$0xff]
    %v477 = vld [vmem:[%s1 + $0xe00] sm:$0xff]
    %v478 = vld [vmem:[%s1 + $0xe08] sm:$0xff]
    %v479 = vld [vmem:[%s1 + $0xe10] sm:$0xff]
    %v480 = vld [vmem:[%s1 + $0xe18] sm:$0xff]
    %v481 = vld [vmem:[%s1 + $0xe20] sm:$0xff]
    %v482 = vld [vmem:[%s1 + $0xe28] sm:$0xff]
    %v483 = vld [vmem:[%s1 + $0xe30] sm:$0xff]
    %v484 = vld [vmem:[%s1 + $0xe38] sm:$0xff]
    %v485 = vld [vmem:[%s1 + $0xe40] sm:$0xff]
    %v486 = vld [vmem:[%s1 + $0xe48] sm:$0xff]
    %v487 = vld [vmem:[%s1 + $0xe50] sm:$0xff]
    %v488 = vld [vmem:[%s1 + $0xe58] sm:$0xff]
    %v489 = vld [vmem:[%s1 + $0xe60] sm:$0xff]
    %v490 = vld [vmem:[%s1 + $0xe68] sm:$0xff]
    %v491 = vld [vmem:[%s1 + $0xe70] sm:$0xff]
    %v492 = vld [vmem:[%s1 + $0xe78] sm:$0xff]
    %v493 = vld [vmem:[%s1 + $0xe80] sm:$0xff]
    %v494 = vld [vmem:[%s1 + $0xe88] sm:$0xff]
    %v495 = vld [vmem:[%s1 + $0xe90] sm:$0xff]
    %v496 = vld [vmem:[%s1 + $0xe98] sm:$0xff]
    %v497 = vld [vmem:[%s1 + $0xea0] sm:$0xff]
    %v498 = vld [vmem:[%s1 + $0xea8] sm:$0xff]
    %v499 = vld [vmem:[%s1 + $0xeb0] sm:$0xff]
    %v500 = vld [vmem:[%s1 + $0xeb8] sm:$0xff]
    %v501 = vld [vmem:[%s1 + $0xec0] sm:$0xff]
    %v502 = vld [vmem:[%s1 + $0xec8] sm:$0xff]
    %v503 = vld [vmem:[%s1 + $0xed0] sm:$0xff]
    %v504 = vld [vmem:[%s1 + $0xed8] sm:$0xff]
    %v505 = vld [vmem:[%s1 + $0xee0] sm:$0xff]
    %v506 = vld [vmem:[%s1 + $0xee8] sm:$0xff]
    %v507 = vld [vmem:[%s1 + $0xef0] sm:$0xff]
    %v508 = vld [vmem:[%s1 + $0xef8] sm:$0xff]
    %v509 = vld [vmem:[%s1 + $0xf00] sm:$0xff]
    %v510 = vld [vmem:[%s1 + $0xf08] sm:$0xff]
    %v511 = vld [vmem:[%s1 + $0xf10] sm:$0xff]
    %v512 = vld [vmem:[%s1 + $0xf18] sm:$0xff]
    %v513 = vld [vmem:[%s1 + $0xf20] sm:$0xff]
    %v514 = vld [vmem:[%s1 + $0xf28] sm:$0xff]
    %v515 = vld [vmem:[%s1 + $0xf30] sm:$0xff]
    %v516 = vld [vmem:[%s1 + $0xf38] sm:$0xff]
    %v517 = vld [vmem:[%s1 + $0xf40] sm:$0xff]
    %v518 = vld [vmem:[%s1 + $0xf48] sm:$0xff]
    %v519 = vld [vmem:[%s1 + $0xf50] sm:$0xff]
    %v520 = vld [vmem:[%s1 + $0xf58] sm:$0xff]
    %v521 = vld [vmem:[%s1 + $0xf60] sm:$0xff]
    %v522 = vld [vmem:[%s1 + $0xf68] sm:$0xff]
    %v523 = vld [vmem:[%s1 + $0xf70] sm:$0xff]
    %v524 = vld [vmem:[%s1 + $0xf78] sm:$0xff]
    %v525 = vld [vmem:[%s1 + $0xf80] sm:$0xff]
    %v526 = vld [vmem:[%s1 + $0xf88] sm:$0xff]
    %v527 = vld [vmem:[%s1 + $0xf90] sm:$0xff]
    %v528 = vld [vmem:[%s1 + $0xf98] sm:$0xff]
    %v529 = vld [vmem:[%s1 + $0xfa0] sm:$0xff]
    %v530 = vld [vmem:[%s1 + $0xfa8] sm:$0xff]
    %v531 = vld [vmem:[%s1 + $0xfb0] sm:$0xff]
    %v532 = vld [vmem:[%s1 + $0xfb8] sm:$0xff]
    %v533 = vld [vmem:[%s1 + $0xfc0] sm:$0xff]
    %v534 = vld [vmem:[%s1 + $0xfc8] sm:$0xff]
    %v535 = vld [vmem:[%s1 + $0xfd0] sm:$0xff]
    %v536 = vld [vmem:[%s1 + $0xfd8] sm:$0xff]
    %v537 = vld [vmem:[%s1 + $0xfe0] sm:$0xff]
    %v538 = vld [vmem:[%s1 + $0xfe8] sm:$0xff]
    %v539 = vld [vmem:[%s1 + $0xff0] sm:$0xff]
    %v540 = vld [vmem:[%s1 + $0xff8] sm:$0xff]
    %v541 = vld [vmem:[%s2] sm:$0xff]
    %v543 = vlaneseq
    %v544 = vshrl.u32 %v543, 7
    %v545 = vsub.s32 0, %v544
    %v546 = vrot.slane %v541, %v545
    %v547 = vlaneseq
    %v548 = vshrl.u32 %v547, 7
    %v549 = vsub.s32 1, %v548
    %v550 = vrot.slane %v541, %v549
    %v551 = vlaneseq
    %v552 = vshrl.u32 %v551, 7
    %v553 = vsub.s32 2, %v552
    %v554 = vrot.slane %v541, %v553
    %v555 = vlaneseq
    %v556 = vshrl.u32 %v555, 7
    %v557 = vsub.s32 3, %v556
    %v558 = vrot.slane %v541, %v557
    %v559 = vlaneseq
    %v560 = vshrl.u32 %v559, 7
    %v561 = vsub.s32 4, %v560
    %v562 = vrot.slane %v541, %v561
    %v563 = vlaneseq
    %v564 = vshrl.u32 %v563, 7
    %v565 = vsub.s32 5, %v564
    %v566 = vrot.slane %v541, %v565
    %v567 = vlaneseq
    %v568 = vshrl.u32 %v567, 7
    %v569 = vsub.s32 6, %v568
    %v570 = vrot.slane %v541, %v569
    %v571 = vlaneseq
    %v572 = vshrl.u32 %v571, 7
    %v573 = vsub.s32 7, %v572
    %v574 = vrot.slane %v541, %v573
    %v584 = vcombine.high %v28, %v28
    %v586 = vunpack.c.l.s4 1966171168
    %v587 = vunpack.c.0.s8 %v586
    %v588 = vlaneseq
    %v589 = vshrl.u32 %v588, 7
    %v590 = vsub.s32 %v587, %v589
    %v591 = vrot.slane %v28, %v590
    %v593 = vunpack.c.l.s4 1966171168
    %v594 = vunpack.c.0.s8 %v593
    %v595 = vlaneseq
    %v596 = vshrl.u32 %v595, 7
    %v597 = vsub.s32 %v594, %v596
    %v598 = vrot.slane %v584, %v597
    %v599 = vcombine.high %v591, %v591
    %v600 = vcombine.high %v598, %v598
    %v602 = vunpack.c.l.s4 1966171168
    %v603 = vunpack.c.0.s8 %v602
    %v604 = vlaneseq
    %v605 = vshrl.u32 %v604, 7
    %v606 = vsub.s32 %v603, %v605
    %v607 = vrot.slane %v591, %v606
    %v609 = vunpack.c.l.s4 1966171168
    %v610 = vunpack.c.0.s8 %v609
    %v611 = vlaneseq
    %v612 = vshrl.u32 %v611, 7
    %v613 = vsub.s32 %v610, %v612
    %v614 = vrot.slane %v598, %v613
    %v616 = vunpack.c.l.s4 1966171168
    %v617 = vunpack.c.0.s8 %v616
    %v618 = vlaneseq
    %v619 = vshrl.u32 %v618, 7
    %v620 = vsub.s32 %v617, %v619
    %v621 = vrot.slane %v599, %v620
    %v623 = vunpack.c.l.s4 1966171168
    %v624 = vunpack.c.0.s8 %v623
    %v625 = vlaneseq
    %v626 = vshrl.u32 %v625, 7
    %v627 = vsub.s32 %v624, %v626
    %v628 = vrot.slane %v600, %v627
    %v629 = vcombine.high %v607, %v607
    %v630 = vcombine.high %v614, %v614
    %v631 = vcombine.high %v621, %v621
    %v632 = vcombine.high %v628, %v628
    %v1153 = vunpack.c.l.b16 %v29
    %v1154 = vunpack.c.h.b16 %v29
    %v1155 = vunpack.c.l.b16 %v30
    %v1156 = vunpack.c.h.b16 %v30
    %v1157 = vunpack.c.l.b16 %v31
    %v1158 = vunpack.c.h.b16 %v31
    %v1159 = vunpack.c.l.b16 %v32
    %v1160 = vunpack.c.h.b16 %v32
    %v1161 = vunpack.c.l.b16 %v33
    %v1162 = vunpack.c.h.b16 %v33
    %v1163 = vunpack.c.l.b16 %v34
    %v1164 = vunpack.c.h.b16 %v34
    %v1165 = vunpack.c.l.b16 %v35
    %v1166 = vunpack.c.h.b16 %v35
    %v1167 = vunpack.c.l.b16 %v36
    %v1168 = vunpack.c.h.b16 %v36
    %v1169 = vunpack.c.l.b16 %v37
    %v1170 = vunpack.c.h.b16 %v37
    %v1171 = vunpack.c.l.b16 %v38
    %v1172 = vunpack.c.h.b16 %v38
    %v1173 = vunpack.c.l.b16 %v39
    %v1174 = vunpack.c.h.b16 %v39
    %v1175 = vunpack.c.l.b16 %v40
    %v1176 = vunpack.c.h.b16 %v40
    %v1177 = vunpack.c.l.b16 %v41
    %v1178 = vunpack.c.h.b16 %v41
    %v1179 = vunpack.c.l.b16 %v42
    %v1180 = vunpack.c.h.b16 %v42
    %v1181 = vunpack.c.l.b16 %v43
    %v1182 = vunpack.c.h.b16 %v43
    %v1183 = vunpack.c.l.b16 %v44
    %v1184 = vunpack.c.h.b16 %v44
    %v1185 = vunpack.c.l.b16 %v45
    %v1186 = vunpack.c.h.b16 %v45
    %v1187 = vunpack.c.l.b16 %v46
    %v1188 = vunpack.c.h.b16 %v46
    %v1189 = vunpack.c.l.b16 %v47
    %v1190 = vunpack.c.h.b16 %v47
    %v1191 = vunpack.c.l.b16 %v48
    %v1192 = vunpack.c.h.b16 %v48
    %v1193 = vunpack.c.l.b16 %v49
    %v1194 = vunpack.c.h.b16 %v49
    %v1195 = vunpack.c.l.b16 %v50
    %v1196 = vunpack.c.h.b16 %v50
    %v1197 = vunpack.c.l.b16 %v51
    %v1198 = vunpack.c.h.b16 %v51
    %v1199 = vunpack.c.l.b16 %v52
    %v1200 = vunpack.c.h.b16 %v52
    %v1201 = vunpack.c.l.b16 %v53
    %v1202 = vunpack.c.h.b16 %v53
    %v1203 = vunpack.c.l.b16 %v54
    %v1204 = vunpack.c.h.b16 %v54
    %v1205 = vunpack.c.l.b16 %v55
    %v1206 = vunpack.c.h.b16 %v55
    %v1207 = vunpack.c.l.b16 %v56
    %v1208 = vunpack.c.h.b16 %v56
    %v1209 = vunpack.c.l.b16 %v57
    %v1210 = vunpack.c.h.b16 %v57
    %v1211 = vunpack.c.l.b16 %v58
    %v1212 = vunpack.c.h.b16 %v58
    %v1213 = vunpack.c.l.b16 %v59
    %v1214 = vunpack.c.h.b16 %v59
    %v1215 = vunpack.c.l.b16 %v60
    %v1216 = vunpack.c.h.b16 %v60
    %v1217 = vunpack.c.l.b16 %v61
    %v1218 = vunpack.c.h.b16 %v61
    %v1219 = vunpack.c.l.b16 %v62
    %v1220 = vunpack.c.h.b16 %v62
    %v1221 = vunpack.c.l.b16 %v63
    %v1222 = vunpack.c.h.b16 %v63
    %v1223 = vunpack.c.l.b16 %v64
    %v1224 = vunpack.c.h.b16 %v64
    %v1225 = vunpack.c.l.b16 %v65
    %v1226 = vunpack.c.h.b16 %v65
    %v1227 = vunpack.c.l.b16 %v66
    %v1228 = vunpack.c.h.b16 %v66
    %v1229 = vunpack.c.l.b16 %v67
    %v1230 = vunpack.c.h.b16 %v67
    %v1231 = vunpack.c.l.b16 %v68
    %v1232 = vunpack.c.h.b16 %v68
    %v1233 = vunpack.c.l.b16 %v69
    %v1234 = vunpack.c.h.b16 %v69
    %v1235 = vunpack.c.l.b16 %v70
    %v1236 = vunpack.c.h.b16 %v70
    %v1237 = vunpack.c.l.b16 %v71
    %v1238 = vunpack.c.h.b16 %v71
    %v1239 = vunpack.c.l.b16 %v72
    %v1240 = vunpack.c.h.b16 %v72
    %v1241 = vunpack.c.l.b16 %v73
    %v1242 = vunpack.c.h.b16 %v73
    %v1243 = vunpack.c.l.b16 %v74
    %v1244 = vunpack.c.h.b16 %v74
    %v1245 = vunpack.c.l.b16 %v75
    %v1246 = vunpack.c.h.b16 %v75
    %v1247 = vunpack.c.l.b16 %v76
    %v1248 = vunpack.c.h.b16 %v76
    %v1249 = vunpack.c.l.b16 %v77
    %v1250 = vunpack.c.h.b16 %v77
    %v1251 = vunpack.c.l.b16 %v78
    %v1252 = vunpack.c.h.b16 %v78
    %v1253 = vunpack.c.l.b16 %v79
    %v1254 = vunpack.c.h.b16 %v79
    %v1255 = vunpack.c.l.b16 %v80
    %v1256 = vunpack.c.h.b16 %v80
    %v1257 = vunpack.c.l.b16 %v81
    %v1258 = vunpack.c.h.b16 %v81
    %v1259 = vunpack.c.l.b16 %v82
    %v1260 = vunpack.c.h.b16 %v82
    %v1261 = vunpack.c.l.b16 %v83
    %v1262 = vunpack.c.h.b16 %v83
    %v1263 = vunpack.c.l.b16 %v84
    %v1264 = vunpack.c.h.b16 %v84
    %v1265 = vunpack.c.l.b16 %v85
    %v1266 = vunpack.c.h.b16 %v85
    %v1267 = vunpack.c.l.b16 %v86
    %v1268 = vunpack.c.h.b16 %v86
    %v1269 = vunpack.c.l.b16 %v87
    %v1270 = vunpack.c.h.b16 %v87
    %v1271 = vunpack.c.l.b16 %v88
    %v1272 = vunpack.c.h.b16 %v88
    %v1273 = vunpack.c.l.b16 %v89
    %v1274 = vunpack.c.h.b16 %v89
    %v1275 = vunpack.c.l.b16 %v90
    %v1276 = vunpack.c.h.b16 %v90
    %v1277 = vunpack.c.l.b16 %v91
    %v1278 = vunpack.c.h.b16 %v91
    %v1279 = vunpack.c.l.b16 %v92
    %v1280 = vunpack.c.h.b16 %v92
    %v1281 = vunpack.c.l.b16 %v93
    %v1282 = vunpack.c.h.b16 %v93
    %v1283 = vunpack.c.l.b16 %v94
    %v1284 = vunpack.c.h.b16 %v94
    %v1285 = vunpack.c.l.b16 %v95
    %v1286 = vunpack.c.h.b16 %v95
    %v1287 = vunpack.c.l.b16 %v96
    %v1288 = vunpack.c.h.b16 %v96
    %v1289 = vunpack.c.l.b16 %v97
    %v1290 = vunpack.c.h.b16 %v97
    %v1291 = vunpack.c.l.b16 %v98
    %v1292 = vunpack.c.h.b16 %v98
    %v1293 = vunpack.c.l.b16 %v99
    %v1294 = vunpack.c.h.b16 %v99
    %v1295 = vunpack.c.l.b16 %v100
    %v1296 = vunpack.c.h.b16 %v100
    %v1297 = vunpack.c.l.b16 %v101
    %v1298 = vunpack.c.h.b16 %v101
    %v1299 = vunpack.c.l.b16 %v102
    %v1300 = vunpack.c.h.b16 %v102
    %v1301 = vunpack.c.l.b16 %v103
    %v1302 = vunpack.c.h.b16 %v103
    %v1303 = vunpack.c.l.b16 %v104
    %v1304 = vunpack.c.h.b16 %v104
    %v1305 = vunpack.c.l.b16 %v105
    %v1306 = vunpack.c.h.b16 %v105
    %v1307 = vunpack.c.l.b16 %v106
    %v1308 = vunpack.c.h.b16 %v106
    %v1309 = vunpack.c.l.b16 %v107
    %v1310 = vunpack.c.h.b16 %v107
    %v1311 = vunpack.c.l.b16 %v108
    %v1312 = vunpack.c.h.b16 %v108
    %v1313 = vunpack.c.l.b16 %v109
    %v1314 = vunpack.c.h.b16 %v109
    %v1315 = vunpack.c.l.b16 %v110
    %v1316 = vunpack.c.h.b16 %v110
    %v1317 = vunpack.c.l.b16 %v111
    %v1318 = vunpack.c.h.b16 %v111
    %v1319 = vunpack.c.l.b16 %v112
    %v1320 = vunpack.c.h.b16 %v112
    %v1321 = vunpack.c.l.b16 %v113
    %v1322 = vunpack.c.h.b16 %v113
    %v1323 = vunpack.c.l.b16 %v114
    %v1324 = vunpack.c.h.b16 %v114
    %v1325 = vunpack.c.l.b16 %v115
    %v1326 = vunpack.c.h.b16 %v115
    %v1327 = vunpack.c.l.b16 %v116
    %v1328 = vunpack.c.h.b16 %v116
    %v1329 = vunpack.c.l.b16 %v117
    %v1330 = vunpack.c.h.b16 %v117
    %v1331 = vunpack.c.l.b16 %v118
    %v1332 = vunpack.c.h.b16 %v118
    %v1333 = vunpack.c.l.b16 %v119
    %v1334 = vunpack.c.h.b16 %v119
    %v1335 = vunpack.c.l.b16 %v120
    %v1336 = vunpack.c.h.b16 %v120
    %v1337 = vunpack.c.l.b16 %v121
    %v1338 = vunpack.c.h.b16 %v121
    %v1339 = vunpack.c.l.b16 %v122
    %v1340 = vunpack.c.h.b16 %v122
    %v1341 = vunpack.c.l.b16 %v123
    %v1342 = vunpack.c.h.b16 %v123
    %v1343 = vunpack.c.l.b16 %v124
    %v1344 = vunpack.c.h.b16 %v124
    %v1345 = vunpack.c.l.b16 %v125
    %v1346 = vunpack.c.h.b16 %v125
    %v1347 = vunpack.c.l.b16 %v126
    %v1348 = vunpack.c.h.b16 %v126
    %v1349 = vunpack.c.l.b16 %v127
    %v1350 = vunpack.c.h.b16 %v127
    %v1351 = vunpack.c.l.b16 %v128
    %v1352 = vunpack.c.h.b16 %v128
    %v1353 = vunpack.c.l.b16 %v129
    %v1354 = vunpack.c.h.b16 %v129
    %v1355 = vunpack.c.l.b16 %v130
    %v1356 = vunpack.c.h.b16 %v130
    %v1357 = vunpack.c.l.b16 %v131
    %v1358 = vunpack.c.h.b16 %v131
    %v1359 = vunpack.c.l.b16 %v132
    %v1360 = vunpack.c.h.b16 %v132
    %v1361 = vunpack.c.l.b16 %v133
    %v1362 = vunpack.c.h.b16 %v133
    %v1363 = vunpack.c.l.b16 %v134
    %v1364 = vunpack.c.h.b16 %v134
    %v1365 = vunpack.c.l.b16 %v135
    %v1366 = vunpack.c.h.b16 %v135
    %v1367 = vunpack.c.l.b16 %v136
    %v1368 = vunpack.c.h.b16 %v136
    %v1369 = vunpack.c.l.b16 %v137
    %v1370 = vunpack.c.h.b16 %v137
    %v1371 = vunpack.c.l.b16 %v138
    %v1372 = vunpack.c.h.b16 %v138
    %v1373 = vunpack.c.l.b16 %v139
    %v1374 = vunpack.c.h.b16 %v139
    %v1375 = vunpack.c.l.b16 %v140
    %v1376 = vunpack.c.h.b16 %v140
    %v1377 = vunpack.c.l.b16 %v141
    %v1378 = vunpack.c.h.b16 %v141
    %v1379 = vunpack.c.l.b16 %v142
    %v1380 = vunpack.c.h.b16 %v142
    %v1381 = vunpack.c.l.b16 %v143
    %v1382 = vunpack.c.h.b16 %v143
    %v1383 = vunpack.c.l.b16 %v144
    %v1384 = vunpack.c.h.b16 %v144
    %v1385 = vunpack.c.l.b16 %v145
    %v1386 = vunpack.c.h.b16 %v145
    %v1387 = vunpack.c.l.b16 %v146
    %v1388 = vunpack.c.h.b16 %v146
    %v1389 = vunpack.c.l.b16 %v147
    %v1390 = vunpack.c.h.b16 %v147
    %v1391 = vunpack.c.l.b16 %v148
    %v1392 = vunpack.c.h.b16 %v148
    %v1393 = vunpack.c.l.b16 %v149
    %v1394 = vunpack.c.h.b16 %v149
    %v1395 = vunpack.c.l.b16 %v150
    %v1396 = vunpack.c.h.b16 %v150
    %v1397 = vunpack.c.l.b16 %v151
    %v1398 = vunpack.c.h.b16 %v151
    %v1399 = vunpack.c.l.b16 %v152
    %v1400 = vunpack.c.h.b16 %v152
    %v1401 = vunpack.c.l.b16 %v153
    %v1402 = vunpack.c.h.b16 %v153
    %v1403 = vunpack.c.l.b16 %v154
    %v1404 = vunpack.c.h.b16 %v154
    %v1405 = vunpack.c.l.b16 %v155
    %v1406 = vunpack.c.h.b16 %v155
    %v1407 = vunpack.c.l.b16 %v156
    %v1408 = vunpack.c.h.b16 %v156
    %v1409 = vunpack.c.l.b16 %v157
    %v1410 = vunpack.c.h.b16 %v157
    %v1411 = vunpack.c.l.b16 %v158
    %v1412 = vunpack.c.h.b16 %v158
    %v1413 = vunpack.c.l.b16 %v159
    %v1414 = vunpack.c.h.b16 %v159
    %v1415 = vunpack.c.l.b16 %v160
    %v1416 = vunpack.c.h.b16 %v160
    %v1417 = vunpack.c.l.b16 %v161
    %v1418 = vunpack.c.h.b16 %v161
    %v1419 = vunpack.c.l.b16 %v162
    %v1420 = vunpack.c.h.b16 %v162
    %v1421 = vunpack.c.l.b16 %v163
    %v1422 = vunpack.c.h.b16 %v163
    %v1423 = vunpack.c.l.b16 %v164
    %v1424 = vunpack.c.h.b16 %v164
    %v1425 = vunpack.c.l.b16 %v165
    %v1426 = vunpack.c.h.b16 %v165
    %v1427 = vunpack.c.l.b16 %v166
    %v1428 = vunpack.c.h.b16 %v166
    %v1429 = vunpack.c.l.b16 %v167
    %v1430 = vunpack.c.h.b16 %v167
    %v1431 = vunpack.c.l.b16 %v168
    %v1432 = vunpack.c.h.b16 %v168
    %v1433 = vunpack.c.l.b16 %v169
    %v1434 = vunpack.c.h.b16 %v169
    %v1435 = vunpack.c.l.b16 %v170
    %v1436 = vunpack.c.h.b16 %v170
    %v1437 = vunpack.c.l.b16 %v171
    %v1438 = vunpack.c.h.b16 %v171
    %v1439 = vunpack.c.l.b16 %v172
    %v1440 = vunpack.c.h.b16 %v172
    %v1441 = vunpack.c.l.b16 %v173
    %v1442 = vunpack.c.h.b16 %v173
    %v1443 = vunpack.c.l.b16 %v174
    %v1444 = vunpack.c.h.b16 %v174
    %v1445 = vunpack.c.l.b16 %v175
    %v1446 = vunpack.c.h.b16 %v175
    %v1447 = vunpack.c.l.b16 %v176
    %v1448 = vunpack.c.h.b16 %v176
    %v1449 = vunpack.c.l.b16 %v177
    %v1450 = vunpack.c.h.b16 %v177
    %v1451 = vunpack.c.l.b16 %v178
    %v1452 = vunpack.c.h.b16 %v178
    %v1453 = vunpack.c.l.b16 %v179
    %v1454 = vunpack.c.h.b16 %v179
    %v1455 = vunpack.c.l.b16 %v180
    %v1456 = vunpack.c.h.b16 %v180
    %v1457 = vunpack.c.l.b16 %v181
    %v1458 = vunpack.c.h.b16 %v181
    %v1459 = vunpack.c.l.b16 %v182
    %v1460 = vunpack.c.h.b16 %v182
    %v1461 = vunpack.c.l.b16 %v183
    %v1462 = vunpack.c.h.b16 %v183
    %v1463 = vunpack.c.l.b16 %v184
    %v1464 = vunpack.c.h.b16 %v184
    %v1465 = vunpack.c.l.b16 %v185
    %v1466 = vunpack.c.h.b16 %v185
    %v1467 = vunpack.c.l.b16 %v186
    %v1468 = vunpack.c.h.b16 %v186
    %v1469 = vunpack.c.l.b16 %v187
    %v1470 = vunpack.c.h.b16 %v187
    %v1471 = vunpack.c.l.b16 %v188
    %v1472 = vunpack.c.h.b16 %v188
    %v1473 = vunpack.c.l.b16 %v189
    %v1474 = vunpack.c.h.b16 %v189
    %v1475 = vunpack.c.l.b16 %v190
    %v1476 = vunpack.c.h.b16 %v190
    %v1477 = vunpack.c.l.b16 %v191
    %v1478 = vunpack.c.h.b16 %v191
    %v1479 = vunpack.c.l.b16 %v192
    %v1480 = vunpack.c.h.b16 %v192
    %v1481 = vunpack.c.l.b16 %v193
    %v1482 = vunpack.c.h.b16 %v193
    %v1483 = vunpack.c.l.b16 %v194
    %v1484 = vunpack.c.h.b16 %v194
    %v1485 = vunpack.c.l.b16 %v195
    %v1486 = vunpack.c.h.b16 %v195
    %v1487 = vunpack.c.l.b16 %v196
    %v1488 = vunpack.c.h.b16 %v196
    %v1489 = vunpack.c.l.b16 %v197
    %v1490 = vunpack.c.h.b16 %v197
    %v1491 = vunpack.c.l.b16 %v198
    %v1492 = vunpack.c.h.b16 %v198
    %v1493 = vunpack.c.l.b16 %v199
    %v1494 = vunpack.c.h.b16 %v199
    %v1495 = vunpack.c.l.b16 %v200
    %v1496 = vunpack.c.h.b16 %v200
    %v1497 = vunpack.c.l.b16 %v201
    %v1498 = vunpack.c.h.b16 %v201
    %v1499 = vunpack.c.l.b16 %v202
    %v1500 = vunpack.c.h.b16 %v202
    %v1501 = vunpack.c.l.b16 %v203
    %v1502 = vunpack.c.h.b16 %v203
    %v1503 = vunpack.c.l.b16 %v204
    %v1504 = vunpack.c.h.b16 %v204
    %v1505 = vunpack.c.l.b16 %v205
    %v1506 = vunpack.c.h.b16 %v205
    %v1507 = vunpack.c.l.b16 %v206
    %v1508 = vunpack.c.h.b16 %v206
    %v1509 = vunpack.c.l.b16 %v207
    %v1510 = vunpack.c.h.b16 %v207
    %v1511 = vunpack.c.l.b16 %v208
    %v1512 = vunpack.c.h.b16 %v208
    %v1513 = vunpack.c.l.b16 %v209
    %v1514 = vunpack.c.h.b16 %v209
    %v1515 = vunpack.c.l.b16 %v210
    %v1516 = vunpack.c.h.b16 %v210
    %v1517 = vunpack.c.l.b16 %v211
    %v1518 = vunpack.c.h.b16 %v211
    %v1519 = vunpack.c.l.b16 %v212
    %v1520 = vunpack.c.h.b16 %v212
    %v1521 = vunpack.c.l.b16 %v213
    %v1522 = vunpack.c.h.b16 %v213
    %v1523 = vunpack.c.l.b16 %v214
    %v1524 = vunpack.c.h.b16 %v214
    %v1525 = vunpack.c.l.b16 %v215
    %v1526 = vunpack.c.h.b16 %v215
    %v1527 = vunpack.c.l.b16 %v216
    %v1528 = vunpack.c.h.b16 %v216
    %v1529 = vunpack.c.l.b16 %v217
    %v1530 = vunpack.c.h.b16 %v217
    %v1531 = vunpack.c.l.b16 %v218
    %v1532 = vunpack.c.h.b16 %v218
    %v1533 = vunpack.c.l.b16 %v219
    %v1534 = vunpack.c.h.b16 %v219
    %v1535 = vunpack.c.l.b16 %v220
    %v1536 = vunpack.c.h.b16 %v220
    %v1537 = vunpack.c.l.b16 %v221
    %v1538 = vunpack.c.h.b16 %v221
    %v1539 = vunpack.c.l.b16 %v222
    %v1540 = vunpack.c.h.b16 %v222
    %v1541 = vunpack.c.l.b16 %v223
    %v1542 = vunpack.c.h.b16 %v223
    %v1543 = vunpack.c.l.b16 %v224
    %v1544 = vunpack.c.h.b16 %v224
    %v1545 = vunpack.c.l.b16 %v225
    %v1546 = vunpack.c.h.b16 %v225
    %v1547 = vunpack.c.l.b16 %v226
    %v1548 = vunpack.c.h.b16 %v226
    %v1549 = vunpack.c.l.b16 %v227
    %v1550 = vunpack.c.h.b16 %v227
    %v1551 = vunpack.c.l.b16 %v228
    %v1552 = vunpack.c.h.b16 %v228
    %v1553 = vunpack.c.l.b16 %v229
    %v1554 = vunpack.c.h.b16 %v229
    %v1555 = vunpack.c.l.b16 %v230
    %v1556 = vunpack.c.h.b16 %v230
    %v1557 = vunpack.c.l.b16 %v231
    %v1558 = vunpack.c.h.b16 %v231
    %v1559 = vunpack.c.l.b16 %v232
    %v1560 = vunpack.c.h.b16 %v232
    %v1561 = vunpack.c.l.b16 %v233
    %v1562 = vunpack.c.h.b16 %v233
    %v1563 = vunpack.c.l.b16 %v234
    %v1564 = vunpack.c.h.b16 %v234
    %v1565 = vunpack.c.l.b16 %v235
    %v1566 = vunpack.c.h.b16 %v235
    %v1567 = vunpack.c.l.b16 %v236
    %v1568 = vunpack.c.h.b16 %v236
    %v1569 = vunpack.c.l.b16 %v237
    %v1570 = vunpack.c.h.b16 %v237
    %v1571 = vunpack.c.l.b16 %v238
    %v1572 = vunpack.c.h.b16 %v238
    %v1573 = vunpack.c.l.b16 %v239
    %v1574 = vunpack.c.h.b16 %v239
    %v1575 = vunpack.c.l.b16 %v240
    %v1576 = vunpack.c.h.b16 %v240
    %v1577 = vunpack.c.l.b16 %v241
    %v1578 = vunpack.c.h.b16 %v241
    %v1579 = vunpack.c.l.b16 %v242
    %v1580 = vunpack.c.h.b16 %v242
    %v1581 = vunpack.c.l.b16 %v243
    %v1582 = vunpack.c.h.b16 %v243
    %v1583 = vunpack.c.l.b16 %v244
    %v1584 = vunpack.c.h.b16 %v244
    %v1585 = vunpack.c.l.b16 %v245
    %v1586 = vunpack.c.h.b16 %v245
    %v1587 = vunpack.c.l.b16 %v246
    %v1588 = vunpack.c.h.b16 %v246
    %v1589 = vunpack.c.l.b16 %v247
    %v1590 = vunpack.c.h.b16 %v247
    %v1591 = vunpack.c.l.b16 %v248
    %v1592 = vunpack.c.h.b16 %v248
    %v1593 = vunpack.c.l.b16 %v249
    %v1594 = vunpack.c.h.b16 %v249
    %v1595 = vunpack.c.l.b16 %v250
    %v1596 = vunpack.c.h.b16 %v250
    %v1597 = vunpack.c.l.b16 %v251
    %v1598 = vunpack.c.h.b16 %v251
    %v1599 = vunpack.c.l.b16 %v252
    %v1600 = vunpack.c.h.b16 %v252
    %v1601 = vunpack.c.l.b16 %v253
    %v1602 = vunpack.c.h.b16 %v253
    %v1603 = vunpack.c.l.b16 %v254
    %v1604 = vunpack.c.h.b16 %v254
    %v1605 = vunpack.c.l.b16 %v255
    %v1606 = vunpack.c.h.b16 %v255
    %v1607 = vunpack.c.l.b16 %v256
    %v1608 = vunpack.c.h.b16 %v256
    %v1609 = vunpack.c.l.b16 %v257
    %v1610 = vunpack.c.h.b16 %v257
    %v1611 = vunpack.c.l.b16 %v258
    %v1612 = vunpack.c.h.b16 %v258
    %v1613 = vunpack.c.l.b16 %v259
    %v1614 = vunpack.c.h.b16 %v259
    %v1615 = vunpack.c.l.b16 %v260
    %v1616 = vunpack.c.h.b16 %v260
    %v1617 = vunpack.c.l.b16 %v261
    %v1618 = vunpack.c.h.b16 %v261
    %v1619 = vunpack.c.l.b16 %v262
    %v1620 = vunpack.c.h.b16 %v262
    %v1621 = vunpack.c.l.b16 %v263
    %v1622 = vunpack.c.h.b16 %v263
    %v1623 = vunpack.c.l.b16 %v264
    %v1624 = vunpack.c.h.b16 %v264
    %v1625 = vunpack.c.l.b16 %v265
    %v1626 = vunpack.c.h.b16 %v265
    %v1627 = vunpack.c.l.b16 %v266
    %v1628 = vunpack.c.h.b16 %v266
    %v1629 = vunpack.c.l.b16 %v267
    %v1630 = vunpack.c.h.b16 %v267
    %v1631 = vunpack.c.l.b16 %v268
    %v1632 = vunpack.c.h.b16 %v268
    %v1633 = vunpack.c.l.b16 %v269
    %v1634 = vunpack.c.h.b16 %v269
    %v1635 = vunpack.c.l.b16 %v270
    %v1636 = vunpack.c.h.b16 %v270
    %v1637 = vunpack.c.l.b16 %v271
    %v1638 = vunpack.c.h.b16 %v271
    %v1639 = vunpack.c.l.b16 %v272
    %v1640 = vunpack.c.h.b16 %v272
    %v1641 = vunpack.c.l.b16 %v273
    %v1642 = vunpack.c.h.b16 %v273
    %v1643 = vunpack.c.l.b16 %v274
    %v1644 = vunpack.c.h.b16 %v274
    %v1645 = vunpack.c.l.b16 %v275
    %v1646 = vunpack.c.h.b16 %v275
    %v1647 = vunpack.c.l.b16 %v276
    %v1648 = vunpack.c.h.b16 %v276
    %v1649 = vunpack.c.l.b16 %v277
    %v1650 = vunpack.c.h.b16 %v277
    %v1651 = vunpack.c.l.b16 %v278
    %v1652 = vunpack.c.h.b16 %v278
    %v1653 = vunpack.c.l.b16 %v279
    %v1654 = vunpack.c.h.b16 %v279
    %v1655 = vunpack.c.l.b16 %v280
    %v1656 = vunpack.c.h.b16 %v280
    %v1657 = vunpack.c.l.b16 %v281
    %v1658 = vunpack.c.h.b16 %v281
    %v1659 = vunpack.c.l.b16 %v282
    %v1660 = vunpack.c.h.b16 %v282
    %v1661 = vunpack.c.l.b16 %v283
    %v1662 = vunpack.c.h.b16 %v283
    %v1663 = vunpack.c.l.b16 %v284
    %v1664 = vunpack.c.h.b16 %v284
    %v1665 = vunpack.c.l.b16 %v285
    %v1666 = vunpack.c.h.b16 %v285
    %v1667 = vunpack.c.l.b16 %v286
    %v1668 = vunpack.c.h.b16 %v286
    %v1669 = vunpack.c.l.b16 %v287
    %v1670 = vunpack.c.h.b16 %v287
    %v1671 = vunpack.c.l.b16 %v288
    %v1672 = vunpack.c.h.b16 %v288
    %v1673 = vunpack.c.l.b16 %v289
    %v1674 = vunpack.c.h.b16 %v289
    %v1675 = vunpack.c.l.b16 %v290
    %v1676 = vunpack.c.h.b16 %v290
    %v1677 = vunpack.c.l.b16 %v291
    %v1678 = vunpack.c.h.b16 %v291
    %v1679 = vunpack.c.l.b16 %v292
    %v1680 = vunpack.c.h.b16 %v292
    %v1681 = vunpack.c.l.b16 %v293
    %v1682 = vunpack.c.h.b16 %v293
    %v1683 = vunpack.c.l.b16 %v294
    %v1684 = vunpack.c.h.b16 %v294
    %v1685 = vunpack.c.l.b16 %v295
    %v1686 = vunpack.c.h.b16 %v295
    %v1687 = vunpack.c.l.b16 %v296
    %v1688 = vunpack.c.h.b16 %v296
    %v1689 = vunpack.c.l.b16 %v297
    %v1690 = vunpack.c.h.b16 %v297
    %v1691 = vunpack.c.l.b16 %v298
    %v1692 = vunpack.c.h.b16 %v298
    %v1693 = vunpack.c.l.b16 %v299
    %v1694 = vunpack.c.h.b16 %v299
    %v1695 = vunpack.c.l.b16 %v300
    %v1696 = vunpack.c.h.b16 %v300
    %v1697 = vunpack.c.l.b16 %v301
    %v1698 = vunpack.c.h.b16 %v301
    %v1699 = vunpack.c.l.b16 %v302
    %v1700 = vunpack.c.h.b16 %v302
    %v1701 = vunpack.c.l.b16 %v303
    %v1702 = vunpack.c.h.b16 %v303
    %v1703 = vunpack.c.l.b16 %v304
    %v1704 = vunpack.c.h.b16 %v304
    %v1705 = vunpack.c.l.b16 %v305
    %v1706 = vunpack.c.h.b16 %v305
    %v1707 = vunpack.c.l.b16 %v306
    %v1708 = vunpack.c.h.b16 %v306
    %v1709 = vunpack.c.l.b16 %v307
    %v1710 = vunpack.c.h.b16 %v307
    %v1711 = vunpack.c.l.b16 %v308
    %v1712 = vunpack.c.h.b16 %v308
    %v1713 = vunpack.c.l.b16 %v309
    %v1714 = vunpack.c.h.b16 %v309
    %v1715 = vunpack.c.l.b16 %v310
    %v1716 = vunpack.c.h.b16 %v310
    %v1717 = vunpack.c.l.b16 %v311
    %v1718 = vunpack.c.h.b16 %v311
    %v1719 = vunpack.c.l.b16 %v312
    %v1720 = vunpack.c.h.b16 %v312
    %v1721 = vunpack.c.l.b16 %v313
    %v1722 = vunpack.c.h.b16 %v313
    %v1723 = vunpack.c.l.b16 %v314
    %v1724 = vunpack.c.h.b16 %v314
    %v1725 = vunpack.c.l.b16 %v315
    %v1726 = vunpack.c.h.b16 %v315
    %v1727 = vunpack.c.l.b16 %v316
    %v1728 = vunpack.c.h.b16 %v316
    %v1729 = vunpack.c.l.b16 %v317
    %v1730 = vunpack.c.h.b16 %v317
    %v1731 = vunpack.c.l.b16 %v318
    %v1732 = vunpack.c.h.b16 %v318
    %v1733 = vunpack.c.l.b16 %v319
    %v1734 = vunpack.c.h.b16 %v319
    %v1735 = vunpack.c.l.b16 %v320
    %v1736 = vunpack.c.h.b16 %v320
    %v1737 = vunpack.c.l.b16 %v321
    %v1738 = vunpack.c.h.b16 %v321
    %v1739 = vunpack.c.l.b16 %v322
    %v1740 = vunpack.c.h.b16 %v322
    %v1741 = vunpack.c.l.b16 %v323
    %v1742 = vunpack.c.h.b16 %v323
    %v1743 = vunpack.c.l.b16 %v324
    %v1744 = vunpack.c.h.b16 %v324
    %v1745 = vunpack.c.l.b16 %v325
    %v1746 = vunpack.c.h.b16 %v325
    %v1747 = vunpack.c.l.b16 %v326
    %v1748 = vunpack.c.h.b16 %v326
    %v1749 = vunpack.c.l.b16 %v327
    %v1750 = vunpack.c.h.b16 %v327
    %v1751 = vunpack.c.l.b16 %v328
    %v1752 = vunpack.c.h.b16 %v328
    %v1753 = vunpack.c.l.b16 %v329
    %v1754 = vunpack.c.h.b16 %v329
    %v1755 = vunpack.c.l.b16 %v330
    %v1756 = vunpack.c.h.b16 %v330
    %v1757 = vunpack.c.l.b16 %v331
    %v1758 = vunpack.c.h.b16 %v331
    %v1759 = vunpack.c.l.b16 %v332
    %v1760 = vunpack.c.h.b16 %v332
    %v1761 = vunpack.c.l.b16 %v333
    %v1762 = vunpack.c.h.b16 %v333
    %v1763 = vunpack.c.l.b16 %v334
    %v1764 = vunpack.c.h.b16 %v334
    %v1765 = vunpack.c.l.b16 %v335
    %v1766 = vunpack.c.h.b16 %v335
    %v1767 = vunpack.c.l.b16 %v336
    %v1768 = vunpack.c.h.b16 %v336
    %v1769 = vunpack.c.l.b16 %v337
    %v1770 = vunpack.c.h.b16 %v337
    %v1771 = vunpack.c.l.b16 %v338
    %v1772 = vunpack.c.h.b16 %v338
    %v1773 = vunpack.c.l.b16 %v339
    %v1774 = vunpack.c.h.b16 %v339
    %v1775 = vunpack.c.l.b16 %v340
    %v1776 = vunpack.c.h.b16 %v340
    %v1777 = vunpack.c.l.b16 %v341
    %v1778 = vunpack.c.h.b16 %v341
    %v1779 = vunpack.c.l.b16 %v342
    %v1780 = vunpack.c.h.b16 %v342
    %v1781 = vunpack.c.l.b16 %v343
    %v1782 = vunpack.c.h.b16 %v343
    %v1783 = vunpack.c.l.b16 %v344
    %v1784 = vunpack.c.h.b16 %v344
    %v1785 = vunpack.c.l.b16 %v345
    %v1786 = vunpack.c.h.b16 %v345
    %v1787 = vunpack.c.l.b16 %v346
    %v1788 = vunpack.c.h.b16 %v346
    %v1789 = vunpack.c.l.b16 %v347
    %v1790 = vunpack.c.h.b16 %v347
    %v1791 = vunpack.c.l.b16 %v348
    %v1792 = vunpack.c.h.b16 %v348
    %v1793 = vunpack.c.l.b16 %v349
    %v1794 = vunpack.c.h.b16 %v349
    %v1795 = vunpack.c.l.b16 %v350
    %v1796 = vunpack.c.h.b16 %v350
    %v1797 = vunpack.c.l.b16 %v351
    %v1798 = vunpack.c.h.b16 %v351
    %v1799 = vunpack.c.l.b16 %v352
    %v1800 = vunpack.c.h.b16 %v352
    %v1801 = vunpack.c.l.b16 %v353
    %v1802 = vunpack.c.h.b16 %v353
    %v1803 = vunpack.c.l.b16 %v354
    %v1804 = vunpack.c.h.b16 %v354
    %v1805 = vunpack.c.l.b16 %v355
    %v1806 = vunpack.c.h.b16 %v355
    %v1807 = vunpack.c.l.b16 %v356
    %v1808 = vunpack.c.h.b16 %v356
    %v1809 = vunpack.c.l.b16 %v357
    %v1810 = vunpack.c.h.b16 %v357
    %v1811 = vunpack.c.l.b16 %v358
    %v1812 = vunpack.c.h.b16 %v358
    %v1813 = vunpack.c.l.b16 %v359
    %v1814 = vunpack.c.h.b16 %v359
    %v1815 = vunpack.c.l.b16 %v360
    %v1816 = vunpack.c.h.b16 %v360
    %v1817 = vunpack.c.l.b16 %v361
    %v1818 = vunpack.c.h.b16 %v361
    %v1819 = vunpack.c.l.b16 %v362
    %v1820 = vunpack.c.h.b16 %v362
    %v1821 = vunpack.c.l.b16 %v363
    %v1822 = vunpack.c.h.b16 %v363
    %v1823 = vunpack.c.l.b16 %v364
    %v1824 = vunpack.c.h.b16 %v364
    %v1825 = vunpack.c.l.b16 %v365
    %v1826 = vunpack.c.h.b16 %v365
    %v1827 = vunpack.c.l.b16 %v366
    %v1828 = vunpack.c.h.b16 %v366
    %v1829 = vunpack.c.l.b16 %v367
    %v1830 = vunpack.c.h.b16 %v367
    %v1831 = vunpack.c.l.b16 %v368
    %v1832 = vunpack.c.h.b16 %v368
    %v1833 = vunpack.c.l.b16 %v369
    %v1834 = vunpack.c.h.b16 %v369
    %v1835 = vunpack.c.l.b16 %v370
    %v1836 = vunpack.c.h.b16 %v370
    %v1837 = vunpack.c.l.b16 %v371
    %v1838 = vunpack.c.h.b16 %v371
    %v1839 = vunpack.c.l.b16 %v372
    %v1840 = vunpack.c.h.b16 %v372
    %v1841 = vunpack.c.l.b16 %v373
    %v1842 = vunpack.c.h.b16 %v373
    %v1843 = vunpack.c.l.b16 %v374
    %v1844 = vunpack.c.h.b16 %v374
    %v1845 = vunpack.c.l.b16 %v375
    %v1846 = vunpack.c.h.b16 %v375
    %v1847 = vunpack.c.l.b16 %v376
    %v1848 = vunpack.c.h.b16 %v376
    %v1849 = vunpack.c.l.b16 %v377
    %v1850 = vunpack.c.h.b16 %v377
    %v1851 = vunpack.c.l.b16 %v378
    %v1852 = vunpack.c.h.b16 %v378
    %v1853 = vunpack.c.l.b16 %v379
    %v1854 = vunpack.c.h.b16 %v379
    %v1855 = vunpack.c.l.b16 %v380
    %v1856 = vunpack.c.h.b16 %v380
    %v1857 = vunpack.c.l.b16 %v381
    %v1858 = vunpack.c.h.b16 %v381
    %v1859 = vunpack.c.l.b16 %v382
    %v1860 = vunpack.c.h.b16 %v382
    %v1861 = vunpack.c.l.b16 %v383
    %v1862 = vunpack.c.h.b16 %v383
    %v1863 = vunpack.c.l.b16 %v384
    %v1864 = vunpack.c.h.b16 %v384
    %v1865 = vunpack.c.l.b16 %v385
    %v1866 = vunpack.c.h.b16 %v385
    %v1867 = vunpack.c.l.b16 %v386
    %v1868 = vunpack.c.h.b16 %v386
    %v1869 = vunpack.c.l.b16 %v387
    %v1870 = vunpack.c.h.b16 %v387
    %v1871 = vunpack.c.l.b16 %v388
    %v1872 = vunpack.c.h.b16 %v388
    %v1873 = vunpack.c.l.b16 %v389
    %v1874 = vunpack.c.h.b16 %v389
    %v1875 = vunpack.c.l.b16 %v390
    %v1876 = vunpack.c.h.b16 %v390
    %v1877 = vunpack.c.l.b16 %v391
    %v1878 = vunpack.c.h.b16 %v391
    %v1879 = vunpack.c.l.b16 %v392
    %v1880 = vunpack.c.h.b16 %v392
    %v1881 = vunpack.c.l.b16 %v393
    %v1882 = vunpack.c.h.b16 %v393
    %v1883 = vunpack.c.l.b16 %v394
    %v1884 = vunpack.c.h.b16 %v394
    %v1885 = vunpack.c.l.b16 %v395
    %v1886 = vunpack.c.h.b16 %v395
    %v1887 = vunpack.c.l.b16 %v396
    %v1888 = vunpack.c.h.b16 %v396
    %v1889 = vunpack.c.l.b16 %v397
    %v1890 = vunpack.c.h.b16 %v397
    %v1891 = vunpack.c.l.b16 %v398
    %v1892 = vunpack.c.h.b16 %v398
    %v1893 = vunpack.c.l.b16 %v399
    %v1894 = vunpack.c.h.b16 %v399
    %v1895 = vunpack.c.l.b16 %v400
    %v1896 = vunpack.c.h.b16 %v400
    %v1897 = vunpack.c.l.b16 %v401
    %v1898 = vunpack.c.h.b16 %v401
    %v1899 = vunpack.c.l.b16 %v402
    %v1900 = vunpack.c.h.b16 %v402
    %v1901 = vunpack.c.l.b16 %v403
    %v1902 = vunpack.c.h.b16 %v403
    %v1903 = vunpack.c.l.b16 %v404
    %v1904 = vunpack.c.h.b16 %v404
    %v1905 = vunpack.c.l.b16 %v405
    %v1906 = vunpack.c.h.b16 %v405
    %v1907 = vunpack.c.l.b16 %v406
    %v1908 = vunpack.c.h.b16 %v406
    %v1909 = vunpack.c.l.b16 %v407
    %v1910 = vunpack.c.h.b16 %v407
    %v1911 = vunpack.c.l.b16 %v408
    %v1912 = vunpack.c.h.b16 %v408
    %v1913 = vunpack.c.l.b16 %v409
    %v1914 = vunpack.c.h.b16 %v409
    %v1915 = vunpack.c.l.b16 %v410
    %v1916 = vunpack.c.h.b16 %v410
    %v1917 = vunpack.c.l.b16 %v411
    %v1918 = vunpack.c.h.b16 %v411
    %v1919 = vunpack.c.l.b16 %v412
    %v1920 = vunpack.c.h.b16 %v412
    %v1921 = vunpack.c.l.b16 %v413
    %v1922 = vunpack.c.h.b16 %v413
    %v1923 = vunpack.c.l.b16 %v414
    %v1924 = vunpack.c.h.b16 %v414
    %v1925 = vunpack.c.l.b16 %v415
    %v1926 = vunpack.c.h.b16 %v415
    %v1927 = vunpack.c.l.b16 %v416
    %v1928 = vunpack.c.h.b16 %v416
    %v1929 = vunpack.c.l.b16 %v417
    %v1930 = vunpack.c.h.b16 %v417
    %v1931 = vunpack.c.l.b16 %v418
    %v1932 = vunpack.c.h.b16 %v418
    %v1933 = vunpack.c.l.b16 %v419
    %v1934 = vunpack.c.h.b16 %v419
    %v1935 = vunpack.c.l.b16 %v420
    %v1936 = vunpack.c.h.b16 %v420
    %v1937 = vunpack.c.l.b16 %v421
    %v1938 = vunpack.c.h.b16 %v421
    %v1939 = vunpack.c.l.b16 %v422
    %v1940 = vunpack.c.h.b16 %v422
    %v1941 = vunpack.c.l.b16 %v423
    %v1942 = vunpack.c.h.b16 %v423
    %v1943 = vunpack.c.l.b16 %v424
    %v1944 = vunpack.c.h.b16 %v424
    %v1945 = vunpack.c.l.b16 %v425
    %v1946 = vunpack.c.h.b16 %v425
    %v1947 = vunpack.c.l.b16 %v426
    %v1948 = vunpack.c.h.b16 %v426
    %v1949 = vunpack.c.l.b16 %v427
    %v1950 = vunpack.c.h.b16 %v427
    %v1951 = vunpack.c.l.b16 %v428
    %v1952 = vunpack.c.h.b16 %v428
    %v1953 = vunpack.c.l.b16 %v429
    %v1954 = vunpack.c.h.b16 %v429
    %v1955 = vunpack.c.l.b16 %v430
    %v1956 = vunpack.c.h.b16 %v430
    %v1957 = vunpack.c.l.b16 %v431
    %v1958 = vunpack.c.h.b16 %v431
    %v1959 = vunpack.c.l.b16 %v432
    %v1960 = vunpack.c.h.b16 %v432
    %v1961 = vunpack.c.l.b16 %v433
    %v1962 = vunpack.c.h.b16 %v433
    %v1963 = vunpack.c.l.b16 %v434
    %v1964 = vunpack.c.h.b16 %v434
    %v1965 = vunpack.c.l.b16 %v435
    %v1966 = vunpack.c.h.b16 %v435
    %v1967 = vunpack.c.l.b16 %v436
    %v1968 = vunpack.c.h.b16 %v436
    %v1969 = vunpack.c.l.b16 %v437
    %v1970 = vunpack.c.h.b16 %v437
    %v1971 = vunpack.c.l.b16 %v438
    %v1972 = vunpack.c.h.b16 %v438
    %v1973 = vunpack.c.l.b16 %v439
    %v1974 = vunpack.c.h.b16 %v439
    %v1975 = vunpack.c.l.b16 %v440
    %v1976 = vunpack.c.h.b16 %v440
    %v1977 = vunpack.c.l.b16 %v441
    %v1978 = vunpack.c.h.b16 %v441
    %v1979 = vunpack.c.l.b16 %v442
    %v1980 = vunpack.c.h.b16 %v442
    %v1981 = vunpack.c.l.b16 %v443
    %v1982 = vunpack.c.h.b16 %v443
    %v1983 = vunpack.c.l.b16 %v444
    %v1984 = vunpack.c.h.b16 %v444
    %v1985 = vunpack.c.l.b16 %v445
    %v1986 = vunpack.c.h.b16 %v445
    %v1987 = vunpack.c.l.b16 %v446
    %v1988 = vunpack.c.h.b16 %v446
    %v1989 = vunpack.c.l.b16 %v447
    %v1990 = vunpack.c.h.b16 %v447
    %v1991 = vunpack.c.l.b16 %v448
    %v1992 = vunpack.c.h.b16 %v448
    %v1993 = vunpack.c.l.b16 %v449
    %v1994 = vunpack.c.h.b16 %v449
    %v1995 = vunpack.c.l.b16 %v450
    %v1996 = vunpack.c.h.b16 %v450
    %v1997 = vunpack.c.l.b16 %v451
    %v1998 = vunpack.c.h.b16 %v451
    %v1999 = vunpack.c.l.b16 %v452
    %v2000 = vunpack.c.h.b16 %v452
    %v2001 = vunpack.c.l.b16 %v453
    %v2002 = vunpack.c.h.b16 %v453
    %v2003 = vunpack.c.l.b16 %v454
    %v2004 = vunpack.c.h.b16 %v454
    %v2005 = vunpack.c.l.b16 %v455
    %v2006 = vunpack.c.h.b16 %v455
    %v2007 = vunpack.c.l.b16 %v456
    %v2008 = vunpack.c.h.b16 %v456
    %v2009 = vunpack.c.l.b16 %v457
    %v2010 = vunpack.c.h.b16 %v457
    %v2011 = vunpack.c.l.b16 %v458
    %v2012 = vunpack.c.h.b16 %v458
    %v2013 = vunpack.c.l.b16 %v459
    %v2014 = vunpack.c.h.b16 %v459
    %v2015 = vunpack.c.l.b16 %v460
    %v2016 = vunpack.c.h.b16 %v460
    %v2017 = vunpack.c.l.b16 %v461
    %v2018 = vunpack.c.h.b16 %v461
    %v2019 = vunpack.c.l.b16 %v462
    %v2020 = vunpack.c.h.b16 %v462
    %v2021 = vunpack.c.l.b16 %v463
    %v2022 = vunpack.c.h.b16 %v463
    %v2023 = vunpack.c.l.b16 %v464
    %v2024 = vunpack.c.h.b16 %v464
    %v2025 = vunpack.c.l.b16 %v465
    %v2026 = vunpack.c.h.b16 %v465
    %v2027 = vunpack.c.l.b16 %v466
    %v2028 = vunpack.c.h.b16 %v466
    %v2029 = vunpack.c.l.b16 %v467
    %v2030 = vunpack.c.h.b16 %v467
    %v2031 = vunpack.c.l.b16 %v468
    %v2032 = vunpack.c.h.b16 %v468
    %v2033 = vunpack.c.l.b16 %v469
    %v2034 = vunpack.c.h.b16 %v469
    %v2035 = vunpack.c.l.b16 %v470
    %v2036 = vunpack.c.h.b16 %v470
    %v2037 = vunpack.c.l.b16 %v471
    %v2038 = vunpack.c.h.b16 %v471
    %v2039 = vunpack.c.l.b16 %v472
    %v2040 = vunpack.c.h.b16 %v472
    %v2041 = vunpack.c.l.b16 %v473
    %v2042 = vunpack.c.h.b16 %v473
    %v2043 = vunpack.c.l.b16 %v474
    %v2044 = vunpack.c.h.b16 %v474
    %v2045 = vunpack.c.l.b16 %v475
    %v2046 = vunpack.c.h.b16 %v475
    %v2047 = vunpack.c.l.b16 %v476
    %v2048 = vunpack.c.h.b16 %v476
    %v2049 = vunpack.c.l.b16 %v477
    %v2050 = vunpack.c.h.b16 %v477
    %v2051 = vunpack.c.l.b16 %v478
    %v2052 = vunpack.c.h.b16 %v478
    %v2053 = vunpack.c.l.b16 %v479
    %v2054 = vunpack.c.h.b16 %v479
    %v2055 = vunpack.c.l.b16 %v480
    %v2056 = vunpack.c.h.b16 %v480
    %v2057 = vunpack.c.l.b16 %v481
    %v2058 = vunpack.c.h.b16 %v481
    %v2059 = vunpack.c.l.b16 %v482
    %v2060 = vunpack.c.h.b16 %v482
    %v2061 = vunpack.c.l.b16 %v483
    %v2062 = vunpack.c.h.b16 %v483
    %v2063 = vunpack.c.l.b16 %v484
    %v2064 = vunpack.c.h.b16 %v484
    %v2065 = vunpack.c.l.b16 %v485
    %v2066 = vunpack.c.h.b16 %v485
    %v2067 = vunpack.c.l.b16 %v486
    %v2068 = vunpack.c.h.b16 %v486
    %v2069 = vunpack.c.l.b16 %v487
    %v2070 = vunpack.c.h.b16 %v487
    %v2071 = vunpack.c.l.b16 %v488
    %v2072 = vunpack.c.h.b16 %v488
    %v2073 = vunpack.c.l.b16 %v489
    %v2074 = vunpack.c.h.b16 %v489
    %v2075 = vunpack.c.l.b16 %v490
    %v2076 = vunpack.c.h.b16 %v490
    %v2077 = vunpack.c.l.b16 %v491
    %v2078 = vunpack.c.h.b16 %v491
    %v2079 = vunpack.c.l.b16 %v492
    %v2080 = vunpack.c.h.b16 %v492
    %v2081 = vunpack.c.l.b16 %v493
    %v2082 = vunpack.c.h.b16 %v493
    %v2083 = vunpack.c.l.b16 %v494
    %v2084 = vunpack.c.h.b16 %v494
    %v2085 = vunpack.c.l.b16 %v495
    %v2086 = vunpack.c.h.b16 %v495
    %v2087 = vunpack.c.l.b16 %v496
    %v2088 = vunpack.c.h.b16 %v496
    %v2089 = vunpack.c.l.b16 %v497
    %v2090 = vunpack.c.h.b16 %v497
    %v2091 = vunpack.c.l.b16 %v498
    %v2092 = vunpack.c.h.b16 %v498
    %v2093 = vunpack.c.l.b16 %v499
    %v2094 = vunpack.c.h.b16 %v499
    %v2095 = vunpack.c.l.b16 %v500
    %v2096 = vunpack.c.h.b16 %v500
    %v2097 = vunpack.c.l.b16 %v501
    %v2098 = vunpack.c.h.b16 %v501
    %v2099 = vunpack.c.l.b16 %v502
    %v2100 = vunpack.c.h.b16 %v502
    %v2101 = vunpack.c.l.b16 %v503
    %v2102 = vunpack.c.h.b16 %v503
    %v2103 = vunpack.c.l.b16 %v504
    %v2104 = vunpack.c.h.b16 %v504
    %v2105 = vunpack.c.l.b16 %v505
    %v2106 = vunpack.c.h.b16 %v505
    %v2107 = vunpack.c.l.b16 %v506
    %v2108 = vunpack.c.h.b16 %v506
    %v2109 = vunpack.c.l.b16 %v507
    %v2110 = vunpack.c.h.b16 %v507
    %v2111 = vunpack.c.l.b16 %v508
    %v2112 = vunpack.c.h.b16 %v508
    %v2113 = vunpack.c.l.b16 %v509
    %v2114 = vunpack.c.h.b16 %v509
    %v2115 = vunpack.c.l.b16 %v510
    %v2116 = vunpack.c.h.b16 %v510
    %v2117 = vunpack.c.l.b16 %v511
    %v2118 = vunpack.c.h.b16 %v511
    %v2119 = vunpack.c.l.b16 %v512
    %v2120 = vunpack.c.h.b16 %v512
    %v2121 = vunpack.c.l.b16 %v513
    %v2122 = vunpack.c.h.b16 %v513
    %v2123 = vunpack.c.l.b16 %v514
    %v2124 = vunpack.c.h.b16 %v514
    %v2125 = vunpack.c.l.b16 %v515
    %v2126 = vunpack.c.h.b16 %v515
    %v2127 = vunpack.c.l.b16 %v516
    %v2128 = vunpack.c.h.b16 %v516
    %v2129 = vunpack.c.l.b16 %v517
    %v2130 = vunpack.c.h.b16 %v517
    %v2131 = vunpack.c.l.b16 %v518
    %v2132 = vunpack.c.h.b16 %v518
    %v2133 = vunpack.c.l.b16 %v519
    %v2134 = vunpack.c.h.b16 %v519
    %v2135 = vunpack.c.l.b16 %v520
    %v2136 = vunpack.c.h.b16 %v520
    %v2137 = vunpack.c.l.b16 %v521
    %v2138 = vunpack.c.h.b16 %v521
    %v2139 = vunpack.c.l.b16 %v522
    %v2140 = vunpack.c.h.b16 %v522
    %v2141 = vunpack.c.l.b16 %v523
    %v2142 = vunpack.c.h.b16 %v523
    %v2143 = vunpack.c.l.b16 %v524
    %v2144 = vunpack.c.h.b16 %v524
    %v2145 = vunpack.c.l.b16 %v525
    %v2146 = vunpack.c.h.b16 %v525
    %v2147 = vunpack.c.l.b16 %v526
    %v2148 = vunpack.c.h.b16 %v526
    %v2149 = vunpack.c.l.b16 %v527
    %v2150 = vunpack.c.h.b16 %v527
    %v2151 = vunpack.c.l.b16 %v528
    %v2152 = vunpack.c.h.b16 %v528
    %v2153 = vunpack.c.l.b16 %v529
    %v2154 = vunpack.c.h.b16 %v529
    %v2155 = vunpack.c.l.b16 %v530
    %v2156 = vunpack.c.h.b16 %v530
    %v2157 = vunpack.c.l.b16 %v531
    %v2158 = vunpack.c.h.b16 %v531
    %v2159 = vunpack.c.l.b16 %v532
    %v2160 = vunpack.c.h.b16 %v532
    %v2161 = vunpack.c.l.b16 %v533
    %v2162 = vunpack.c.h.b16 %v533
    %v2163 = vunpack.c.l.b16 %v534
    %v2164 = vunpack.c.h.b16 %v534
    %v2165 = vunpack.c.l.b16 %v535
    %v2166 = vunpack.c.h.b16 %v535
    %v2167 = vunpack.c.l.b16 %v536
    %v2168 = vunpack.c.h.b16 %v536
    %v2169 = vunpack.c.l.b16 %v537
    %v2170 = vunpack.c.h.b16 %v537
    %v2171 = vunpack.c.l.b16 %v538
    %v2172 = vunpack.c.h.b16 %v538
    %v2173 = vunpack.c.l.b16 %v539
    %v2174 = vunpack.c.h.b16 %v539
    %v2175 = vunpack.c.l.b16 %v540
    %v2176 = vunpack.c.h.b16 %v540
    %v2177 = vpack.c.b16 %v1161, %v1153
    %v2178 = vpack.c.b16 %v1162, %v1154
    %v2179 = vpack.c.b16 %v1163, %v1155
    %v2180 = vpack.c.b16 %v1164, %v1156
    %v2181 = vpack.c.b16 %v1165, %v1157
    %v2182 = vpack.c.b16 %v1166, %v1158
    %v2183 = vpack.c.b16 %v1167, %v1159
    %v2184 = vpack.c.b16 %v1168, %v1160
    %v2185 = vpack.c.b16 %v1177, %v1169
    %v2186 = vpack.c.b16 %v1178, %v1170
    %v2187 = vpack.c.b16 %v1179, %v1171
    %v2188 = vpack.c.b16 %v1180, %v1172
    %v2189 = vpack.c.b16 %v1181, %v1173
    %v2190 = vpack.c.b16 %v1182, %v1174
    %v2191 = vpack.c.b16 %v1183, %v1175
    %v2192 = vpack.c.b16 %v1184, %v1176
    %v2193 = vpack.c.b16 %v1193, %v1185
    %v2194 = vpack.c.b16 %v1194, %v1186
    %v2195 = vpack.c.b16 %v1195, %v1187
    %v2196 = vpack.c.b16 %v1196, %v1188
    %v2197 = vpack.c.b16 %v1197, %v1189
    %v2198 = vpack.c.b16 %v1198, %v1190
    %v2199 = vpack.c.b16 %v1199, %v1191
    %v2200 = vpack.c.b16 %v1200, %v1192
    %v2201 = vpack.c.b16 %v1209, %v1201
    %v2202 = vpack.c.b16 %v1210, %v1202
    %v2203 = vpack.c.b16 %v1211, %v1203
    %v2204 = vpack.c.b16 %v1212, %v1204
    %v2205 = vpack.c.b16 %v1213, %v1205
    %v2206 = vpack.c.b16 %v1214, %v1206
    %v2207 = vpack.c.b16 %v1215, %v1207
    %v2208 = vpack.c.b16 %v1216, %v1208
    %v2209 = vpack.c.b16 %v1225, %v1217
    %v2210 = vpack.c.b16 %v1226, %v1218
    %v2211 = vpack.c.b16 %v1227, %v1219
    %v2212 = vpack.c.b16 %v1228, %v1220
    %v2213 = vpack.c.b16 %v1229, %v1221
    %v2214 = vpack.c.b16 %v1230, %v1222
    %v2215 = vpack.c.b16 %v1231, %v1223
    %v2216 = vpack.c.b16 %v1232, %v1224
    %v2217 = vpack.c.b16 %v1241, %v1233
    %v2218 = vpack.c.b16 %v1242, %v1234
    %v2219 = vpack.c.b16 %v1243, %v1235
    %v2220 = vpack.c.b16 %v1244, %v1236
    %v2221 = vpack.c.b16 %v1245, %v1237
    %v2222 = vpack.c.b16 %v1246, %v1238
    %v2223 = vpack.c.b16 %v1247, %v1239
    %v2224 = vpack.c.b16 %v1248, %v1240
    %v2225 = vpack.c.b16 %v1257, %v1249
    %v2226 = vpack.c.b16 %v1258, %v1250
    %v2227 = vpack.c.b16 %v1259, %v1251
    %v2228 = vpack.c.b16 %v1260, %v1252
    %v2229 = vpack.c.b16 %v1261, %v1253
    %v2230 = vpack.c.b16 %v1262, %v1254
    %v2231 = vpack.c.b16 %v1263, %v1255
    %v2232 = vpack.c.b16 %v1264, %v1256
    %v2233 = vpack.c.b16 %v1273, %v1265
    %v2234 = vpack.c.b16 %v1274, %v1266
    %v2235 = vpack.c.b16 %v1275, %v1267
    %v2236 = vpack.c.b16 %v1276, %v1268
    %v2237 = vpack.c.b16 %v1277, %v1269
    %v2238 = vpack.c.b16 %v1278, %v1270
    %v2239 = vpack.c.b16 %v1279, %v1271
    %v2240 = vpack.c.b16 %v1280, %v1272
    %v2241 = vpack.c.b16 %v1289, %v1281
    %v2242 = vpack.c.b16 %v1290, %v1282
    %v2243 = vpack.c.b16 %v1291, %v1283
    %v2244 = vpack.c.b16 %v1292, %v1284
    %v2245 = vpack.c.b16 %v1293, %v1285
    %v2246 = vpack.c.b16 %v1294, %v1286
    %v2247 = vpack.c.b16 %v1295, %v1287
    %v2248 = vpack.c.b16 %v1296, %v1288
    %v2249 = vpack.c.b16 %v1305, %v1297
    %v2250 = vpack.c.b16 %v1306, %v1298
    %v2251 = vpack.c.b16 %v1307, %v1299
    %v2252 = vpack.c.b16 %v1308, %v1300
    %v2253 = vpack.c.b16 %v1309, %v1301
    %v2254 = vpack.c.b16 %v1310, %v1302
    %v2255 = vpack.c.b16 %v1311, %v1303
    %v2256 = vpack.c.b16 %v1312, %v1304
    %v2257 = vpack.c.b16 %v1321, %v1313
    %v2258 = vpack.c.b16 %v1322, %v1314
    %v2259 = vpack.c.b16 %v1323, %v1315
    %v2260 = vpack.c.b16 %v1324, %v1316
    %v2261 = vpack.c.b16 %v1325, %v1317
    %v2262 = vpack.c.b16 %v1326, %v1318
    %v2263 = vpack.c.b16 %v1327, %v1319
    %v2264 = vpack.c.b16 %v1328, %v1320
    %v2265 = vpack.c.b16 %v1337, %v1329
    %v2266 = vpack.c.b16 %v1338, %v1330
    %v2267 = vpack.c.b16 %v1339, %v1331
    %v2268 = vpack.c.b16 %v1340, %v1332
    %v2269 = vpack.c.b16 %v1341, %v1333
    %v2270 = vpack.c.b16 %v1342, %v1334
    %v2271 = vpack.c.b16 %v1343, %v1335
    %v2272 = vpack.c.b16 %v1344, %v1336
    %v2273 = vpack.c.b16 %v1353, %v1345
    %v2274 = vpack.c.b16 %v1354, %v1346
    %v2275 = vpack.c.b16 %v1355, %v1347
    %v2276 = vpack.c.b16 %v1356, %v1348
    %v2277 = vpack.c.b16 %v1357, %v1349
    %v2278 = vpack.c.b16 %v1358, %v1350
    %v2279 = vpack.c.b16 %v1359, %v1351
    %v2280 = vpack.c.b16 %v1360, %v1352
    %v2281 = vpack.c.b16 %v1369, %v1361
    %v2282 = vpack.c.b16 %v1370, %v1362
    %v2283 = vpack.c.b16 %v1371, %v1363
    %v2284 = vpack.c.b16 %v1372, %v1364
    %v2285 = vpack.c.b16 %v1373, %v1365
    %v2286 = vpack.c.b16 %v1374, %v1366
    %v2287 = vpack.c.b16 %v1375, %v1367
    %v2288 = vpack.c.b16 %v1376, %v1368
    %v2289 = vpack.c.b16 %v1385, %v1377
    %v2290 = vpack.c.b16 %v1386, %v1378
    %v2291 = vpack.c.b16 %v1387, %v1379
    %v2292 = vpack.c.b16 %v1388, %v1380
    %v2293 = vpack.c.b16 %v1389, %v1381
    %v2294 = vpack.c.b16 %v1390, %v1382
    %v2295 = vpack.c.b16 %v1391, %v1383
    %v2296 = vpack.c.b16 %v1392, %v1384
    %v2297 = vpack.c.b16 %v1401, %v1393
    %v2298 = vpack.c.b16 %v1402, %v1394
    %v2299 = vpack.c.b16 %v1403, %v1395
    %v2300 = vpack.c.b16 %v1404, %v1396
    %v2301 = vpack.c.b16 %v1405, %v1397
    %v2302 = vpack.c.b16 %v1406, %v1398
    %v2303 = vpack.c.b16 %v1407, %v1399
    %v2304 = vpack.c.b16 %v1408, %v1400
    %v2305 = vpack.c.b16 %v1417, %v1409
    %v2306 = vpack.c.b16 %v1418, %v1410
    %v2307 = vpack.c.b16 %v1419, %v1411
    %v2308 = vpack.c.b16 %v1420, %v1412
    %v2309 = vpack.c.b16 %v1421, %v1413
    %v2310 = vpack.c.b16 %v1422, %v1414
    %v2311 = vpack.c.b16 %v1423, %v1415
    %v2312 = vpack.c.b16 %v1424, %v1416
    %v2313 = vpack.c.b16 %v1433, %v1425
    %v2314 = vpack.c.b16 %v1434, %v1426
    %v2315 = vpack.c.b16 %v1435, %v1427
    %v2316 = vpack.c.b16 %v1436, %v1428
    %v2317 = vpack.c.b16 %v1437, %v1429
    %v2318 = vpack.c.b16 %v1438, %v1430
    %v2319 = vpack.c.b16 %v1439, %v1431
    %v2320 = vpack.c.b16 %v1440, %v1432
    %v2321 = vpack.c.b16 %v1449, %v1441
    %v2322 = vpack.c.b16 %v1450, %v1442
    %v2323 = vpack.c.b16 %v1451, %v1443
    %v2324 = vpack.c.b16 %v1452, %v1444
    %v2325 = vpack.c.b16 %v1453, %v1445
    %v2326 = vpack.c.b16 %v1454, %v1446
    %v2327 = vpack.c.b16 %v1455, %v1447
    %v2328 = vpack.c.b16 %v1456, %v1448
    %v2329 = vpack.c.b16 %v1465, %v1457
    %v2330 = vpack.c.b16 %v1466, %v1458
    %v2331 = vpack.c.b16 %v1467, %v1459
    %v2332 = vpack.c.b16 %v1468, %v1460
    %v2333 = vpack.c.b16 %v1469, %v1461
    %v2334 = vpack.c.b16 %v1470, %v1462
    %v2335 = vpack.c.b16 %v1471, %v1463
    %v2336 = vpack.c.b16 %v1472, %v1464
    %v2337 = vpack.c.b16 %v1481, %v1473
    %v2338 = vpack.c.b16 %v1482, %v1474
    %v2339 = vpack.c.b16 %v1483, %v1475
    %v2340 = vpack.c.b16 %v1484, %v1476
    %v2341 = vpack.c.b16 %v1485, %v1477
    %v2342 = vpack.c.b16 %v1486, %v1478
    %v2343 = vpack.c.b16 %v1487, %v1479
    %v2344 = vpack.c.b16 %v1488, %v1480
    %v2345 = vpack.c.b16 %v1497, %v1489
    %v2346 = vpack.c.b16 %v1498, %v1490
    %v2347 = vpack.c.b16 %v1499, %v1491
    %v2348 = vpack.c.b16 %v1500, %v1492
    %v2349 = vpack.c.b16 %v1501, %v1493
    %v2350 = vpack.c.b16 %v1502, %v1494
    %v2351 = vpack.c.b16 %v1503, %v1495
    %v2352 = vpack.c.b16 %v1504, %v1496
    %v2353 = vpack.c.b16 %v1513, %v1505
    %v2354 = vpack.c.b16 %v1514, %v1506
    %v2355 = vpack.c.b16 %v1515, %v1507
    %v2356 = vpack.c.b16 %v1516, %v1508
    %v2357 = vpack.c.b16 %v1517, %v1509
    %v2358 = vpack.c.b16 %v1518, %v1510
    %v2359 = vpack.c.b16 %v1519, %v1511
    %v2360 = vpack.c.b16 %v1520, %v1512
    %v2361 = vpack.c.b16 %v1529, %v1521
    %v2362 = vpack.c.b16 %v1530, %v1522
    %v2363 = vpack.c.b16 %v1531, %v1523
    %v2364 = vpack.c.b16 %v1532, %v1524
    %v2365 = vpack.c.b16 %v1533, %v1525
    %v2366 = vpack.c.b16 %v1534, %v1526
    %v2367 = vpack.c.b16 %v1535, %v1527
    %v2368 = vpack.c.b16 %v1536, %v1528
    %v2369 = vpack.c.b16 %v1545, %v1537
    %v2370 = vpack.c.b16 %v1546, %v1538
    %v2371 = vpack.c.b16 %v1547, %v1539
    %v2372 = vpack.c.b16 %v1548, %v1540
    %v2373 = vpack.c.b16 %v1549, %v1541
    %v2374 = vpack.c.b16 %v1550, %v1542
    %v2375 = vpack.c.b16 %v1551, %v1543
    %v2376 = vpack.c.b16 %v1552, %v1544
    %v2377 = vpack.c.b16 %v1561, %v1553
    %v2378 = vpack.c.b16 %v1562, %v1554
    %v2379 = vpack.c.b16 %v1563, %v1555
    %v2380 = vpack.c.b16 %v1564, %v1556
    %v2381 = vpack.c.b16 %v1565, %v1557
    %v2382 = vpack.c.b16 %v1566, %v1558
    %v2383 = vpack.c.b16 %v1567, %v1559
    %v2384 = vpack.c.b16 %v1568, %v1560
    %v2385 = vpack.c.b16 %v1577, %v1569
    %v2386 = vpack.c.b16 %v1578, %v1570
    %v2387 = vpack.c.b16 %v1579, %v1571
    %v2388 = vpack.c.b16 %v1580, %v1572
    %v2389 = vpack.c.b16 %v1581, %v1573
    %v2390 = vpack.c.b16 %v1582, %v1574
    %v2391 = vpack.c.b16 %v1583, %v1575
    %v2392 = vpack.c.b16 %v1584, %v1576
    %v2393 = vpack.c.b16 %v1593, %v1585
    %v2394 = vpack.c.b16 %v1594, %v1586
    %v2395 = vpack.c.b16 %v1595, %v1587
    %v2396 = vpack.c.b16 %v1596, %v1588
    %v2397 = vpack.c.b16 %v1597, %v1589
    %v2398 = vpack.c.b16 %v1598, %v1590
    %v2399 = vpack.c.b16 %v1599, %v1591
    %v2400 = vpack.c.b16 %v1600, %v1592
    %v2401 = vpack.c.b16 %v1609, %v1601
    %v2402 = vpack.c.b16 %v1610, %v1602
    %v2403 = vpack.c.b16 %v1611, %v1603
    %v2404 = vpack.c.b16 %v1612, %v1604
    %v2405 = vpack.c.b16 %v1613, %v1605
    %v2406 = vpack.c.b16 %v1614, %v1606
    %v2407 = vpack.c.b16 %v1615, %v1607
    %v2408 = vpack.c.b16 %v1616, %v1608
    %v2409 = vpack.c.b16 %v1625, %v1617
    %v2410 = vpack.c.b16 %v1626, %v1618
    %v2411 = vpack.c.b16 %v1627, %v1619
    %v2412 = vpack.c.b16 %v1628, %v1620
    %v2413 = vpack.c.b16 %v1629, %v1621
    %v2414 = vpack.c.b16 %v1630, %v1622
    %v2415 = vpack.c.b16 %v1631, %v1623
    %v2416 = vpack.c.b16 %v1632, %v1624
    %v2417 = vpack.c.b16 %v1641, %v1633
    %v2418 = vpack.c.b16 %v1642, %v1634
    %v2419 = vpack.c.b16 %v1643, %v1635
    %v2420 = vpack.c.b16 %v1644, %v1636
    %v2421 = vpack.c.b16 %v1645, %v1637
    %v2422 = vpack.c.b16 %v1646, %v1638
    %v2423 = vpack.c.b16 %v1647, %v1639
    %v2424 = vpack.c.b16 %v1648, %v1640
    %v2425 = vpack.c.b16 %v1657, %v1649
    %v2426 = vpack.c.b16 %v1658, %v1650
    %v2427 = vpack.c.b16 %v1659, %v1651
    %v2428 = vpack.c.b16 %v1660, %v1652
    %v2429 = vpack.c.b16 %v1661, %v1653
    %v2430 = vpack.c.b16 %v1662, %v1654
    %v2431 = vpack.c.b16 %v1663, %v1655
    %v2432 = vpack.c.b16 %v1664, %v1656
    %v2433 = vpack.c.b16 %v1673, %v1665
    %v2434 = vpack.c.b16 %v1674, %v1666
    %v2435 = vpack.c.b16 %v1675, %v1667
    %v2436 = vpack.c.b16 %v1676, %v1668
    %v2437 = vpack.c.b16 %v1677, %v1669
    %v2438 = vpack.c.b16 %v1678, %v1670
    %v2439 = vpack.c.b16 %v1679, %v1671
    %v2440 = vpack.c.b16 %v1680, %v1672
    %v2441 = vpack.c.b16 %v1689, %v1681
    %v2442 = vpack.c.b16 %v1690, %v1682
    %v2443 = vpack.c.b16 %v1691, %v1683
    %v2444 = vpack.c.b16 %v1692, %v1684
    %v2445 = vpack.c.b16 %v1693, %v1685
    %v2446 = vpack.c.b16 %v1694, %v1686
    %v2447 = vpack.c.b16 %v1695, %v1687
    %v2448 = vpack.c.b16 %v1696, %v1688
    %v2449 = vpack.c.b16 %v1705, %v1697
    %v2450 = vpack.c.b16 %v1706, %v1698
    %v2451 = vpack.c.b16 %v1707, %v1699
    %v2452 = vpack.c.b16 %v1708, %v1700
    %v2453 = vpack.c.b16 %v1709, %v1701
    %v2454 = vpack.c.b16 %v1710, %v1702
    %v2455 = vpack.c.b16 %v1711, %v1703
    %v2456 = vpack.c.b16 %v1712, %v1704
    %v2457 = vpack.c.b16 %v1721, %v1713
    %v2458 = vpack.c.b16 %v1722, %v1714
    %v2459 = vpack.c.b16 %v1723, %v1715
    %v2460 = vpack.c.b16 %v1724, %v1716
    %v2461 = vpack.c.b16 %v1725, %v1717
    %v2462 = vpack.c.b16 %v1726, %v1718
    %v2463 = vpack.c.b16 %v1727, %v1719
    %v2464 = vpack.c.b16 %v1728, %v1720
    %v2465 = vpack.c.b16 %v1737, %v1729
    %v2466 = vpack.c.b16 %v1738, %v1730
    %v2467 = vpack.c.b16 %v1739, %v1731
    %v2468 = vpack.c.b16 %v1740, %v1732
    %v2469 = vpack.c.b16 %v1741, %v1733
    %v2470 = vpack.c.b16 %v1742, %v1734
    %v2471 = vpack.c.b16 %v1743, %v1735
    %v2472 = vpack.c.b16 %v1744, %v1736
    %v2473 = vpack.c.b16 %v1753, %v1745
    %v2474 = vpack.c.b16 %v1754, %v1746
    %v2475 = vpack.c.b16 %v1755, %v1747
    %v2476 = vpack.c.b16 %v1756, %v1748
    %v2477 = vpack.c.b16 %v1757, %v1749
    %v2478 = vpack.c.b16 %v1758, %v1750
    %v2479 = vpack.c.b16 %v1759, %v1751
    %v2480 = vpack.c.b16 %v1760, %v1752
    %v2481 = vpack.c.b16 %v1769, %v1761
    %v2482 = vpack.c.b16 %v1770, %v1762
    %v2483 = vpack.c.b16 %v1771, %v1763
    %v2484 = vpack.c.b16 %v1772, %v1764
    %v2485 = vpack.c.b16 %v1773, %v1765
    %v2486 = vpack.c.b16 %v1774, %v1766
    %v2487 = vpack.c.b16 %v1775, %v1767
    %v2488 = vpack.c.b16 %v1776, %v1768
    %v2489 = vpack.c.b16 %v1785, %v1777
    %v2490 = vpack.c.b16 %v1786, %v1778
    %v2491 = vpack.c.b16 %v1787, %v1779
    %v2492 = vpack.c.b16 %v1788, %v1780
    %v2493 = vpack.c.b16 %v1789, %v1781
    %v2494 = vpack.c.b16 %v1790, %v1782
    %v2495 = vpack.c.b16 %v1791, %v1783
    %v2496 = vpack.c.b16 %v1792, %v1784
    %v2497 = vpack.c.b16 %v1801, %v1793
    %v2498 = vpack.c.b16 %v1802, %v1794
    %v2499 = vpack.c.b16 %v1803, %v1795
    %v2500 = vpack.c.b16 %v1804, %v1796
    %v2501 = vpack.c.b16 %v1805, %v1797
    %v2502 = vpack.c.b16 %v1806, %v1798
    %v2503 = vpack.c.b16 %v1807, %v1799
    %v2504 = vpack.c.b16 %v1808, %v1800
    %v2505 = vpack.c.b16 %v1817, %v1809
    %v2506 = vpack.c.b16 %v1818, %v1810
    %v2507 = vpack.c.b16 %v1819, %v1811
    %v2508 = vpack.c.b16 %v1820, %v1812
    %v2509 = vpack.c.b16 %v1821, %v1813
    %v2510 = vpack.c.b16 %v1822, %v1814
    %v2511 = vpack.c.b16 %v1823, %v1815
    %v2512 = vpack.c.b16 %v1824, %v1816
    %v2513 = vpack.c.b16 %v1833, %v1825
    %v2514 = vpack.c.b16 %v1834, %v1826
    %v2515 = vpack.c.b16 %v1835, %v1827
    %v2516 = vpack.c.b16 %v1836, %v1828
    %v2517 = vpack.c.b16 %v1837, %v1829
    %v2518 = vpack.c.b16 %v1838, %v1830
    %v2519 = vpack.c.b16 %v1839, %v1831
    %v2520 = vpack.c.b16 %v1840, %v1832
    %v2521 = vpack.c.b16 %v1849, %v1841
    %v2522 = vpack.c.b16 %v1850, %v1842
    %v2523 = vpack.c.b16 %v1851, %v1843
    %v2524 = vpack.c.b16 %v1852, %v1844
    %v2525 = vpack.c.b16 %v1853, %v1845
    %v2526 = vpack.c.b16 %v1854, %v1846
    %v2527 = vpack.c.b16 %v1855, %v1847
    %v2528 = vpack.c.b16 %v1856, %v1848
    %v2529 = vpack.c.b16 %v1865, %v1857
    %v2530 = vpack.c.b16 %v1866, %v1858
    %v2531 = vpack.c.b16 %v1867, %v1859
    %v2532 = vpack.c.b16 %v1868, %v1860
    %v2533 = vpack.c.b16 %v1869, %v1861
    %v2534 = vpack.c.b16 %v1870, %v1862
    %v2535 = vpack.c.b16 %v1871, %v1863
    %v2536 = vpack.c.b16 %v1872, %v1864
    %v2537 = vpack.c.b16 %v1881, %v1873
    %v2538 = vpack.c.b16 %v1882, %v1874
    %v2539 = vpack.c.b16 %v1883, %v1875
    %v2540 = vpack.c.b16 %v1884, %v1876
    %v2541 = vpack.c.b16 %v1885, %v1877
    %v2542 = vpack.c.b16 %v1886, %v1878
    %v2543 = vpack.c.b16 %v1887, %v1879
    %v2544 = vpack.c.b16 %v1888, %v1880
    %v2545 = vpack.c.b16 %v1897, %v1889
    %v2546 = vpack.c.b16 %v1898, %v1890
    %v2547 = vpack.c.b16 %v1899, %v1891
    %v2548 = vpack.c.b16 %v1900, %v1892
    %v2549 = vpack.c.b16 %v1901, %v1893
    %v2550 = vpack.c.b16 %v1902, %v1894
    %v2551 = vpack.c.b16 %v1903, %v1895
    %v2552 = vpack.c.b16 %v1904, %v1896
    %v2553 = vpack.c.b16 %v1913, %v1905
    %v2554 = vpack.c.b16 %v1914, %v1906
    %v2555 = vpack.c.b16 %v1915, %v1907
    %v2556 = vpack.c.b16 %v1916, %v1908
    %v2557 = vpack.c.b16 %v1917, %v1909
    %v2558 = vpack.c.b16 %v1918, %v1910
    %v2559 = vpack.c.b16 %v1919, %v1911
    %v2560 = vpack.c.b16 %v1920, %v1912
    %v2561 = vpack.c.b16 %v1929, %v1921
    %v2562 = vpack.c.b16 %v1930, %v1922
    %v2563 = vpack.c.b16 %v1931, %v1923
    %v2564 = vpack.c.b16 %v1932, %v1924
    %v2565 = vpack.c.b16 %v1933, %v1925
    %v2566 = vpack.c.b16 %v1934, %v1926
    %v2567 = vpack.c.b16 %v1935, %v1927
    %v2568 = vpack.c.b16 %v1936, %v1928
    %v2569 = vpack.c.b16 %v1945, %v1937
    %v2570 = vpack.c.b16 %v1946, %v1938
    %v2571 = vpack.c.b16 %v1947, %v1939
    %v2572 = vpack.c.b16 %v1948, %v1940
    %v2573 = vpack.c.b16 %v1949, %v1941
    %v2574 = vpack.c.b16 %v1950, %v1942
    %v2575 = vpack.c.b16 %v1951, %v1943
    %v2576 = vpack.c.b16 %v1952, %v1944
    %v2577 = vpack.c.b16 %v1961, %v1953
    %v2578 = vpack.c.b16 %v1962, %v1954
    %v2579 = vpack.c.b16 %v1963, %v1955
    %v2580 = vpack.c.b16 %v1964, %v1956
    %v2581 = vpack.c.b16 %v1965, %v1957
    %v2582 = vpack.c.b16 %v1966, %v1958
    %v2583 = vpack.c.b16 %v1967, %v1959
    %v2584 = vpack.c.b16 %v1968, %v1960
    %v2585 = vpack.c.b16 %v1977, %v1969
    %v2586 = vpack.c.b16 %v1978, %v1970
    %v2587 = vpack.c.b16 %v1979, %v1971
    %v2588 = vpack.c.b16 %v1980, %v1972
    %v2589 = vpack.c.b16 %v1981, %v1973
    %v2590 = vpack.c.b16 %v1982, %v1974
    %v2591 = vpack.c.b16 %v1983, %v1975
    %v2592 = vpack.c.b16 %v1984, %v1976
    %v2593 = vpack.c.b16 %v1993, %v1985
    %v2594 = vpack.c.b16 %v1994, %v1986
    %v2595 = vpack.c.b16 %v1995, %v1987
    %v2596 = vpack.c.b16 %v1996, %v1988
    %v2597 = vpack.c.b16 %v1997, %v1989
    %v2598 = vpack.c.b16 %v1998, %v1990
    %v2599 = vpack.c.b16 %v1999, %v1991
    %v2600 = vpack.c.b16 %v2000, %v1992
    %v2601 = vpack.c.b16 %v2009, %v2001
    %v2602 = vpack.c.b16 %v2010, %v2002
    %v2603 = vpack.c.b16 %v2011, %v2003
    %v2604 = vpack.c.b16 %v2012, %v2004
    %v2605 = vpack.c.b16 %v2013, %v2005
    %v2606 = vpack.c.b16 %v2014, %v2006
    %v2607 = vpack.c.b16 %v2015, %v2007
    %v2608 = vpack.c.b16 %v2016, %v2008
    %v2609 = vpack.c.b16 %v2025, %v2017
    %v2610 = vpack.c.b16 %v2026, %v2018
    %v2611 = vpack.c.b16 %v2027, %v2019
    %v2612 = vpack.c.b16 %v2028, %v2020
    %v2613 = vpack.c.b16 %v2029, %v2021
    %v2614 = vpack.c.b16 %v2030, %v2022
    %v2615 = vpack.c.b16 %v2031, %v2023
    %v2616 = vpack.c.b16 %v2032, %v2024
    %v2617 = vpack.c.b16 %v2041, %v2033
    %v2618 = vpack.c.b16 %v2042, %v2034
    %v2619 = vpack.c.b16 %v2043, %v2035
    %v2620 = vpack.c.b16 %v2044, %v2036
    %v2621 = vpack.c.b16 %v2045, %v2037
    %v2622 = vpack.c.b16 %v2046, %v2038
    %v2623 = vpack.c.b16 %v2047, %v2039
    %v2624 = vpack.c.b16 %v2048, %v2040
    %v2625 = vpack.c.b16 %v2057, %v2049
    %v2626 = vpack.c.b16 %v2058, %v2050
    %v2627 = vpack.c.b16 %v2059, %v2051
    %v2628 = vpack.c.b16 %v2060, %v2052
    %v2629 = vpack.c.b16 %v2061, %v2053
    %v2630 = vpack.c.b16 %v2062, %v2054
    %v2631 = vpack.c.b16 %v2063, %v2055
    %v2632 = vpack.c.b16 %v2064, %v2056
    %v2633 = vpack.c.b16 %v2073, %v2065
    %v2634 = vpack.c.b16 %v2074, %v2066
    %v2635 = vpack.c.b16 %v2075, %v2067
    %v2636 = vpack.c.b16 %v2076, %v2068
    %v2637 = vpack.c.b16 %v2077, %v2069
    %v2638 = vpack.c.b16 %v2078, %v2070
    %v2639 = vpack.c.b16 %v2079, %v2071
    %v2640 = vpack.c.b16 %v2080, %v2072
    %v2641 = vpack.c.b16 %v2089, %v2081
    %v2642 = vpack.c.b16 %v2090, %v2082
    %v2643 = vpack.c.b16 %v2091, %v2083
    %v2644 = vpack.c.b16 %v2092, %v2084
    %v2645 = vpack.c.b16 %v2093, %v2085
    %v2646 = vpack.c.b16 %v2094, %v2086
    %v2647 = vpack.c.b16 %v2095, %v2087
    %v2648 = vpack.c.b16 %v2096, %v2088
    %v2649 = vpack.c.b16 %v2105, %v2097
    %v2650 = vpack.c.b16 %v2106, %v2098
    %v2651 = vpack.c.b16 %v2107, %v2099
    %v2652 = vpack.c.b16 %v2108, %v2100
    %v2653 = vpack.c.b16 %v2109, %v2101
    %v2654 = vpack.c.b16 %v2110, %v2102
    %v2655 = vpack.c.b16 %v2111, %v2103
    %v2656 = vpack.c.b16 %v2112, %v2104
    %v2657 = vpack.c.b16 %v2121, %v2113
    %v2658 = vpack.c.b16 %v2122, %v2114
    %v2659 = vpack.c.b16 %v2123, %v2115
    %v2660 = vpack.c.b16 %v2124, %v2116
    %v2661 = vpack.c.b16 %v2125, %v2117
    %v2662 = vpack.c.b16 %v2126, %v2118
    %v2663 = vpack.c.b16 %v2127, %v2119
    %v2664 = vpack.c.b16 %v2128, %v2120
    %v2665 = vpack.c.b16 %v2137, %v2129
    %v2666 = vpack.c.b16 %v2138, %v2130
    %v2667 = vpack.c.b16 %v2139, %v2131
    %v2668 = vpack.c.b16 %v2140, %v2132
    %v2669 = vpack.c.b16 %v2141, %v2133
    %v2670 = vpack.c.b16 %v2142, %v2134
    %v2671 = vpack.c.b16 %v2143, %v2135
    %v2672 = vpack.c.b16 %v2144, %v2136
    %v2673 = vpack.c.b16 %v2153, %v2145
    %v2674 = vpack.c.b16 %v2154, %v2146
    %v2675 = vpack.c.b16 %v2155, %v2147
    %v2676 = vpack.c.b16 %v2156, %v2148
    %v2677 = vpack.c.b16 %v2157, %v2149
    %v2678 = vpack.c.b16 %v2158, %v2150
    %v2679 = vpack.c.b16 %v2159, %v2151
    %v2680 = vpack.c.b16 %v2160, %v2152
    %v2681 = vpack.c.b16 %v2169, %v2161
    %v2682 = vpack.c.b16 %v2170, %v2162
    %v2683 = vpack.c.b16 %v2171, %v2163
    %v2684 = vpack.c.b16 %v2172, %v2164
    %v2685 = vpack.c.b16 %v2173, %v2165
    %v2686 = vpack.c.b16 %v2174, %v2166
    %v2687 = vpack.c.b16 %v2175, %v2167
    %v2688 = vpack.c.b16 %v2176, %v2168
    %3201 = vmatprep.subr.bf16.mxu0 %v2178
    %3202 = vmatpush1.bf16.msra.mxu0 %v2177
    %3203 = vmatprep.subr.bf16.mxu0 %v2186
    %3204 = vmatpush1.bf16.msra.mxu0 %v2185
    %3205 = vmatprep.subr.bf16.mxu0 %v2194
    %3206 = vmatpush1.bf16.msra.mxu0 %v2193
    %3207 = vmatprep.subr.bf16.mxu0 %v2202
    %3208 = vmatpush1.bf16.msra.mxu0 %v2201
    %3209 = vmatprep.subr.bf16.mxu0 %v2210
    %3210 = vmatpush1.bf16.msra.mxu0 %v2209
    %3211 = vmatprep.subr.bf16.mxu0 %v2218
    %3212 = vmatpush1.bf16.msra.mxu0 %v2217
    %3213 = vmatprep.subr.bf16.mxu0 %v2226
    %3214 = vmatpush1.bf16.msra.mxu0 %v2225
    %3215 = vmatprep.subr.bf16.mxu0 %v2234
    %3216 = vmatpush1.bf16.msra.mxu0 %v2233
    %3217 = vmatprep.subr.bf16.mxu0 %v2242
    %3218 = vmatpush1.bf16.msra.mxu0 %v2241
    %3219 = vmatprep.subr.bf16.mxu0 %v2250
    %3220 = vmatpush1.bf16.msra.mxu0 %v2249
    %3221 = vmatprep.subr.bf16.mxu0 %v2258
    %3222 = vmatpush1.bf16.msra.mxu0 %v2257
    %3223 = vmatprep.subr.bf16.mxu0 %v2266
    %3224 = vmatpush1.bf16.msra.mxu0 %v2265
    %3225 = vmatprep.subr.bf16.mxu0 %v2274
    %3226 = vmatpush1.bf16.msra.mxu0 %v2273
    %3227 = vmatprep.subr.bf16.mxu0 %v2282
    %3228 = vmatpush1.bf16.msra.mxu0 %v2281
    %3229 = vmatprep.subr.bf16.mxu0 %v2290
    %3230 = vmatpush1.bf16.msra.mxu0 %v2289
    %3231 = vmatprep.subr.bf16.mxu0 %v2298
    %3232 = vmatpush1.bf16.msra.mxu0 %v2297
    %3233 = vmatprep.mubr.bf16.mxu0 %v621
    %3234 = vmatmul.mubr.bf16.gmra.mrb[0].mxu0 %v607
    %v3235 = vpop.f32.mrb[0].mxu0
    %v3236 = vadd.f32 %v546, %v3235
    %v3237 = vpop.f32.mrb[0].mxu0
    %v3238 = vadd.f32 %v550, %v3237
    %v3239 = vpop.f32.mrb[0].mxu0
    %v3240 = vpop.f32.mrb[0].mxu0
    %3241 = vdwg.mxu0
    %3242 = vmatprep.subr.bf16.mxu0 %v2306
    %3243 = vmatpush1.bf16.msra.mxu0 %v2305
    %3244 = vmatprep.subr.bf16.mxu0 %v2314
    %3245 = vmatpush1.bf16.msra.mxu0 %v2313
    %3246 = vmatprep.subr.bf16.mxu0 %v2322
    %3247 = vmatpush1.bf16.msra.mxu0 %v2321
    %3248 = vmatprep.subr.bf16.mxu0 %v2330
    %3249 = vmatpush1.bf16.msra.mxu0 %v2329
    %3250 = vmatprep.subr.bf16.mxu0 %v2338
    %3251 = vmatpush1.bf16.msra.mxu0 %v2337
    %3252 = vmatprep.subr.bf16.mxu0 %v2346
    %3253 = vmatpush1.bf16.msra.mxu0 %v2345
    %3254 = vmatprep.subr.bf16.mxu0 %v2354
    %3255 = vmatpush1.bf16.msra.mxu0 %v2353
    %3256 = vmatprep.subr.bf16.mxu0 %v2362
    %3257 = vmatpush1.bf16.msra.mxu0 %v2361
    %3258 = vmatprep.subr.bf16.mxu0 %v2370
    %3259 = vmatpush1.bf16.msra.mxu0 %v2369
    %3260 = vmatprep.subr.bf16.mxu0 %v2378
    %3261 = vmatpush1.bf16.msra.mxu0 %v2377
    %3262 = vmatprep.subr.bf16.mxu0 %v2386
    %3263 = vmatpush1.bf16.msra.mxu0 %v2385
    %3264 = vmatprep.subr.bf16.mxu0 %v2394
    %3265 = vmatpush1.bf16.msra.mxu0 %v2393
    %3266 = vmatprep.subr.bf16.mxu0 %v2402
    %3267 = vmatpush1.bf16.msra.mxu0 %v2401
    %3268 = vmatprep.subr.bf16.mxu0 %v2410
    %3269 = vmatpush1.bf16.msra.mxu0 %v2409
    %3270 = vmatprep.subr.bf16.mxu0 %v2418
    %3271 = vmatpush1.bf16.msra.mxu0 %v2417
    %3272 = vmatprep.subr.bf16.mxu0 %v2426
    %3273 = vmatpush1.bf16.msra.mxu0 %v2425
    %3274 = vmatprep.mubr.bf16.mxu0 %v631
    %3275 = vmatmul.mubr.bf16.gmra.mrb[0].mxu0 %v629
    %v3276 = vpop.f32.mrb[0].mxu0
    %v3277 = vadd.f32 %v3236, %v3276
    %v3278 = vpop.f32.mrb[0].mxu0
    %v3279 = vadd.f32 %v3238, %v3278
    %v3280 = vpop.f32.mrb[0].mxu0
    %v3281 = vpop.f32.mrb[0].mxu0
    %3282 = vdwg.mxu0
    %3283 = vmatprep.subr.bf16.mxu0 %v2434
    %3284 = vmatpush1.bf16.msra.mxu0 %v2433
    %3285 = vmatprep.subr.bf16.mxu0 %v2442
    %3286 = vmatpush1.bf16.msra.mxu0 %v2441
    %3287 = vmatprep.subr.bf16.mxu0 %v2450
    %3288 = vmatpush1.bf16.msra.mxu0 %v2449
    %3289 = vmatprep.subr.bf16.mxu0 %v2458
    %3290 = vmatpush1.bf16.msra.mxu0 %v2457
    %3291 = vmatprep.subr.bf16.mxu0 %v2466
    %3292 = vmatpush1.bf16.msra.mxu0 %v2465
    %3293 = vmatprep.subr.bf16.mxu0 %v2474
    %3294 = vmatpush1.bf16.msra.mxu0 %v2473
    %3295 = vmatprep.subr.bf16.mxu0 %v2482
    %3296 = vmatpush1.bf16.msra.mxu0 %v2481
    %3297 = vmatprep.subr.bf16.mxu0 %v2490
    %3298 = vmatpush1.bf16.msra.mxu0 %v2489
    %3299 = vmatprep.subr.bf16.mxu0 %v2498
    %3300 = vmatpush1.bf16.msra.mxu0 %v2497
    %3301 = vmatprep.subr.bf16.mxu0 %v2506
    %3302 = vmatpush1.bf16.msra.mxu0 %v2505
    %3303 = vmatprep.subr.bf16.mxu0 %v2514
    %3304 = vmatpush1.bf16.msra.mxu0 %v2513
    %3305 = vmatprep.subr.bf16.mxu0 %v2522
    %3306 = vmatpush1.bf16.msra.mxu0 %v2521
    %3307 = vmatprep.subr.bf16.mxu0 %v2530
    %3308 = vmatpush1.bf16.msra.mxu0 %v2529
    %3309 = vmatprep.subr.bf16.mxu0 %v2538
    %3310 = vmatpush1.bf16.msra.mxu0 %v2537
    %3311 = vmatprep.subr.bf16.mxu0 %v2546
    %3312 = vmatpush1.bf16.msra.mxu0 %v2545
    %3313 = vmatprep.subr.bf16.mxu0 %v2554
    %3314 = vmatpush1.bf16.msra.mxu0 %v2553
    %3315 = vmatprep.mubr.bf16.mxu0 %v628
    %3316 = vmatmul.mubr.bf16.gmra.mrb[0].mxu0 %v614
    %v3317 = vpop.f32.mrb[0].mxu0
    %v3318 = vadd.f32 %v3277, %v3317
    %v3319 = vpop.f32.mrb[0].mxu0
    %v3320 = vadd.f32 %v3279, %v3319
    %v3321 = vpop.f32.mrb[0].mxu0
    %v3322 = vpop.f32.mrb[0].mxu0
    %3323 = vdwg.mxu0
    %3324 = vmatprep.subr.bf16.mxu0 %v2562
    %3325 = vmatpush1.bf16.msra.mxu0 %v2561
    %3326 = vmatprep.subr.bf16.mxu0 %v2570
    %3327 = vmatpush1.bf16.msra.mxu0 %v2569
    %3328 = vmatprep.subr.bf16.mxu0 %v2578
    %3329 = vmatpush1.bf16.msra.mxu0 %v2577
    %3330 = vmatprep.subr.bf16.mxu0 %v2586
    %3331 = vmatpush1.bf16.msra.mxu0 %v2585
    %3332 = vmatprep.subr.bf16.mxu0 %v2594
    %3333 = vmatpush1.bf16.msra.mxu0 %v2593
    %3334 = vmatprep.subr.bf16.mxu0 %v2602
    %3335 = vmatpush1.bf16.msra.mxu0 %v2601
    %3336 = vmatprep.subr.bf16.mxu0 %v2610
    %3337 = vmatpush1.bf16.msra.mxu0 %v2609
    %3338 = vmatprep.subr.bf16.mxu0 %v2618
    %3339 = vmatpush1.bf16.msra.mxu0 %v2617
    %3340 = vmatprep.subr.bf16.mxu0 %v2626
    %3341 = vmatpush1.bf16.msra.mxu0 %v2625
    %3342 = vmatprep.subr.bf16.mxu0 %v2634
    %3343 = vmatpush1.bf16.msra.mxu0 %v2633
    %3344 = vmatprep.subr.bf16.mxu0 %v2642
    %3345 = vmatpush1.bf16.msra.mxu0 %v2641
    %3346 = vmatprep.subr.bf16.mxu0 %v2650
    %3347 = vmatpush1.bf16.msra.mxu0 %v2649
    %3348 = vmatprep.subr.bf16.mxu0 %v2658
    %3349 = vmatpush1.bf16.msra.mxu0 %v2657
    %3350 = vmatprep.subr.bf16.mxu0 %v2666
    %3351 = vmatpush1.bf16.msra.mxu0 %v2665
    %3352 = vmatprep.subr.bf16.mxu0 %v2674
    %3353 = vmatpush1.bf16.msra.mxu0 %v2673
    %3354 = vmatprep.subr.bf16.mxu0 %v2682
    %3355 = vmatpush1.bf16.msra.mxu0 %v2681
    %3356 = vmatprep.mubr.bf16.mxu0 %v632
    %3357 = vmatmul.mubr.bf16.gmra.mrb[0].mxu0 %v630
    %v3358 = vpop.f32.mrb[0].mxu0
    %v3359 = vadd.f32 %v3318, %v3358
    %v3360 = vpop.f32.mrb[0].mxu0
    %v3361 = vadd.f32 %v3320, %v3360
    %v3362 = vpop.f32.mrb[0].mxu0
    %v3363 = vpop.f32.mrb[0].mxu0
    %3364 = vdwg.mxu0
    %3365 = vmatprep.subr.bf16.mxu0 %v2180
    %3366 = vmatpush1.bf16.msra.mxu0 %v2179
    %3367 = vmatprep.subr.bf16.mxu0 %v2188
    %3368 = vmatpush1.bf16.msra.mxu0 %v2187
    %3369 = vmatprep.subr.bf16.mxu0 %v2196
    %3370 = vmatpush1.bf16.msra.mxu0 %v2195
    %3371 = vmatprep.subr.bf16.mxu0 %v2204
    %3372 = vmatpush1.bf16.msra.mxu0 %v2203
    %3373 = vmatprep.subr.bf16.mxu0 %v2212
    %3374 = vmatpush1.bf16.msra.mxu0 %v2211
    %3375 = vmatprep.subr.bf16.mxu0 %v2220
    %3376 = vmatpush1.bf16.msra.mxu0 %v2219
    %3377 = vmatprep.subr.bf16.mxu0 %v2228
    %3378 = vmatpush1.bf16.msra.mxu0 %v2227
    %3379 = vmatprep.subr.bf16.mxu0 %v2236
    %3380 = vmatpush1.bf16.msra.mxu0 %v2235
    %3381 = vmatprep.subr.bf16.mxu0 %v2244
    %3382 = vmatpush1.bf16.msra.mxu0 %v2243
    %3383 = vmatprep.subr.bf16.mxu0 %v2252
    %3384 = vmatpush1.bf16.msra.mxu0 %v2251
    %3385 = vmatprep.subr.bf16.mxu0 %v2260
    %3386 = vmatpush1.bf16.msra.mxu0 %v2259
    %3387 = vmatprep.subr.bf16.mxu0 %v2268
    %3388 = vmatpush1.bf16.msra.mxu0 %v2267
    %3389 = vmatprep.subr.bf16.mxu0 %v2276
    %3390 = vmatpush1.bf16.msra.mxu0 %v2275
    %3391 = vmatprep.subr.bf16.mxu0 %v2284
    %3392 = vmatpush1.bf16.msra.mxu0 %v2283
    %3393 = vmatprep.subr.bf16.mxu0 %v2292
    %3394 = vmatpush1.bf16.msra.mxu0 %v2291
    %3395 = vmatprep.subr.bf16.mxu0 %v2300
    %3396 = vmatpush1.bf16.msra.mxu0 %v2299
    %3397 = vmatprep.mubr.bf16.mxu0 %v621
    %3398 = vmatmul.mubr.bf16.gmra.mrb[0].mxu0 %v607
    %v3399 = vpop.f32.mrb[0].mxu0
    %v3400 = vadd.f32 %v554, %v3399
    %v3401 = vpop.f32.mrb[0].mxu0
    %v3402 = vadd.f32 %v558, %v3401
    %v3403 = vpop.f32.mrb[0].mxu0
    %v3404 = vpop.f32.mrb[0].mxu0
    %3405 = vdwg.mxu0
    %3406 = vmatprep.subr.bf16.mxu0 %v2308
    %3407 = vmatpush1.bf16.msra.mxu0 %v2307
    %3408 = vmatprep.subr.bf16.mxu0 %v2316
    %3409 = vmatpush1.bf16.msra.mxu0 %v2315
    %3410 = vmatprep.subr.bf16.mxu0 %v2324
    %3411 = vmatpush1.bf16.msra.mxu0 %v2323
    %3412 = vmatprep.subr.bf16.mxu0 %v2332
    %3413 = vmatpush1.bf16.msra.mxu0 %v2331
    %3414 = vmatprep.subr.bf16.mxu0 %v2340
    %3415 = vmatpush1.bf16.msra.mxu0 %v2339
    %3416 = vmatprep.subr.bf16.mxu0 %v2348
    %3417 = vmatpush1.bf16.msra.mxu0 %v2347
    %3418 = vmatprep.subr.bf16.mxu0 %v2356
    %3419 = vmatpush1.bf16.msra.mxu0 %v2355
    %3420 = vmatprep.subr.bf16.mxu0 %v2364
    %3421 = vmatpush1.bf16.msra.mxu0 %v2363
    %3422 = vmatprep.subr.bf16.mxu0 %v2372
    %3423 = vmatpush1.bf16.msra.mxu0 %v2371
    %3424 = vmatprep.subr.bf16.mxu0 %v2380
    %3425 = vmatpush1.bf16.msra.mxu0 %v2379
    %3426 = vmatprep.subr.bf16.mxu0 %v2388
    %3427 = vmatpush1.bf16.msra.mxu0 %v2387
    %3428 = vmatprep.subr.bf16.mxu0 %v2396
    %3429 = vmatpush1.bf16.msra.mxu0 %v2395
    %3430 = vmatprep.subr.bf16.mxu0 %v2404
    %3431 = vmatpush1.bf16.msra.mxu0 %v2403
    %3432 = vmatprep.subr.bf16.mxu0 %v2412
    %3433 = vmatpush1.bf16.msra.mxu0 %v2411
    %3434 = vmatprep.subr.bf16.mxu0 %v2420
    %3435 = vmatpush1.bf16.msra.mxu0 %v2419
    %3436 = vmatprep.subr.bf16.mxu0 %v2428
    %3437 = vmatpush1.bf16.msra.mxu0 %v2427
    %3438 = vmatprep.mubr.bf16.mxu0 %v631
    %3439 = vmatmul.mubr.bf16.gmra.mrb[0].mxu0 %v629
    %v3440 = vpop.f32.mrb[0].mxu0
    %v3441 = vadd.f32 %v3400, %v3440
    %v3442 = vpop.f32.mrb[0].mxu0
    %v3443 = vadd.f32 %v3402, %v3442
    %v3444 = vpop.f32.mrb[0].mxu0
    %v3445 = vpop.f32.mrb[0].mxu0
    %3446 = vdwg.mxu0
    %3447 = vmatprep.subr.bf16.mxu0 %v2436
    %3448 = vmatpush1.bf16.msra.mxu0 %v2435
    %3449 = vmatprep.subr.bf16.mxu0 %v2444
    %3450 = vmatpush1.bf16.msra.mxu0 %v2443
    %3451 = vmatprep.subr.bf16.mxu0 %v2452
    %3452 = vmatpush1.bf16.msra.mxu0 %v2451
    %3453 = vmatprep.subr.bf16.mxu0 %v2460
    %3454 = vmatpush1.bf16.msra.mxu0 %v2459
    %3455 = vmatprep.subr.bf16.mxu0 %v2468
    %3456 = vmatpush1.bf16.msra.mxu0 %v2467
    %3457 = vmatprep.subr.bf16.mxu0 %v2476
    %3458 = vmatpush1.bf16.msra.mxu0 %v2475
    %3459 = vmatprep.subr.bf16.mxu0 %v2484
    %3460 = vmatpush1.bf16.msra.mxu0 %v2483
    %3461 = vmatprep.subr.bf16.mxu0 %v2492
    %3462 = vmatpush1.bf16.msra.mxu0 %v2491
    %3463 = vmatprep.subr.bf16.mxu0 %v2500
    %3464 = vmatpush1.bf16.msra.mxu0 %v2499
    %3465 = vmatprep.subr.bf16.mxu0 %v2508
    %3466 = vmatpush1.bf16.msra.mxu0 %v2507
    %3467 = vmatprep.subr.bf16.mxu0 %v2516
    %3468 = vmatpush1.bf16.msra.mxu0 %v2515
    %3469 = vmatprep.subr.bf16.mxu0 %v2524
    %3470 = vmatpush1.bf16.msra.mxu0 %v2523
    %3471 = vmatprep.subr.bf16.mxu0 %v2532
    %3472 = vmatpush1.bf16.msra.mxu0 %v2531
    %3473 = vmatprep.subr.bf16.mxu0 %v2540
    %3474 = vmatpush1.bf16.msra.mxu0 %v2539
    %3475 = vmatprep.subr.bf16.mxu0 %v2548
    %3476 = vmatpush1.bf16.msra.mxu0 %v2547
    %3477 = vmatprep.subr.bf16.mxu0 %v2556
    %3478 = vmatpush1.bf16.msra.mxu0 %v2555
    %3479 = vmatprep.mubr.bf16.mxu0 %v628
    %3480 = vmatmul.mubr.bf16.gmra.mrb[0].mxu0 %v614
    %v3481 = vpop.f32.mrb[0].mxu0
    %v3482 = vadd.f32 %v3441, %v3481
    %v3483 = vpop.f32.mrb[0].mxu0
    %v3484 = vadd.f32 %v3443, %v3483
    %v3485 = vpop.f32.mrb[0].mxu0
    %v3486 = vpop.f32.mrb[0].mxu0
    %3487 = vdwg.mxu0
    %3488 = vmatprep.subr.bf16.mxu0 %v2564
    %3489 = vmatpush1.bf16.msra.mxu0 %v2563
    %3490 = vmatprep.subr.bf16.mxu0 %v2572
    %3491 = vmatpush1.bf16.msra.mxu0 %v2571
    %3492 = vmatprep.subr.bf16.mxu0 %v2580
    %3493 = vmatpush1.bf16.msra.mxu0 %v2579
    %3494 = vmatprep.subr.bf16.mxu0 %v2588
    %3495 = vmatpush1.bf16.msra.mxu0 %v2587
    %3496 = vmatprep.subr.bf16.mxu0 %v2596
    %3497 = vmatpush1.bf16.msra.mxu0 %v2595
    %3498 = vmatprep.subr.bf16.mxu0 %v2604
    %3499 = vmatpush1.bf16.msra.mxu0 %v2603
    %3500 = vmatprep.subr.bf16.mxu0 %v2612
    %3501 = vmatpush1.bf16.msra.mxu0 %v2611
    %3502 = vmatprep.subr.bf16.mxu0 %v2620
    %3503 = vmatpush1.bf16.msra.mxu0 %v2619
    %3504 = vmatprep.subr.bf16.mxu0 %v2628
    %3505 = vmatpush1.bf16.msra.mxu0 %v2627
    %3506 = vmatprep.subr.bf16.mxu0 %v2636
    %3507 = vmatpush1.bf16.msra.mxu0 %v2635
    %3508 = vmatprep.subr.bf16.mxu0 %v2644
    %3509 = vmatpush1.bf16.msra.mxu0 %v2643
    %3510 = vmatprep.subr.bf16.mxu0 %v2652
    %3511 = vmatpush1.bf16.msra.mxu0 %v2651
    %3512 = vmatprep.subr.bf16.mxu0 %v2660
    %3513 = vmatpush1.bf16.msra.mxu0 %v2659
    %3514 = vmatprep.subr.bf16.mxu0 %v2668
    %3515 = vmatpush1.bf16.msra.mxu0 %v2667
    %3516 = vmatprep.subr.bf16.mxu0 %v2676
    %3517 = vmatpush1.bf16.msra.mxu0 %v2675
    %3518 = vmatprep.subr.bf16.mxu0 %v2684
    %3519 = vmatpush1.bf16.msra.mxu0 %v2683
    %3520 = vmatprep.mubr.bf16.mxu0 %v632
    %3521 = vmatmul.mubr.bf16.gmra.mrb[0].mxu0 %v630
    %v3522 = vpop.f32.mrb[0].mxu0
    %v3523 = vadd.f32 %v3482, %v3522
    %v3524 = vpop.f32.mrb[0].mxu0
    %v3525 = vadd.f32 %v3484, %v3524
    %v3526 = vpop.f32.mrb[0].mxu0
    %v3527 = vpop.f32.mrb[0].mxu0
    %3528 = vdwg.mxu0
    %3529 = vmatprep.subr.bf16.mxu0 %v2182
    %3530 = vmatpush1.bf16.msra.mxu0 %v2181
    %3531 = vmatprep.subr.bf16.mxu0 %v2190
    %3532 = vmatpush1.bf16.msra.mxu0 %v2189
    %3533 = vmatprep.subr.bf16.mxu0 %v2198
    %3534 = vmatpush1.bf16.msra.mxu0 %v2197
    %3535 = vmatprep.subr.bf16.mxu0 %v2206
    %3536 = vmatpush1.bf16.msra.mxu0 %v2205
    %3537 = vmatprep.subr.bf16.mxu0 %v2214
    %3538 = vmatpush1.bf16.msra.mxu0 %v2213
    %3539 = vmatprep.subr.bf16.mxu0 %v2222
    %3540 = vmatpush1.bf16.msra.mxu0 %v2221
    %3541 = vmatprep.subr.bf16.mxu0 %v2230
    %3542 = vmatpush1.bf16.msra.mxu0 %v2229
    %3543 = vmatprep.subr.bf16.mxu0 %v2238
    %3544 = vmatpush1.bf16.msra.mxu0 %v2237
    %3545 = vmatprep.subr.bf16.mxu0 %v2246
    %3546 = vmatpush1.bf16.msra.mxu0 %v2245
    %3547 = vmatprep.subr.bf16.mxu0 %v2254
    %3548 = vmatpush1.bf16.msra.mxu0 %v2253
    %3549 = vmatprep.subr.bf16.mxu0 %v2262
    %3550 = vmatpush1.bf16.msra.mxu0 %v2261
    %3551 = vmatprep.subr.bf16.mxu0 %v2270
    %3552 = vmatpush1.bf16.msra.mxu0 %v2269
    %3553 = vmatprep.subr.bf16.mxu0 %v2278
    %3554 = vmatpush1.bf16.msra.mxu0 %v2277
    %3555 = vmatprep.subr.bf16.mxu0 %v2286
    %3556 = vmatpush1.bf16.msra.mxu0 %v2285
    %3557 = vmatprep.subr.bf16.mxu0 %v2294
    %3558 = vmatpush1.bf16.msra.mxu0 %v2293
    %3559 = vmatprep.subr.bf16.mxu0 %v2302
    %3560 = vmatpush1.bf16.msra.mxu0 %v2301
    %3561 = vmatprep.mubr.bf16.mxu0 %v621
    %3562 = vmatmul.mubr.bf16.gmra.mrb[0].mxu0 %v607
    %v3563 = vpop.f32.mrb[0].mxu0
    %v3564 = vadd.f32 %v562, %v3563
    %v3565 = vpop.f32.mrb[0].mxu0
    %v3566 = vadd.f32 %v566, %v3565
    %v3567 = vpop.f32.mrb[0].mxu0
    %v3568 = vpop.f32.mrb[0].mxu0
    %3569 = vdwg.mxu0
    %3570 = vmatprep.subr.bf16.mxu0 %v2310
    %3571 = vmatpush1.bf16.msra.mxu0 %v2309
    %3572 = vmatprep.subr.bf16.mxu0 %v2318
    %3573 = vmatpush1.bf16.msra.mxu0 %v2317
    %3574 = vmatprep.subr.bf16.mxu0 %v2326
    %3575 = vmatpush1.bf16.msra.mxu0 %v2325
    %3576 = vmatprep.subr.bf16.mxu0 %v2334
    %3577 = vmatpush1.bf16.msra.mxu0 %v2333
    %3578 = vmatprep.subr.bf16.mxu0 %v2342
    %3579 = vmatpush1.bf16.msra.mxu0 %v2341
    %3580 = vmatprep.subr.bf16.mxu0 %v2350
    %3581 = vmatpush1.bf16.msra.mxu0 %v2349
    %3582 = vmatprep.subr.bf16.mxu0 %v2358
    %3583 = vmatpush1.bf16.msra.mxu0 %v2357
    %3584 = vmatprep.subr.bf16.mxu0 %v2366
    %3585 = vmatpush1.bf16.msra.mxu0 %v2365
    %3586 = vmatprep.subr.bf16.mxu0 %v2374
    %3587 = vmatpush1.bf16.msra.mxu0 %v2373
    %3588 = vmatprep.subr.bf16.mxu0 %v2382
    %3589 = vmatpush1.bf16.msra.mxu0 %v2381
    %3590 = vmatprep.subr.bf16.mxu0 %v2390
    %3591 = vmatpush1.bf16.msra.mxu0 %v2389
    %3592 = vmatprep.subr.bf16.mxu0 %v2398
    %3593 = vmatpush1.bf16.msra.mxu0 %v2397
    %3594 = vmatprep.subr.bf16.mxu0 %v2406
    %3595 = vmatpush1.bf16.msra.mxu0 %v2405
    %3596 = vmatprep.subr.bf16.mxu0 %v2414
    %3597 = vmatpush1.bf16.msra.mxu0 %v2413
    %3598 = vmatprep.subr.bf16.mxu0 %v2422
    %3599 = vmatpush1.bf16.msra.mxu0 %v2421
    %3600 = vmatprep.subr.bf16.mxu0 %v2430
    %3601 = vmatpush1.bf16.msra.mxu0 %v2429
    %3602 = vmatprep.mubr.bf16.mxu0 %v631
    %3603 = vmatmul.mubr.bf16.gmra.mrb[0].mxu0 %v629
    %v3604 = vpop.f32.mrb[0].mxu0
    %v3605 = vadd.f32 %v3564, %v3604
    %v3606 = vpop.f32.mrb[0].mxu0
    %v3607 = vadd.f32 %v3566, %v3606
    %v3608 = vpop.f32.mrb[0].mxu0
    %v3609 = vpop.f32.mrb[0].mxu0
    %3610 = vdwg.mxu0
    %3611 = vmatprep.subr.bf16.mxu0 %v2438
    %3612 = vmatpush1.bf16.msra.mxu0 %v2437
    %3613 = vmatprep.subr.bf16.mxu0 %v2446
    %3614 = vmatpush1.bf16.msra.mxu0 %v2445
    %3615 = vmatprep.subr.bf16.mxu0 %v2454
    %3616 = vmatpush1.bf16.msra.mxu0 %v2453
    %3617 = vmatprep.subr.bf16.mxu0 %v2462
    %3618 = vmatpush1.bf16.msra.mxu0 %v2461
    %3619 = vmatprep.subr.bf16.mxu0 %v2470
    %3620 = vmatpush1.bf16.msra.mxu0 %v2469
    %3621 = vmatprep.subr.bf16.mxu0 %v2478
    %3622 = vmatpush1.bf16.msra.mxu0 %v2477
    %3623 = vmatprep.subr.bf16.mxu0 %v2486
    %3624 = vmatpush1.bf16.msra.mxu0 %v2485
    %3625 = vmatprep.subr.bf16.mxu0 %v2494
    %3626 = vmatpush1.bf16.msra.mxu0 %v2493
    %3627 = vmatprep.subr.bf16.mxu0 %v2502
    %3628 = vmatpush1.bf16.msra.mxu0 %v2501
    %3629 = vmatprep.subr.bf16.mxu0 %v2510
    %3630 = vmatpush1.bf16.msra.mxu0 %v2509
    %3631 = vmatprep.subr.bf16.mxu0 %v2518
    %3632 = vmatpush1.bf16.msra.mxu0 %v2517
    %3633 = vmatprep.subr.bf16.mxu0 %v2526
    %3634 = vmatpush1.bf16.msra.mxu0 %v2525
    %3635 = vmatprep.subr.bf16.mxu0 %v2534
    %3636 = vmatpush1.bf16.msra.mxu0 %v2533
    %3637 = vmatprep.subr.bf16.mxu0 %v2542
    %3638 = vmatpush1.bf16.msra.mxu0 %v2541
    %3639 = vmatprep.subr.bf16.mxu0 %v2550
    %3640 = vmatpush1.bf16.msra.mxu0 %v2549
    %3641 = vmatprep.subr.bf16.mxu0 %v2558
    %3642 = vmatpush1.bf16.msra.mxu0 %v2557
    %3643 = vmatprep.mubr.bf16.mxu0 %v628
    %3644 = vmatmul.mubr.bf16.gmra.mrb[0].mxu0 %v614
    %v3645 = vpop.f32.mrb[0].mxu0
    %v3646 = vadd.f32 %v3605, %v3645
    %v3647 = vpop.f32.mrb[0].mxu0
    %v3648 = vadd.f32 %v3607, %v3647
    %v3649 = vpop.f32.mrb[0].mxu0
    %v3650 = vpop.f32.mrb[0].mxu0
    %3651 = vdwg.mxu0
    %3652 = vmatprep.subr.bf16.mxu0 %v2566
    %3653 = vmatpush1.bf16.msra.mxu0 %v2565
    %3654 = vmatprep.subr.bf16.mxu0 %v2574
    %3655 = vmatpush1.bf16.msra.mxu0 %v2573
    %3656 = vmatprep.subr.bf16.mxu0 %v2582
    %3657 = vmatpush1.bf16.msra.mxu0 %v2581
    %3658 = vmatprep.subr.bf16.mxu0 %v2590
    %3659 = vmatpush1.bf16.msra.mxu0 %v2589
    %3660 = vmatprep.subr.bf16.mxu0 %v2598
    %3661 = vmatpush1.bf16.msra.mxu0 %v2597
    %3662 = vmatprep.subr.bf16.mxu0 %v2606
    %3663 = vmatpush1.bf16.msra.mxu0 %v2605
    %3664 = vmatprep.subr.bf16.mxu0 %v2614
    %3665 = vmatpush1.bf16.msra.mxu0 %v2613
    %3666 = vmatprep.subr.bf16.mxu0 %v2622
    %3667 = vmatpush1.bf16.msra.mxu0 %v2621
    %3668 = vmatprep.subr.bf16.mxu0 %v2630
    %3669 = vmatpush1.bf16.msra.mxu0 %v2629
    %3670 = vmatprep.subr.bf16.mxu0 %v2638
    %3671 = vmatpush1.bf16.msra.mxu0 %v2637
    %3672 = vmatprep.subr.bf16.mxu0 %v2646
    %3673 = vmatpush1.bf16.msra.mxu0 %v2645
    %3674 = vmatprep.subr.bf16.mxu0 %v2654
    %3675 = vmatpush1.bf16.msra.mxu0 %v2653
    %3676 = vmatprep.subr.bf16.mxu0 %v2662
    %3677 = vmatpush1.bf16.msra.mxu0 %v2661
    %3678 = vmatprep.subr.bf16.mxu0 %v2670
    %3679 = vmatpush1.bf16.msra.mxu0 %v2669
    %3680 = vmatprep.subr.bf16.mxu0 %v2678
    %3681 = vmatpush1.bf16.msra.mxu0 %v2677
    %3682 = vmatprep.subr.bf16.mxu0 %v2686
    %3683 = vmatpush1.bf16.msra.mxu0 %v2685
    %3684 = vmatprep.mubr.bf16.mxu0 %v632
    %3685 = vmatmul.mubr.bf16.gmra.mrb[0].mxu0 %v630
    %v3686 = vpop.f32.mrb[0].mxu0
    %v3687 = vadd.f32 %v3646, %v3686
    %v3688 = vpop.f32.mrb[0].mxu0
    %v3689 = vadd.f32 %v3648, %v3688
    %v3690 = vpop.f32.mrb[0].mxu0
    %v3691 = vpop.f32.mrb[0].mxu0
    %3692 = vdwg.mxu0
    %3693 = vmatprep.subr.bf16.mxu0 %v2184
    %3694 = vmatpush1.bf16.msra.mxu0 %v2183
    %3695 = vmatprep.subr.bf16.mxu0 %v2192
    %3696 = vmatpush1.bf16.msra.mxu0 %v2191
    %3697 = vmatprep.subr.bf16.mxu0 %v2200
    %3698 = vmatpush1.bf16.msra.mxu0 %v2199
    %3699 = vmatprep.subr.bf16.mxu0 %v2208
    %3700 = vmatpush1.bf16.msra.mxu0 %v2207
    %3701 = vmatprep.subr.bf16.mxu0 %v2216
    %3702 = vmatpush1.bf16.msra.mxu0 %v2215
    %3703 = vmatprep.subr.bf16.mxu0 %v2224
    %3704 = vmatpush1.bf16.msra.mxu0 %v2223
    %3705 = vmatprep.subr.bf16.mxu0 %v2232
    %3706 = vmatpush1.bf16.msra.mxu0 %v2231
    %3707 = vmatprep.subr.bf16.mxu0 %v2240
    %3708 = vmatpush1.bf16.msra.mxu0 %v2239
    %3709 = vmatprep.subr.bf16.mxu0 %v2248
    %3710 = vmatpush1.bf16.msra.mxu0 %v2247
    %3711 = vmatprep.subr.bf16.mxu0 %v2256
    %3712 = vmatpush1.bf16.msra.mxu0 %v2255
    %3713 = vmatprep.subr.bf16.mxu0 %v2264
    %3714 = vmatpush1.bf16.msra.mxu0 %v2263
    %3715 = vmatprep.subr.bf16.mxu0 %v2272
    %3716 = vmatpush1.bf16.msra.mxu0 %v2271
    %3717 = vmatprep.subr.bf16.mxu0 %v2280
    %3718 = vmatpush1.bf16.msra.mxu0 %v2279
    %3719 = vmatprep.subr.bf16.mxu0 %v2288
    %3720 = vmatpush1.bf16.msra.mxu0 %v2287
    %3721 = vmatprep.subr.bf16.mxu0 %v2296
    %3722 = vmatpush1.bf16.msra.mxu0 %v2295
    %3723 = vmatprep.subr.bf16.mxu0 %v2304
    %3724 = vmatpush1.bf16.msra.mxu0 %v2303
    %3725 = vmatprep.mubr.bf16.mxu0 %v621
    %3726 = vmatmul.mubr.bf16.gmra.mrb[0].mxu0 %v607
    %v3727 = vpop.f32.mrb[0].mxu0
    %v3728 = vadd.f32 %v570, %v3727
    %v3729 = vpop.f32.mrb[0].mxu0
    %v3730 = vadd.f32 %v574, %v3729
    %v3731 = vpop.f32.mrb[0].mxu0
    %v3732 = vpop.f32.mrb[0].mxu0
    %3733 = vdwg.mxu0
    %3734 = vmatprep.subr.bf16.mxu0 %v2312
    %3735 = vmatpush1.bf16.msra.mxu0 %v2311
    %3736 = vmatprep.subr.bf16.mxu0 %v2320
    %3737 = vmatpush1.bf16.msra.mxu0 %v2319
    %3738 = vmatprep.subr.bf16.mxu0 %v2328
    %3739 = vmatpush1.bf16.msra.mxu0 %v2327
    %3740 = vmatprep.subr.bf16.mxu0 %v2336
    %3741 = vmatpush1.bf16.msra.mxu0 %v2335
    %3742 = vmatprep.subr.bf16.mxu0 %v2344
    %3743 = vmatpush1.bf16.msra.mxu0 %v2343
    %3744 = vmatprep.subr.bf16.mxu0 %v2352
    %3745 = vmatpush1.bf16.msra.mxu0 %v2351
    %3746 = vmatprep.subr.bf16.mxu0 %v2360
    %3747 = vmatpush1.bf16.msra.mxu0 %v2359
    %3748 = vmatprep.subr.bf16.mxu0 %v2368
    %3749 = vmatpush1.bf16.msra.mxu0 %v2367
    %3750 = vmatprep.subr.bf16.mxu0 %v2376
    %3751 = vmatpush1.bf16.msra.mxu0 %v2375
    %3752 = vmatprep.subr.bf16.mxu0 %v2384
    %3753 = vmatpush1.bf16.msra.mxu0 %v2383
    %3754 = vmatprep.subr.bf16.mxu0 %v2392
    %3755 = vmatpush1.bf16.msra.mxu0 %v2391
    %3756 = vmatprep.subr.bf16.mxu0 %v2400
    %3757 = vmatpush1.bf16.msra.mxu0 %v2399
    %3758 = vmatprep.subr.bf16.mxu0 %v2408
    %3759 = vmatpush1.bf16.msra.mxu0 %v2407
    %3760 = vmatprep.subr.bf16.mxu0 %v2416
    %3761 = vmatpush1.bf16.msra.mxu0 %v2415
    %3762 = vmatprep.subr.bf16.mxu0 %v2424
    %3763 = vmatpush1.bf16.msra.mxu0 %v2423
    %3764 = vmatprep.subr.bf16.mxu0 %v2432
    %3765 = vmatpush1.bf16.msra.mxu0 %v2431
    %3766 = vmatprep.mubr.bf16.mxu0 %v631
    %3767 = vmatmul.mubr.bf16.gmra.mrb[0].mxu0 %v629
    %v3768 = vpop.f32.mrb[0].mxu0
    %v3769 = vadd.f32 %v3728, %v3768
    %v3770 = vpop.f32.mrb[0].mxu0
    %v3771 = vadd.f32 %v3730, %v3770
    %v3772 = vpop.f32.mrb[0].mxu0
    %v3773 = vpop.f32.mrb[0].mxu0
    %3774 = vdwg.mxu0
    %3775 = vmatprep.subr.bf16.mxu0 %v2440
    %3776 = vmatpush1.bf16.msra.mxu0 %v2439
    %3777 = vmatprep.subr.bf16.mxu0 %v2448
    %3778 = vmatpush1.bf16.msra.mxu0 %v2447
    %3779 = vmatprep.subr.bf16.mxu0 %v2456
    %3780 = vmatpush1.bf16.msra.mxu0 %v2455
    %3781 = vmatprep.subr.bf16.mxu0 %v2464
    %3782 = vmatpush1.bf16.msra.mxu0 %v2463
    %3783 = vmatprep.subr.bf16.mxu0 %v2472
    %3784 = vmatpush1.bf16.msra.mxu0 %v2471
    %3785 = vmatprep.subr.bf16.mxu0 %v2480
    %3786 = vmatpush1.bf16.msra.mxu0 %v2479
    %3787 = vmatprep.subr.bf16.mxu0 %v2488
    %3788 = vmatpush1.bf16.msra.mxu0 %v2487
    %3789 = vmatprep.subr.bf16.mxu0 %v2496
    %3790 = vmatpush1.bf16.msra.mxu0 %v2495
    %3791 = vmatprep.subr.bf16.mxu0 %v2504
    %3792 = vmatpush1.bf16.msra.mxu0 %v2503
    %3793 = vmatprep.subr.bf16.mxu0 %v2512
    %3794 = vmatpush1.bf16.msra.mxu0 %v2511
    %3795 = vmatprep.subr.bf16.mxu0 %v2520
    %3796 = vmatpush1.bf16.msra.mxu0 %v2519
    %3797 = vmatprep.subr.bf16.mxu0 %v2528
    %3798 = vmatpush1.bf16.msra.mxu0 %v2527
    %3799 = vmatprep.subr.bf16.mxu0 %v2536
    %3800 = vmatpush1.bf16.msra.mxu0 %v2535
    %3801 = vmatprep.subr.bf16.mxu0 %v2544
    %3802 = vmatpush1.bf16.msra.mxu0 %v2543
    %3803 = vmatprep.subr.bf16.mxu0 %v2552
    %3804 = vmatpush1.bf16.msra.mxu0 %v2551
    %3805 = vmatprep.subr.bf16.mxu0 %v2560
    %3806 = vmatpush1.bf16.msra.mxu0 %v2559
    %3807 = vmatprep.mubr.bf16.mxu0 %v628
    %3808 = vmatmul.mubr.bf16.gmra.mrb[0].mxu0 %v614
    %v3809 = vpop.f32.mrb[0].mxu0
    %v3810 = vadd.f32 %v3769, %v3809
    %v3811 = vpop.f32.mrb[0].mxu0
    %v3812 = vadd.f32 %v3771, %v3811
    %v3813 = vpop.f32.mrb[0].mxu0
    %v3814 = vpop.f32.mrb[0].mxu0
    %3815 = vdwg.mxu0
    %3816 = vmatprep.subr.bf16.mxu0 %v2568
    %3817 = vmatpush1.bf16.msra.mxu0 %v2567
    %3818 = vmatprep.subr.bf16.mxu0 %v2576
    %3819 = vmatpush1.bf16.msra.mxu0 %v2575
    %3820 = vmatprep.subr.bf16.mxu0 %v2584
    %3821 = vmatpush1.bf16.msra.mxu0 %v2583
    %3822 = vmatprep.subr.bf16.mxu0 %v2592
    %3823 = vmatpush1.bf16.msra.mxu0 %v2591
    %3824 = vmatprep.subr.bf16.mxu0 %v2600
    %3825 = vmatpush1.bf16.msra.mxu0 %v2599
    %3826 = vmatprep.subr.bf16.mxu0 %v2608
    %3827 = vmatpush1.bf16.msra.mxu0 %v2607
    %3828 = vmatprep.subr.bf16.mxu0 %v2616
    %3829 = vmatpush1.bf16.msra.mxu0 %v2615
    %3830 = vmatprep.subr.bf16.mxu0 %v2624
    %3831 = vmatpush1.bf16.msra.mxu0 %v2623
    %3832 = vmatprep.subr.bf16.mxu0 %v2632
    %3833 = vmatpush1.bf16.msra.mxu0 %v2631
    %3834 = vmatprep.subr.bf16.mxu0 %v2640
    %3835 = vmatpush1.bf16.msra.mxu0 %v2639
    %3836 = vmatprep.subr.bf16.mxu0 %v2648
    %3837 = vmatpush1.bf16.msra.mxu0 %v2647
    %3838 = vmatprep.subr.bf16.mxu0 %v2656
    %3839 = vmatpush1.bf16.msra.mxu0 %v2655
    %3840 = vmatprep.subr.bf16.mxu0 %v2664
    %3841 = vmatpush1.bf16.msra.mxu0 %v2663
    %3842 = vmatprep.subr.bf16.mxu0 %v2672
    %3843 = vmatpush1.bf16.msra.mxu0 %v2671
    %3844 = vmatprep.subr.bf16.mxu0 %v2680
    %3845 = vmatpush1.bf16.msra.mxu0 %v2679
    %3846 = vmatprep.subr.bf16.mxu0 %v2688
    %3847 = vmatpush1.bf16.msra.mxu0 %v2687
    %3848 = vmatprep.mubr.bf16.mxu0 %v632
    %3849 = vmatmul.mubr.bf16.gmra.mrb[0].mxu0 %v630
    %v3850 = vpop.f32.mrb[0].mxu0
    %v3851 = vadd.f32 %v3810, %v3850
    %v3852 = vpop.f32.mrb[0].mxu0
    %v3853 = vadd.f32 %v3812, %v3852
    %v3854 = vpop.f32.mrb[0].mxu0
    %v3855 = vpop.f32.mrb[0].mxu0
    %3856 = vdwg.mxu0
    %v3857 = vmax.f32 %v3359, 0.0
    %v3858 = vmax.f32 %v3361, 0.0
    %v3859 = vmax.f32 %v3523, 0.0
    %v3860 = vmax.f32 %v3525, 0.0
    %v3861 = vmax.f32 %v3687, 0.0
    %v3862 = vmax.f32 %v3689, 0.0
    %v3863 = vmax.f32 %v3851, 0.0
    %v3864 = vmax.f32 %v3853, 0.0
    %v3865 = vpack.c.bf16 %v3857, %v3857
    %v3866 = vpack.c.bf16 %v3858, %v3858
    %v3867 = vpack.c.bf16 %v3859, %v3859
    %v3868 = vpack.c.bf16 %v3860, %v3860
    %v3869 = vpack.c.bf16 %v3861, %v3861
    %v3870 = vpack.c.bf16 %v3862, %v3862
    %v3871 = vpack.c.bf16 %v3863, %v3863
    %v3872 = vpack.c.bf16 %v3864, %v3864
    %v3873 = vld [vmem:[%s3] sm:$0xff]
    %v3874 = vld [vmem:[%s3 + $0x8] sm:$0xff]
    %v3875 = vld [vmem:[%s3 + $0x10] sm:$0xff]
    %v3876 = vld [vmem:[%s3 + $0x18] sm:$0xff]
    %v3877 = vld [vmem:[%s3 + $0x20] sm:$0xff]
    %v3878 = vld [vmem:[%s3 + $0x28] sm:$0xff]
    %v3879 = vld [vmem:[%s3 + $0x30] sm:$0xff]
    %v3880 = vld [vmem:[%s3 + $0x38] sm:$0xff]
    %v3881 = vld [vmem:[%s3 + $0x40] sm:$0xff]
    %v3882 = vld [vmem:[%s3 + $0x48] sm:$0xff]
    %v3883 = vld [vmem:[%s3 + $0x50] sm:$0xff]
    %v3884 = vld [vmem:[%s3 + $0x58] sm:$0xff]
    %v3885 = vld [vmem:[%s3 + $0x60] sm:$0xff]
    %v3886 = vld [vmem:[%s3 + $0x68] sm:$0xff]
    %v3887 = vld [vmem:[%s3 + $0x70] sm:$0xff]
    %v3888 = vld [vmem:[%s3 + $0x78] sm:$0xff]
    %v3889 = vld [vmem:[%s3 + $0x80] sm:$0xff]
    %v3890 = vld [vmem:[%s3 + $0x88] sm:$0xff]
    %v3891 = vld [vmem:[%s3 + $0x90] sm:$0xff]
    %v3892 = vld [vmem:[%s3 + $0x98] sm:$0xff]
    %v3893 = vld [vmem:[%s3 + $0xa0] sm:$0xff]
    %v3894 = vld [vmem:[%s3 + $0xa8] sm:$0xff]
    %v3895 = vld [vmem:[%s3 + $0xb0] sm:$0xff]
    %v3896 = vld [vmem:[%s3 + $0xb8] sm:$0xff]
    %v3897 = vld [vmem:[%s3 + $0xc0] sm:$0xff]
    %v3898 = vld [vmem:[%s3 + $0xc8] sm:$0xff]
    %v3899 = vld [vmem:[%s3 + $0xd0] sm:$0xff]
    %v3900 = vld [vmem:[%s3 + $0xd8] sm:$0xff]
    %v3901 = vld [vmem:[%s3 + $0xe0] sm:$0xff]
    %v3902 = vld [vmem:[%s3 + $0xe8] sm:$0xff]
    %v3903 = vld [vmem:[%s3 + $0xf0] sm:$0xff]
    %v3904 = vld [vmem:[%s3 + $0xf8] sm:$0xff]
    %v3905 = vld [vmem:[%s3 + $0x100] sm:$0xff]
    %v3906 = vld [vmem:[%s3 + $0x108] sm:$0xff]
    %v3907 = vld [vmem:[%s3 + $0x110] sm:$0xff]
    %v3908 = vld [vmem:[%s3 + $0x118] sm:$0xff]
    %v3909 = vld [vmem:[%s3 + $0x120] sm:$0xff]
    %v3910 = vld [vmem:[%s3 + $0x128] sm:$0xff]
    %v3911 = vld [vmem:[%s3 + $0x130] sm:$0xff]
    %v3912 = vld [vmem:[%s3 + $0x138] sm:$0xff]
    %v3913 = vld [vmem:[%s3 + $0x140] sm:$0xff]
    %v3914 = vld [vmem:[%s3 + $0x148] sm:$0xff]
    %v3915 = vld [vmem:[%s3 + $0x150] sm:$0xff]
    %v3916 = vld [vmem:[%s3 + $0x158] sm:$0xff]
    %v3917 = vld [vmem:[%s3 + $0x160] sm:$0xff]
    %v3918 = vld [vmem:[%s3 + $0x168] sm:$0xff]
    %v3919 = vld [vmem:[%s3 + $0x170] sm:$0xff]
    %v3920 = vld [vmem:[%s3 + $0x178] sm:$0xff]
    %v3921 = vld [vmem:[%s3 + $0x180] sm:$0xff]
    %v3922 = vld [vmem:[%s3 + $0x188] sm:$0xff]
    %v3923 = vld [vmem:[%s3 + $0x190] sm:$0xff]
    %v3924 = vld [vmem:[%s3 + $0x198] sm:$0xff]
    %v3925 = vld [vmem:[%s3 + $0x1a0] sm:$0xff]
    %v3926 = vld [vmem:[%s3 + $0x1a8] sm:$0xff]
    %v3927 = vld [vmem:[%s3 + $0x1b0] sm:$0xff]
    %v3928 = vld [vmem:[%s3 + $0x1b8] sm:$0xff]
    %v3929 = vld [vmem:[%s3 + $0x1c0] sm:$0xff]
    %v3930 = vld [vmem:[%s3 + $0x1c8] sm:$0xff]
    %v3931 = vld [vmem:[%s3 + $0x1d0] sm:$0xff]
    %v3932 = vld [vmem:[%s3 + $0x1d8] sm:$0xff]
    %v3933 = vld [vmem:[%s3 + $0x1e0] sm:$0xff]
    %v3934 = vld [vmem:[%s3 + $0x1e8] sm:$0xff]
    %v3935 = vld [vmem:[%s3 + $0x1f0] sm:$0xff]
    %v3936 = vld [vmem:[%s3 + $0x1f8] sm:$0xff]
    %v3937 = vld [vmem:[%s3 + $0x200] sm:$0xff]
    %v3938 = vld [vmem:[%s3 + $0x208] sm:$0xff]
    %v3939 = vld [vmem:[%s3 + $0x210] sm:$0xff]
    %v3940 = vld [vmem:[%s3 + $0x218] sm:$0xff]
    %v3941 = vld [vmem:[%s3 + $0x220] sm:$0xff]
    %v3942 = vld [vmem:[%s3 + $0x228] sm:$0xff]
    %v3943 = vld [vmem:[%s3 + $0x230] sm:$0xff]
    %v3944 = vld [vmem:[%s3 + $0x238] sm:$0xff]
    %v3945 = vld [vmem:[%s3 + $0x240] sm:$0xff]
    %v3946 = vld [vmem:[%s3 + $0x248] sm:$0xff]
    %v3947 = vld [vmem:[%s3 + $0x250] sm:$0xff]
    %v3948 = vld [vmem:[%s3 + $0x258] sm:$0xff]
    %v3949 = vld [vmem:[%s3 + $0x260] sm:$0xff]
    %v3950 = vld [vmem:[%s3 + $0x268] sm:$0xff]
    %v3951 = vld [vmem:[%s3 + $0x270] sm:$0xff]
    %v3952 = vld [vmem:[%s3 + $0x278] sm:$0xff]
    %v3953 = vld [vmem:[%s3 + $0x280] sm:$0xff]
    %v3954 = vld [vmem:[%s3 + $0x288] sm:$0xff]
    %v3955 = vld [vmem:[%s3 + $0x290] sm:$0xff]
    %v3956 = vld [vmem:[%s3 + $0x298] sm:$0xff]
    %v3957 = vld [vmem:[%s3 + $0x2a0] sm:$0xff]
    %v3958 = vld [vmem:[%s3 + $0x2a8] sm:$0xff]
    %v3959 = vld [vmem:[%s3 + $0x2b0] sm:$0xff]
    %v3960 = vld [vmem:[%s3 + $0x2b8] sm:$0xff]
    %v3961 = vld [vmem:[%s3 + $0x2c0] sm:$0xff]
    %v3962 = vld [vmem:[%s3 + $0x2c8] sm:$0xff]
    %v3963 = vld [vmem:[%s3 + $0x2d0] sm:$0xff]
    %v3964 = vld [vmem:[%s3 + $0x2d8] sm:$0xff]
    %v3965 = vld [vmem:[%s3 + $0x2e0] sm:$0xff]
    %v3966 = vld [vmem:[%s3 + $0x2e8] sm:$0xff]
    %v3967 = vld [vmem:[%s3 + $0x2f0] sm:$0xff]
    %v3968 = vld [vmem:[%s3 + $0x2f8] sm:$0xff]
    %v3969 = vld [vmem:[%s3 + $0x300] sm:$0xff]
    %v3970 = vld [vmem:[%s3 + $0x308] sm:$0xff]
    %v3971 = vld [vmem:[%s3 + $0x310] sm:$0xff]
    %v3972 = vld [vmem:[%s3 + $0x318] sm:$0xff]
    %v3973 = vld [vmem:[%s3 + $0x320] sm:$0xff]
    %v3974 = vld [vmem:[%s3 + $0x328] sm:$0xff]
    %v3975 = vld [vmem:[%s3 + $0x330] sm:$0xff]
    %v3976 = vld [vmem:[%s3 + $0x338] sm:$0xff]
    %v3977 = vld [vmem:[%s3 + $0x340] sm:$0xff]
    %v3978 = vld [vmem:[%s3 + $0x348] sm:$0xff]
    %v3979 = vld [vmem:[%s3 + $0x350] sm:$0xff]
    %v3980 = vld [vmem:[%s3 + $0x358] sm:$0xff]
    %v3981 = vld [vmem:[%s3 + $0x360] sm:$0xff]
    %v3982 = vld [vmem:[%s3 + $0x368] sm:$0xff]
    %v3983 = vld [vmem:[%s3 + $0x370] sm:$0xff]
    %v3984 = vld [vmem:[%s3 + $0x378] sm:$0xff]
    %v3985 = vld [vmem:[%s3 + $0x380] sm:$0xff]
    %v3986 = vld [vmem:[%s3 + $0x388] sm:$0xff]
    %v3987 = vld [vmem:[%s3 + $0x390] sm:$0xff]
    %v3988 = vld [vmem:[%s3 + $0x398] sm:$0xff]
    %v3989 = vld [vmem:[%s3 + $0x3a0] sm:$0xff]
    %v3990 = vld [vmem:[%s3 + $0x3a8] sm:$0xff]
    %v3991 = vld [vmem:[%s3 + $0x3b0] sm:$0xff]
    %v3992 = vld [vmem:[%s3 + $0x3b8] sm:$0xff]
    %v3993 = vld [vmem:[%s3 + $0x3c0] sm:$0xff]
    %v3994 = vld [vmem:[%s3 + $0x3c8] sm:$0xff]
    %v3995 = vld [vmem:[%s3 + $0x3d0] sm:$0xff]
    %v3996 = vld [vmem:[%s3 + $0x3d8] sm:$0xff]
    %v3997 = vld [vmem:[%s3 + $0x3e0] sm:$0xff]
    %v3998 = vld [vmem:[%s3 + $0x3e8] sm:$0xff]
    %v3999 = vld [vmem:[%s3 + $0x3f0] sm:$0xff]
    %v4000 = vld [vmem:[%s3 + $0x3f8] sm:$0xff]
    %v4001 = vld [vmem:[%s3 + $0x400] sm:$0xff]
    %v4002 = vld [vmem:[%s3 + $0x408] sm:$0xff]
    %v4003 = vld [vmem:[%s3 + $0x410] sm:$0xff]
    %v4004 = vld [vmem:[%s3 + $0x418] sm:$0xff]
    %v4005 = vld [vmem:[%s3 + $0x420] sm:$0xff]
    %v4006 = vld [vmem:[%s3 + $0x428] sm:$0xff]
    %v4007 = vld [vmem:[%s3 + $0x430] sm:$0xff]
    %v4008 = vld [vmem:[%s3 + $0x438] sm:$0xff]
    %v4009 = vld [vmem:[%s3 + $0x440] sm:$0xff]
    %v4010 = vld [vmem:[%s3 + $0x448] sm:$0xff]
    %v4011 = vld [vmem:[%s3 + $0x450] sm:$0xff]
    %v4012 = vld [vmem:[%s3 + $0x458] sm:$0xff]
    %v4013 = vld [vmem:[%s3 + $0x460] sm:$0xff]
    %v4014 = vld [vmem:[%s3 + $0x468] sm:$0xff]
    %v4015 = vld [vmem:[%s3 + $0x470] sm:$0xff]
    %v4016 = vld [vmem:[%s3 + $0x478] sm:$0xff]
    %v4017 = vld [vmem:[%s3 + $0x480] sm:$0xff]
    %v4018 = vld [vmem:[%s3 + $0x488] sm:$0xff]
    %v4019 = vld [vmem:[%s3 + $0x490] sm:$0xff]
    %v4020 = vld [vmem:[%s3 + $0x498] sm:$0xff]
    %v4021 = vld [vmem:[%s3 + $0x4a0] sm:$0xff]
    %v4022 = vld [vmem:[%s3 + $0x4a8] sm:$0xff]
    %v4023 = vld [vmem:[%s3 + $0x4b0] sm:$0xff]
    %v4024 = vld [vmem:[%s3 + $0x4b8] sm:$0xff]
    %v4025 = vld [vmem:[%s3 + $0x4c0] sm:$0xff]
    %v4026 = vld [vmem:[%s3 + $0x4c8] sm:$0xff]
    %v4027 = vld [vmem:[%s3 + $0x4d0] sm:$0xff]
    %v4028 = vld [vmem:[%s3 + $0x4d8] sm:$0xff]
    %v4029 = vld [vmem:[%s3 + $0x4e0] sm:$0xff]
    %v4030 = vld [vmem:[%s3 + $0x4e8] sm:$0xff]
    %v4031 = vld [vmem:[%s3 + $0x4f0] sm:$0xff]
    %v4032 = vld [vmem:[%s3 + $0x4f8] sm:$0xff]
    %v4033 = vld [vmem:[%s3 + $0x500] sm:$0xff]
    %v4034 = vld [vmem:[%s3 + $0x508] sm:$0xff]
    %v4035 = vld [vmem:[%s3 + $0x510] sm:$0xff]
    %v4036 = vld [vmem:[%s3 + $0x518] sm:$0xff]
    %v4037 = vld [vmem:[%s3 + $0x520] sm:$0xff]
    %v4038 = vld [vmem:[%s3 + $0x528] sm:$0xff]
    %v4039 = vld [vmem:[%s3 + $0x530] sm:$0xff]
    %v4040 = vld [vmem:[%s3 + $0x538] sm:$0xff]
    %v4041 = vld [vmem:[%s3 + $0x540] sm:$0xff]
    %v4042 = vld [vmem:[%s3 + $0x548] sm:$0xff]
    %v4043 = vld [vmem:[%s3 + $0x550] sm:$0xff]
    %v4044 = vld [vmem:[%s3 + $0x558] sm:$0xff]
    %v4045 = vld [vmem:[%s3 + $0x560] sm:$0xff]
    %v4046 = vld [vmem:[%s3 + $0x568] sm:$0xff]
    %v4047 = vld [vmem:[%s3 + $0x570] sm:$0xff]
    %v4048 = vld [vmem:[%s3 + $0x578] sm:$0xff]
    %v4049 = vld [vmem:[%s3 + $0x580] sm:$0xff]
    %v4050 = vld [vmem:[%s3 + $0x588] sm:$0xff]
    %v4051 = vld [vmem:[%s3 + $0x590] sm:$0xff]
    %v4052 = vld [vmem:[%s3 + $0x598] sm:$0xff]
    %v4053 = vld [vmem:[%s3 + $0x5a0] sm:$0xff]
    %v4054 = vld [vmem:[%s3 + $0x5a8] sm:$0xff]
    %v4055 = vld [vmem:[%s3 + $0x5b0] sm:$0xff]
    %v4056 = vld [vmem:[%s3 + $0x5b8] sm:$0xff]
    %v4057 = vld [vmem:[%s3 + $0x5c0] sm:$0xff]
    %v4058 = vld [vmem:[%s3 + $0x5c8] sm:$0xff]
    %v4059 = vld [vmem:[%s3 + $0x5d0] sm:$0xff]
    %v4060 = vld [vmem:[%s3 + $0x5d8] sm:$0xff]
    %v4061 = vld [vmem:[%s3 + $0x5e0] sm:$0xff]
    %v4062 = vld [vmem:[%s3 + $0x5e8] sm:$0xff]
    %v4063 = vld [vmem:[%s3 + $0x5f0] sm:$0xff]
    %v4064 = vld [vmem:[%s3 + $0x5f8] sm:$0xff]
    %v4065 = vld [vmem:[%s3 + $0x600] sm:$0xff]
    %v4066 = vld [vmem:[%s3 + $0x608] sm:$0xff]
    %v4067 = vld [vmem:[%s3 + $0x610] sm:$0xff]
    %v4068 = vld [vmem:[%s3 + $0x618] sm:$0xff]
    %v4069 = vld [vmem:[%s3 + $0x620] sm:$0xff]
    %v4070 = vld [vmem:[%s3 + $0x628] sm:$0xff]
    %v4071 = vld [vmem:[%s3 + $0x630] sm:$0xff]
    %v4072 = vld [vmem:[%s3 + $0x638] sm:$0xff]
    %v4073 = vld [vmem:[%s3 + $0x640] sm:$0xff]
    %v4074 = vld [vmem:[%s3 + $0x648] sm:$0xff]
    %v4075 = vld [vmem:[%s3 + $0x650] sm:$0xff]
    %v4076 = vld [vmem:[%s3 + $0x658] sm:$0xff]
    %v4077 = vld [vmem:[%s3 + $0x660] sm:$0xff]
    %v4078 = vld [vmem:[%s3 + $0x668] sm:$0xff]
    %v4079 = vld [vmem:[%s3 + $0x670] sm:$0xff]
    %v4080 = vld [vmem:[%s3 + $0x678] sm:$0xff]
    %v4081 = vld [vmem:[%s3 + $0x680] sm:$0xff]
    %v4082 = vld [vmem:[%s3 + $0x688] sm:$0xff]
    %v4083 = vld [vmem:[%s3 + $0x690] sm:$0xff]
    %v4084 = vld [vmem:[%s3 + $0x698] sm:$0xff]
    %v4085 = vld [vmem:[%s3 + $0x6a0] sm:$0xff]
    %v4086 = vld [vmem:[%s3 + $0x6a8] sm:$0xff]
    %v4087 = vld [vmem:[%s3 + $0x6b0] sm:$0xff]
    %v4088 = vld [vmem:[%s3 + $0x6b8] sm:$0xff]
    %v4089 = vld [vmem:[%s3 + $0x6c0] sm:$0xff]
    %v4090 = vld [vmem:[%s3 + $0x6c8] sm:$0xff]
    %v4091 = vld [vmem:[%s3 + $0x6d0] sm:$0xff]
    %v4092 = vld [vmem:[%s3 + $0x6d8] sm:$0xff]
    %v4093 = vld [vmem:[%s3 + $0x6e0] sm:$0xff]
    %v4094 = vld [vmem:[%s3 + $0x6e8] sm:$0xff]
    %v4095 = vld [vmem:[%s3 + $0x6f0] sm:$0xff]
    %v4096 = vld [vmem:[%s3 + $0x6f8] sm:$0xff]
    %v4097 = vld [vmem:[%s3 + $0x700] sm:$0xff]
    %v4098 = vld [vmem:[%s3 + $0x708] sm:$0xff]
    %v4099 = vld [vmem:[%s3 + $0x710] sm:$0xff]
    %v4100 = vld [vmem:[%s3 + $0x718] sm:$0xff]
    %v4101 = vld [vmem:[%s3 + $0x720] sm:$0xff]
    %v4102 = vld [vmem:[%s3 + $0x728] sm:$0xff]
    %v4103 = vld [vmem:[%s3 + $0x730] sm:$0xff]
    %v4104 = vld [vmem:[%s3 + $0x738] sm:$0xff]
    %v4105 = vld [vmem:[%s3 + $0x740] sm:$0xff]
    %v4106 = vld [vmem:[%s3 + $0x748] sm:$0xff]
    %v4107 = vld [vmem:[%s3 + $0x750] sm:$0xff]
    %v4108 = vld [vmem:[%s3 + $0x758] sm:$0xff]
    %v4109 = vld [vmem:[%s3 + $0x760] sm:$0xff]
    %v4110 = vld [vmem:[%s3 + $0x768] sm:$0xff]
    %v4111 = vld [vmem:[%s3 + $0x770] sm:$0xff]
    %v4112 = vld [vmem:[%s3 + $0x778] sm:$0xff]
    %v4113 = vld [vmem:[%s3 + $0x780] sm:$0xff]
    %v4114 = vld [vmem:[%s3 + $0x788] sm:$0xff]
    %v4115 = vld [vmem:[%s3 + $0x790] sm:$0xff]
    %v4116 = vld [vmem:[%s3 + $0x798] sm:$0xff]
    %v4117 = vld [vmem:[%s3 + $0x7a0] sm:$0xff]
    %v4118 = vld [vmem:[%s3 + $0x7a8] sm:$0xff]
    %v4119 = vld [vmem:[%s3 + $0x7b0] sm:$0xff]
    %v4120 = vld [vmem:[%s3 + $0x7b8] sm:$0xff]
    %v4121 = vld [vmem:[%s3 + $0x7c0] sm:$0xff]
    %v4122 = vld [vmem:[%s3 + $0x7c8] sm:$0xff]
    %v4123 = vld [vmem:[%s3 + $0x7d0] sm:$0xff]
    %v4124 = vld [vmem:[%s3 + $0x7d8] sm:$0xff]
    %v4125 = vld [vmem:[%s3 + $0x7e0] sm:$0xff]
    %v4126 = vld [vmem:[%s3 + $0x7e8] sm:$0xff]
    %v4127 = vld [vmem:[%s3 + $0x7f0] sm:$0xff]
    %v4128 = vld [vmem:[%s3 + $0x7f8] sm:$0xff]
    %v4129 = vld [vmem:[%s4] sm:$0xf]
    %v4131 = vlaneseq
    %v4132 = vshrl.u32 %v4131, 7
    %v4133 = vsub.s32 0, %v4132
    %v4134 = vrot.slane %v4129, %v4133
    %v4135 = vlaneseq
    %v4136 = vshrl.u32 %v4135, 7
    %v4137 = vsub.s32 1, %v4136
    %v4138 = vrot.slane %v4129, %v4137
    %v4139 = vlaneseq
    %v4140 = vshrl.u32 %v4139, 7
    %v4141 = vsub.s32 2, %v4140
    %v4142 = vrot.slane %v4129, %v4141
    %v4143 = vlaneseq
    %v4144 = vshrl.u32 %v4143, 7
    %v4145 = vsub.s32 3, %v4144
    %v4146 = vrot.slane %v4129, %v4145
    %v4407 = vunpack.c.l.b16 %v3873
    %v4408 = vunpack.c.h.b16 %v3873
    %v4409 = vunpack.c.l.b16 %v3874
    %v4410 = vunpack.c.h.b16 %v3874
    %v4411 = vunpack.c.l.b16 %v3875
    %v4412 = vunpack.c.h.b16 %v3875
    %v4413 = vunpack.c.l.b16 %v3876
    %v4414 = vunpack.c.h.b16 %v3876
    %v4415 = vunpack.c.l.b16 %v3877
    %v4416 = vunpack.c.h.b16 %v3877
    %v4417 = vunpack.c.l.b16 %v3878
    %v4418 = vunpack.c.h.b16 %v3878
    %v4419 = vunpack.c.l.b16 %v3879
    %v4420 = vunpack.c.h.b16 %v3879
    %v4421 = vunpack.c.l.b16 %v3880
    %v4422 = vunpack.c.h.b16 %v3880
    %v4423 = vunpack.c.l.b16 %v3881
    %v4424 = vunpack.c.h.b16 %v3881
    %v4425 = vunpack.c.l.b16 %v3882
    %v4426 = vunpack.c.h.b16 %v3882
    %v4427 = vunpack.c.l.b16 %v3883
    %v4428 = vunpack.c.h.b16 %v3883
    %v4429 = vunpack.c.l.b16 %v3884
    %v4430 = vunpack.c.h.b16 %v3884
    %v4431 = vunpack.c.l.b16 %v3885
    %v4432 = vunpack.c.h.b16 %v3885
    %v4433 = vunpack.c.l.b16 %v3886
    %v4434 = vunpack.c.h.b16 %v3886
    %v4435 = vunpack.c.l.b16 %v3887
    %v4436 = vunpack.c.h.b16 %v3887
    %v4437 = vunpack.c.l.b16 %v3888
    %v4438 = vunpack.c.h.b16 %v3888
    %v4439 = vunpack.c.l.b16 %v3889
    %v4440 = vunpack.c.h.b16 %v3889
    %v4441 = vunpack.c.l.b16 %v3890
    %v4442 = vunpack.c.h.b16 %v3890
    %v4443 = vunpack.c.l.b16 %v3891
    %v4444 = vunpack.c.h.b16 %v3891
    %v4445 = vunpack.c.l.b16 %v3892
    %v4446 = vunpack.c.h.b16 %v3892
    %v4447 = vunpack.c.l.b16 %v3893
    %v4448 = vunpack.c.h.b16 %v3893
    %v4449 = vunpack.c.l.b16 %v3894
    %v4450 = vunpack.c.h.b16 %v3894
    %v4451 = vunpack.c.l.b16 %v3895
    %v4452 = vunpack.c.h.b16 %v3895
    %v4453 = vunpack.c.l.b16 %v3896
    %v4454 = vunpack.c.h.b16 %v3896
    %v4455 = vunpack.c.l.b16 %v3897
    %v4456 = vunpack.c.h.b16 %v3897
    %v4457 = vunpack.c.l.b16 %v3898
    %v4458 = vunpack.c.h.b16 %v3898
    %v4459 = vunpack.c.l.b16 %v3899
    %v4460 = vunpack.c.h.b16 %v3899
    %v4461 = vunpack.c.l.b16 %v3900
    %v4462 = vunpack.c.h.b16 %v3900
    %v4463 = vunpack.c.l.b16 %v3901
    %v4464 = vunpack.c.h.b16 %v3901
    %v4465 = vunpack.c.l.b16 %v3902
    %v4466 = vunpack.c.h.b16 %v3902
    %v4467 = vunpack.c.l.b16 %v3903
    %v4468 = vunpack.c.h.b16 %v3903
    %v4469 = vunpack.c.l.b16 %v3904
    %v4470 = vunpack.c.h.b16 %v3904
    %v4471 = vunpack.c.l.b16 %v3905
    %v4472 = vunpack.c.h.b16 %v3905
    %v4473 = vunpack.c.l.b16 %v3906
    %v4474 = vunpack.c.h.b16 %v3906
    %v4475 = vunpack.c.l.b16 %v3907
    %v4476 = vunpack.c.h.b16 %v3907
    %v4477 = vunpack.c.l.b16 %v3908
    %v4478 = vunpack.c.h.b16 %v3908
    %v4479 = vunpack.c.l.b16 %v3909
    %v4480 = vunpack.c.h.b16 %v3909
    %v4481 = vunpack.c.l.b16 %v3910
    %v4482 = vunpack.c.h.b16 %v3910
    %v4483 = vunpack.c.l.b16 %v3911
    %v4484 = vunpack.c.h.b16 %v3911
    %v4485 = vunpack.c.l.b16 %v3912
    %v4486 = vunpack.c.h.b16 %v3912
    %v4487 = vunpack.c.l.b16 %v3913
    %v4488 = vunpack.c.h.b16 %v3913
    %v4489 = vunpack.c.l.b16 %v3914
    %v4490 = vunpack.c.h.b16 %v3914
    %v4491 = vunpack.c.l.b16 %v3915
    %v4492 = vunpack.c.h.b16 %v3915
    %v4493 = vunpack.c.l.b16 %v3916
    %v4494 = vunpack.c.h.b16 %v3916
    %v4495 = vunpack.c.l.b16 %v3917
    %v4496 = vunpack.c.h.b16 %v3917
    %v4497 = vunpack.c.l.b16 %v3918
    %v4498 = vunpack.c.h.b16 %v3918
    %v4499 = vunpack.c.l.b16 %v3919
    %v4500 = vunpack.c.h.b16 %v3919
    %v4501 = vunpack.c.l.b16 %v3920
    %v4502 = vunpack.c.h.b16 %v3920
    %v4503 = vunpack.c.l.b16 %v3921
    %v4504 = vunpack.c.h.b16 %v3921
    %v4505 = vunpack.c.l.b16 %v3922
    %v4506 = vunpack.c.h.b16 %v3922
    %v4507 = vunpack.c.l.b16 %v3923
    %v4508 = vunpack.c.h.b16 %v3923
    %v4509 = vunpack.c.l.b16 %v3924
    %v4510 = vunpack.c.h.b16 %v3924
    %v4511 = vunpack.c.l.b16 %v3925
    %v4512 = vunpack.c.h.b16 %v3925
    %v4513 = vunpack.c.l.b16 %v3926
    %v4514 = vunpack.c.h.b16 %v3926
    %v4515 = vunpack.c.l.b16 %v3927
    %v4516 = vunpack.c.h.b16 %v3927
    %v4517 = vunpack.c.l.b16 %v3928
    %v4518 = vunpack.c.h.b16 %v3928
    %v4519 = vunpack.c.l.b16 %v3929
    %v4520 = vunpack.c.h.b16 %v3929
    %v4521 = vunpack.c.l.b16 %v3930
    %v4522 = vunpack.c.h.b16 %v3930
    %v4523 = vunpack.c.l.b16 %v3931
    %v4524 = vunpack.c.h.b16 %v3931
    %v4525 = vunpack.c.l.b16 %v3932
    %v4526 = vunpack.c.h.b16 %v3932
    %v4527 = vunpack.c.l.b16 %v3933
    %v4528 = vunpack.c.h.b16 %v3933
    %v4529 = vunpack.c.l.b16 %v3934
    %v4530 = vunpack.c.h.b16 %v3934
    %v4531 = vunpack.c.l.b16 %v3935
    %v4532 = vunpack.c.h.b16 %v3935
    %v4533 = vunpack.c.l.b16 %v3936
    %v4534 = vunpack.c.h.b16 %v3936
    %v4535 = vunpack.c.l.b16 %v3937
    %v4536 = vunpack.c.h.b16 %v3937
    %v4537 = vunpack.c.l.b16 %v3938
    %v4538 = vunpack.c.h.b16 %v3938
    %v4539 = vunpack.c.l.b16 %v3939
    %v4540 = vunpack.c.h.b16 %v3939
    %v4541 = vunpack.c.l.b16 %v3940
    %v4542 = vunpack.c.h.b16 %v3940
    %v4543 = vunpack.c.l.b16 %v3941
    %v4544 = vunpack.c.h.b16 %v3941
    %v4545 = vunpack.c.l.b16 %v3942
    %v4546 = vunpack.c.h.b16 %v3942
    %v4547 = vunpack.c.l.b16 %v3943
    %v4548 = vunpack.c.h.b16 %v3943
    %v4549 = vunpack.c.l.b16 %v3944
    %v4550 = vunpack.c.h.b16 %v3944
    %v4551 = vunpack.c.l.b16 %v3945
    %v4552 = vunpack.c.h.b16 %v3945
    %v4553 = vunpack.c.l.b16 %v3946
    %v4554 = vunpack.c.h.b16 %v3946
    %v4555 = vunpack.c.l.b16 %v3947
    %v4556 = vunpack.c.h.b16 %v3947
    %v4557 = vunpack.c.l.b16 %v3948
    %v4558 = vunpack.c.h.b16 %v3948
    %v4559 = vunpack.c.l.b16 %v3949
    %v4560 = vunpack.c.h.b16 %v3949
    %v4561 = vunpack.c.l.b16 %v3950
    %v4562 = vunpack.c.h.b16 %v3950
    %v4563 = vunpack.c.l.b16 %v3951
    %v4564 = vunpack.c.h.b16 %v3951
    %v4565 = vunpack.c.l.b16 %v3952
    %v4566 = vunpack.c.h.b16 %v3952
    %v4567 = vunpack.c.l.b16 %v3953
    %v4568 = vunpack.c.h.b16 %v3953
    %v4569 = vunpack.c.l.b16 %v3954
    %v4570 = vunpack.c.h.b16 %v3954
    %v4571 = vunpack.c.l.b16 %v3955
    %v4572 = vunpack.c.h.b16 %v3955
    %v4573 = vunpack.c.l.b16 %v3956
    %v4574 = vunpack.c.h.b16 %v3956
    %v4575 = vunpack.c.l.b16 %v3957
    %v4576 = vunpack.c.h.b16 %v3957
    %v4577 = vunpack.c.l.b16 %v3958
    %v4578 = vunpack.c.h.b16 %v3958
    %v4579 = vunpack.c.l.b16 %v3959
    %v4580 = vunpack.c.h.b16 %v3959
    %v4581 = vunpack.c.l.b16 %v3960
    %v4582 = vunpack.c.h.b16 %v3960
    %v4583 = vunpack.c.l.b16 %v3961
    %v4584 = vunpack.c.h.b16 %v3961
    %v4585 = vunpack.c.l.b16 %v3962
    %v4586 = vunpack.c.h.b16 %v3962
    %v4587 = vunpack.c.l.b16 %v3963
    %v4588 = vunpack.c.h.b16 %v3963
    %v4589 = vunpack.c.l.b16 %v3964
    %v4590 = vunpack.c.h.b16 %v3964
    %v4591 = vunpack.c.l.b16 %v3965
    %v4592 = vunpack.c.h.b16 %v3965
    %v4593 = vunpack.c.l.b16 %v3966
    %v4594 = vunpack.c.h.b16 %v3966
    %v4595 = vunpack.c.l.b16 %v3967
    %v4596 = vunpack.c.h.b16 %v3967
    %v4597 = vunpack.c.l.b16 %v3968
    %v4598 = vunpack.c.h.b16 %v3968
    %v4599 = vunpack.c.l.b16 %v3969
    %v4600 = vunpack.c.h.b16 %v3969
    %v4601 = vunpack.c.l.b16 %v3970
    %v4602 = vunpack.c.h.b16 %v3970
    %v4603 = vunpack.c.l.b16 %v3971
    %v4604 = vunpack.c.h.b16 %v3971
    %v4605 = vunpack.c.l.b16 %v3972
    %v4606 = vunpack.c.h.b16 %v3972
    %v4607 = vunpack.c.l.b16 %v3973
    %v4608 = vunpack.c.h.b16 %v3973
    %v4609 = vunpack.c.l.b16 %v3974
    %v4610 = vunpack.c.h.b16 %v3974
    %v4611 = vunpack.c.l.b16 %v3975
    %v4612 = vunpack.c.h.b16 %v3975
    %v4613 = vunpack.c.l.b16 %v3976
    %v4614 = vunpack.c.h.b16 %v3976
    %v4615 = vunpack.c.l.b16 %v3977
    %v4616 = vunpack.c.h.b16 %v3977
    %v4617 = vunpack.c.l.b16 %v3978
    %v4618 = vunpack.c.h.b16 %v3978
    %v4619 = vunpack.c.l.b16 %v3979
    %v4620 = vunpack.c.h.b16 %v3979
    %v4621 = vunpack.c.l.b16 %v3980
    %v4622 = vunpack.c.h.b16 %v3980
    %v4623 = vunpack.c.l.b16 %v3981
    %v4624 = vunpack.c.h.b16 %v3981
    %v4625 = vunpack.c.l.b16 %v3982
    %v4626 = vunpack.c.h.b16 %v3982
    %v4627 = vunpack.c.l.b16 %v3983
    %v4628 = vunpack.c.h.b16 %v3983
    %v4629 = vunpack.c.l.b16 %v3984
    %v4630 = vunpack.c.h.b16 %v3984
    %v4631 = vunpack.c.l.b16 %v3985
    %v4632 = vunpack.c.h.b16 %v3985
    %v4633 = vunpack.c.l.b16 %v3986
    %v4634 = vunpack.c.h.b16 %v3986
    %v4635 = vunpack.c.l.b16 %v3987
    %v4636 = vunpack.c.h.b16 %v3987
    %v4637 = vunpack.c.l.b16 %v3988
    %v4638 = vunpack.c.h.b16 %v3988
    %v4639 = vunpack.c.l.b16 %v3989
    %v4640 = vunpack.c.h.b16 %v3989
    %v4641 = vunpack.c.l.b16 %v3990
    %v4642 = vunpack.c.h.b16 %v3990
    %v4643 = vunpack.c.l.b16 %v3991
    %v4644 = vunpack.c.h.b16 %v3991
    %v4645 = vunpack.c.l.b16 %v3992
    %v4646 = vunpack.c.h.b16 %v3992
    %v4647 = vunpack.c.l.b16 %v3993
    %v4648 = vunpack.c.h.b16 %v3993
    %v4649 = vunpack.c.l.b16 %v3994
    %v4650 = vunpack.c.h.b16 %v3994
    %v4651 = vunpack.c.l.b16 %v3995
    %v4652 = vunpack.c.h.b16 %v3995
    %v4653 = vunpack.c.l.b16 %v3996
    %v4654 = vunpack.c.h.b16 %v3996
    %v4655 = vunpack.c.l.b16 %v3997
    %v4656 = vunpack.c.h.b16 %v3997
    %v4657 = vunpack.c.l.b16 %v3998
    %v4658 = vunpack.c.h.b16 %v3998
    %v4659 = vunpack.c.l.b16 %v3999
    %v4660 = vunpack.c.h.b16 %v3999
    %v4661 = vunpack.c.l.b16 %v4000
    %v4662 = vunpack.c.h.b16 %v4000
    %v4663 = vunpack.c.l.b16 %v4001
    %v4664 = vunpack.c.h.b16 %v4001
    %v4665 = vunpack.c.l.b16 %v4002
    %v4666 = vunpack.c.h.b16 %v4002
    %v4667 = vunpack.c.l.b16 %v4003
    %v4668 = vunpack.c.h.b16 %v4003
    %v4669 = vunpack.c.l.b16 %v4004
    %v4670 = vunpack.c.h.b16 %v4004
    %v4671 = vunpack.c.l.b16 %v4005
    %v4672 = vunpack.c.h.b16 %v4005
    %v4673 = vunpack.c.l.b16 %v4006
    %v4674 = vunpack.c.h.b16 %v4006
    %v4675 = vunpack.c.l.b16 %v4007
    %v4676 = vunpack.c.h.b16 %v4007
    %v4677 = vunpack.c.l.b16 %v4008
    %v4678 = vunpack.c.h.b16 %v4008
    %v4679 = vunpack.c.l.b16 %v4009
    %v4680 = vunpack.c.h.b16 %v4009
    %v4681 = vunpack.c.l.b16 %v4010
    %v4682 = vunpack.c.h.b16 %v4010
    %v4683 = vunpack.c.l.b16 %v4011
    %v4684 = vunpack.c.h.b16 %v4011
    %v4685 = vunpack.c.l.b16 %v4012
    %v4686 = vunpack.c.h.b16 %v4012
    %v4687 = vunpack.c.l.b16 %v4013
    %v4688 = vunpack.c.h.b16 %v4013
    %v4689 = vunpack.c.l.b16 %v4014
    %v4690 = vunpack.c.h.b16 %v4014
    %v4691 = vunpack.c.l.b16 %v4015
    %v4692 = vunpack.c.h.b16 %v4015
    %v4693 = vunpack.c.l.b16 %v4016
    %v4694 = vunpack.c.h.b16 %v4016
    %v4695 = vunpack.c.l.b16 %v4017
    %v4696 = vunpack.c.h.b16 %v4017
    %v4697 = vunpack.c.l.b16 %v4018
    %v4698 = vunpack.c.h.b16 %v4018
    %v4699 = vunpack.c.l.b16 %v4019
    %v4700 = vunpack.c.h.b16 %v4019
    %v4701 = vunpack.c.l.b16 %v4020
    %v4702 = vunpack.c.h.b16 %v4020
    %v4703 = vunpack.c.l.b16 %v4021
    %v4704 = vunpack.c.h.b16 %v4021
    %v4705 = vunpack.c.l.b16 %v4022
    %v4706 = vunpack.c.h.b16 %v4022
    %v4707 = vunpack.c.l.b16 %v4023
    %v4708 = vunpack.c.h.b16 %v4023
    %v4709 = vunpack.c.l.b16 %v4024
    %v4710 = vunpack.c.h.b16 %v4024
    %v4711 = vunpack.c.l.b16 %v4025
    %v4712 = vunpack.c.h.b16 %v4025
    %v4713 = vunpack.c.l.b16 %v4026
    %v4714 = vunpack.c.h.b16 %v4026
    %v4715 = vunpack.c.l.b16 %v4027
    %v4716 = vunpack.c.h.b16 %v4027
    %v4717 = vunpack.c.l.b16 %v4028
    %v4718 = vunpack.c.h.b16 %v4028
    %v4719 = vunpack.c.l.b16 %v4029
    %v4720 = vunpack.c.h.b16 %v4029
    %v4721 = vunpack.c.l.b16 %v4030
    %v4722 = vunpack.c.h.b16 %v4030
    %v4723 = vunpack.c.l.b16 %v4031
    %v4724 = vunpack.c.h.b16 %v4031
    %v4725 = vunpack.c.l.b16 %v4032
    %v4726 = vunpack.c.h.b16 %v4032
    %v4727 = vunpack.c.l.b16 %v4033
    %v4728 = vunpack.c.h.b16 %v4033
    %v4729 = vunpack.c.l.b16 %v4034
    %v4730 = vunpack.c.h.b16 %v4034
    %v4731 = vunpack.c.l.b16 %v4035
    %v4732 = vunpack.c.h.b16 %v4035
    %v4733 = vunpack.c.l.b16 %v4036
    %v4734 = vunpack.c.h.b16 %v4036
    %v4735 = vunpack.c.l.b16 %v4037
    %v4736 = vunpack.c.h.b16 %v4037
    %v4737 = vunpack.c.l.b16 %v4038
    %v4738 = vunpack.c.h.b16 %v4038
    %v4739 = vunpack.c.l.b16 %v4039
    %v4740 = vunpack.c.h.b16 %v4039
    %v4741 = vunpack.c.l.b16 %v4040
    %v4742 = vunpack.c.h.b16 %v4040
    %v4743 = vunpack.c.l.b16 %v4041
    %v4744 = vunpack.c.h.b16 %v4041
    %v4745 = vunpack.c.l.b16 %v4042
    %v4746 = vunpack.c.h.b16 %v4042
    %v4747 = vunpack.c.l.b16 %v4043
    %v4748 = vunpack.c.h.b16 %v4043
    %v4749 = vunpack.c.l.b16 %v4044
    %v4750 = vunpack.c.h.b16 %v4044
    %v4751 = vunpack.c.l.b16 %v4045
    %v4752 = vunpack.c.h.b16 %v4045
    %v4753 = vunpack.c.l.b16 %v4046
    %v4754 = vunpack.c.h.b16 %v4046
    %v4755 = vunpack.c.l.b16 %v4047
    %v4756 = vunpack.c.h.b16 %v4047
    %v4757 = vunpack.c.l.b16 %v4048
    %v4758 = vunpack.c.h.b16 %v4048
    %v4759 = vunpack.c.l.b16 %v4049
    %v4760 = vunpack.c.h.b16 %v4049
    %v4761 = vunpack.c.l.b16 %v4050
    %v4762 = vunpack.c.h.b16 %v4050
    %v4763 = vunpack.c.l.b16 %v4051
    %v4764 = vunpack.c.h.b16 %v4051
    %v4765 = vunpack.c.l.b16 %v4052
    %v4766 = vunpack.c.h.b16 %v4052
    %v4767 = vunpack.c.l.b16 %v4053
    %v4768 = vunpack.c.h.b16 %v4053
    %v4769 = vunpack.c.l.b16 %v4054
    %v4770 = vunpack.c.h.b16 %v4054
    %v4771 = vunpack.c.l.b16 %v4055
    %v4772 = vunpack.c.h.b16 %v4055
    %v4773 = vunpack.c.l.b16 %v4056
    %v4774 = vunpack.c.h.b16 %v4056
    %v4775 = vunpack.c.l.b16 %v4057
    %v4776 = vunpack.c.h.b16 %v4057
    %v4777 = vunpack.c.l.b16 %v4058
    %v4778 = vunpack.c.h.b16 %v4058
    %v4779 = vunpack.c.l.b16 %v4059
    %v4780 = vunpack.c.h.b16 %v4059
    %v4781 = vunpack.c.l.b16 %v4060
    %v4782 = vunpack.c.h.b16 %v4060
    %v4783 = vunpack.c.l.b16 %v4061
    %v4784 = vunpack.c.h.b16 %v4061
    %v4785 = vunpack.c.l.b16 %v4062
    %v4786 = vunpack.c.h.b16 %v4062
    %v4787 = vunpack.c.l.b16 %v4063
    %v4788 = vunpack.c.h.b16 %v4063
    %v4789 = vunpack.c.l.b16 %v4064
    %v4790 = vunpack.c.h.b16 %v4064
    %v4791 = vunpack.c.l.b16 %v4065
    %v4792 = vunpack.c.h.b16 %v4065
    %v4793 = vunpack.c.l.b16 %v4066
    %v4794 = vunpack.c.h.b16 %v4066
    %v4795 = vunpack.c.l.b16 %v4067
    %v4796 = vunpack.c.h.b16 %v4067
    %v4797 = vunpack.c.l.b16 %v4068
    %v4798 = vunpack.c.h.b16 %v4068
    %v4799 = vunpack.c.l.b16 %v4069
    %v4800 = vunpack.c.h.b16 %v4069
    %v4801 = vunpack.c.l.b16 %v4070
    %v4802 = vunpack.c.h.b16 %v4070
    %v4803 = vunpack.c.l.b16 %v4071
    %v4804 = vunpack.c.h.b16 %v4071
    %v4805 = vunpack.c.l.b16 %v4072
    %v4806 = vunpack.c.h.b16 %v4072
    %v4807 = vunpack.c.l.b16 %v4073
    %v4808 = vunpack.c.h.b16 %v4073
    %v4809 = vunpack.c.l.b16 %v4074
    %v4810 = vunpack.c.h.b16 %v4074
    %v4811 = vunpack.c.l.b16 %v4075
    %v4812 = vunpack.c.h.b16 %v4075
    %v4813 = vunpack.c.l.b16 %v4076
    %v4814 = vunpack.c.h.b16 %v4076
    %v4815 = vunpack.c.l.b16 %v4077
    %v4816 = vunpack.c.h.b16 %v4077
    %v4817 = vunpack.c.l.b16 %v4078
    %v4818 = vunpack.c.h.b16 %v4078
    %v4819 = vunpack.c.l.b16 %v4079
    %v4820 = vunpack.c.h.b16 %v4079
    %v4821 = vunpack.c.l.b16 %v4080
    %v4822 = vunpack.c.h.b16 %v4080
    %v4823 = vunpack.c.l.b16 %v4081
    %v4824 = vunpack.c.h.b16 %v4081
    %v4825 = vunpack.c.l.b16 %v4082
    %v4826 = vunpack.c.h.b16 %v4082
    %v4827 = vunpack.c.l.b16 %v4083
    %v4828 = vunpack.c.h.b16 %v4083
    %v4829 = vunpack.c.l.b16 %v4084
    %v4830 = vunpack.c.h.b16 %v4084
    %v4831 = vunpack.c.l.b16 %v4085
    %v4832 = vunpack.c.h.b16 %v4085
    %v4833 = vunpack.c.l.b16 %v4086
    %v4834 = vunpack.c.h.b16 %v4086
    %v4835 = vunpack.c.l.b16 %v4087
    %v4836 = vunpack.c.h.b16 %v4087
    %v4837 = vunpack.c.l.b16 %v4088
    %v4838 = vunpack.c.h.b16 %v4088
    %v4839 = vunpack.c.l.b16 %v4089
    %v4840 = vunpack.c.h.b16 %v4089
    %v4841 = vunpack.c.l.b16 %v4090
    %v4842 = vunpack.c.h.b16 %v4090
    %v4843 = vunpack.c.l.b16 %v4091
    %v4844 = vunpack.c.h.b16 %v4091
    %v4845 = vunpack.c.l.b16 %v4092
    %v4846 = vunpack.c.h.b16 %v4092
    %v4847 = vunpack.c.l.b16 %v4093
    %v4848 = vunpack.c.h.b16 %v4093
    %v4849 = vunpack.c.l.b16 %v4094
    %v4850 = vunpack.c.h.b16 %v4094
    %v4851 = vunpack.c.l.b16 %v4095
    %v4852 = vunpack.c.h.b16 %v4095
    %v4853 = vunpack.c.l.b16 %v4096
    %v4854 = vunpack.c.h.b16 %v4096
    %v4855 = vunpack.c.l.b16 %v4097
    %v4856 = vunpack.c.h.b16 %v4097
    %v4857 = vunpack.c.l.b16 %v4098
    %v4858 = vunpack.c.h.b16 %v4098
    %v4859 = vunpack.c.l.b16 %v4099
    %v4860 = vunpack.c.h.b16 %v4099
    %v4861 = vunpack.c.l.b16 %v4100
    %v4862 = vunpack.c.h.b16 %v4100
    %v4863 = vunpack.c.l.b16 %v4101
    %v4864 = vunpack.c.h.b16 %v4101
    %v4865 = vunpack.c.l.b16 %v4102
    %v4866 = vunpack.c.h.b16 %v4102
    %v4867 = vunpack.c.l.b16 %v4103
    %v4868 = vunpack.c.h.b16 %v4103
    %v4869 = vunpack.c.l.b16 %v4104
    %v4870 = vunpack.c.h.b16 %v4104
    %v4871 = vunpack.c.l.b16 %v4105
    %v4872 = vunpack.c.h.b16 %v4105
    %v4873 = vunpack.c.l.b16 %v4106
    %v4874 = vunpack.c.h.b16 %v4106
    %v4875 = vunpack.c.l.b16 %v4107
    %v4876 = vunpack.c.h.b16 %v4107
    %v4877 = vunpack.c.l.b16 %v4108
    %v4878 = vunpack.c.h.b16 %v4108
    %v4879 = vunpack.c.l.b16 %v4109
    %v4880 = vunpack.c.h.b16 %v4109
    %v4881 = vunpack.c.l.b16 %v4110
    %v4882 = vunpack.c.h.b16 %v4110
    %v4883 = vunpack.c.l.b16 %v4111
    %v4884 = vunpack.c.h.b16 %v4111
    %v4885 = vunpack.c.l.b16 %v4112
    %v4886 = vunpack.c.h.b16 %v4112
    %v4887 = vunpack.c.l.b16 %v4113
    %v4888 = vunpack.c.h.b16 %v4113
    %v4889 = vunpack.c.l.b16 %v4114
    %v4890 = vunpack.c.h.b16 %v4114
    %v4891 = vunpack.c.l.b16 %v4115
    %v4892 = vunpack.c.h.b16 %v4115
    %v4893 = vunpack.c.l.b16 %v4116
    %v4894 = vunpack.c.h.b16 %v4116
    %v4895 = vunpack.c.l.b16 %v4117
    %v4896 = vunpack.c.h.b16 %v4117
    %v4897 = vunpack.c.l.b16 %v4118
    %v4898 = vunpack.c.h.b16 %v4118
    %v4899 = vunpack.c.l.b16 %v4119
    %v4900 = vunpack.c.h.b16 %v4119
    %v4901 = vunpack.c.l.b16 %v4120
    %v4902 = vunpack.c.h.b16 %v4120
    %v4903 = vunpack.c.l.b16 %v4121
    %v4904 = vunpack.c.h.b16 %v4121
    %v4905 = vunpack.c.l.b16 %v4122
    %v4906 = vunpack.c.h.b16 %v4122
    %v4907 = vunpack.c.l.b16 %v4123
    %v4908 = vunpack.c.h.b16 %v4123
    %v4909 = vunpack.c.l.b16 %v4124
    %v4910 = vunpack.c.h.b16 %v4124
    %v4911 = vunpack.c.l.b16 %v4125
    %v4912 = vunpack.c.h.b16 %v4125
    %v4913 = vunpack.c.l.b16 %v4126
    %v4914 = vunpack.c.h.b16 %v4126
    %v4915 = vunpack.c.l.b16 %v4127
    %v4916 = vunpack.c.h.b16 %v4127
    %v4917 = vunpack.c.l.b16 %v4128
    %v4918 = vunpack.c.h.b16 %v4128
    %v4919 = vpack.c.b16 %v4411, %v4407
    %v4920 = vpack.c.b16 %v4412, %v4408
    %v4921 = vpack.c.b16 %v4413, %v4409
    %v4922 = vpack.c.b16 %v4414, %v4410
    %v4923 = vpack.c.b16 %v4419, %v4415
    %v4924 = vpack.c.b16 %v4420, %v4416
    %v4925 = vpack.c.b16 %v4421, %v4417
    %v4926 = vpack.c.b16 %v4422, %v4418
    %v4927 = vpack.c.b16 %v4427, %v4423
    %v4928 = vpack.c.b16 %v4428, %v4424
    %v4929 = vpack.c.b16 %v4429, %v4425
    %v4930 = vpack.c.b16 %v4430, %v4426
    %v4931 = vpack.c.b16 %v4435, %v4431
    %v4932 = vpack.c.b16 %v4436, %v4432
    %v4933 = vpack.c.b16 %v4437, %v4433
    %v4934 = vpack.c.b16 %v4438, %v4434
    %v4935 = vpack.c.b16 %v4443, %v4439
    %v4936 = vpack.c.b16 %v4444, %v4440
    %v4937 = vpack.c.b16 %v4445, %v4441
    %v4938 = vpack.c.b16 %v4446, %v4442
    %v4939 = vpack.c.b16 %v4451, %v4447
    %v4940 = vpack.c.b16 %v4452, %v4448
    %v4941 = vpack.c.b16 %v4453, %v4449
    %v4942 = vpack.c.b16 %v4454, %v4450
    %v4943 = vpack.c.b16 %v4459, %v4455
    %v4944 = vpack.c.b16 %v4460, %v4456
    %v4945 = vpack.c.b16 %v4461, %v4457
    %v4946 = vpack.c.b16 %v4462, %v4458
    %v4947 = vpack.c.b16 %v4467, %v4463
    %v4948 = vpack.c.b16 %v4468, %v4464
    %v4949 = vpack.c.b16 %v4469, %v4465
    %v4950 = vpack.c.b16 %v4470, %v4466
    %v4951 = vpack.c.b16 %v4475, %v4471
    %v4952 = vpack.c.b16 %v4476, %v4472
    %v4953 = vpack.c.b16 %v4477, %v4473
    %v4954 = vpack.c.b16 %v4478, %v4474
    %v4955 = vpack.c.b16 %v4483, %v4479
    %v4956 = vpack.c.b16 %v4484, %v4480
    %v4957 = vpack.c.b16 %v4485, %v4481
    %v4958 = vpack.c.b16 %v4486, %v4482
    %v4959 = vpack.c.b16 %v4491, %v4487
    %v4960 = vpack.c.b16 %v4492, %v4488
    %v4961 = vpack.c.b16 %v4493, %v4489
    %v4962 = vpack.c.b16 %v4494, %v4490
    %v4963 = vpack.c.b16 %v4499, %v4495
    %v4964 = vpack.c.b16 %v4500, %v4496
    %v4965 = vpack.c.b16 %v4501, %v4497
    %v4966 = vpack.c.b16 %v4502, %v4498
    %v4967 = vpack.c.b16 %v4507, %v4503
    %v4968 = vpack.c.b16 %v4508, %v4504
    %v4969 = vpack.c.b16 %v4509, %v4505
    %v4970 = vpack.c.b16 %v4510, %v4506
    %v4971 = vpack.c.b16 %v4515, %v4511
    %v4972 = vpack.c.b16 %v4516, %v4512
    %v4973 = vpack.c.b16 %v4517, %v4513
    %v4974 = vpack.c.b16 %v4518, %v4514
    %v4975 = vpack.c.b16 %v4523, %v4519
    %v4976 = vpack.c.b16 %v4524, %v4520
    %v4977 = vpack.c.b16 %v4525, %v4521
    %v4978 = vpack.c.b16 %v4526, %v4522
    %v4979 = vpack.c.b16 %v4531, %v4527
    %v4980 = vpack.c.b16 %v4532, %v4528
    %v4981 = vpack.c.b16 %v4533, %v4529
    %v4982 = vpack.c.b16 %v4534, %v4530
    %v4983 = vpack.c.b16 %v4539, %v4535
    %v4984 = vpack.c.b16 %v4540, %v4536
    %v4985 = vpack.c.b16 %v4541, %v4537
    %v4986 = vpack.c.b16 %v4542, %v4538
    %v4987 = vpack.c.b16 %v4547, %v4543
    %v4988 = vpack.c.b16 %v4548, %v4544
    %v4989 = vpack.c.b16 %v4549, %v4545
    %v4990 = vpack.c.b16 %v4550, %v4546
    %v4991 = vpack.c.b16 %v4555, %v4551
    %v4992 = vpack.c.b16 %v4556, %v4552
    %v4993 = vpack.c.b16 %v4557, %v4553
    %v4994 = vpack.c.b16 %v4558, %v4554
    %v4995 = vpack.c.b16 %v4563, %v4559
    %v4996 = vpack.c.b16 %v4564, %v4560
    %v4997 = vpack.c.b16 %v4565, %v4561
    %v4998 = vpack.c.b16 %v4566, %v4562
    %v4999 = vpack.c.b16 %v4571, %v4567
    %v5000 = vpack.c.b16 %v4572, %v4568
    %v5001 = vpack.c.b16 %v4573, %v4569
    %v5002 = vpack.c.b16 %v4574, %v4570
    %v5003 = vpack.c.b16 %v4579, %v4575
    %v5004 = vpack.c.b16 %v4580, %v4576
    %v5005 = vpack.c.b16 %v4581, %v4577
    %v5006 = vpack.c.b16 %v4582, %v4578
    %v5007 = vpack.c.b16 %v4587, %v4583
    %v5008 = vpack.c.b16 %v4588, %v4584
    %v5009 = vpack.c.b16 %v4589, %v4585
    %v5010 = vpack.c.b16 %v4590, %v4586
    %v5011 = vpack.c.b16 %v4595, %v4591
    %v5012 = vpack.c.b16 %v4596, %v4592
    %v5013 = vpack.c.b16 %v4597, %v4593
    %v5014 = vpack.c.b16 %v4598, %v4594
    %v5015 = vpack.c.b16 %v4603, %v4599
    %v5016 = vpack.c.b16 %v4604, %v4600
    %v5017 = vpack.c.b16 %v4605, %v4601
    %v5018 = vpack.c.b16 %v4606, %v4602
    %v5019 = vpack.c.b16 %v4611, %v4607
    %v5020 = vpack.c.b16 %v4612, %v4608
    %v5021 = vpack.c.b16 %v4613, %v4609
    %v5022 = vpack.c.b16 %v4614, %v4610
    %v5023 = vpack.c.b16 %v4619, %v4615
    %v5024 = vpack.c.b16 %v4620, %v4616
    %v5025 = vpack.c.b16 %v4621, %v4617
    %v5026 = vpack.c.b16 %v4622, %v4618
    %v5027 = vpack.c.b16 %v4627, %v4623
    %v5028 = vpack.c.b16 %v4628, %v4624
    %v5029 = vpack.c.b16 %v4629, %v4625
    %v5030 = vpack.c.b16 %v4630, %v4626
    %v5031 = vpack.c.b16 %v4635, %v4631
    %v5032 = vpack.c.b16 %v4636, %v4632
    %v5033 = vpack.c.b16 %v4637, %v4633
    %v5034 = vpack.c.b16 %v4638, %v4634
    %v5035 = vpack.c.b16 %v4643, %v4639
    %v5036 = vpack.c.b16 %v4644, %v4640
    %v5037 = vpack.c.b16 %v4645, %v4641
    %v5038 = vpack.c.b16 %v4646, %v4642
    %v5039 = vpack.c.b16 %v4651, %v4647
    %v5040 = vpack.c.b16 %v4652, %v4648
    %v5041 = vpack.c.b16 %v4653, %v4649
    %v5042 = vpack.c.b16 %v4654, %v4650
    %v5043 = vpack.c.b16 %v4659, %v4655
    %v5044 = vpack.c.b16 %v4660, %v4656
    %v5045 = vpack.c.b16 %v4661, %v4657
    %v5046 = vpack.c.b16 %v4662, %v4658
    %v5047 = vpack.c.b16 %v4667, %v4663
    %v5048 = vpack.c.b16 %v4668, %v4664
    %v5049 = vpack.c.b16 %v4669, %v4665
    %v5050 = vpack.c.b16 %v4670, %v4666
    %v5051 = vpack.c.b16 %v4675, %v4671
    %v5052 = vpack.c.b16 %v4676, %v4672
    %v5053 = vpack.c.b16 %v4677, %v4673
    %v5054 = vpack.c.b16 %v4678, %v4674
    %v5055 = vpack.c.b16 %v4683, %v4679
    %v5056 = vpack.c.b16 %v4684, %v4680
    %v5057 = vpack.c.b16 %v4685, %v4681
    %v5058 = vpack.c.b16 %v4686, %v4682
    %v5059 = vpack.c.b16 %v4691, %v4687
    %v5060 = vpack.c.b16 %v4692, %v4688
    %v5061 = vpack.c.b16 %v4693, %v4689
    %v5062 = vpack.c.b16 %v4694, %v4690
    %v5063 = vpack.c.b16 %v4699, %v4695
    %v5064 = vpack.c.b16 %v4700, %v4696
    %v5065 = vpack.c.b16 %v4701, %v4697
    %v5066 = vpack.c.b16 %v4702, %v4698
    %v5067 = vpack.c.b16 %v4707, %v4703
    %v5068 = vpack.c.b16 %v4708, %v4704
    %v5069 = vpack.c.b16 %v4709, %v4705
    %v5070 = vpack.c.b16 %v4710, %v4706
    %v5071 = vpack.c.b16 %v4715, %v4711
    %v5072 = vpack.c.b16 %v4716, %v4712
    %v5073 = vpack.c.b16 %v4717, %v4713
    %v5074 = vpack.c.b16 %v4718, %v4714
    %v5075 = vpack.c.b16 %v4723, %v4719
    %v5076 = vpack.c.b16 %v4724, %v4720
    %v5077 = vpack.c.b16 %v4725, %v4721
    %v5078 = vpack.c.b16 %v4726, %v4722
    %v5079 = vpack.c.b16 %v4731, %v4727
    %v5080 = vpack.c.b16 %v4732, %v4728
    %v5081 = vpack.c.b16 %v4733, %v4729
    %v5082 = vpack.c.b16 %v4734, %v4730
    %v5083 = vpack.c.b16 %v4739, %v4735
    %v5084 = vpack.c.b16 %v4740, %v4736
    %v5085 = vpack.c.b16 %v4741, %v4737
    %v5086 = vpack.c.b16 %v4742, %v4738
    %v5087 = vpack.c.b16 %v4747, %v4743
    %v5088 = vpack.c.b16 %v4748, %v4744
    %v5089 = vpack.c.b16 %v4749, %v4745
    %v5090 = vpack.c.b16 %v4750, %v4746
    %v5091 = vpack.c.b16 %v4755, %v4751
    %v5092 = vpack.c.b16 %v4756, %v4752
    %v5093 = vpack.c.b16 %v4757, %v4753
    %v5094 = vpack.c.b16 %v4758, %v4754
    %v5095 = vpack.c.b16 %v4763, %v4759
    %v5096 = vpack.c.b16 %v4764, %v4760
    %v5097 = vpack.c.b16 %v4765, %v4761
    %v5098 = vpack.c.b16 %v4766, %v4762
    %v5099 = vpack.c.b16 %v4771, %v4767
    %v5100 = vpack.c.b16 %v4772, %v4768
    %v5101 = vpack.c.b16 %v4773, %v4769
    %v5102 = vpack.c.b16 %v4774, %v4770
    %v5103 = vpack.c.b16 %v4779, %v4775
    %v5104 = vpack.c.b16 %v4780, %v4776
    %v5105 = vpack.c.b16 %v4781, %v4777
    %v5106 = vpack.c.b16 %v4782, %v4778
    %v5107 = vpack.c.b16 %v4787, %v4783
    %v5108 = vpack.c.b16 %v4788, %v4784
    %v5109 = vpack.c.b16 %v4789, %v4785
    %v5110 = vpack.c.b16 %v4790, %v4786
    %v5111 = vpack.c.b16 %v4795, %v4791
    %v5112 = vpack.c.b16 %v4796, %v4792
    %v5113 = vpack.c.b16 %v4797, %v4793
    %v5114 = vpack.c.b16 %v4798, %v4794
    %v5115 = vpack.c.b16 %v4803, %v4799
    %v5116 = vpack.c.b16 %v4804, %v4800
    %v5117 = vpack.c.b16 %v4805, %v4801
    %v5118 = vpack.c.b16 %v4806, %v4802
    %v5119 = vpack.c.b16 %v4811, %v4807
    %v5120 = vpack.c.b16 %v4812, %v4808
    %v5121 = vpack.c.b16 %v4813, %v4809
    %v5122 = vpack.c.b16 %v4814, %v4810
    %v5123 = vpack.c.b16 %v4819, %v4815
    %v5124 = vpack.c.b16 %v4820, %v4816
    %v5125 = vpack.c.b16 %v4821, %v4817
    %v5126 = vpack.c.b16 %v4822, %v4818
    %v5127 = vpack.c.b16 %v4827, %v4823
    %v5128 = vpack.c.b16 %v4828, %v4824
    %v5129 = vpack.c.b16 %v4829, %v4825
    %v5130 = vpack.c.b16 %v4830, %v4826
    %v5131 = vpack.c.b16 %v4835, %v4831
    %v5132 = vpack.c.b16 %v4836, %v4832
    %v5133 = vpack.c.b16 %v4837, %v4833
    %v5134 = vpack.c.b16 %v4838, %v4834
    %v5135 = vpack.c.b16 %v4843, %v4839
    %v5136 = vpack.c.b16 %v4844, %v4840
    %v5137 = vpack.c.b16 %v4845, %v4841
    %v5138 = vpack.c.b16 %v4846, %v4842
    %v5139 = vpack.c.b16 %v4851, %v4847
    %v5140 = vpack.c.b16 %v4852, %v4848
    %v5141 = vpack.c.b16 %v4853, %v4849
    %v5142 = vpack.c.b16 %v4854, %v4850
    %v5143 = vpack.c.b16 %v4859, %v4855
    %v5144 = vpack.c.b16 %v4860, %v4856
    %v5145 = vpack.c.b16 %v4861, %v4857
    %v5146 = vpack.c.b16 %v4862, %v4858
    %v5147 = vpack.c.b16 %v4867, %v4863
    %v5148 = vpack.c.b16 %v4868, %v4864
    %v5149 = vpack.c.b16 %v4869, %v4865
    %v5150 = vpack.c.b16 %v4870, %v4866
    %v5151 = vpack.c.b16 %v4875, %v4871
    %v5152 = vpack.c.b16 %v4876, %v4872
    %v5153 = vpack.c.b16 %v4877, %v4873
    %v5154 = vpack.c.b16 %v4878, %v4874
    %v5155 = vpack.c.b16 %v4883, %v4879
    %v5156 = vpack.c.b16 %v4884, %v4880
    %v5157 = vpack.c.b16 %v4885, %v4881
    %v5158 = vpack.c.b16 %v4886, %v4882
    %v5159 = vpack.c.b16 %v4891, %v4887
    %v5160 = vpack.c.b16 %v4892, %v4888
    %v5161 = vpack.c.b16 %v4893, %v4889
    %v5162 = vpack.c.b16 %v4894, %v4890
    %v5163 = vpack.c.b16 %v4899, %v4895
    %v5164 = vpack.c.b16 %v4900, %v4896
    %v5165 = vpack.c.b16 %v4901, %v4897
    %v5166 = vpack.c.b16 %v4902, %v4898
    %v5167 = vpack.c.b16 %v4907, %v4903
    %v5168 = vpack.c.b16 %v4908, %v4904
    %v5169 = vpack.c.b16 %v4909, %v4905
    %v5170 = vpack.c.b16 %v4910, %v4906
    %v5171 = vpack.c.b16 %v4915, %v4911
    %v5172 = vpack.c.b16 %v4916, %v4912
    %v5173 = vpack.c.b16 %v4917, %v4913
    %v5174 = vpack.c.b16 %v4918, %v4914
    %5431 = vmatprep.subr.bf16.mxu0 %v4920
    %5432 = vmatpush1.bf16.msra.mxu0 %v4919
    %5433 = vmatprep.subr.bf16.mxu0 %v4924
    %5434 = vmatpush1.bf16.msra.mxu0 %v4923
    %5435 = vmatprep.subr.bf16.mxu0 %v4928
    %5436 = vmatpush1.bf16.msra.mxu0 %v4927
    %5437 = vmatprep.subr.bf16.mxu0 %v4932
    %5438 = vmatpush1.bf16.msra.mxu0 %v4931
    %5439 = vmatprep.subr.bf16.mxu0 %v4936
    %5440 = vmatpush1.bf16.msra.mxu0 %v4935
    %5441 = vmatprep.subr.bf16.mxu0 %v4940
    %5442 = vmatpush1.bf16.msra.mxu0 %v4939
    %5443 = vmatprep.subr.bf16.mxu0 %v4944
    %5444 = vmatpush1.bf16.msra.mxu0 %v4943
    %5445 = vmatprep.subr.bf16.mxu0 %v4948
    %5446 = vmatpush1.bf16.msra.mxu0 %v4947
    %5447 = vmatprep.subr.bf16.mxu0 %v4952
    %5448 = vmatpush1.bf16.msra.mxu0 %v4951
    %5449 = vmatprep.subr.bf16.mxu0 %v4956
    %5450 = vmatpush1.bf16.msra.mxu0 %v4955
    %5451 = vmatprep.subr.bf16.mxu0 %v4960
    %5452 = vmatpush1.bf16.msra.mxu0 %v4959
    %5453 = vmatprep.subr.bf16.mxu0 %v4964
    %5454 = vmatpush1.bf16.msra.mxu0 %v4963
    %5455 = vmatprep.subr.bf16.mxu0 %v4968
    %5456 = vmatpush1.bf16.msra.mxu0 %v4967
    %5457 = vmatprep.subr.bf16.mxu0 %v4972
    %5458 = vmatpush1.bf16.msra.mxu0 %v4971
    %5459 = vmatprep.subr.bf16.mxu0 %v4976
    %5460 = vmatpush1.bf16.msra.mxu0 %v4975
    %5461 = vmatprep.subr.bf16.mxu0 %v4980
    %5462 = vmatpush1.bf16.msra.mxu0 %v4979
    %5463 = vmatprep.mubr.bf16.mxu0 %v3866
    %5464 = vmatmul.mubr.bf16.gmra.mrb[0].mxu0 %v3865
    %v5465 = vpop.f32.mrb[0].mxu0
    %v5466 = vadd.f32 %v4134, %v5465
    %v5467 = vpop.f32.mrb[0].mxu0
    %v5468 = vadd.f32 %v4138, %v5467
    %v5469 = vpop.f32.mrb[0].mxu0
    %v5470 = vpop.f32.mrb[0].mxu0
    %5471 = vdwg.mxu0
    %5472 = vmatprep.subr.bf16.mxu0 %v4984
    %5473 = vmatpush1.bf16.msra.mxu0 %v4983
    %5474 = vmatprep.subr.bf16.mxu0 %v4988
    %5475 = vmatpush1.bf16.msra.mxu0 %v4987
    %5476 = vmatprep.subr.bf16.mxu0 %v4992
    %5477 = vmatpush1.bf16.msra.mxu0 %v4991
    %5478 = vmatprep.subr.bf16.mxu0 %v4996
    %5479 = vmatpush1.bf16.msra.mxu0 %v4995
    %5480 = vmatprep.subr.bf16.mxu0 %v5000
    %5481 = vmatpush1.bf16.msra.mxu0 %v4999
    %5482 = vmatprep.subr.bf16.mxu0 %v5004
    %5483 = vmatpush1.bf16.msra.mxu0 %v5003
    %5484 = vmatprep.subr.bf16.mxu0 %v5008
    %5485 = vmatpush1.bf16.msra.mxu0 %v5007
    %5486 = vmatprep.subr.bf16.mxu0 %v5012
    %5487 = vmatpush1.bf16.msra.mxu0 %v5011
    %5488 = vmatprep.subr.bf16.mxu0 %v5016
    %5489 = vmatpush1.bf16.msra.mxu0 %v5015
    %5490 = vmatprep.subr.bf16.mxu0 %v5020
    %5491 = vmatpush1.bf16.msra.mxu0 %v5019
    %5492 = vmatprep.subr.bf16.mxu0 %v5024
    %5493 = vmatpush1.bf16.msra.mxu0 %v5023
    %5494 = vmatprep.subr.bf16.mxu0 %v5028
    %5495 = vmatpush1.bf16.msra.mxu0 %v5027
    %5496 = vmatprep.subr.bf16.mxu0 %v5032
    %5497 = vmatpush1.bf16.msra.mxu0 %v5031
    %5498 = vmatprep.subr.bf16.mxu0 %v5036
    %5499 = vmatpush1.bf16.msra.mxu0 %v5035
    %5500 = vmatprep.subr.bf16.mxu0 %v5040
    %5501 = vmatpush1.bf16.msra.mxu0 %v5039
    %5502 = vmatprep.subr.bf16.mxu0 %v5044
    %5503 = vmatpush1.bf16.msra.mxu0 %v5043
    %5504 = vmatprep.mubr.bf16.mxu0 %v3868
    %5505 = vmatmul.mubr.bf16.gmra.mrb[0].mxu0 %v3867
    %v5506 = vpop.f32.mrb[0].mxu0
    %v5507 = vadd.f32 %v5466, %v5506
    %v5508 = vpop.f32.mrb[0].mxu0
    %v5509 = vadd.f32 %v5468, %v5508
    %v5510 = vpop.f32.mrb[0].mxu0
    %v5511 = vpop.f32.mrb[0].mxu0
    %5512 = vdwg.mxu0
    %5513 = vmatprep.subr.bf16.mxu0 %v5048
    %5514 = vmatpush1.bf16.msra.mxu0 %v5047
    %5515 = vmatprep.subr.bf16.mxu0 %v5052
    %5516 = vmatpush1.bf16.msra.mxu0 %v5051
    %5517 = vmatprep.subr.bf16.mxu0 %v5056
    %5518 = vmatpush1.bf16.msra.mxu0 %v5055
    %5519 = vmatprep.subr.bf16.mxu0 %v5060
    %5520 = vmatpush1.bf16.msra.mxu0 %v5059
    %5521 = vmatprep.subr.bf16.mxu0 %v5064
    %5522 = vmatpush1.bf16.msra.mxu0 %v5063
    %5523 = vmatprep.subr.bf16.mxu0 %v5068
    %5524 = vmatpush1.bf16.msra.mxu0 %v5067
    %5525 = vmatprep.subr.bf16.mxu0 %v5072
    %5526 = vmatpush1.bf16.msra.mxu0 %v5071
    %5527 = vmatprep.subr.bf16.mxu0 %v5076
    %5528 = vmatpush1.bf16.msra.mxu0 %v5075
    %5529 = vmatprep.subr.bf16.mxu0 %v5080
    %5530 = vmatpush1.bf16.msra.mxu0 %v5079
    %5531 = vmatprep.subr.bf16.mxu0 %v5084
    %5532 = vmatpush1.bf16.msra.mxu0 %v5083
    %5533 = vmatprep.subr.bf16.mxu0 %v5088
    %5534 = vmatpush1.bf16.msra.mxu0 %v5087
    %5535 = vmatprep.subr.bf16.mxu0 %v5092
    %5536 = vmatpush1.bf16.msra.mxu0 %v5091
    %5537 = vmatprep.subr.bf16.mxu0 %v5096
    %5538 = vmatpush1.bf16.msra.mxu0 %v5095
    %5539 = vmatprep.subr.bf16.mxu0 %v5100
    %5540 = vmatpush1.bf16.msra.mxu0 %v5099
    %5541 = vmatprep.subr.bf16.mxu0 %v5104
    %5542 = vmatpush1.bf16.msra.mxu0 %v5103
    %5543 = vmatprep.subr.bf16.mxu0 %v5108
    %5544 = vmatpush1.bf16.msra.mxu0 %v5107
    %5545 = vmatprep.mubr.bf16.mxu0 %v3870
    %5546 = vmatmul.mubr.bf16.gmra.mrb[0].mxu0 %v3869
    %v5547 = vpop.f32.mrb[0].mxu0
    %v5548 = vadd.f32 %v5507, %v5547
    %v5549 = vpop.f32.mrb[0].mxu0
    %v5550 = vadd.f32 %v5509, %v5549
    %v5551 = vpop.f32.mrb[0].mxu0
    %v5552 = vpop.f32.mrb[0].mxu0
    %5553 = vdwg.mxu0
    %5554 = vmatprep.subr.bf16.mxu0 %v5112
    %5555 = vmatpush1.bf16.msra.mxu0 %v5111
    %5556 = vmatprep.subr.bf16.mxu0 %v5116
    %5557 = vmatpush1.bf16.msra.mxu0 %v5115
    %5558 = vmatprep.subr.bf16.mxu0 %v5120
    %5559 = vmatpush1.bf16.msra.mxu0 %v5119
    %5560 = vmatprep.subr.bf16.mxu0 %v5124
    %5561 = vmatpush1.bf16.msra.mxu0 %v5123
    %5562 = vmatprep.subr.bf16.mxu0 %v5128
    %5563 = vmatpush1.bf16.msra.mxu0 %v5127
    %5564 = vmatprep.subr.bf16.mxu0 %v5132
    %5565 = vmatpush1.bf16.msra.mxu0 %v5131
    %5566 = vmatprep.subr.bf16.mxu0 %v5136
    %5567 = vmatpush1.bf16.msra.mxu0 %v5135
    %5568 = vmatprep.subr.bf16.mxu0 %v5140
    %5569 = vmatpush1.bf16.msra.mxu0 %v5139
    %5570 = vmatprep.subr.bf16.mxu0 %v5144
    %5571 = vmatpush1.bf16.msra.mxu0 %v5143
    %5572 = vmatprep.subr.bf16.mxu0 %v5148
    %5573 = vmatpush1.bf16.msra.mxu0 %v5147
    %5574 = vmatprep.subr.bf16.mxu0 %v5152
    %5575 = vmatpush1.bf16.msra.mxu0 %v5151
    %5576 = vmatprep.subr.bf16.mxu0 %v5156
    %5577 = vmatpush1.bf16.msra.mxu0 %v5155
    %5578 = vmatprep.subr.bf16.mxu0 %v5160
    %5579 = vmatpush1.bf16.msra.mxu0 %v5159
    %5580 = vmatprep.subr.bf16.mxu0 %v5164
    %5581 = vmatpush1.bf16.msra.mxu0 %v5163
    %5582 = vmatprep.subr.bf16.mxu0 %v5168
    %5583 = vmatpush1.bf16.msra.mxu0 %v5167
    %5584 = vmatprep.subr.bf16.mxu0 %v5172
    %5585 = vmatpush1.bf16.msra.mxu0 %v5171
    %5586 = vmatprep.mubr.bf16.mxu0 %v3872
    %5587 = vmatmul.mubr.bf16.gmra.mrb[0].mxu0 %v3871
    %v5588 = vpop.f32.mrb[0].mxu0
    %v5589 = vadd.f32 %v5548, %v5588
    %v5590 = vpop.f32.mrb[0].mxu0
    %v5591 = vadd.f32 %v5550, %v5590
    %v5592 = vpop.f32.mrb[0].mxu0
    %v5593 = vpop.f32.mrb[0].mxu0
    %5594 = vdwg.mxu0
    %5595 = vmatprep.subr.bf16.mxu0 %v4922
    %5596 = vmatpush1.bf16.msra.mxu0 %v4921
    %5597 = vmatprep.subr.bf16.mxu0 %v4926
    %5598 = vmatpush1.bf16.msra.mxu0 %v4925
    %5599 = vmatprep.subr.bf16.mxu0 %v4930
    %5600 = vmatpush1.bf16.msra.mxu0 %v4929
    %5601 = vmatprep.subr.bf16.mxu0 %v4934
    %5602 = vmatpush1.bf16.msra.mxu0 %v4933
    %5603 = vmatprep.subr.bf16.mxu0 %v4938
    %5604 = vmatpush1.bf16.msra.mxu0 %v4937
    %5605 = vmatprep.subr.bf16.mxu0 %v4942
    %5606 = vmatpush1.bf16.msra.mxu0 %v4941
    %5607 = vmatprep.subr.bf16.mxu0 %v4946
    %5608 = vmatpush1.bf16.msra.mxu0 %v4945
    %5609 = vmatprep.subr.bf16.mxu0 %v4950
    %5610 = vmatpush1.bf16.msra.mxu0 %v4949
    %5611 = vmatprep.subr.bf16.mxu0 %v4954
    %5612 = vmatpush1.bf16.msra.mxu0 %v4953
    %5613 = vmatprep.subr.bf16.mxu0 %v4958
    %5614 = vmatpush1.bf16.msra.mxu0 %v4957
    %5615 = vmatprep.subr.bf16.mxu0 %v4962
    %5616 = vmatpush1.bf16.msra.mxu0 %v4961
    %5617 = vmatprep.subr.bf16.mxu0 %v4966
    %5618 = vmatpush1.bf16.msra.mxu0 %v4965
    %5619 = vmatprep.subr.bf16.mxu0 %v4970
    %5620 = vmatpush1.bf16.msra.mxu0 %v4969
    %5621 = vmatprep.subr.bf16.mxu0 %v4974
    %5622 = vmatpush1.bf16.msra.mxu0 %v4973
    %5623 = vmatprep.subr.bf16.mxu0 %v4978
    %5624 = vmatpush1.bf16.msra.mxu0 %v4977
    %5625 = vmatprep.subr.bf16.mxu0 %v4982
    %5626 = vmatpush1.bf16.msra.mxu0 %v4981
    %5627 = vmatprep.mubr.bf16.mxu0 %v3866
    %5628 = vmatmul.mubr.bf16.gmra.mrb[0].mxu0 %v3865
    %v5629 = vpop.f32.mrb[0].mxu0
    %v5630 = vadd.f32 %v4142, %v5629
    %v5631 = vpop.f32.mrb[0].mxu0
    %v5632 = vadd.f32 %v4146, %v5631
    %v5633 = vpop.f32.mrb[0].mxu0
    %v5634 = vpop.f32.mrb[0].mxu0
    %5635 = vdwg.mxu0
    %5636 = vmatprep.subr.bf16.mxu0 %v4986
    %5637 = vmatpush1.bf16.msra.mxu0 %v4985
    %5638 = vmatprep.subr.bf16.mxu0 %v4990
    %5639 = vmatpush1.bf16.msra.mxu0 %v4989
    %5640 = vmatprep.subr.bf16.mxu0 %v4994
    %5641 = vmatpush1.bf16.msra.mxu0 %v4993
    %5642 = vmatprep.subr.bf16.mxu0 %v4998
    %5643 = vmatpush1.bf16.msra.mxu0 %v4997
    %5644 = vmatprep.subr.bf16.mxu0 %v5002
    %5645 = vmatpush1.bf16.msra.mxu0 %v5001
    %5646 = vmatprep.subr.bf16.mxu0 %v5006
    %5647 = vmatpush1.bf16.msra.mxu0 %v5005
    %5648 = vmatprep.subr.bf16.mxu0 %v5010
    %5649 = vmatpush1.bf16.msra.mxu0 %v5009
    %5650 = vmatprep.subr.bf16.mxu0 %v5014
    %5651 = vmatpush1.bf16.msra.mxu0 %v5013
    %5652 = vmatprep.subr.bf16.mxu0 %v5018
    %5653 = vmatpush1.bf16.msra.mxu0 %v5017
    %5654 = vmatprep.subr.bf16.mxu0 %v5022
    %5655 = vmatpush1.bf16.msra.mxu0 %v5021
    %5656 = vmatprep.subr.bf16.mxu0 %v5026
    %5657 = vmatpush1.bf16.msra.mxu0 %v5025
    %5658 = vmatprep.subr.bf16.mxu0 %v5030
    %5659 = vmatpush1.bf16.msra.mxu0 %v5029
    %5660 = vmatprep.subr.bf16.mxu0 %v5034
    %5661 = vmatpush1.bf16.msra.mxu0 %v5033
    %5662 = vmatprep.subr.bf16.mxu0 %v5038
    %5663 = vmatpush1.bf16.msra.mxu0 %v5037
    %5664 = vmatprep.subr.bf16.mxu0 %v5042
    %5665 = vmatpush1.bf16.msra.mxu0 %v5041
    %5666 = vmatprep.subr.bf16.mxu0 %v5046
    %5667 = vmatpush1.bf16.msra.mxu0 %v5045
    %5668 = vmatprep.mubr.bf16.mxu0 %v3868
    %5669 = vmatmul.mubr.bf16.gmra.mrb[0].mxu0 %v3867
    %v5670 = vpop.f32.mrb[0].mxu0
    %v5671 = vadd.f32 %v5630, %v5670
    %v5672 = vpop.f32.mrb[0].mxu0
    %v5673 = vadd.f32 %v5632, %v5672
    %v5674 = vpop.f32.mrb[0].mxu0
    %v5675 = vpop.f32.mrb[0].mxu0
    %5676 = vdwg.mxu0
    %5677 = vmatprep.subr.bf16.mxu0 %v5050
    %5678 = vmatpush1.bf16.msra.mxu0 %v5049
    %5679 = vmatprep.subr.bf16.mxu0 %v5054
    %5680 = vmatpush1.bf16.msra.mxu0 %v5053
    %5681 = vmatprep.subr.bf16.mxu0 %v5058
    %5682 = vmatpush1.bf16.msra.mxu0 %v5057
    %5683 = vmatprep.subr.bf16.mxu0 %v5062
    %5684 = vmatpush1.bf16.msra.mxu0 %v5061
    %5685 = vmatprep.subr.bf16.mxu0 %v5066
    %5686 = vmatpush1.bf16.msra.mxu0 %v5065
    %5687 = vmatprep.subr.bf16.mxu0 %v5070
    %5688 = vmatpush1.bf16.msra.mxu0 %v5069
    %5689 = vmatprep.subr.bf16.mxu0 %v5074
    %5690 = vmatpush1.bf16.msra.mxu0 %v5073
    %5691 = vmatprep.subr.bf16.mxu0 %v5078
    %5692 = vmatpush1.bf16.msra.mxu0 %v5077
    %5693 = vmatprep.subr.bf16.mxu0 %v5082
    %5694 = vmatpush1.bf16.msra.mxu0 %v5081
    %5695 = vmatprep.subr.bf16.mxu0 %v5086
    %5696 = vmatpush1.bf16.msra.mxu0 %v5085
    %5697 = vmatprep.subr.bf16.mxu0 %v5090
    %5698 = vmatpush1.bf16.msra.mxu0 %v5089
    %5699 = vmatprep.subr.bf16.mxu0 %v5094
    %5700 = vmatpush1.bf16.msra.mxu0 %v5093
    %5701 = vmatprep.subr.bf16.mxu0 %v5098
    %5702 = vmatpush1.bf16.msra.mxu0 %v5097
    %5703 = vmatprep.subr.bf16.mxu0 %v5102
    %5704 = vmatpush1.bf16.msra.mxu0 %v5101
    %5705 = vmatprep.subr.bf16.mxu0 %v5106
    %5706 = vmatpush1.bf16.msra.mxu0 %v5105
    %5707 = vmatprep.subr.bf16.mxu0 %v5110
    %5708 = vmatpush1.bf16.msra.mxu0 %v5109
    %5709 = vmatprep.mubr.bf16.mxu0 %v3870
    %5710 = vmatmul.mubr.bf16.gmra.mrb[0].mxu0 %v3869
    %v5711 = vpop.f32.mrb[0].mxu0
    %v5712 = vadd.f32 %v5671, %v5711
    %v5713 = vpop.f32.mrb[0].mxu0
    %v5714 = vadd.f32 %v5673, %v5713
    %v5715 = vpop.f32.mrb[0].mxu0
    %v5716 = vpop.f32.mrb[0].mxu0
    %5717 = vdwg.mxu0
    %5718 = vmatprep.subr.bf16.mxu0 %v5114
    %5719 = vmatpush1.bf16.msra.mxu0 %v5113
    %5720 = vmatprep.subr.bf16.mxu0 %v5118
    %5721 = vmatpush1.bf16.msra.mxu0 %v5117
    %5722 = vmatprep.subr.bf16.mxu0 %v5122
    %5723 = vmatpush1.bf16.msra.mxu0 %v5121
    %5724 = vmatprep.subr.bf16.mxu0 %v5126
    %5725 = vmatpush1.bf16.msra.mxu0 %v5125
    %5726 = vmatprep.subr.bf16.mxu0 %v5130
    %5727 = vmatpush1.bf16.msra.mxu0 %v5129
    %5728 = vmatprep.subr.bf16.mxu0 %v5134
    %5729 = vmatpush1.bf16.msra.mxu0 %v5133
    %5730 = vmatprep.subr.bf16.mxu0 %v5138
    %5731 = vmatpush1.bf16.msra.mxu0 %v5137
    %5732 = vmatprep.subr.bf16.mxu0 %v5142
    %5733 = vmatpush1.bf16.msra.mxu0 %v5141
    %5734 = vmatprep.subr.bf16.mxu0 %v5146
    %5735 = vmatpush1.bf16.msra.mxu0 %v5145
    %5736 = vmatprep.subr.bf16.mxu0 %v5150
    %5737 = vmatpush1.bf16.msra.mxu0 %v5149
    %5738 = vmatprep.subr.bf16.mxu0 %v5154
    %5739 = vmatpush1.bf16.msra.mxu0 %v5153
    %5740 = vmatprep.subr.bf16.mxu0 %v5158
    %5741 = vmatpush1.bf16.msra.mxu0 %v5157
    %5742 = vmatprep.subr.bf16.mxu0 %v5162
    %5743 = vmatpush1.bf16.msra.mxu0 %v5161
    %5744 = vmatprep.subr.bf16.mxu0 %v5166
    %5745 = vmatpush1.bf16.msra.mxu0 %v5165
    %5746 = vmatprep.subr.bf16.mxu0 %v5170
    %5747 = vmatpush1.bf16.msra.mxu0 %v5169
    %5748 = vmatprep.subr.bf16.mxu0 %v5174
    %5749 = vmatpush1.bf16.msra.mxu0 %v5173
    %5750 = vmatprep.mubr.bf16.mxu0 %v3872
    %5751 = vmatmul.mubr.bf16.gmra.mrb[0].mxu0 %v3871
    %v5752 = vpop.f32.mrb[0].mxu0
    %v5753 = vadd.f32 %v5712, %v5752
    %v5754 = vpop.f32.mrb[0].mxu0
    %v5755 = vadd.f32 %v5714, %v5754
    %v5756 = vpop.f32.mrb[0].mxu0
    %v5757 = vpop.f32.mrb[0].mxu0
    %5758 = vdwg.mxu0
    %v5759 = vmax.f32 %v5589, 0.0
    %v5760 = vmax.f32 %v5591, 0.0
    %v5761 = vmax.f32 %v5753, 0.0
    %v5762 = vmax.f32 %v5755, 0.0
    %v5763 = vpack.c.bf16 %v5759, %v5759
    %v5764 = vpack.c.bf16 %v5760, %v5760
    %v5765 = vpack.c.bf16 %v5761, %v5761
    %v5766 = vpack.c.bf16 %v5762, %v5762
    %v5767 = vld [vmem:[%s5] sm:$0xf]
    %v5768 = vld [vmem:[%s5 + $0x4] sm:$0xf]
    %v5769 = vld [vmem:[%s5 + $0x8] sm:$0xf]
    %v5770 = vld [vmem:[%s5 + $0xc] sm:$0xf]
    %v5771 = vld [vmem:[%s5 + $0x10] sm:$0xf]
    %v5772 = vld [vmem:[%s5 + $0x14] sm:$0xf]
    %v5773 = vld [vmem:[%s5 + $0x18] sm:$0xf]
    %v5774 = vld [vmem:[%s5 + $0x1c] sm:$0xf]
    %v5775 = vld [vmem:[%s5 + $0x20] sm:$0xf]
    %v5776 = vld [vmem:[%s5 + $0x24] sm:$0xf]
    %v5777 = vld [vmem:[%s5 + $0x28] sm:$0xf]
    %v5778 = vld [vmem:[%s5 + $0x2c] sm:$0xf]
    %v5779 = vld [vmem:[%s5 + $0x30] sm:$0xf]
    %v5780 = vld [vmem:[%s5 + $0x34] sm:$0xf]
    %v5781 = vld [vmem:[%s5 + $0x38] sm:$0xf]
    %v5782 = vld [vmem:[%s5 + $0x3c] sm:$0xf]
    %v5783 = vld [vmem:[%s5 + $0x40] sm:$0xf]
    %v5784 = vld [vmem:[%s5 + $0x44] sm:$0xf]
    %v5785 = vld [vmem:[%s5 + $0x48] sm:$0xf]
    %v5786 = vld [vmem:[%s5 + $0x4c] sm:$0xf]
    %v5787 = vld [vmem:[%s5 + $0x50] sm:$0xf]
    %v5788 = vld [vmem:[%s5 + $0x54] sm:$0xf]
    %v5789 = vld [vmem:[%s5 + $0x58] sm:$0xf]
    %v5790 = vld [vmem:[%s5 + $0x5c] sm:$0xf]
    %v5791 = vld [vmem:[%s5 + $0x60] sm:$0xf]
    %v5792 = vld [vmem:[%s5 + $0x64] sm:$0xf]
    %v5793 = vld [vmem:[%s5 + $0x68] sm:$0xf]
    %v5794 = vld [vmem:[%s5 + $0x6c] sm:$0xf]
    %v5795 = vld [vmem:[%s5 + $0x70] sm:$0xf]
    %v5796 = vld [vmem:[%s5 + $0x74] sm:$0xf]
    %v5797 = vld [vmem:[%s5 + $0x78] sm:$0xf]
    %v5798 = vld [vmem:[%s5 + $0x7c] sm:$0xf]
    %v5799 = vld [vmem:[%s5 + $0x80] sm:$0xf]
    %v5800 = vld [vmem:[%s5 + $0x84] sm:$0xf]
    %v5801 = vld [vmem:[%s5 + $0x88] sm:$0xf]
    %v5802 = vld [vmem:[%s5 + $0x8c] sm:$0xf]
    %v5803 = vld [vmem:[%s5 + $0x90] sm:$0xf]
    %v5804 = vld [vmem:[%s5 + $0x94] sm:$0xf]
    %v5805 = vld [vmem:[%s5 + $0x98] sm:$0xf]
    %v5806 = vld [vmem:[%s5 + $0x9c] sm:$0xf]
    %v5807 = vld [vmem:[%s5 + $0xa0] sm:$0xf]
    %v5808 = vld [vmem:[%s5 + $0xa4] sm:$0xf]
    %v5809 = vld [vmem:[%s5 + $0xa8] sm:$0xf]
    %v5810 = vld [vmem:[%s5 + $0xac] sm:$0xf]
    %v5811 = vld [vmem:[%s5 + $0xb0] sm:$0xf]
    %v5812 = vld [vmem:[%s5 + $0xb4] sm:$0xf]
    %v5813 = vld [vmem:[%s5 + $0xb8] sm:$0xf]
    %v5814 = vld [vmem:[%s5 + $0xbc] sm:$0xf]
    %v5815 = vld [vmem:[%s5 + $0xc0] sm:$0xf]
    %v5816 = vld [vmem:[%s5 + $0xc4] sm:$0xf]
    %v5817 = vld [vmem:[%s5 + $0xc8] sm:$0xf]
    %v5818 = vld [vmem:[%s5 + $0xcc] sm:$0xf]
    %v5819 = vld [vmem:[%s5 + $0xd0] sm:$0xf]
    %v5820 = vld [vmem:[%s5 + $0xd4] sm:$0xf]
    %v5821 = vld [vmem:[%s5 + $0xd8] sm:$0xf]
    %v5822 = vld [vmem:[%s5 + $0xdc] sm:$0xf]
    %v5823 = vld [vmem:[%s5 + $0xe0] sm:$0xf]
    %v5824 = vld [vmem:[%s5 + $0xe4] sm:$0xf]
    %v5825 = vld [vmem:[%s5 + $0xe8] sm:$0xf]
    %v5826 = vld [vmem:[%s5 + $0xec] sm:$0xf]
    %v5827 = vld [vmem:[%s5 + $0xf0] sm:$0xf]
    %v5828 = vld [vmem:[%s5 + $0xf4] sm:$0xf]
    %v5829 = vld [vmem:[%s5 + $0xf8] sm:$0xf]
    %v5830 = vld [vmem:[%s5 + $0xfc] sm:$0xf]
    %v5831 = vld [vmem:[%s6] sm:$0x1]
    %v5833 = vlaneseq
    %v5834 = vshrl.u32 %v5833, 7
    %v5835 = vsub.s32 0, %v5834
    %v5836 = vrot.slane %v5831, %v5835
    %v5902 = vunpack.c.l.b16 %v5767
    %v5903 = vunpack.c.l.b16 %v5768
    %v5904 = vunpack.c.l.b16 %v5769
    %v5905 = vunpack.c.l.b16 %v5770
    %v5906 = vunpack.c.l.b16 %v5771
    %v5907 = vunpack.c.l.b16 %v5772
    %v5908 = vunpack.c.l.b16 %v5773
    %v5909 = vunpack.c.l.b16 %v5774
    %v5910 = vunpack.c.l.b16 %v5775
    %v5911 = vunpack.c.l.b16 %v5776
    %v5912 = vunpack.c.l.b16 %v5777
    %v5913 = vunpack.c.l.b16 %v5778
    %v5914 = vunpack.c.l.b16 %v5779
    %v5915 = vunpack.c.l.b16 %v5780
    %v5916 = vunpack.c.l.b16 %v5781
    %v5917 = vunpack.c.l.b16 %v5782
    %v5918 = vunpack.c.l.b16 %v5783
    %v5919 = vunpack.c.l.b16 %v5784
    %v5920 = vunpack.c.l.b16 %v5785
    %v5921 = vunpack.c.l.b16 %v5786
    %v5922 = vunpack.c.l.b16 %v5787
    %v5923 = vunpack.c.l.b16 %v5788
    %v5924 = vunpack.c.l.b16 %v5789
    %v5925 = vunpack.c.l.b16 %v5790
    %v5926 = vunpack.c.l.b16 %v5791
    %v5927 = vunpack.c.l.b16 %v5792
    %v5928 = vunpack.c.l.b16 %v5793
    %v5929 = vunpack.c.l.b16 %v5794
    %v5930 = vunpack.c.l.b16 %v5795
    %v5931 = vunpack.c.l.b16 %v5796
    %v5932 = vunpack.c.l.b16 %v5797
    %v5933 = vunpack.c.l.b16 %v5798
    %v5934 = vunpack.c.l.b16 %v5799
    %v5935 = vunpack.c.l.b16 %v5800
    %v5936 = vunpack.c.l.b16 %v5801
    %v5937 = vunpack.c.l.b16 %v5802
    %v5938 = vunpack.c.l.b16 %v5803
    %v5939 = vunpack.c.l.b16 %v5804
    %v5940 = vunpack.c.l.b16 %v5805
    %v5941 = vunpack.c.l.b16 %v5806
    %v5942 = vunpack.c.l.b16 %v5807
    %v5943 = vunpack.c.l.b16 %v5808
    %v5944 = vunpack.c.l.b16 %v5809
    %v5945 = vunpack.c.l.b16 %v5810
    %v5946 = vunpack.c.l.b16 %v5811
    %v5947 = vunpack.c.l.b16 %v5812
    %v5948 = vunpack.c.l.b16 %v5813
    %v5949 = vunpack.c.l.b16 %v5814
    %v5950 = vunpack.c.l.b16 %v5815
    %v5951 = vunpack.c.l.b16 %v5816
    %v5952 = vunpack.c.l.b16 %v5817
    %v5953 = vunpack.c.l.b16 %v5818
    %v5954 = vunpack.c.l.b16 %v5819
    %v5955 = vunpack.c.l.b16 %v5820
    %v5956 = vunpack.c.l.b16 %v5821
    %v5957 = vunpack.c.l.b16 %v5822
    %v5958 = vunpack.c.l.b16 %v5823
    %v5959 = vunpack.c.l.b16 %v5824
    %v5960 = vunpack.c.l.b16 %v5825
    %v5961 = vunpack.c.l.b16 %v5826
    %v5962 = vunpack.c.l.b16 %v5827
    %v5963 = vunpack.c.l.b16 %v5828
    %v5964 = vunpack.c.l.b16 %v5829
    %v5965 = vunpack.c.l.b16 %v5830
    %v5966 = vpack.c.b16 %v5903, %v5902
    %v5967 = vpack.c.b16 %v5905, %v5904
    %v5968 = vpack.c.b16 %v5907, %v5906
    %v5969 = vpack.c.b16 %v5909, %v5908
    %v5970 = vpack.c.b16 %v5911, %v5910
    %v5971 = vpack.c.b16 %v5913, %v5912
    %v5972 = vpack.c.b16 %v5915, %v5914
    %v5973 = vpack.c.b16 %v5917, %v5916
    %v5974 = vpack.c.b16 %v5919, %v5918
    %v5975 = vpack.c.b16 %v5921, %v5920
    %v5976 = vpack.c.b16 %v5923, %v5922
    %v5977 = vpack.c.b16 %v5925, %v5924
    %v5978 = vpack.c.b16 %v5927, %v5926
    %v5979 = vpack.c.b16 %v5929, %v5928
    %v5980 = vpack.c.b16 %v5931, %v5930
    %v5981 = vpack.c.b16 %v5933, %v5932
    %v5982 = vpack.c.b16 %v5935, %v5934
    %v5983 = vpack.c.b16 %v5937, %v5936
    %v5984 = vpack.c.b16 %v5939, %v5938
    %v5985 = vpack.c.b16 %v5941, %v5940
    %v5986 = vpack.c.b16 %v5943, %v5942
    %v5987 = vpack.c.b16 %v5945, %v5944
    %v5988 = vpack.c.b16 %v5947, %v5946
    %v5989 = vpack.c.b16 %v5949, %v5948
    %v5990 = vpack.c.b16 %v5951, %v5950
    %v5991 = vpack.c.b16 %v5953, %v5952
    %v5992 = vpack.c.b16 %v5955, %v5954
    %v5993 = vpack.c.b16 %v5957, %v5956
    %v5994 = vpack.c.b16 %v5959, %v5958
    %v5995 = vpack.c.b16 %v5961, %v5960
    %v5996 = vpack.c.b16 %v5963, %v5962
    %v5997 = vpack.c.b16 %v5965, %v5964
    %6030 = vmatprep.subr.bf16.mxu0 0
    %6031 = vmatpush1.bf16.msra.mxu0 %v5966
    %6032 = vmatprep.subr.bf16.mxu0 0
    %6033 = vmatpush1.bf16.msra.mxu0 %v5967
    %6034 = vmatprep.subr.bf16.mxu0 0
    %6035 = vmatpush1.bf16.msra.mxu0 %v5968
    %6036 = vmatprep.subr.bf16.mxu0 0
    %6037 = vmatpush1.bf16.msra.mxu0 %v5969
    %6038 = vmatprep.subr.bf16.mxu0 0
    %6039 = vmatpush1.bf16.msra.mxu0 %v5970
    %6040 = vmatprep.subr.bf16.mxu0 0
    %6041 = vmatpush1.bf16.msra.mxu0 %v5971
    %6042 = vmatprep.subr.bf16.mxu0 0
    %6043 = vmatpush1.bf16.msra.mxu0 %v5972
    %6044 = vmatprep.subr.bf16.mxu0 0
    %6045 = vmatpush1.bf16.msra.mxu0 %v5973
    %6046 = vmatprep.subr.bf16.mxu0 0
    %6047 = vmatpush1.bf16.msra.mxu0 %v5974
    %6048 = vmatprep.subr.bf16.mxu0 0
    %6049 = vmatpush1.bf16.msra.mxu0 %v5975
    %6050 = vmatprep.subr.bf16.mxu0 0
    %6051 = vmatpush1.bf16.msra.mxu0 %v5976
    %6052 = vmatprep.subr.bf16.mxu0 0
    %6053 = vmatpush1.bf16.msra.mxu0 %v5977
    %6054 = vmatprep.subr.bf16.mxu0 0
    %6055 = vmatpush1.bf16.msra.mxu0 %v5978
    %6056 = vmatprep.subr.bf16.mxu0 0
    %6057 = vmatpush1.bf16.msra.mxu0 %v5979
    %6058 = vmatprep.subr.bf16.mxu0 0
    %6059 = vmatpush1.bf16.msra.mxu0 %v5980
    %6060 = vmatprep.subr.bf16.mxu0 0
    %6061 = vmatpush1.bf16.msra.mxu0 %v5981
    %6062 = vmatprep.mubr.bf16.mxu0 %v5764
    %6063 = vmatmul.mubr.bf16.gmra.mrb[0].mxu0 %v5763
    %v6064 = vpop.f32.mrb[0].mxu0
    %v6065 = vadd.f32 %v5836, %v6064
    %v6066 = vpop.f32.mrb[0].mxu0
    %v6067 = vpop.f32.mrb[0].mxu0
    %v6068 = vpop.f32.mrb[0].mxu0
    %6069 = vdwg.mxu0
    %6070 = vmatprep.subr.bf16.mxu0 0
    %6071 = vmatpush1.bf16.msra.mxu0 %v5982
    %6072 = vmatprep.subr.bf16.mxu0 0
    %6073 = vmatpush1.bf16.msra.mxu0 %v5983
    %6074 = vmatprep.subr.bf16.mxu0 0
    %6075 = vmatpush1.bf16.msra.mxu0 %v5984
    %6076 = vmatprep.subr.bf16.mxu0 0
    %6077 = vmatpush1.bf16.msra.mxu0 %v5985
    %6078 = vmatprep.subr.bf16.mxu0 0
    %6079 = vmatpush1.bf16.msra.mxu0 %v5986
    %6080 = vmatprep.subr.bf16.mxu0 0
    %6081 = vmatpush1.bf16.msra.mxu0 %v5987
    %6082 = vmatprep.subr.bf16.mxu0 0
    %6083 = vmatpush1.bf16.msra.mxu0 %v5988
    %6084 = vmatprep.subr.bf16.mxu0 0
    %6085 = vmatpush1.bf16.msra.mxu0 %v5989
    %6086 = vmatprep.subr.bf16.mxu0 0
    %6087 = vmatpush1.bf16.msra.mxu0 %v5990
    %6088 = vmatprep.subr.bf16.mxu0 0
    %6089 = vmatpush1.bf16.msra.mxu0 %v5991
    %6090 = vmatprep.subr.bf16.mxu0 0
    %6091 = vmatpush1.bf16.msra.mxu0 %v5992
    %6092 = vmatprep.subr.bf16.mxu0 0
    %6093 = vmatpush1.bf16.msra.mxu0 %v5993
    %6094 = vmatprep.subr.bf16.mxu0 0
    %6095 = vmatpush1.bf16.msra.mxu0 %v5994
    %6096 = vmatprep.subr.bf16.mxu0 0
    %6097 = vmatpush1.bf16.msra.mxu0 %v5995
    %6098 = vmatprep.subr.bf16.mxu0 0
    %6099 = vmatpush1.bf16.msra.mxu0 %v5996
    %6100 = vmatprep.subr.bf16.mxu0 0
    %6101 = vmatpush1.bf16.msra.mxu0 %v5997
    %6102 = vmatprep.mubr.bf16.mxu0 %v5766
    %6103 = vmatmul.mubr.bf16.gmra.mrb[0].mxu0 %v5765
    %v6104 = vpop.f32.mrb[0].mxu0
    %v6105 = vadd.f32 %v6065, %v6104
    %v6106 = vpop.f32.mrb[0].mxu0
    %v6107 = vpop.f32.mrb[0].mxu0
    %v6108 = vpop.f32.mrb[0].mxu0
    %6109 = vdwg.mxu0
    %vm6110 = vcmask 74752
    %6111 = vst.msk [vmem:[#allocation2] sm:$0x3] %vm6110, %v6105
    // Predicated region
    $region30: #{model_forward.7} parent=1 // pred_check
      _
    $region31: #{model_forward.7} parent=1 // pred_check_branch
      %6113 = sbr.rel (0) target = $region33
    $region32: #{model_forward.7} parent=1 // pred_region
      %s6115 = ssub.s32 32, 32
      %6116 = vsyncadd [#allocation3], %s6115
      %s6118 = sshll.u32 [#allocation2], 4
      %s6119 = int_to_ptr.vmem [resolvable:$true] %s6118
      %6121 = dma.vmem_to_hbm [thread:$0]  %s6119, 32, %s7, [#allocation3]
    $region33: #{model_forward.7} parent=1 // pred_fallthru
      _
    // Predicated region
    $region34: #{model_forward.7} parent=1 // pred_check
      _
    $region35: #{model_forward.7} parent=1 // pred_check_branch
      %6123 = sbr.rel (0) target = $region37
    $region36: #{model_forward.7} parent=1 // pred_region
      %6124 = dma.done [#allocation3], 32
    $region37: #{model_forward.7} parent=1 // pred_fallthru
      _
    %6125 = vsyncpa [#allocation3], 1

</llo_original>
